<compile_context>
chip_gen: v7x
topology: tpu7x:2x2x1
jax: 0.10.0
libtpu: 0.0.40
codegen_flags: <defaults>
</compile_context>

<pallas_src>
import functools

import jax
import jax.numpy as jnp
from jax import lax
from jax.experimental import pallas as pl
from jax.experimental.pallas import tpu as pltpu


# ----------------------------------------------------------------------------
# Small helpers
# ----------------------------------------------------------------------------
def _round_up(x, m):
    return (x + m - 1) // m * m


def _pick_tile(dim, preferred, granule):
    return preferred if dim >= preferred else _round_up(dim, granule)


# ----------------------------------------------------------------------------
# Grouped, tiled, fused GEMM (+bias, +ReLU) kernel
# ----------------------------------------------------------------------------
def _gemm_kernel(x_ref, w_ref, b_ref, o_ref, acc_ref, *, relu):
    """One (tm, tn) output tile; grid axis 3 (K) accumulated in f32 VMEM."""
    @pl.when(pl.program_id(3) == 0)
    def _init():
        acc_ref[...] = jnp.zeros_like(acc_ref)

    acc_ref[...] += jnp.dot(x_ref[...], w_ref[...],
                            preferred_element_type=jnp.float32)

    @pl.when(pl.program_id(3) == pl.num_programs(3) - 1)
    def _finalize():
        out = acc_ref[...] + b_ref[...]
        if relu:
            out = jnp.maximum(out, 0.0)
        o_ref[...] = out.astype(o_ref.dtype)


def grouped_matmul_bias(x, w, b, *, relu=False, keep_padded_n=False,
                        tm_pref=256, tn_pref=256, tk_pref=512):
    """Batched-over-groups fused GEMM: out[g] = act(x[g] @ w[g] + b[g]).

    x: (G, M, K), w: (G, K, N), b: (G, N) -> (G, M, N or N_pad) float32.
    Operands are fed to the MXU in bf16; accumulation / epilogue are f32.
    Dimensions are zero-padded to tile multiples (K-pad is exact for matmul;
    extra M rows / N cols are sliced away or kept-as-zero on request).
    """
    G, M, K = x.shape
    _, _, N = w.shape
    tm = _pick_tile(M, tm_pref, 16)    # sublane granule (bf16 packing)
    tk = _pick_tile(K, tk_pref, 128)   # lane granule
    tn = _pick_tile(N, tn_pref, 128)   # lane granule (lane-dense stores)
    Mp, Kp, Np = _round_up(M, tm), _round_up(K, tk), _round_up(N, tn)

    xp = jnp.zeros((G, Mp, Kp), jnp.bfloat16).at[:, :M, :K].set(
        x.astype(jnp.bfloat16))
    wp = jnp.zeros((G, Kp, Np), jnp.bfloat16).at[:, :K, :N].set(
        w.astype(jnp.bfloat16))
    bp = jnp.zeros((G, 1, Np), jnp.float32).at[:, 0, :N].set(
        b.astype(jnp.float32))

    grid = (G, Mp // tm, Np // tn, Kp // tk)
    flops = 2 * G * Mp * Np * Kp
    bytes_accessed = xp.size * 2 + wp.size * 2 + bp.size * 4 + G * Mp * Np * 4

    out = pl.pallas_call(
        functools.partial(_gemm_kernel, relu=relu),
        out_shape=jax.ShapeDtypeStruct((G, Mp, Np), jnp.float32),
        grid_spec=pltpu.PrefetchScalarGridSpec(
            num_scalar_prefetch=0,
            grid=grid,
            in_specs=[
                pl.BlockSpec((None, tm, tk), lambda g, i, j, k: (g, i, k)),
                pl.BlockSpec((None, tk, tn), lambda g, i, j, k: (g, k, j)),
                pl.BlockSpec((None, 1, tn), lambda g, i, j, k: (g, 0, j)),
            ],
            out_specs=pl.BlockSpec((None, tm, tn), lambda g, i, j, k: (g, i, j)),
            scratch_shapes=[pltpu.VMEM((tm, tn), jnp.float32)],
        ),
        compiler_params=pltpu.CompilerParams(
            dimension_semantics=("parallel", "parallel", "parallel", "arbitrary"),
            vmem_limit_bytes=64 * 1024 * 1024,
        ),
        cost_estimate=pl.CostEstimate(flops=flops, transcendentals=0,
                                      bytes_accessed=bytes_accessed),
    )(xp, wp, bp)

    n_out = Np if keep_padded_n else N
    return out[:, :M, :n_out]


# ----------------------------------------------------------------------------
# Separable 5x5 / stride-1 max-pool kernel (NHWC, one image per grid step)
# ----------------------------------------------------------------------------
def _maxpool5_kernel(x_ref, o_ref):
    x = x_ref[...]                       # (H, W, C)
    H, W, C = x.shape
    OH, OW = H - 4, W - 4
    r = x[:, 0:OW, :]
    for dj in range(1, 5):               # row pass (W axis): 4 maximums
        r = jnp.maximum(r, x[:, dj:dj + OW, :])
    o = r[0:OH, :, :]
    for di in range(1, 5):               # column pass (H axis): 4 maximums
        o = jnp.maximum(o, r[di:di + OH, :, :])
    o_ref[...] = o


def pallas_maxpool5(x):
    """x: (N, H, W, C) float32 -> (N, H-4, W-4, C)."""
    N, H, W, C = x.shape
    OH, OW = H - 4, W - 4
    return pl.pallas_call(
        _maxpool5_kernel,
        grid=(N,),
        out_shape=jax.ShapeDtypeStruct((N, OH, OW, C), jnp.float32),
        in_specs=[pl.BlockSpec((None, H, W, C), lambda n: (n, 0, 0, 0))],
        out_specs=pl.BlockSpec((None, OH, OW, C), lambda n: (n, 0, 0, 0)),
        compiler_params=pltpu.CompilerParams(
            dimension_semantics=("parallel",)),
    )(x.astype(jnp.float32))


# ----------------------------------------------------------------------------
# Fused fc4 (MXU) + fc5 (VPU row-reduction) head kernel
# ----------------------------------------------------------------------------
def _head_kernel(x_ref, w4_ref, b4_ref, w5t_ref, b5_ref, o_ref):
    h = jnp.dot(x_ref[...], w4_ref[...], preferred_element_type=jnp.float32)
    h = h + b4_ref[...]                                      # (B, 1024), no act
    pred = jnp.sum(h * w5t_ref[...], axis=1, keepdims=True) + b5_ref[...]
    o_ref[...] = pred


def pallas_head(x, w4, b4, w5, b5):
    """x: (B, 2048) -> (B, 1). fc4 and fc5 fused into a single kernel."""
    B, K = x.shape
    N = w4.shape[1]
    return pl.pallas_call(
        _head_kernel,
        grid=(1,),
        out_shape=jax.ShapeDtypeStruct((B, 1), jnp.float32),
        in_specs=[
            pl.BlockSpec((B, K), lambda i: (0, 0)),
            pl.BlockSpec((K, N), lambda i: (0, 0)),
            pl.BlockSpec((1, N), lambda i: (0, 0)),
            pl.BlockSpec((1, N), lambda i: (0, 0)),
            pl.BlockSpec((1, 1), lambda i: (0, 0)),
        ],
        out_specs=pl.BlockSpec((B, 1), lambda i: (0, 0)),
        compiler_params=pltpu.CompilerParams(
            dimension_semantics=("arbitrary",)),
        cost_estimate=pl.CostEstimate(
            flops=2 * B * K * N + 2 * B * N, transcendentals=0,
            bytes_accessed=B * K * 2 + K * N * 2 + 2 * N * 4 + B * 4 + 4),
    )(x.astype(jnp.bfloat16), w4.astype(jnp.bfloat16),
      b4.reshape(1, N).astype(jnp.float32),
      w5.reshape(1, N).astype(jnp.float32),
      b5.reshape(1, 1).astype(jnp.float32))


# ----------------------------------------------------------------------------
# Plain-JAX glue: NHWC im2col and weight re-ordering
# ----------------------------------------------------------------------------
def im2col_nhwc(x, kh, kw, stride):
    """x: (N, H, W, C) -> cols (N*OH*OW, kh*kw*C); K ordering (i, j, c), c fastest."""
    N, H, W, C = x.shape
    OH = (H - kh) // stride + 1
    OW = (W - kw) // stride + 1
    taps = []
    for i in range(kh):
        for j in range(kw):
            taps.append(x[:, i:i + stride * OH:stride, j:j + stride * OW:stride, :])
    cols = jnp.stack(taps, axis=3)                 # (N, OH, OW, kh*kw, C)
    return cols.reshape(N * OH * OW, kh * kw * C), OH, OW


def conv2d_grouped(x, w, b, *, stride, relu, groups, keep_padded_n=False):
    """Grouped (over branches) conv via im2col + the fused Pallas GEMM.

    x: (G*B, H, W, IC) NHWC, w: (G, OC, IC, kh, kw) torch layout, b: (G, OC)
    -> (G*B, OH, OW, OC or OC_pad) float32.
    """
    GB, H, W, IC = x.shape
    G = groups
    B = GB // G
    _, OC, _, kh, kw = w.shape
    # Cast the activation to bf16 once, BEFORE im2col, so the materialized
    # patch matrix is half the HBM traffic.
    # TODO(synk): fold the kh*kw im2col into the GEMM K axis (implicit conv)
    # so the patch expansion is never materialized in HBM at all.
    cols, OH, OW = im2col_nhwc(x.astype(jnp.bfloat16), kh, kw, stride)
    cols = cols.reshape(G, B * OH * OW, kh * kw * IC)
    # Re-order the (small) weight to the im2col K order (i, j, c) instead of
    # transposing the (large) activation.
    wmat = w.transpose(0, 3, 4, 2, 1).reshape(G, kh * kw * IC, OC)
    out = grouped_matmul_bias(cols, wmat, b, relu=relu,
                              keep_padded_n=keep_padded_n)
    return out.reshape(GB, OH, OW, out.shape[-1]), OH, OW


def _permute_fc3_rows(w3, C, H, W):
    """Re-order fc3 rows from torch's NCHW flatten order (c, h, w) to our NHWC
    flatten order (h, w, c), so the activation never gets transposed."""
    n_out = w3.shape[1]
    return w3.reshape(C, H, W, n_out).transpose(1, 2, 0, 3).reshape(C * H * W, n_out)


# ----------------------------------------------------------------------------
# Model
# ----------------------------------------------------------------------------
def init_params(key, flat_dim):
    ks = jax.random.split(key, 6)
    s = 0.05

    def n(k, shape):
        return jax.random.normal(k, shape, jnp.float32) * s

    def branch(k):
        kk = jax.random.split(k, 6)
        return dict(
            w1=n(kk[0], (64, 3, 7, 7)),    b1=n(kk[1], (64,)),
            w2=n(kk[2], (32, 64, 9, 9)),   b2=n(kk[3], (32,)),
            w3=n(kk[4], (flat_dim, 1024)), b3=n(kk[5], (1024,)),
        )

    return dict(
        lq=branch(ks[0]),
        ref=branch(ks[1]),
        w4=n(ks[2], (2048, 1024)), b4=n(ks[3], (1024,)),
        w5=n(ks[4], (1024, 1)),    b5=n(ks[5], (1,)),
    )


def dcnn_nariqa_forward(params, lq_patches, ref_patches):
    B, _, H, W = lq_patches.shape
    G = 2
    # NCHW -> NHWC once (C=3 is tiny); stack the two branches on a group axis.
    x = jnp.stack([lq_patches, ref_patches], axis=0)            # (2, B, 3, H, W)
    x = x.transpose(0, 1, 3, 4, 2).reshape(G * B, H, W, 3)      # (2B, H, W, 3)

    w1 = jnp.stack([params['lq']['w1'], params['ref']['w1']])
    b1 = jnp.stack([params['lq']['b1'], params['ref']['b1']])
    w2 = jnp.stack([params['lq']['w2'], params['ref']['w2']])
    b2 = jnp.stack([params['lq']['b2'], params['ref']['b2']])

    # block1: conv 7x7 / stride 4 + ReLU.  Keep the GEMM's padded 128 output
    # channels (the extra channels are exactly 0) so the pool stores lane-dense.
    y, H1, W1 = conv2d_grouped(x, w1, b1, stride=4, relu=True,
                               groups=G, keep_padded_n=True)    # (2B, H1, W1, 128)
    y = pallas_maxpool5(y)                                      # (2B, H1-4, W1-4, 128)

    # block2: conv 9x9 / stride 1 + ReLU on the 64 real channels.
    y = y[..., :64]
    y, H2, W2 = conv2d_grouped(y, w2, b2, stride=1, relu=True,
                               groups=G)                        # (2B, H2, W2, 32)

    # fc3: our layout flattens (h, w, c); permute fc3 rows once to match
    # torch's NCHW (c, h, w) flatten order instead of transposing the activation.
    feat = y.reshape(G, B, H2 * W2 * 32)
    w3 = jnp.stack([_permute_fc3_rows(params['lq']['w3'], 32, H2, W2),
                    _permute_fc3_rows(params['ref']['w3'], 32, H2, W2)])
    b3 = jnp.stack([params['lq']['b3'], params['ref']['b3']])
    feat = grouped_matmul_bias(feat, w3, b3, relu=False)        # (2, B, 1024)

    # torch: cat((feature_ref, feature_lq), dim=1) -> fc4 -> fc5 (fused kernel)
    concat = jnp.concatenate([feat[1], feat[0]], axis=1)        # (B, 2048)
    return pallas_head(concat, params['w4'], params['b4'],
                       params['w5'], params['b5'])              # (B, 1)


# ----------------------------------------------------------------------------
# Pure-JAX reference (mirrors the bf16-operand / f32-accumulate numerics)
# ----------------------------------------------------------------------------
def ref_forward(params, lq, ref):
    def branch(p, x):
        dn = ('NCHW', 'OIHW', 'NCHW')
        y = lax.conv_general_dilated(
            x.astype(jnp.bfloat16), p['w1'].astype(jnp.bfloat16), (4, 4), 'VALID',
            dimension_numbers=dn, preferred_element_type=jnp.float32)
        y = jnp.maximum(y + p['b1'][None, :, None, None], 0.0)
        y = lax.reduce_window(y, -jnp.inf, lax.max, (1, 1, 5, 5), (1, 1, 1, 1), 'VALID')
        y = lax.conv_general_dilated(
            y.astype(jnp.bfloat16), p['w2'].astype(jnp.bfloat16), (1, 1), 'VALID',
            dimension_numbers=dn, preferred_element_type=jnp.float32)
        y = jnp.maximum(y + p['b2'][None, :, None, None], 0.0)
        y = y.reshape(y.shape[0], -1)
        return jnp.dot(y.astype(jnp.bfloat16), p['w3'].astype(jnp.bfloat16),
                       preferred_element_type=jnp.float32) + p['b3']

    flq = branch(params['lq'], lq)
    fref = branch(params['ref'], ref)
    c = jnp.concatenate([fref, flq], axis=1)
    c = jnp.dot(c.astype(jnp.bfloat16), params['w4'].astype(jnp.bfloat16),
                preferred_element_type=jnp.float32) + params['b4']
    return c @ params['w5'] + params['b5']


# ----------------------------------------------------------------------------
if __name__ == "__main__":
    B, H, W = 2, 55, 55   # 55 -> conv7/s4 -> 13 -> pool5/s1 -> 9 -> conv9/s1 -> 1
    H1 = (H - 7) // 4 + 1
    H2 = (H1 - 4) - 8
    flat_dim = 32 * H2 * H2   # 32 here (59168 for the nominal 224x224 inputs)

    key = jax.random.PRNGKey(0)
    k_lq, k_ref, k_par = jax.random.split(key, 3)
    lq_patches = jax.random.normal(k_lq, (B, 3, H, W), jnp.float32)
    ref_patches = jax.random.normal(k_ref, (B, 3, H, W), jnp.float32)
    params = init_params(k_par, flat_dim)

    fwd = jax.jit(dcnn_nariqa_forward)
    pred = jax.block_until_ready(fwd(params, lq_patches, ref_patches))
    assert pred.shape == (B, 1), pred.shape

    expected = jax.block_until_ready(ref_forward(params, lq_patches, ref_patches))
    assert jnp.allclose(pred, expected, rtol=2e-2, atol=2e-2), (pred, expected)

    print("KERNEL_OK")
</pallas_src>

<mosaic_0001>
module attributes {stable_mosaic.version = 11 : i64} {
  func.func @_gemm_kernel(%arg0: i32, %arg1: i32, %arg2: i32, %arg3: i32, %arg4: memref<1x256x256xbf16, #tpu.memory_space<vmem>>, %arg5: memref<1x256x128xbf16, #tpu.memory_space<vmem>>, %arg6: memref<1x1x128xf32, #tpu.memory_space<vmem>>, %arg7: memref<1x256x128xf32, #tpu.memory_space<vmem>>, %arg8: memref<256x128xf32, #tpu.memory_space<vmem>>) attributes {dimension_semantics = [#tpu.dimension_semantics<parallel>, #tpu.dimension_semantics<parallel>, #tpu.dimension_semantics<parallel>, #tpu.dimension_semantics<arbitrary>], iteration_bounds = array<i64: 2, 2, 1, 1>, scalar_prefetch = 0 : i64, scratch_operands = 1 : i64, tpu.core_type = #tpu.core_type<tc>, window_params = [{transform_indices = @transform_0, window_bounds = array<i64: 1, 256, 256>}, {transform_indices = @transform_1, window_bounds = array<i64: 1, 256, 128>}, {transform_indices = @transform_2, window_bounds = array<i64: 1, 1, 128>}, {transform_indices = @transform_3, window_bounds = array<i64: 1, 256, 128>}]} {
    %c0_i32 = arith.constant 0 : i32
    %0 = arith.cmpi eq, %arg3, %c0_i32 : i32
    %1 = arith.extui %0 : i1 to i32
    %c0_i32_0 = arith.constant 0 : i32
    %2 = arith.cmpi ne, %1, %c0_i32_0 : i32
    scf.if %2 {
      %cst_12 = arith.constant 0.000000e+00 : f32
      %14 = vector.broadcast %cst_12 : f32 to vector<256x128xf32>
      %c0_13 = arith.constant 0 : index
      %c0_14 = arith.constant 0 : index
      %15 = vector.load %arg8[%c0_13, %c0_14] : memref<256x128xf32, #tpu.memory_space<vmem>>, vector<256x128xf32>
      tpu.vector_store %arg8[%c0_13, %c0_14], %14 {strides = array<i32>} : memref<256x128xf32, #tpu.memory_space<vmem>>, vector<256x128xf32>,
    } else {
    }
    %c0 = arith.constant 0 : index
    %c0_1 = arith.constant 0 : index
    %3 = vector.load %arg8[%c0, %c0_1] : memref<256x128xf32, #tpu.memory_space<vmem>>, vector<256x128xf32>
    %c0_2 = arith.constant 0 : index
    %c0_3 = arith.constant 0 : index
    %c0_4 = arith.constant 0 : index
    %4 = vector.load %arg4[%c0_2, %c0_3, %c0_4] : memref<1x256x256xbf16, #tpu.memory_space<vmem>>, vector<1x256x256xbf16>
    %5 = vector.shape_cast %4 : vector<1x256x256xbf16> to vector<256x256xbf16>
    %c0_5 = arith.constant 0 : index
    %c0_6 = arith.constant 0 : index
    %c0_7 = arith.constant 0 : index
    %6 = vector.load %arg5[%c0_5, %c0_6, %c0_7] : memref<1x256x128xbf16, #tpu.memory_space<vmem>>, vector<1x256x128xbf16>
    %7 = vector.shape_cast %6 : vector<1x256x128xbf16> to vector<256x128xbf16>
    %cst = arith.constant dense<0.000000e+00> : vector<256x128xf32>
    %8 = tpu.matmul %5, %7, %cst {dimension_numbers = #tpu.dot_dimension_numbers<[1], [0], [0], [1], [0, 0, 1, 1], [], []>} : vector<256x256xbf16>, vector<256x128xbf16>, vector<256x128xf32> -> vector<256x128xf32>
    %9 = arith.addf %3, %8 : vector<256x128xf32>
    %c0_8 = arith.constant 0 : index
    %c0_9 = arith.constant 0 : index
    %10 = vector.load %arg8[%c0_8, %c0_9] : memref<256x128xf32, #tpu.memory_space<vmem>>, vector<256x128xf32>
    tpu.vector_store %arg8[%c0_8, %c0_9], %9 {strides = array<i32>} : memref<256x128xf32, #tpu.memory_space<vmem>>, vector<256x128xf32>,
    %c0_i32_10 = arith.constant 0 : i32
    %11 = arith.cmpi eq, %arg3, %c0_i32_10 : i32
    %12 = arith.extui %11 : i1 to i32
    %c0_i32_11 = arith.constant 0 : i32
    %13 = arith.cmpi ne, %12, %c0_i32_11 : i32
    scf.if %13 {
      %c0_12 = arith.constant 0 : index
      %c0_13 = arith.constant 0 : index
      %14 = vector.load %arg8[%c0_12, %c0_13] : memref<256x128xf32, #tpu.memory_space<vmem>>, vector<256x128xf32>
      %c0_14 = arith.constant 0 : index
      %c0_15 = arith.constant 0 : index
      %c0_16 = arith.constant 0 : index
      %15 = vector.load %arg6[%c0_14, %c0_15, %c0_16] : memref<1x1x128xf32, #tpu.memory_space<vmem>>, vector<1x1x128xf32>
      %16 = vector.shape_cast %15 : vector<1x1x128xf32> to vector<1x128xf32>
      %17 = vector.broadcast %16 : vector<1x128xf32> to vector<256x128xf32>
      %18 = arith.addf %14, %17 : vector<256x128xf32>
      %cst_17 = arith.constant 0.000000e+00 : f32
      %19 = vector.broadcast %cst_17 : f32 to vector<256x128xf32>
      %20 = arith.maximumf %18, %19 : vector<256x128xf32>
      %c0_18 = arith.constant 0 : index
      %c0_19 = arith.constant 0 : index
      %c0_20 = arith.constant 0 : index
      %21 = vector.load %arg7[%c0_18, %c0_19, %c0_20] : memref<1x256x128xf32, #tpu.memory_space<vmem>>, vector<1x256x128xf32>
      %22 = vector.shape_cast %21 : vector<1x256x128xf32> to vector<256x128xf32>
      %23 = vector.shape_cast %20 : vector<256x128xf32> to vector<1x256x128xf32>
      tpu.vector_store %arg7[%c0_18, %c0_19, %c0_20], %23 {strides = array<i32>} : memref<1x256x128xf32, #tpu.memory_space<vmem>>, vector<1x256x128xf32>,
    } else {
    }
    return
  }
  func.func @transform_0(%arg0: i32, %arg1: i32, %arg2: i32, %arg3: i32) -> (i32, i32, i32) {
    %c0_i32 = arith.constant 0 : i32
    return %arg0, %arg1, %arg3 : i32, i32, i32
  }
  func.func @transform_1(%arg0: i32, %arg1: i32, %arg2: i32, %arg3: i32) -> (i32, i32, i32) {
    %c0_i32 = arith.constant 0 : i32
    return %arg0, %arg3, %arg2 : i32, i32, i32
  }
  func.func @transform_2(%arg0: i32, %arg1: i32, %arg2: i32, %arg3: i32) -> (i32, i32, i32) {
    %c0_i32 = arith.constant 0 : i32
    %c0_i32_0 = arith.constant 0 : i32
    return %arg0, %c0_i32, %arg2 : i32, i32, i32
  }
  func.func @transform_3(%arg0: i32, %arg1: i32, %arg2: i32, %arg3: i32) -> (i32, i32, i32) {
    %c0_i32 = arith.constant 0 : i32
    return %arg0, %arg1, %arg2 : i32, i32, i32
  }
}

module attributes {stable_mosaic.version = 11 : i64} {
  func.func @_maxpool5_kernel(%arg0: i32, %arg1: memref<1x13x13x128xf32, #tpu.memory_space<vmem>>, %arg2: memref<1x9x9x128xf32, #tpu.memory_space<vmem>>) attributes {dimension_semantics = [#tpu.dimension_semantics<parallel>], iteration_bounds = array<i64: 4>, scalar_prefetch = 0 : i64, scratch_operands = 0 : i64, tpu.core_type = #tpu.core_type<tc>, window_params = [{transform_indices = @transform_0, window_bounds = array<i64: 1, 13, 13, 128>}, {transform_indices = @transform_1, window_bounds = array<i64: 1, 9, 9, 128>}]} {
    %c0 = arith.constant 0 : index
    %c0_0 = arith.constant 0 : index
    %c0_1 = arith.constant 0 : index
    %c0_2 = arith.constant 0 : index
    %0 = vector.load %arg1[%c0, %c0_0, %c0_1, %c0_2] : memref<1x13x13x128xf32, #tpu.memory_space<vmem>>, vector<1x13x13x128xf32>
    %1 = vector.shape_cast %0 : vector<1x13x13x128xf32> to vector<13x13x128xf32>
    %2 = vector.extract_strided_slice %1 {offsets = [0, 0, 0], sizes = [13, 9, 128], strides = [1, 1, 1]} : vector<13x13x128xf32> to vector<13x9x128xf32>
    %3 = vector.extract_strided_slice %1 {offsets = [0, 1, 0], sizes = [13, 9, 128], strides = [1, 1, 1]} : vector<13x13x128xf32> to vector<13x9x128xf32>
    %4 = arith.maximumf %2, %3 : vector<13x9x128xf32>
    %5 = vector.extract_strided_slice %1 {offsets = [0, 2, 0], sizes = [13, 9, 128], strides = [1, 1, 1]} : vector<13x13x128xf32> to vector<13x9x128xf32>
    %6 = arith.maximumf %4, %5 : vector<13x9x128xf32>
    %7 = vector.extract_strided_slice %1 {offsets = [0, 3, 0], sizes = [13, 9, 128], strides = [1, 1, 1]} : vector<13x13x128xf32> to vector<13x9x128xf32>
    %8 = arith.maximumf %6, %7 : vector<13x9x128xf32>
    %9 = vector.extract_strided_slice %1 {offsets = [0, 4, 0], sizes = [13, 9, 128], strides = [1, 1, 1]} : vector<13x13x128xf32> to vector<13x9x128xf32>
    %10 = arith.maximumf %8, %9 : vector<13x9x128xf32>
    %11 = vector.extract_strided_slice %10 {offsets = [0, 0, 0], sizes = [9, 9, 128], strides = [1, 1, 1]} : vector<13x9x128xf32> to vector<9x9x128xf32>
    %12 = vector.extract_strided_slice %10 {offsets = [1, 0, 0], sizes = [9, 9, 128], strides = [1, 1, 1]} : vector<13x9x128xf32> to vector<9x9x128xf32>
    %13 = arith.maximumf %11, %12 : vector<9x9x128xf32>
    %14 = vector.extract_strided_slice %10 {offsets = [2, 0, 0], sizes = [9, 9, 128], strides = [1, 1, 1]} : vector<13x9x128xf32> to vector<9x9x128xf32>
    %15 = arith.maximumf %13, %14 : vector<9x9x128xf32>
    %16 = vector.extract_strided_slice %10 {offsets = [3, 0, 0], sizes = [9, 9, 128], strides = [1, 1, 1]} : vector<13x9x128xf32> to vector<9x9x128xf32>
    %17 = arith.maximumf %15, %16 : vector<9x9x128xf32>
    %18 = vector.extract_strided_slice %10 {offsets = [4, 0, 0], sizes = [9, 9, 128], strides = [1, 1, 1]} : vector<13x9x128xf32> to vector<9x9x128xf32>
    %19 = arith.maximumf %17, %18 : vector<9x9x128xf32>
    %c0_3 = arith.constant 0 : index
    %c0_4 = arith.constant 0 : index
    %c0_5 = arith.constant 0 : index
    %c0_6 = arith.constant 0 : index
    %20 = vector.load %arg2[%c0_3, %c0_4, %c0_5, %c0_6] : memref<1x9x9x128xf32, #tpu.memory_space<vmem>>, vector<1x9x9x128xf32>
    %21 = vector.shape_cast %20 : vector<1x9x9x128xf32> to vector<9x9x128xf32>
    %22 = vector.shape_cast %19 : vector<9x9x128xf32> to vector<1x9x9x128xf32>
    tpu.vector_store %arg2[%c0_3, %c0_4, %c0_5, %c0_6], %22 {strides = array<i32>} : memref<1x9x9x128xf32, #tpu.memory_space<vmem>>, vector<1x9x9x128xf32>,
    return
  }
  func.func @transform_0(%arg0: i32) -> (i32, i32, i32, i32) {
    %c0_i32 = arith.constant 0 : i32
    %c0_i32_0 = arith.constant 0 : i32
    %c0_i32_1 = arith.constant 0 : i32
    %c0_i32_2 = arith.constant 0 : i32
    return %arg0, %c0_i32, %c0_i32_0, %c0_i32_1 : i32, i32, i32, i32
  }
  func.func @transform_1(%arg0: i32) -> (i32, i32, i32, i32) {
    %c0_i32 = arith.constant 0 : i32
    %c0_i32_0 = arith.constant 0 : i32
    %c0_i32_1 = arith.constant 0 : i32
    %c0_i32_2 = arith.constant 0 : i32
    return %arg0, %c0_i32, %c0_i32_0, %c0_i32_1 : i32, i32, i32, i32
  }
}

module attributes {stable_mosaic.version = 11 : i64} {
  func.func @_gemm_kernel(%arg0: i32, %arg1: i32, %arg2: i32, %arg3: i32, %arg4: memref<1x16x512xbf16, #tpu.memory_space<vmem>>, %arg5: memref<1x512x128xbf16, #tpu.memory_space<vmem>>, %arg6: memref<1x1x128xf32, #tpu.memory_space<vmem>>, %arg7: memref<1x16x128xf32, #tpu.memory_space<vmem>>, %arg8: memref<16x128xf32, #tpu.memory_space<vmem>>) attributes {dimension_semantics = [#tpu.dimension_semantics<parallel>, #tpu.dimension_semantics<parallel>, #tpu.dimension_semantics<parallel>, #tpu.dimension_semantics<arbitrary>], iteration_bounds = array<i64: 2, 1, 1, 11>, scalar_prefetch = 0 : i64, scratch_operands = 1 : i64, tpu.core_type = #tpu.core_type<tc>, window_params = [{transform_indices = @transform_0, window_bounds = array<i64: 1, 16, 512>}, {transform_indices = @transform_1, window_bounds = array<i64: 1, 512, 128>}, {transform_indices = @transform_2, window_bounds = array<i64: 1, 1, 128>}, {transform_indices = @transform_3, window_bounds = array<i64: 1, 16, 128>}]} {
    %c0_i32 = arith.constant 0 : i32
    %0 = arith.cmpi eq, %arg3, %c0_i32 : i32
    %1 = arith.extui %0 : i1 to i32
    %c0_i32_0 = arith.constant 0 : i32
    %2 = arith.cmpi ne, %1, %c0_i32_0 : i32
    scf.if %2 {
      %cst_11 = arith.constant 0.000000e+00 : f32
      %14 = vector.broadcast %cst_11 : f32 to vector<16x128xf32>
      %c0_12 = arith.constant 0 : index
      %c0_13 = arith.constant 0 : index
      %15 = vector.load %arg8[%c0_12, %c0_13] : memref<16x128xf32, #tpu.memory_space<vmem>>, vector<16x128xf32>
      tpu.vector_store %arg8[%c0_12, %c0_13], %14 {strides = array<i32>} : memref<16x128xf32, #tpu.memory_space<vmem>>, vector<16x128xf32>,
    } else {
    }
    %c0 = arith.constant 0 : index
    %c0_1 = arith.constant 0 : index
    %3 = vector.load %arg8[%c0, %c0_1] : memref<16x128xf32, #tpu.memory_space<vmem>>, vector<16x128xf32>
    %c0_2 = arith.constant 0 : index
    %c0_3 = arith.constant 0 : index
    %c0_4 = arith.constant 0 : index
    %4 = vector.load %arg4[%c0_2, %c0_3, %c0_4] : memref<1x16x512xbf16, #tpu.memory_space<vmem>>, vector<1x16x512xbf16>
    %5 = vector.shape_cast %4 : vector<1x16x512xbf16> to vector<16x512xbf16>
    %c0_5 = arith.constant 0 : index
    %c0_6 = arith.constant 0 : index
    %c0_7 = arith.constant 0 : index
    %6 = vector.load %arg5[%c0_5, %c0_6, %c0_7] : memref<1x512x128xbf16, #tpu.memory_space<vmem>>, vector<1x512x128xbf16>
    %7 = vector.shape_cast %6 : vector<1x512x128xbf16> to vector<512x128xbf16>
    %cst = arith.constant dense<0.000000e+00> : vector<16x128xf32>
    %8 = tpu.matmul %5, %7, %cst {dimension_numbers = #tpu.dot_dimension_numbers<[1], [0], [0], [1], [0, 0, 1, 1], [], []>} : vector<16x512xbf16>, vector<512x128xbf16>, vector<16x128xf32> -> vector<16x128xf32>
    %9 = arith.addf %3, %8 : vector<16x128xf32>
    %c0_8 = arith.constant 0 : index
    %c0_9 = arith.constant 0 : index
    %10 = vector.load %arg8[%c0_8, %c0_9] : memref<16x128xf32, #tpu.memory_space<vmem>>, vector<16x128xf32>
    tpu.vector_store %arg8[%c0_8, %c0_9], %9 {strides = array<i32>} : memref<16x128xf32, #tpu.memory_space<vmem>>, vector<16x128xf32>,
    %c10_i32 = arith.constant 10 : i32
    %11 = arith.cmpi eq, %arg3, %c10_i32 : i32
    %12 = arith.extui %11 : i1 to i32
    %c0_i32_10 = arith.constant 0 : i32
    %13 = arith.cmpi ne, %12, %c0_i32_10 : i32
    scf.if %13 {
      %c0_11 = arith.constant 0 : index
      %c0_12 = arith.constant 0 : index
      %14 = vector.load %arg8[%c0_11, %c0_12] : memref<16x128xf32, #tpu.memory_space<vmem>>, vector<16x128xf32>
      %c0_13 = arith.constant 0 : index
      %c0_14 = arith.constant 0 : index
      %c0_15 = arith.constant 0 : index
      %15 = vector.load %arg6[%c0_13, %c0_14, %c0_15] : memref<1x1x128xf32, #tpu.memory_space<vmem>>, vector<1x1x128xf32>
      %16 = vector.shape_cast %15 : vector<1x1x128xf32> to vector<1x128xf32>
      %17 = vector.broadcast %16 : vector<1x128xf32> to vector<16x128xf32>
      %18 = arith.addf %14, %17 : vector<16x128xf32>
      %cst_16 = arith.constant 0.000000e+00 : f32
      %19 = vector.broadcast %cst_16 : f32 to vector<16x128xf32>
      %20 = arith.maximumf %18, %19 : vector<16x128xf32>
      %c0_17 = arith.constant 0 : index
      %c0_18 = arith.constant 0 : index
      %c0_19 = arith.constant 0 : index
      %21 = vector.load %arg7[%c0_17, %c0_18, %c0_19] : memref<1x16x128xf32, #tpu.memory_space<vmem>>, vector<1x16x128xf32>
      %22 = vector.shape_cast %21 : vector<1x16x128xf32> to vector<16x128xf32>
      %23 = vector.shape_cast %20 : vector<16x128xf32> to vector<1x16x128xf32>
      tpu.vector_store %arg7[%c0_17, %c0_18, %c0_19], %23 {strides = array<i32>} : memref<1x16x128xf32, #tpu.memory_space<vmem>>, vector<1x16x128xf32>,
    } else {
    }
    return
  }
  func.func @transform_0(%arg0: i32, %arg1: i32, %arg2: i32, %arg3: i32) -> (i32, i32, i32) {
    %c0_i32 = arith.constant 0 : i32
    return %arg0, %arg1, %arg3 : i32, i32, i32
  }
  func.func @transform_1(%arg0: i32, %arg1: i32, %arg2: i32, %arg3: i32) -> (i32, i32, i32) {
    %c0_i32 = arith.constant 0 : i32
    return %arg0, %arg3, %arg2 : i32, i32, i32
  }
  func.func @transform_2(%arg0: i32, %arg1: i32, %arg2: i32, %arg3: i32) -> (i32, i32, i32) {
    %c0_i32 = arith.constant 0 : i32
    %c0_i32_0 = arith.constant 0 : i32
    return %arg0, %c0_i32, %arg2 : i32, i32, i32
  }
  func.func @transform_3(%arg0: i32, %arg1: i32, %arg2: i32, %arg3: i32) -> (i32, i32, i32) {
    %c0_i32 = arith.constant 0 : i32
    return %arg0, %arg1, %arg2 : i32, i32, i32
  }
}

module attributes {stable_mosaic.version = 11 : i64} {
  func.func @_gemm_kernel(%arg0: i32, %arg1: i32, %arg2: i32, %arg3: i32, %arg4: memref<1x16x128xbf16, #tpu.memory_space<vmem>>, %arg5: memref<1x128x256xbf16, #tpu.memory_space<vmem>>, %arg6: memref<1x1x256xf32, #tpu.memory_space<vmem>>, %arg7: memref<1x16x256xf32, #tpu.memory_space<vmem>>, %arg8: memref<16x256xf32, #tpu.memory_space<vmem>>) attributes {dimension_semantics = [#tpu.dimension_semantics<parallel>, #tpu.dimension_semantics<parallel>, #tpu.dimension_semantics<parallel>, #tpu.dimension_semantics<arbitrary>], iteration_bounds = array<i64: 2, 1, 4, 1>, scalar_prefetch = 0 : i64, scratch_operands = 1 : i64, tpu.core_type = #tpu.core_type<tc>, window_params = [{transform_indices = @transform_0, window_bounds = array<i64: 1, 16, 128>}, {transform_indices = @transform_1, window_bounds = array<i64: 1, 128, 256>}, {transform_indices = @transform_2, window_bounds = array<i64: 1, 1, 256>}, {transform_indices = @transform_3, window_bounds = array<i64: 1, 16, 256>}]} {
    %c0_i32 = arith.constant 0 : i32
    %0 = arith.cmpi eq, %arg3, %c0_i32 : i32
    %1 = arith.extui %0 : i1 to i32
    %c0_i32_0 = arith.constant 0 : i32
    %2 = arith.cmpi ne, %1, %c0_i32_0 : i32
    scf.if %2 {
      %cst_12 = arith.constant 0.000000e+00 : f32
      %14 = vector.broadcast %cst_12 : f32 to vector<16x256xf32>
      %c0_13 = arith.constant 0 : index
      %c0_14 = arith.constant 0 : index
      %15 = vector.load %arg8[%c0_13, %c0_14] : memref<16x256xf32, #tpu.memory_space<vmem>>, vector<16x256xf32>
      tpu.vector_store %arg8[%c0_13, %c0_14], %14 {strides = array<i32>} : memref<16x256xf32, #tpu.memory_space<vmem>>, vector<16x256xf32>,
    } else {
    }
    %c0 = arith.constant 0 : index
    %c0_1 = arith.constant 0 : index
    %3 = vector.load %arg8[%c0, %c0_1] : memref<16x256xf32, #tpu.memory_space<vmem>>, vector<16x256xf32>
    %c0_2 = arith.constant 0 : index
    %c0_3 = arith.constant 0 : index
    %c0_4 = arith.constant 0 : index
    %4 = vector.load %arg4[%c0_2, %c0_3, %c0_4] : memref<1x16x128xbf16, #tpu.memory_space<vmem>>, vector<1x16x128xbf16>
    %5 = vector.shape_cast %4 : vector<1x16x128xbf16> to vector<16x128xbf16>
    %c0_5 = arith.constant 0 : index
    %c0_6 = arith.constant 0 : index
    %c0_7 = arith.constant 0 : index
    %6 = vector.load %arg5[%c0_5, %c0_6, %c0_7] : memref<1x128x256xbf16, #tpu.memory_space<vmem>>, vector<1x128x256xbf16>
    %7 = vector.shape_cast %6 : vector<1x128x256xbf16> to vector<128x256xbf16>
    %cst = arith.constant dense<0.000000e+00> : vector<16x256xf32>
    %8 = tpu.matmul %5, %7, %cst {dimension_numbers = #tpu.dot_dimension_numbers<[1], [0], [0], [1], [0, 0, 1, 1], [], []>} : vector<16x128xbf16>, vector<128x256xbf16>, vector<16x256xf32> -> vector<16x256xf32>
    %9 = arith.addf %3, %8 : vector<16x256xf32>
    %c0_8 = arith.constant 0 : index
    %c0_9 = arith.constant 0 : index
    %10 = vector.load %arg8[%c0_8, %c0_9] : memref<16x256xf32, #tpu.memory_space<vmem>>, vector<16x256xf32>
    tpu.vector_store %arg8[%c0_8, %c0_9], %9 {strides = array<i32>} : memref<16x256xf32, #tpu.memory_space<vmem>>, vector<16x256xf32>,
    %c0_i32_10 = arith.constant 0 : i32
    %11 = arith.cmpi eq, %arg3, %c0_i32_10 : i32
    %12 = arith.extui %11 : i1 to i32
    %c0_i32_11 = arith.constant 0 : i32
    %13 = arith.cmpi ne, %12, %c0_i32_11 : i32
    scf.if %13 {
      %c0_12 = arith.constant 0 : index
      %c0_13 = arith.constant 0 : index
      %14 = vector.load %arg8[%c0_12, %c0_13] : memref<16x256xf32, #tpu.memory_space<vmem>>, vector<16x256xf32>
      %c0_14 = arith.constant 0 : index
      %c0_15 = arith.constant 0 : index
      %c0_16 = arith.constant 0 : index
      %15 = vector.load %arg6[%c0_14, %c0_15, %c0_16] : memref<1x1x256xf32, #tpu.memory_space<vmem>>, vector<1x1x256xf32>
      %16 = vector.shape_cast %15 : vector<1x1x256xf32> to vector<1x256xf32>
      %17 = vector.broadcast %16 : vector<1x256xf32> to vector<16x256xf32>
      %18 = arith.addf %14, %17 : vector<16x256xf32>
      %c0_17 = arith.constant 0 : index
      %c0_18 = arith.constant 0 : index
      %c0_19 = arith.constant 0 : index
      %19 = vector.load %arg7[%c0_17, %c0_18, %c0_19] : memref<1x16x256xf32, #tpu.memory_space<vmem>>, vector<1x16x256xf32>
      %20 = vector.shape_cast %19 : vector<1x16x256xf32> to vector<16x256xf32>
      %21 = vector.shape_cast %18 : vector<16x256xf32> to vector<1x16x256xf32>
      tpu.vector_store %arg7[%c0_17, %c0_18, %c0_19], %21 {strides = array<i32>} : memref<1x16x256xf32, #tpu.memory_space<vmem>>, vector<1x16x256xf32>,
    } else {
    }
    return
  }
  func.func @transform_0(%arg0: i32, %arg1: i32, %arg2: i32, %arg3: i32) -> (i32, i32, i32) {
    %c0_i32 = arith.constant 0 : i32
    return %arg0, %arg1, %arg3 : i32, i32, i32
  }
  func.func @transform_1(%arg0: i32, %arg1: i32, %arg2: i32, %arg3: i32) -> (i32, i32, i32) {
    %c0_i32 = arith.constant 0 : i32
    return %arg0, %arg3, %arg2 : i32, i32, i32
  }
  func.func @transform_2(%arg0: i32, %arg1: i32, %arg2: i32, %arg3: i32) -> (i32, i32, i32) {
    %c0_i32 = arith.constant 0 : i32
    %c0_i32_0 = arith.constant 0 : i32
    return %arg0, %c0_i32, %arg2 : i32, i32, i32
  }
  func.func @transform_3(%arg0: i32, %arg1: i32, %arg2: i32, %arg3: i32) -> (i32, i32, i32) {
    %c0_i32 = arith.constant 0 : i32
    return %arg0, %arg1, %arg2 : i32, i32, i32
  }
}

module attributes {stable_mosaic.version = 11 : i64} {
  func.func @_head_kernel(%arg0: i32, %arg1: memref<2x2048xbf16, #tpu.memory_space<vmem>>, %arg2: memref<2048x1024xbf16, #tpu.memory_space<vmem>>, %arg3: memref<1x1024xf32, #tpu.memory_space<vmem>>, %arg4: memref<1x1024xf32, #tpu.memory_space<vmem>>, %arg5: memref<1x1xf32, #tpu.memory_space<vmem>>, %arg6: memref<2x1xf32, #tpu.memory_space<vmem>>) attributes {dimension_semantics = [#tpu.dimension_semantics<arbitrary>], iteration_bounds = array<i64: 1>, scalar_prefetch = 0 : i64, scratch_operands = 0 : i64, tpu.core_type = #tpu.core_type<tc>, window_params = [{pipeline_mode = #tpu.pipeline_mode<synchronous>, transform_indices = @transform_0, window_bounds = array<i64: 2, 2048>}, {pipeline_mode = #tpu.pipeline_mode<synchronous>, transform_indices = @transform_1, window_bounds = array<i64: 2048, 1024>}, {pipeline_mode = #tpu.pipeline_mode<synchronous>, transform_indices = @transform_2, window_bounds = array<i64: 1, 1024>}, {pipeline_mode = #tpu.pipeline_mode<synchronous>, transform_indices = @transform_3, window_bounds = array<i64: 1, 1024>}, {pipeline_mode = #tpu.pipeline_mode<synchronous>, transform_indices = @transform_4, window_bounds = array<i64: 1, 1>}, {pipeline_mode = #tpu.pipeline_mode<synchronous>, transform_indices = @transform_5, window_bounds = array<i64: 2, 1>}]} {
    %c0 = arith.constant 0 : index
    %c0_0 = arith.constant 0 : index
    %0 = vector.load %arg1[%c0, %c0_0] : memref<2x2048xbf16, #tpu.memory_space<vmem>>, vector<2x2048xbf16>
    %c0_1 = arith.constant 0 : index
    %c0_2 = arith.constant 0 : index
    %1 = vector.load %arg2[%c0_1, %c0_2] : memref<2048x1024xbf16, #tpu.memory_space<vmem>>, vector<2048x1024xbf16>
    %cst = arith.constant dense<0.000000e+00> : vector<2x1024xf32>
    %2 = tpu.matmul %0, %1, %cst {dimension_numbers = #tpu.dot_dimension_numbers<[1], [0], [0], [1], [0, 0, 1, 1], [], []>} : vector<2x2048xbf16>, vector<2048x1024xbf16>, vector<2x1024xf32> -> vector<2x1024xf32>
    %c0_3 = arith.constant 0 : index
    %c0_4 = arith.constant 0 : index
    %3 = vector.load %arg3[%c0_3, %c0_4] : memref<1x1024xf32, #tpu.memory_space<vmem>>, vector<1x1024xf32>
    %4 = vector.broadcast %3 : vector<1x1024xf32> to vector<2x1024xf32>
    %5 = arith.addf %2, %4 : vector<2x1024xf32>
    %c0_5 = arith.constant 0 : index
    %c0_6 = arith.constant 0 : index
    %6 = vector.load %arg4[%c0_5, %c0_6] : memref<1x1024xf32, #tpu.memory_space<vmem>>, vector<1x1024xf32>
    %7 = vector.broadcast %6 : vector<1x1024xf32> to vector<2x1024xf32>
    %8 = arith.mulf %5, %7 : vector<2x1024xf32>
    %cst_7 = arith.constant dense<0.000000e+00> : vector<2xf32>
    %9 = vector.multi_reduction <add>, %8, %cst_7 [1] : vector<2x1024xf32> to vector<2xf32>
    %10 = vector.shape_cast %9 : vector<2xf32> to vector<2x1xf32>
    %c0_8 = arith.constant 0 : index
    %c0_9 = arith.constant 0 : index
    %11 = vector.load %arg5[%c0_8, %c0_9] : memref<1x1xf32, #tpu.memory_space<vmem>>, vector<1x1xf32>
    %12 = vector.broadcast %11 : vector<1x1xf32> to vector<2x1xf32>
    %13 = arith.addf %10, %12 : vector<2x1xf32>
    %c0_10 = arith.constant 0 : index
    %c0_11 = arith.constant 0 : index
    %14 = vector.load %arg6[%c0_10, %c0_11] : memref<2x1xf32, #tpu.memory_space<vmem>>, vector<2x1xf32>
    tpu.vector_store %arg6[%c0_10, %c0_11], %13 {strides = array<i32>} : memref<2x1xf32, #tpu.memory_space<vmem>>, vector<2x1xf32>,
    return
  }
  func.func @transform_0(%arg0: i32) -> (i32, i32) {
    %c0_i32 = arith.constant 0 : i32
    %c0_i32_0 = arith.constant 0 : i32
    %c0_i32_1 = arith.constant 0 : i32
    return %c0_i32, %c0_i32_0 : i32, i32
  }
  func.func @transform_1(%arg0: i32) -> (i32, i32) {
    %c0_i32 = arith.constant 0 : i32
    %c0_i32_0 = arith.constant 0 : i32
    %c0_i32_1 = arith.constant 0 : i32
    return %c0_i32, %c0_i32_0 : i32, i32
  }
  func.func @transform_2(%arg0: i32) -> (i32, i32) {
    %c0_i32 = arith.constant 0 : i32
    %c0_i32_0 = arith.constant 0 : i32
    %c0_i32_1 = arith.constant 0 : i32
    return %c0_i32, %c0_i32_0 : i32, i32
  }
  func.func @transform_3(%arg0: i32) -> (i32, i32) {
    %c0_i32 = arith.constant 0 : i32
    %c0_i32_0 = arith.constant 0 : i32
    %c0_i32_1 = arith.constant 0 : i32
    return %c0_i32, %c0_i32_0 : i32, i32
  }
  func.func @transform_4(%arg0: i32) -> (i32, i32) {
    %c0_i32 = arith.constant 0 : i32
    %c0_i32_0 = arith.constant 0 : i32
    %c0_i32_1 = arith.constant 0 : i32
    return %c0_i32, %c0_i32_0 : i32, i32
  }
  func.func @transform_5(%arg0: i32) -> (i32, i32) {
    %c0_i32 = arith.constant 0 : i32
    %c0_i32_0 = arith.constant 0 : i32
    %c0_i32_1 = arith.constant 0 : i32
    return %c0_i32, %c0_i32_0 : i32, i32
  }
}

</mosaic_0001>

<llo_original>
// kernel: dcnn_nariqa_forward.5
$region0: #{dcnn_nariqa_forward.5}
  #allocation0 [shape = 'u32[]', space=smem, size = 0x4, offset = 0x4, fixed_abs, tag = 'smem constant byte address 0x4 - core index']
  #allocation1 [shape = 'u32[144,128]{1,0:T(1,128)}', space=vmem, size = 0x12000, scoped, tag = 'internal scratch']
  #allocation2 [shape = 'f32[256,128]{1,0:T(8,128)}', space=vmem, size = 0x20000, scoped, tag = 'scratch operand']
  %s0 = inlined_call_operand.hbm [shape: bf16[2,512,256], index: 0, kind: input, shape index: {}]
  %s1 = inlined_call_operand.hbm [shape: bf16[2,256,128], index: 1, kind: input, shape index: {}]
  %s2 = inlined_call_operand.hbm [shape: f32[2,1,128], index: 2, kind: input, shape index: {}]
  %s3 = inlined_call_operand.hbm [shape: f32[2,512,128], index: 3, kind: output, shape index: {}]
  %s4 = sld [smem:[#allocation0]]
  $region65: #{dcnn_nariqa_forward.5} parent=0
    _
  %s6 = ssub.s32 1, %s4
  %s7 = scalar_select 0, %s6, %s4
  $region1: #{dcnn_nariqa_forward.5} parent=0
    #allocation3 [shape = 'u8[262144]{0}', space=vmem, size = 0x40000, scoped, tag = 'input window, operand 0']
    #allocation4 [shape = 's32[2]{0}', space=sflag, size = 0x8, scoped, tag = 'scoped memory for dcnn_nariqa_forward.5']
    #allocation5 [shape = 's32[2]{0}', space=sflag, size = 0x8, scoped, tag = 'scoped memory for dcnn_nariqa_forward.5']
    #allocation6 [shape = 'u8[131072]{0}', space=vmem, size = 0x20000, scoped, tag = 'input window, operand 1']
    #allocation7 [shape = 's32[2]{0}', space=sflag, size = 0x8, scoped, tag = 'scoped memory for dcnn_nariqa_forward.5']
    #allocation8 [shape = 'u8[1024]{0}', space=vmem, size = 0x400, scoped, tag = 'input window, operand 2']
    #allocation9 [shape = 'u8[262144]{0}', space=vmem, size = 0x40000, scoped, tag = 'output window, operand 0']
    %8 = vsyncpa [#allocation4], 0
    %s9 = scalar_lea.sflag [#allocation4], 1
    %10 = vsyncpa %s9, 0
    %11 = vsyncpa [#allocation7], 0
    %s12 = scalar_lea.sflag [#allocation7], 1
    %13 = vsyncpa %s12, 0
    %14 = vsyncpa [#allocation5], 0
    %s15 = scalar_lea.sflag [#allocation5], 1
    %16 = vsyncpa %s15, 0
    loop: start=0, step=1, limit=6
    $region2: #{dcnn_nariqa_forward.5} parent=1 // loop_pre_header
      _
    $region3: #{dcnn_nariqa_forward.5} parent=1 // loop_header
      %s18 = sphi 0, %s22
      %p19 = scmp.ge.s32.totalorder %s18, 6
      %s25 = sphi 0, %s51
      %s26 = sphi 0, %s47
      %s27 = sphi 0, %s43
      %s28 = sphi 0, %s39
      %s29 = sphi 0, %s25
      %s30 = sphi 0, %s26
      %s31 = sphi 0, %s27
      %s32 = sphi 0, %s28
      %s33 = sphi 0, %s29
      %s34 = sphi 0, %s30
      %s35 = sphi 0, %s31
      %s36 = sphi 0, %s32
      %s58 = sphi 0, %s60
      %s61 = sphi 0, %s58
      %s62 = sphi 0, %s61
      %s78 = sphi 0, %s62
      %s88 = sphi 0, %s90
      %s91 = sphi 0, %s88
      %s92 = sphi 0, %s91
      %s108 = sphi 0, %s92
      %s116 = sphi 0, %s118
      %s119 = sphi 0, %s116
      %s120 = sphi 0, %s119
      %s136 = sphi 0, %s120
      %s146 = sphi 0, %s148
      %s149 = sphi 0, %s146
      %s150 = sphi 0, %s149
      %s166 = sphi 0, %s150
    $region4: #{dcnn_nariqa_forward.5} parent=1 // loop_header_branch
      %21 = sbr.rel (%p19) target = $region8
    $region5: #{dcnn_nariqa_forward.5} parent=1 // loop_body
      %s23 = ssub.s32 %s18, 1
      %s24 = ssub.s32 %s18, 2
      %s37 = sadd.s32 1, %s28
      %p38 = scmp.ge.s32.totalorder %s37, 1
      %s39 = scalar_select %p38, 0, %s37
      %s40 = sadd.s32 1, %s27
      %s41 = scalar_select %p38, %s40, %s27
      %p42 = scmp.ge.s32.totalorder %s41, 1
      %s43 = scalar_select %p42, 0, %s41
      %s44 = sadd.s32 1, %s26
      %s45 = scalar_select %p42, %s44, %s26
      %p46 = scmp.ge.s32.totalorder %s45, 2
      %s47 = scalar_select %p46, 0, %s45
      %s48 = sadd.s32 1, %s25
      %s49 = scalar_select %p46, %s48, %s25
      %p50 = scmp.ge.s32.totalorder %s49, 2
      %s51 = scalar_select %p50, 0, %s49
      %s52 = ssub.s32 %s25, %s51
      %s53 = ssub.s32 %s26, %s47
      %s54 = sor.u32 %s52, %s53
      %s55 = ssub.s32 %s28, %s39
      %s56 = sor.u32 %s54, %s55
      %p57 = scmp.eq.s32.totalorder %s56, 0
      %s59 = sadd.s32 %s58, 1
      %s60 = scalar_select %p57, %s58, %s59
      %p63 = pneg %p57
      %p64 = scmp.eq.s32.totalorder %s18, 3
      %p65 = por %p63, %p64
      %p66 = scmp.ne.s32.totalorder %s58, %s61
      %p67 = scmp.eq.s32.totalorder %s18, 0
      %p68 = por %p66, %p67
      %p69 = scmp.ne.s32.totalorder %s58, %s61
      %p70 = scmp.eq.s32.totalorder %s23, 3
      %p71 = por %p69, %p70
      %p72 = scmp.ne.s32.totalorder %s61, %s62
      %p73 = scmp.eq.s32.totalorder %s23, 0
      %p74 = por %p72, %p73
      %p75 = scmp.ne.s32.totalorder %s61, %s62
      %p76 = scmp.eq.s32.totalorder %s24, 3
      %p77 = por %p75, %p76
      %p79 = scmp.ne.s32.totalorder %s62, %s78
      %p80 = scmp.eq.s32.totalorder %s24, 0
      %p81 = por %p79, %p80
      %s82 = ssub.s32 %s25, %s51
      %s83 = ssub.s32 %s28, %s39
      %s84 = sor.u32 %s82, %s83
      %s85 = ssub.s32 %s27, %s43
      %s86 = sor.u32 %s84, %s85
      %p87 = scmp.eq.s32.totalorder %s86, 0
      %s89 = sadd.s32 %s88, 1
      %s90 = scalar_select %p87, %s88, %s89
      %p93 = pneg %p87
      %p94 = scmp.eq.s32.totalorder %s18, 3
      %p95 = por %p93, %p94
      %p96 = scmp.ne.s32.totalorder %s88, %s91
      %p97 = scmp.eq.s32.totalorder %s18, 0
      %p98 = por %p96, %p97
      %p99 = scmp.ne.s32.totalorder %s88, %s91
      %p100 = scmp.eq.s32.totalorder %s23, 3
      %p101 = por %p99, %p100
      %p102 = scmp.ne.s32.totalorder %s91, %s92
      %p103 = scmp.eq.s32.totalorder %s23, 0
      %p104 = por %p102, %p103
      %p105 = scmp.ne.s32.totalorder %s91, %s92
      %p106 = scmp.eq.s32.totalorder %s24, 3
      %p107 = por %p105, %p106
      %p109 = scmp.ne.s32.totalorder %s92, %s108
      %p110 = scmp.eq.s32.totalorder %s24, 0
      %p111 = por %p109, %p110
      %s112 = ssub.s32 %s25, %s51
      %s113 = ssub.s32 %s27, %s43
      %s114 = sor.u32 %s112, %s113
      %p115 = scmp.eq.s32.totalorder %s114, 0
      %s117 = sadd.s32 %s116, 1
      %s118 = scalar_select %p115, %s116, %s117
      %p121 = pneg %p115
      %p122 = scmp.eq.s32.totalorder %s18, 3
      %p123 = por %p121, %p122
      %p124 = scmp.ne.s32.totalorder %s116, %s119
      %p125 = scmp.eq.s32.totalorder %s18, 0
      %p126 = por %p124, %p125
      %p127 = scmp.ne.s32.totalorder %s116, %s119
      %p128 = scmp.eq.s32.totalorder %s23, 3
      %p129 = por %p127, %p128
      %p130 = scmp.ne.s32.totalorder %s119, %s120
      %p131 = scmp.eq.s32.totalorder %s23, 0
      %p132 = por %p130, %p131
      %p133 = scmp.ne.s32.totalorder %s119, %s120
      %p134 = scmp.eq.s32.totalorder %s24, 3
      %p135 = por %p133, %p134
      %p137 = scmp.ne.s32.totalorder %s120, %s136
      %p138 = scmp.eq.s32.totalorder %s24, 0
      %p139 = por %p137, %p138
      %s140 = ssub.s32 %s25, %s51
      %s141 = ssub.s32 %s26, %s47
      %s142 = sor.u32 %s140, %s141
      %s143 = ssub.s32 %s27, %s43
      %s144 = sor.u32 %s142, %s143
      %p145 = scmp.eq.s32.totalorder %s144, 0
      %s147 = sadd.s32 %s146, 1
      %s148 = scalar_select %p145, %s146, %s147
      %p151 = pneg %p145
      %p152 = scmp.eq.s32.totalorder %s18, 3
      %p153 = por %p151, %p152
      %p154 = scmp.ne.s32.totalorder %s146, %s149
      %p155 = scmp.eq.s32.totalorder %s18, 0
      %p156 = por %p154, %p155
      %p157 = scmp.ne.s32.totalorder %s146, %s149
      %p158 = scmp.eq.s32.totalorder %s23, 3
      %p159 = por %p157, %p158
      %p160 = scmp.ne.s32.totalorder %s149, %s150
      %p161 = scmp.eq.s32.totalorder %s23, 0
      %p162 = por %p160, %p161
      %p163 = scmp.ne.s32.totalorder %s149, %s150
      %p164 = scmp.eq.s32.totalorder %s24, 3
      %p165 = por %p163, %p164
      %p167 = scmp.ne.s32.totalorder %s150, %s166
      %p168 = scmp.eq.s32.totalorder %s24, 0
      %p169 = por %p167, %p168
      %p170 = scmp.le.s32.totalorder 1, %s18
      %p171 = scmp.lt.s32.totalorder %s18, 5
      %p172 = pnand %p170, %p171
      %p173 = pneg %p172
      // Predicated region
      $region9: #{dcnn_nariqa_forward.5} parent=5 // pred_check
        _
      $region10: #{dcnn_nariqa_forward.5} parent=5 // pred_check_branch
        %175 = sbr.rel (%p172) target = $region12
      $region11: #{dcnn_nariqa_forward.5} parent=5 // pred_region
        %s176 = ssub.s32 %s18, 1
      $region12: #{dcnn_nariqa_forward.5} parent=5 // pred_fallthru
        _
      %p177 = scmp.lt.s32.totalorder %s18, 4
      // Predicated region
      $region13: #{dcnn_nariqa_forward.5} parent=5 // pred_check
        %p178 = pneg %p177
      $region14: #{dcnn_nariqa_forward.5} parent=5 // pred_check_branch
        %180 = sbr.rel (%p178) target = $region16
      $region15: #{dcnn_nariqa_forward.5} parent=5 // pred_region
        // Predicated region
        $region17: #{dcnn_nariqa_forward.5} parent=15 // pred_check
          %p181 = pneg %p68
        $region18: #{dcnn_nariqa_forward.5} parent=15 // pred_check_branch
          %183 = sbr.rel (%p181) target = $region20
        $region19: #{dcnn_nariqa_forward.5} parent=15 // pred_region
          %s184 = sand.u32 %s58, 1
          %s185 = scalar_lea.sflag [#allocation4], %s184
          %s186 = sand.u32 %s58, 1
          %s187 = smul.addr %s186, 256
          %s188 = scalar_lea.vmem [#allocation3], %s187
          %s189 = smul.u32 32, %s26
          %s190 = smul.u32 2, %s28
          %s192 = ssub.s32 4096, 4096
          %193 = vsyncadd %s185, %s192
          %s194 = smul.addr %s189, 2
          %s195 = sadd.s32 %s190, %s194
          %s196 = smul.addr %s25, 128
          %s197 = sadd.s32 %s195, %s196
          %s198 = smul.addr %s197, 64
          %s199 = scalar_lea.hbm %s0, %s198
          %s200 = sshll.u32 %s188, 4
          %s201 = int_to_ptr.vmem [resolvable:$true] %s200
          %206 = dma.hbm_to_vmem [thread:$0]  %s199, 4096, %s201, %s185, 128, 128, 8
        $region20: #{dcnn_nariqa_forward.5} parent=15 // pred_fallthru
          _
        // Predicated region
        $region21: #{dcnn_nariqa_forward.5} parent=15 // pred_check
          %p207 = pneg %p98
        $region22: #{dcnn_nariqa_forward.5} parent=15 // pred_check_branch
          %209 = sbr.rel (%p207) target = $region24
        $region23: #{dcnn_nariqa_forward.5} parent=15 // pred_region
          %s210 = sand.u32 %s18, 1
          %s211 = scalar_lea.sflag [#allocation7], %s210
          %s212 = sand.u32 %s88, 1
          %s213 = smul.addr %s212, 128
          %s214 = scalar_lea.vmem [#allocation6], %s213
          %s215 = smul.u32 32, %s28
          %s217 = ssub.s32 2048, 2048
          %218 = vsyncadd %s211, %s217
          %s219 = sadd.s32 %s27, %s215
          %s220 = smul.addr %s25, 32
          %s221 = sadd.s32 %s219, %s220
          %s222 = smul.addr %s221, 64
          %s223 = scalar_lea.hbm %s1, %s222
          %s224 = sshll.u32 %s214, 4
          %s225 = int_to_ptr.vmem [resolvable:$true] %s224
          %230 = dma.hbm_to_vmem [thread:$0]  %s223, 2048, %s225, %s211, 64, 64, 4
        $region24: #{dcnn_nariqa_forward.5} parent=15 // pred_fallthru
          _
        // Predicated region
        $region25: #{dcnn_nariqa_forward.5} parent=15 // pred_check
          %p231 = pneg %p126
        $region26: #{dcnn_nariqa_forward.5} parent=15 // pred_check_branch
          %233 = sbr.rel (%p231) target = $region28
        $region27: #{dcnn_nariqa_forward.5} parent=15 // pred_region
          %s234 = sand.u32 %s18, 1
          %s235 = scalar_lea.sflag [#allocation7], %s234
          %s236 = sand.u32 %s116, 1
          %s237 = scalar_lea.vmem [#allocation8], %s236
          %s239 = ssub.s32 16, 16
          %240 = vsyncadd %s235, %s239
          %s241 = sadd.s32 %s27, %s25
          %s242 = smul.addr %s241, 16
          %s243 = scalar_lea.hbm %s2, %s242
          %s245 = sshll.u32 %s237, 4
          %s246 = int_to_ptr.vmem [resolvable:$true] %s245
          %248 = dma.hbm_to_vmem [thread:$0]  %s243, 16, %s246, %s235
        $region28: #{dcnn_nariqa_forward.5} parent=15 // pred_fallthru
          _
      $region16: #{dcnn_nariqa_forward.5} parent=5 // pred_fallthru
        _
      %p249 = scmp.le.s32.totalorder 1, %s18
      %p250 = scmp.lt.s32.totalorder %s18, 5
      %p251 = pnand %p249, %p250
      %p252 = pneg %p251
      // Predicated region
      $region29: #{dcnn_nariqa_forward.5} parent=5 // pred_check
        _
      $region30: #{dcnn_nariqa_forward.5} parent=5 // pred_check_branch
        %254 = sbr.rel (%p251) target = $region32
      $region31: #{dcnn_nariqa_forward.5} parent=5 // pred_region
        %s255 = ssub.s32 %s18, 1
        %s256 = sand.u32 %s61, 1
        %s257 = scalar_lea.sflag [#allocation4], %s256
        %s258 = sand.u32 %s61, 1
        %s259 = smul.addr %s258, 256
        %s260 = scalar_lea.vmem [#allocation3], %s259
        // Predicated region
        $region33: #{dcnn_nariqa_forward.5} parent=31 // pred_check
          %p261 = pneg %p74
        $region34: #{dcnn_nariqa_forward.5} parent=31 // pred_check_branch
          %263 = sbr.rel (%p261) target = $region36
        $region35: #{dcnn_nariqa_forward.5} parent=31 // pred_region
          %264 = dma.done %s257, 4096
        $region36: #{dcnn_nariqa_forward.5} parent=31 // pred_fallthru
          _
        %s265 = sand.u32 %s23, 1
        %s266 = scalar_lea.sflag [#allocation7], %s265
        %s267 = sand.u32 %s91, 1
        %s268 = smul.addr %s267, 128
        %s269 = scalar_lea.vmem [#allocation6], %s268
        // Predicated region
        $region37: #{dcnn_nariqa_forward.5} parent=31 // pred_check
          %p270 = pneg %p104
        $region38: #{dcnn_nariqa_forward.5} parent=31 // pred_check_branch
          %272 = sbr.rel (%p270) target = $region40
        $region39: #{dcnn_nariqa_forward.5} parent=31 // pred_region
          %273 = dma.done %s266, 2048
        $region40: #{dcnn_nariqa_forward.5} parent=31 // pred_fallthru
          _
        %s274 = sand.u32 %s23, 1
        %s275 = scalar_lea.sflag [#allocation7], %s274
        %s276 = sand.u32 %s119, 1
        %s277 = scalar_lea.vmem [#allocation8], %s276
        // Predicated region
        $region41: #{dcnn_nariqa_forward.5} parent=31 // pred_check
          %p278 = pneg %p132
        $region42: #{dcnn_nariqa_forward.5} parent=31 // pred_check_branch
          %280 = sbr.rel (%p278) target = $region44
        $region43: #{dcnn_nariqa_forward.5} parent=31 // pred_region
          %281 = dma.done %s275, 16
        $region44: #{dcnn_nariqa_forward.5} parent=31 // pred_fallthru
          _
        %s282 = sand.u32 %s61, 1
        %s283 = scalar_lea.sflag [#allocation4], %s282
        %s284 = sand.u32 %s61, 1
        %s285 = smul.addr %s284, 256
        %s286 = scalar_lea.vmem [#allocation3], %s285
        %p287 = pneg %p74
        %p288 = pneg %p71
        %s289 = sand.u32 %s23, 1
        %s290 = scalar_lea.sflag [#allocation7], %s289
        %s291 = sand.u32 %s91, 1
        %s292 = smul.addr %s291, 128
        %s293 = scalar_lea.vmem [#allocation6], %s292
        %p294 = pneg %p104
        %p295 = pneg %p101
        %s296 = sand.u32 %s23, 1
        %s297 = scalar_lea.sflag [#allocation7], %s296
        %s298 = sand.u32 %s119, 1
        %s299 = scalar_lea.vmem [#allocation8], %s298
        %p300 = pneg %p132
        %p301 = pneg %p129
        %p302 = pneg %p162
        %p303 = pneg %p159
        %s304 = sand.u32 %s149, 1
        %s305 = scalar_lea.sflag [#allocation5], %s304
        %s306 = sand.u32 %s149, 1
        %s307 = smul.addr %s306, 256
        %s308 = scalar_lea.vmem [#allocation9], %s307
        %s309 = smul.u32 32, %s30
        %s310 = smul.u32 2, %s32
        %s311 = smul.u32 32, %s32
        %s312 = smul.u32 32, %s30
        %p314 = scmp.eq.s32.totalorder %s32, 0
        // Predicated region
        $region45: #{dcnn_nariqa_forward.5} parent=31 // pred_check
          %p315 = pneg %p314
        $region46: #{dcnn_nariqa_forward.5} parent=31 // pred_check_branch
          %317 = sbr.rel (%p315) target = $region48
        $region47: #{dcnn_nariqa_forward.5} parent=31 // pred_region
          %318 = vst [vmem:[#allocation2] sm:$0xff] 0.0
          %319 = vst [vmem:[#allocation2 + $0x8] sm:$0xff] 0.0
          %320 = vst [vmem:[#allocation2 + $0x10] sm:$0xff] 0.0
          %321 = vst [vmem:[#allocation2 + $0x18] sm:$0xff] 0.0
          %322 = vst [vmem:[#allocation2 + $0x20] sm:$0xff] 0.0
          %323 = vst [vmem:[#allocation2 + $0x28] sm:$0xff] 0.0
          %324 = vst [vmem:[#allocation2 + $0x30] sm:$0xff] 0.0
          %325 = vst [vmem:[#allocation2 + $0x38] sm:$0xff] 0.0
          %326 = vst [vmem:[#allocation2 + $0x40] sm:$0xff] 0.0
          %327 = vst [vmem:[#allocation2 + $0x48] sm:$0xff] 0.0
          %328 = vst [vmem:[#allocation2 + $0x50] sm:$0xff] 0.0
          %329 = vst [vmem:[#allocation2 + $0x58] sm:$0xff] 0.0
          %330 = vst [vmem:[#allocation2 + $0x60] sm:$0xff] 0.0
          %331 = vst [vmem:[#allocation2 + $0x68] sm:$0xff] 0.0
          %332 = vst [vmem:[#allocation2 + $0x70] sm:$0xff] 0.0
          %333 = vst [vmem:[#allocation2 + $0x78] sm:$0xff] 0.0
          %334 = vst [vmem:[#allocation2 + $0x80] sm:$0xff] 0.0
          %335 = vst [vmem:[#allocation2 + $0x88] sm:$0xff] 0.0
          %336 = vst [vmem:[#allocation2 + $0x90] sm:$0xff] 0.0
          %337 = vst [vmem:[#allocation2 + $0x98] sm:$0xff] 0.0
          %338 = vst [vmem:[#allocation2 + $0xa0] sm:$0xff] 0.0
          %339 = vst [vmem:[#allocation2 + $0xa8] sm:$0xff] 0.0
          %340 = vst [vmem:[#allocation2 + $0xb0] sm:$0xff] 0.0
          %341 = vst [vmem:[#allocation2 + $0xb8] sm:$0xff] 0.0
          %342 = vst [vmem:[#allocation2 + $0xc0] sm:$0xff] 0.0
          %343 = vst [vmem:[#allocation2 + $0xc8] sm:$0xff] 0.0
          %344 = vst [vmem:[#allocation2 + $0xd0] sm:$0xff] 0.0
          %345 = vst [vmem:[#allocation2 + $0xd8] sm:$0xff] 0.0
          %346 = vst [vmem:[#allocation2 + $0xe0] sm:$0xff] 0.0
          %347 = vst [vmem:[#allocation2 + $0xe8] sm:$0xff] 0.0
          %348 = vst [vmem:[#allocation2 + $0xf0] sm:$0xff] 0.0
          %349 = vst [vmem:[#allocation2 + $0xf8] sm:$0xff] 0.0
        $region48: #{dcnn_nariqa_forward.5} parent=31 // pred_fallthru
          _
        %v350 = vld [vmem:[#allocation2] sm:$0xff]
        %v351 = vld [vmem:[#allocation2 + $0x8] sm:$0xff]
        %v352 = vld [vmem:[#allocation2 + $0x10] sm:$0xff]
        %v353 = vld [vmem:[#allocation2 + $0x18] sm:$0xff]
        %v354 = vld [vmem:[#allocation2 + $0x20] sm:$0xff]
        %v355 = vld [vmem:[#allocation2 + $0x28] sm:$0xff]
        %v356 = vld [vmem:[#allocation2 + $0x30] sm:$0xff]
        %v357 = vld [vmem:[#allocation2 + $0x38] sm:$0xff]
        %v358 = vld [vmem:[#allocation2 + $0x40] sm:$0xff]
        %v359 = vld [vmem:[#allocation2 + $0x48] sm:$0xff]
        %v360 = vld [vmem:[#allocation2 + $0x50] sm:$0xff]
        %v361 = vld [vmem:[#allocation2 + $0x58] sm:$0xff]
        %v362 = vld [vmem:[#allocation2 + $0x60] sm:$0xff]
        %v363 = vld [vmem:[#allocation2 + $0x68] sm:$0xff]
        %v364 = vld [vmem:[#allocation2 + $0x70] sm:$0xff]
        %v365 = vld [vmem:[#allocation2 + $0x78] sm:$0xff]
        %v366 = vld [vmem:[#allocation2 + $0x80] sm:$0xff]
        %v367 = vld [vmem:[#allocation2 + $0x88] sm:$0xff]
        %v368 = vld [vmem:[#allocation2 + $0x90] sm:$0xff]
        %v369 = vld [vmem:[#allocation2 + $0x98] sm:$0xff]
        %v370 = vld [vmem:[#allocation2 + $0xa0] sm:$0xff]
        %v371 = vld [vmem:[#allocation2 + $0xa8] sm:$0xff]
        %v372 = vld [vmem:[#allocation2 + $0xb0] sm:$0xff]
        %v373 = vld [vmem:[#allocation2 + $0xb8] sm:$0xff]
        %v374 = vld [vmem:[#allocation2 + $0xc0] sm:$0xff]
        %v375 = vld [vmem:[#allocation2 + $0xc8] sm:$0xff]
        %v376 = vld [vmem:[#allocation2 + $0xd0] sm:$0xff]
        %v377 = vld [vmem:[#allocation2 + $0xd8] sm:$0xff]
        %v378 = vld [vmem:[#allocation2 + $0xe0] sm:$0xff]
        %v379 = vld [vmem:[#allocation2 + $0xe8] sm:$0xff]
        %v380 = vld [vmem:[#allocation2 + $0xf0] sm:$0xff]
        %v381 = vld [vmem:[#allocation2 + $0xf8] sm:$0xff]
        %v382 = vld [vmem:[%s260] sm:$0xff]
        %v383 = vld [vmem:[%s260 + $0x8] sm:$0xff]
        %v384 = vld [vmem:[%s260 + $0x10] sm:$0xff]
        %v385 = vld [vmem:[%s260 + $0x18] sm:$0xff]
        %v386 = vld [vmem:[%s260 + $0x20] sm:$0xff]
        %v387 = vld [vmem:[%s260 + $0x28] sm:$0xff]
        %v388 = vld [vmem:[%s260 + $0x30] sm:$0xff]
        %v389 = vld [vmem:[%s260 + $0x38] sm:$0xff]
        %v390 = vld [vmem:[%s260 + $0x40] sm:$0xff]
        %v391 = vld [vmem:[%s260 + $0x48] sm:$0xff]
        %v392 = vld [vmem:[%s260 + $0x50] sm:$0xff]
        %v393 = vld [vmem:[%s260 + $0x58] sm:$0xff]
        %v394 = vld [vmem:[%s260 + $0x60] sm:$0xff]
        %v395 = vld [vmem:[%s260 + $0x68] sm:$0xff]
        %v396 = vld [vmem:[%s260 + $0x70] sm:$0xff]
        %v397 = vld [vmem:[%s260 + $0x78] sm:$0xff]
        %v398 = vld [vmem:[%s260 + $0x80] sm:$0xff]
        %v399 = vld [vmem:[%s260 + $0x88] sm:$0xff]
        %v400 = vld [vmem:[%s260 + $0x90] sm:$0xff]
        %v401 = vld [vmem:[%s260 + $0x98] sm:$0xff]
        %v402 = vld [vmem:[%s260 + $0xa0] sm:$0xff]
        %v403 = vld [vmem:[%s260 + $0xa8] sm:$0xff]
        %v404 = vld [vmem:[%s260 + $0xb0] sm:$0xff]
        %v405 = vld [vmem:[%s260 + $0xb8] sm:$0xff]
        %v406 = vld [vmem:[%s260 + $0xc0] sm:$0xff]
        %v407 = vld [vmem:[%s260 + $0xc8] sm:$0xff]
        %v408 = vld [vmem:[%s260 + $0xd0] sm:$0xff]
        %v409 = vld [vmem:[%s260 + $0xd8] sm:$0xff]
        %v410 = vld [vmem:[%s260 + $0xe0] sm:$0xff]
        %v411 = vld [vmem:[%s260 + $0xe8] sm:$0xff]
        %v412 = vld [vmem:[%s260 + $0xf0] sm:$0xff]
        %v413 = vld [vmem:[%s260 + $0xf8] sm:$0xff]
        %v414 = vld [vmem:[%s269] sm:$0xf]
        %v415 = vld [vmem:[%s269 + $0x4] sm:$0xf]
        %v416 = vld [vmem:[%s269 + $0x8] sm:$0xf]
        %v417 = vld [vmem:[%s269 + $0xc] sm:$0xf]
        %v418 = vld [vmem:[%s269 + $0x10] sm:$0xf]
        %v419 = vld [vmem:[%s269 + $0x14] sm:$0xf]
        %v420 = vld [vmem:[%s269 + $0x18] sm:$0xf]
        %v421 = vld [vmem:[%s269 + $0x1c] sm:$0xf]
        %v422 = vld [vmem:[%s269 + $0x20] sm:$0xf]
        %v423 = vld [vmem:[%s269 + $0x24] sm:$0xf]
        %v424 = vld [vmem:[%s269 + $0x28] sm:$0xf]
        %v425 = vld [vmem:[%s269 + $0x2c] sm:$0xf]
        %v426 = vld [vmem:[%s269 + $0x30] sm:$0xf]
        %v427 = vld [vmem:[%s269 + $0x34] sm:$0xf]
        %v428 = vld [vmem:[%s269 + $0x38] sm:$0xf]
        %v429 = vld [vmem:[%s269 + $0x3c] sm:$0xf]
        %v430 = vld [vmem:[%s269 + $0x40] sm:$0xf]
        %v431 = vld [vmem:[%s269 + $0x44] sm:$0xf]
        %v432 = vld [vmem:[%s269 + $0x48] sm:$0xf]
        %v433 = vld [vmem:[%s269 + $0x4c] sm:$0xf]
        %v434 = vld [vmem:[%s269 + $0x50] sm:$0xf]
        %v435 = vld [vmem:[%s269 + $0x54] sm:$0xf]
        %v436 = vld [vmem:[%s269 + $0x58] sm:$0xf]
        %v437 = vld [vmem:[%s269 + $0x5c] sm:$0xf]
        %v438 = vld [vmem:[%s269 + $0x60] sm:$0xf]
        %v439 = vld [vmem:[%s269 + $0x64] sm:$0xf]
        %v440 = vld [vmem:[%s269 + $0x68] sm:$0xf]
        %v441 = vld [vmem:[%s269 + $0x6c] sm:$0xf]
        %v442 = vld [vmem:[%s269 + $0x70] sm:$0xf]
        %v443 = vld [vmem:[%s269 + $0x74] sm:$0xf]
        %v444 = vld [vmem:[%s269 + $0x78] sm:$0xf]
        %v445 = vld [vmem:[%s269 + $0x7c] sm:$0xf]
        %v478 = vunpack.c.l.b16 %v382
        %v479 = vunpack.c.h.b16 %v382
        %v480 = vunpack.c.l.b16 %v383
        %v481 = vunpack.c.h.b16 %v383
        %v482 = vunpack.c.l.b16 %v384
        %v483 = vunpack.c.h.b16 %v384
        %v484 = vunpack.c.l.b16 %v385
        %v485 = vunpack.c.h.b16 %v385
        %v486 = vunpack.c.l.b16 %v386
        %v487 = vunpack.c.h.b16 %v386
        %v488 = vunpack.c.l.b16 %v387
        %v489 = vunpack.c.h.b16 %v387
        %v490 = vunpack.c.l.b16 %v388
        %v491 = vunpack.c.h.b16 %v388
        %v492 = vunpack.c.l.b16 %v389
        %v493 = vunpack.c.h.b16 %v389
        %v494 = vunpack.c.l.b16 %v390
        %v495 = vunpack.c.h.b16 %v390
        %v496 = vunpack.c.l.b16 %v391
        %v497 = vunpack.c.h.b16 %v391
        %v498 = vunpack.c.l.b16 %v392
        %v499 = vunpack.c.h.b16 %v392
        %v500 = vunpack.c.l.b16 %v393
        %v501 = vunpack.c.h.b16 %v393
        %v502 = vunpack.c.l.b16 %v394
        %v503 = vunpack.c.h.b16 %v394
        %v504 = vunpack.c.l.b16 %v395
        %v505 = vunpack.c.h.b16 %v395
        %v506 = vunpack.c.l.b16 %v396
        %v507 = vunpack.c.h.b16 %v396
        %v508 = vunpack.c.l.b16 %v397
        %v509 = vunpack.c.h.b16 %v397
        %v510 = vunpack.c.l.b16 %v398
        %v511 = vunpack.c.h.b16 %v398
        %v512 = vunpack.c.l.b16 %v399
        %v513 = vunpack.c.h.b16 %v399
        %v514 = vunpack.c.l.b16 %v400
        %v515 = vunpack.c.h.b16 %v400
        %v516 = vunpack.c.l.b16 %v401
        %v517 = vunpack.c.h.b16 %v401
        %v518 = vunpack.c.l.b16 %v402
        %v519 = vunpack.c.h.b16 %v402
        %v520 = vunpack.c.l.b16 %v403
        %v521 = vunpack.c.h.b16 %v403
        %v522 = vunpack.c.l.b16 %v404
        %v523 = vunpack.c.h.b16 %v404
        %v524 = vunpack.c.l.b16 %v405
        %v525 = vunpack.c.h.b16 %v405
        %v526 = vunpack.c.l.b16 %v406
        %v527 = vunpack.c.h.b16 %v406
        %v528 = vunpack.c.l.b16 %v407
        %v529 = vunpack.c.h.b16 %v407
        %v530 = vunpack.c.l.b16 %v408
        %v531 = vunpack.c.h.b16 %v408
        %v532 = vunpack.c.l.b16 %v409
        %v533 = vunpack.c.h.b16 %v409
        %v534 = vunpack.c.l.b16 %v410
        %v535 = vunpack.c.h.b16 %v410
        %v536 = vunpack.c.l.b16 %v411
        %v537 = vunpack.c.h.b16 %v411
        %v538 = vunpack.c.l.b16 %v412
        %v539 = vunpack.c.h.b16 %v412
        %v540 = vunpack.c.l.b16 %v413
        %v541 = vunpack.c.h.b16 %v413
        %v542 = vpack.c.b16 %v480, %v478
        %v543 = vpack.c.b16 %v481, %v479
        %v544 = vpack.c.b16 %v484, %v482
        %v545 = vpack.c.b16 %v485, %v483
        %v546 = vpack.c.b16 %v488, %v486
        %v547 = vpack.c.b16 %v489, %v487
        %v548 = vpack.c.b16 %v492, %v490
        %v549 = vpack.c.b16 %v493, %v491
        %v550 = vpack.c.b16 %v496, %v494
        %v551 = vpack.c.b16 %v497, %v495
        %v552 = vpack.c.b16 %v500, %v498
        %v553 = vpack.c.b16 %v501, %v499
        %v554 = vpack.c.b16 %v504, %v502
        %v555 = vpack.c.b16 %v505, %v503
        %v556 = vpack.c.b16 %v508, %v506
        %v557 = vpack.c.b16 %v509, %v507
        %v558 = vpack.c.b16 %v512, %v510
        %v559 = vpack.c.b16 %v513, %v511
        %v560 = vpack.c.b16 %v516, %v514
        %v561 = vpack.c.b16 %v517, %v515
        %v562 = vpack.c.b16 %v520, %v518
        %v563 = vpack.c.b16 %v521, %v519
        %v564 = vpack.c.b16 %v524, %v522
        %v565 = vpack.c.b16 %v525, %v523
        %v566 = vpack.c.b16 %v528, %v526
        %v567 = vpack.c.b16 %v529, %v527
        %v568 = vpack.c.b16 %v532, %v530
        %v569 = vpack.c.b16 %v533, %v531
        %v570 = vpack.c.b16 %v536, %v534
        %v571 = vpack.c.b16 %v537, %v535
        %v572 = vpack.c.b16 %v540, %v538
        %v573 = vpack.c.b16 %v541, %v539
        %v638 = vunpack.c.l.b16 %v414
        %v639 = vunpack.c.l.b16 %v415
        %v640 = vunpack.c.l.b16 %v416
        %v641 = vunpack.c.l.b16 %v417
        %v642 = vunpack.c.l.b16 %v418
        %v643 = vunpack.c.l.b16 %v419
        %v644 = vunpack.c.l.b16 %v420
        %v645 = vunpack.c.l.b16 %v421
        %v646 = vunpack.c.l.b16 %v422
        %v647 = vunpack.c.l.b16 %v423
        %v648 = vunpack.c.l.b16 %v424
        %v649 = vunpack.c.l.b16 %v425
        %v650 = vunpack.c.l.b16 %v426
        %v651 = vunpack.c.l.b16 %v427
        %v652 = vunpack.c.l.b16 %v428
        %v653 = vunpack.c.l.b16 %v429
        %v654 = vunpack.c.l.b16 %v430
        %v655 = vunpack.c.l.b16 %v431
        %v656 = vunpack.c.l.b16 %v432
        %v657 = vunpack.c.l.b16 %v433
        %v658 = vunpack.c.l.b16 %v434
        %v659 = vunpack.c.l.b16 %v435
        %v660 = vunpack.c.l.b16 %v436
        %v661 = vunpack.c.l.b16 %v437
        %v662 = vunpack.c.l.b16 %v438
        %v663 = vunpack.c.l.b16 %v439
        %v664 = vunpack.c.l.b16 %v440
        %v665 = vunpack.c.l.b16 %v441
        %v666 = vunpack.c.l.b16 %v442
        %v667 = vunpack.c.l.b16 %v443
        %v668 = vunpack.c.l.b16 %v444
        %v669 = vunpack.c.l.b16 %v445
        %v670 = vpack.c.b16 %v639, %v638
        %v671 = vpack.c.b16 %v641, %v640
        %v672 = vpack.c.b16 %v643, %v642
        %v673 = vpack.c.b16 %v645, %v644
        %v674 = vpack.c.b16 %v647, %v646
        %v675 = vpack.c.b16 %v649, %v648
        %v676 = vpack.c.b16 %v651, %v650
        %v677 = vpack.c.b16 %v653, %v652
        %v678 = vpack.c.b16 %v655, %v654
        %v679 = vpack.c.b16 %v657, %v656
        %v680 = vpack.c.b16 %v659, %v658
        %v681 = vpack.c.b16 %v661, %v660
        %v682 = vpack.c.b16 %v663, %v662
        %v683 = vpack.c.b16 %v665, %v664
        %v684 = vpack.c.b16 %v667, %v666
        %v685 = vpack.c.b16 %v669, %v668
        %702 = vmatprep.subr.bf16.mxu0 0
        %703 = vmatpush1.bf16.msra.mxu0 %v670
        %704 = vmatprep.subr.bf16.mxu0 0
        %705 = vmatpush1.bf16.msra.mxu0 %v671
        %706 = vmatprep.subr.bf16.mxu0 0
        %707 = vmatpush1.bf16.msra.mxu0 %v672
        %708 = vmatprep.subr.bf16.mxu0 0
        %709 = vmatpush1.bf16.msra.mxu0 %v673
        %710 = vmatprep.subr.bf16.mxu0 0
        %711 = vmatpush1.bf16.msra.mxu0 %v674
        %712 = vmatprep.subr.bf16.mxu0 0
        %713 = vmatpush1.bf16.msra.mxu0 %v675
        %714 = vmatprep.subr.bf16.mxu0 0
        %715 = vmatpush1.bf16.msra.mxu0 %v676
        %716 = vmatprep.subr.bf16.mxu0 0
        %717 = vmatpush1.bf16.msra.mxu0 %v677
        %718 = vmatprep.subr.bf16.mxu0 0
        %719 = vmatpush1.bf16.msra.mxu0 %v678
        %720 = vmatprep.subr.bf16.mxu0 0
        %721 = vmatpush1.bf16.msra.mxu0 %v679
        %722 = vmatprep.subr.bf16.mxu0 0
        %723 = vmatpush1.bf16.msra.mxu0 %v680
        %724 = vmatprep.subr.bf16.mxu0 0
        %725 = vmatpush1.bf16.msra.mxu0 %v681
        %726 = vmatprep.subr.bf16.mxu0 0
        %727 = vmatpush1.bf16.msra.mxu0 %v682
        %728 = vmatprep.subr.bf16.mxu0 0
        %729 = vmatpush1.bf16.msra.mxu0 %v683
        %730 = vmatprep.subr.bf16.mxu0 0
        %731 = vmatpush1.bf16.msra.mxu0 %v684
        %732 = vmatprep.subr.bf16.mxu0 0
        %733 = vmatpush1.bf16.msra.mxu0 %v685
        %734 = vmatprep.mubr.bf16.mxu0 %v543
        %735 = vmatmul.mubr.bf16.gmra.mrb[0].mxu0 %v542
        %v736 = vpop.f32.mrb[0].mxu0
        %v737 = vadd.f32 0.0, %v736
        %v738 = vpop.f32.mrb[0].mxu0
        %v739 = vpop.f32.mrb[0].mxu0
        %v740 = vadd.f32 0.0, %v739
        %v741 = vpop.f32.mrb[0].mxu0
        %742 = vmatprep.mubr.bf16.mxu0 %v545
        %743 = vmatmul.mubr.bf16.gmra.mrb[0].mxu0 %v544
        %v744 = vpop.f32.mrb[0].mxu0
        %v745 = vadd.f32 0.0, %v744
        %v746 = vpop.f32.mrb[0].mxu0
        %v747 = vpop.f32.mrb[0].mxu0
        %v748 = vadd.f32 0.0, %v747
        %v749 = vpop.f32.mrb[0].mxu0
        %750 = vmatprep.mubr.bf16.mxu0 %v547
        %751 = vmatmul.mubr.bf16.gmra.mrb[0].mxu0 %v546
        %v752 = vpop.f32.mrb[0].mxu0
        %v753 = vadd.f32 0.0, %v752
        %v754 = vpop.f32.mrb[0].mxu0
        %v755 = vpop.f32.mrb[0].mxu0
        %v756 = vadd.f32 0.0, %v755
        %v757 = vpop.f32.mrb[0].mxu0
        %758 = vmatprep.mubr.bf16.mxu0 %v549
        %759 = vmatmul.mubr.bf16.gmra.mrb[0].mxu0 %v548
        %v760 = vpop.f32.mrb[0].mxu0
        %v761 = vadd.f32 0.0, %v760
        %v762 = vpop.f32.mrb[0].mxu0
        %v763 = vpop.f32.mrb[0].mxu0
        %v764 = vadd.f32 0.0, %v763
        %v765 = vpop.f32.mrb[0].mxu0
        %766 = vmatprep.mubr.bf16.mxu0 %v551
        %767 = vmatmul.mubr.bf16.gmra.mrb[0].mxu0 %v550
        %v768 = vpop.f32.mrb[0].mxu0
        %v769 = vadd.f32 0.0, %v768
        %v770 = vpop.f32.mrb[0].mxu0
        %v771 = vpop.f32.mrb[0].mxu0
        %v772 = vadd.f32 0.0, %v771
        %v773 = vpop.f32.mrb[0].mxu0
        %774 = vmatprep.mubr.bf16.mxu0 %v553
        %775 = vmatmul.mubr.bf16.gmra.mrb[0].mxu0 %v552
        %v776 = vpop.f32.mrb[0].mxu0
        %v777 = vadd.f32 0.0, %v776
        %v778 = vpop.f32.mrb[0].mxu0
        %v779 = vpop.f32.mrb[0].mxu0
        %v780 = vadd.f32 0.0, %v779
        %v781 = vpop.f32.mrb[0].mxu0
        %782 = vmatprep.mubr.bf16.mxu0 %v555
        %783 = vmatmul.mubr.bf16.gmra.mrb[0].mxu0 %v554
        %v784 = vpop.f32.mrb[0].mxu0
        %v785 = vadd.f32 0.0, %v784
        %v786 = vpop.f32.mrb[0].mxu0
        %v787 = vpop.f32.mrb[0].mxu0
        %v788 = vadd.f32 0.0, %v787
        %v789 = vpop.f32.mrb[0].mxu0
        %790 = vmatprep.mubr.bf16.mxu0 %v557
        %791 = vmatmul.mubr.bf16.gmra.mrb[0].mxu0 %v556
        %v792 = vpop.f32.mrb[0].mxu0
        %v793 = vadd.f32 0.0, %v792
        %v794 = vpop.f32.mrb[0].mxu0
        %v795 = vpop.f32.mrb[0].mxu0
        %v796 = vadd.f32 0.0, %v795
        %v797 = vpop.f32.mrb[0].mxu0
        %798 = vmatprep.mubr.bf16.mxu0 %v559
        %799 = vmatmul.mubr.bf16.gmra.mrb[0].mxu0 %v558
        %v800 = vpop.f32.mrb[0].mxu0
        %v801 = vadd.f32 0.0, %v800
        %v802 = vpop.f32.mrb[0].mxu0
        %v803 = vpop.f32.mrb[0].mxu0
        %v804 = vadd.f32 0.0, %v803
        %v805 = vpop.f32.mrb[0].mxu0
        %806 = vmatprep.mubr.bf16.mxu0 %v561
        %807 = vmatmul.mubr.bf16.gmra.mrb[0].mxu0 %v560
        %v808 = vpop.f32.mrb[0].mxu0
        %v809 = vadd.f32 0.0, %v808
        %v810 = vpop.f32.mrb[0].mxu0
        %v811 = vpop.f32.mrb[0].mxu0
        %v812 = vadd.f32 0.0, %v811
        %v813 = vpop.f32.mrb[0].mxu0
        %814 = vmatprep.mubr.bf16.mxu0 %v563
        %815 = vmatmul.mubr.bf16.gmra.mrb[0].mxu0 %v562
        %v816 = vpop.f32.mrb[0].mxu0
        %v817 = vadd.f32 0.0, %v816
        %v818 = vpop.f32.mrb[0].mxu0
        %v819 = vpop.f32.mrb[0].mxu0
        %v820 = vadd.f32 0.0, %v819
        %v821 = vpop.f32.mrb[0].mxu0
        %822 = vmatprep.mubr.bf16.mxu0 %v565
        %823 = vmatmul.mubr.bf16.gmra.mrb[0].mxu0 %v564
        %v824 = vpop.f32.mrb[0].mxu0
        %v825 = vadd.f32 0.0, %v824
        %v826 = vpop.f32.mrb[0].mxu0
        %v827 = vpop.f32.mrb[0].mxu0
        %v828 = vadd.f32 0.0, %v827
        %v829 = vpop.f32.mrb[0].mxu0
        %830 = vmatprep.mubr.bf16.mxu0 %v567
        %831 = vmatmul.mubr.bf16.gmra.mrb[0].mxu0 %v566
        %v832 = vpop.f32.mrb[0].mxu0
        %v833 = vadd.f32 0.0, %v832
        %v834 = vpop.f32.mrb[0].mxu0
        %v835 = vpop.f32.mrb[0].mxu0
        %v836 = vadd.f32 0.0, %v835
        %v837 = vpop.f32.mrb[0].mxu0
        %838 = vmatprep.mubr.bf16.mxu0 %v569
        %839 = vmatmul.mubr.bf16.gmra.mrb[0].mxu0 %v568
        %v840 = vpop.f32.mrb[0].mxu0
        %v841 = vadd.f32 0.0, %v840
        %v842 = vpop.f32.mrb[0].mxu0
        %v843 = vpop.f32.mrb[0].mxu0
        %v844 = vadd.f32 0.0, %v843
        %v845 = vpop.f32.mrb[0].mxu0
        %846 = vmatprep.mubr.bf16.mxu0 %v571
        %847 = vmatmul.mubr.bf16.gmra.mrb[0].mxu0 %v570
        %v848 = vpop.f32.mrb[0].mxu0
        %v849 = vadd.f32 0.0, %v848
        %v850 = vpop.f32.mrb[0].mxu0
        %v851 = vpop.f32.mrb[0].mxu0
        %v852 = vadd.f32 0.0, %v851
        %v853 = vpop.f32.mrb[0].mxu0
        %854 = vmatprep.mubr.bf16.mxu0 %v573
        %855 = vmatmul.mubr.bf16.gmra.mrb[0].mxu0 %v572
        %v856 = vpop.f32.mrb[0].mxu0
        %v857 = vadd.f32 0.0, %v856
        %v858 = vpop.f32.mrb[0].mxu0
        %v859 = vpop.f32.mrb[0].mxu0
        %v860 = vadd.f32 0.0, %v859
        %v861 = vpop.f32.mrb[0].mxu0
        %862 = vdwg.mxu0
        %v863 = vadd.f32 %v350, %v737
        %v864 = vadd.f32 %v351, %v740
        %v865 = vadd.f32 %v352, %v745
        %v866 = vadd.f32 %v353, %v748
        %v867 = vadd.f32 %v354, %v753
        %v868 = vadd.f32 %v355, %v756
        %v869 = vadd.f32 %v356, %v761
        %v870 = vadd.f32 %v357, %v764
        %v871 = vadd.f32 %v358, %v769
        %v872 = vadd.f32 %v359, %v772
        %v873 = vadd.f32 %v360, %v777
        %v874 = vadd.f32 %v361, %v780
        %v875 = vadd.f32 %v362, %v785
        %v876 = vadd.f32 %v363, %v788
        %v877 = vadd.f32 %v364, %v793
        %v878 = vadd.f32 %v365, %v796
        %v879 = vadd.f32 %v366, %v801
        %v880 = vadd.f32 %v367, %v804
        %v881 = vadd.f32 %v368, %v809
        %v882 = vadd.f32 %v369, %v812
        %v883 = vadd.f32 %v370, %v817
        %v884 = vadd.f32 %v371, %v820
        %v885 = vadd.f32 %v372, %v825
        %v886 = vadd.f32 %v373, %v828
        %v887 = vadd.f32 %v374, %v833
        %v888 = vadd.f32 %v375, %v836
        %v889 = vadd.f32 %v376, %v841
        %v890 = vadd.f32 %v377, %v844
        %v891 = vadd.f32 %v378, %v849
        %v892 = vadd.f32 %v379, %v852
        %v893 = vadd.f32 %v380, %v857
        %v894 = vadd.f32 %v381, %v860
        %895 = vst [vmem:[#allocation2] sm:$0xff] %v863
        %896 = vst [vmem:[#allocation2 + $0x8] sm:$0xff] %v864
        %897 = vst [vmem:[#allocation2 + $0x10] sm:$0xff] %v865
        %898 = vst [vmem:[#allocation2 + $0x18] sm:$0xff] %v866
        %899 = vst [vmem:[#allocation2 + $0x20] sm:$0xff] %v867
        %900 = vst [vmem:[#allocation2 + $0x28] sm:$0xff] %v868
        %901 = vst [vmem:[#allocation2 + $0x30] sm:$0xff] %v869
        %902 = vst [vmem:[#allocation2 + $0x38] sm:$0xff] %v870
        %903 = vst [vmem:[#allocation2 + $0x40] sm:$0xff] %v871
        %904 = vst [vmem:[#allocation2 + $0x48] sm:$0xff] %v872
        %905 = vst [vmem:[#allocation2 + $0x50] sm:$0xff] %v873
        %906 = vst [vmem:[#allocation2 + $0x58] sm:$0xff] %v874
        %907 = vst [vmem:[#allocation2 + $0x60] sm:$0xff] %v875
        %908 = vst [vmem:[#allocation2 + $0x68] sm:$0xff] %v876
        %909 = vst [vmem:[#allocation2 + $0x70] sm:$0xff] %v877
        %910 = vst [vmem:[#allocation2 + $0x78] sm:$0xff] %v878
        %911 = vst [vmem:[#allocation2 + $0x80] sm:$0xff] %v879
        %912 = vst [vmem:[#allocation2 + $0x88] sm:$0xff] %v880
        %913 = vst [vmem:[#allocation2 + $0x90] sm:$0xff] %v881
        %914 = vst [vmem:[#allocation2 + $0x98] sm:$0xff] %v882
        %915 = vst [vmem:[#allocation2 + $0xa0] sm:$0xff] %v883
        %916 = vst [vmem:[#allocation2 + $0xa8] sm:$0xff] %v884
        %917 = vst [vmem:[#allocation2 + $0xb0] sm:$0xff] %v885
        %918 = vst [vmem:[#allocation2 + $0xb8] sm:$0xff] %v886
        %919 = vst [vmem:[#allocation2 + $0xc0] sm:$0xff] %v887
        %920 = vst [vmem:[#allocation2 + $0xc8] sm:$0xff] %v888
        %921 = vst [vmem:[#allocation2 + $0xd0] sm:$0xff] %v889
        %922 = vst [vmem:[#allocation2 + $0xd8] sm:$0xff] %v890
        %923 = vst [vmem:[#allocation2 + $0xe0] sm:$0xff] %v891
        %924 = vst [vmem:[#allocation2 + $0xe8] sm:$0xff] %v892
        %925 = vst [vmem:[#allocation2 + $0xf0] sm:$0xff] %v893
        %926 = vst [vmem:[#allocation2 + $0xf8] sm:$0xff] %v894
        // Predicated region
        $region49: #{dcnn_nariqa_forward.5} parent=31 // pred_check
          %p927 = pneg %p314
        $region50: #{dcnn_nariqa_forward.5} parent=31 // pred_check_branch
          %929 = sbr.rel (%p927) target = $region52
        $region51: #{dcnn_nariqa_forward.5} parent=31 // pred_region
          %v930 = vld [vmem:[#allocation2] sm:$0xff]
          %v931 = vld [vmem:[#allocation2 + $0x8] sm:$0xff]
          %v932 = vld [vmem:[#allocation2 + $0x10] sm:$0xff]
          %v933 = vld [vmem:[#allocation2 + $0x18] sm:$0xff]
          %v934 = vld [vmem:[#allocation2 + $0x20] sm:$0xff]
          %v935 = vld [vmem:[#allocation2 + $0x28] sm:$0xff]
          %v936 = vld [vmem:[#allocation2 + $0x30] sm:$0xff]
          %v937 = vld [vmem:[#allocation2 + $0x38] sm:$0xff]
          %v938 = vld [vmem:[#allocation2 + $0x40] sm:$0xff]
          %v939 = vld [vmem:[#allocation2 + $0x48] sm:$0xff]
          %v940 = vld [vmem:[#allocation2 + $0x50] sm:$0xff]
          %v941 = vld [vmem:[#allocation2 + $0x58] sm:$0xff]
          %v942 = vld [vmem:[#allocation2 + $0x60] sm:$0xff]
          %v943 = vld [vmem:[#allocation2 + $0x68] sm:$0xff]
          %v944 = vld [vmem:[#allocation2 + $0x70] sm:$0xff]
          %v945 = vld [vmem:[#allocation2 + $0x78] sm:$0xff]
          %v946 = vld [vmem:[#allocation2 + $0x80] sm:$0xff]
          %v947 = vld [vmem:[#allocation2 + $0x88] sm:$0xff]
          %v948 = vld [vmem:[#allocation2 + $0x90] sm:$0xff]
          %v949 = vld [vmem:[#allocation2 + $0x98] sm:$0xff]
          %v950 = vld [vmem:[#allocation2 + $0xa0] sm:$0xff]
          %v951 = vld [vmem:[#allocation2 + $0xa8] sm:$0xff]
          %v952 = vld [vmem:[#allocation2 + $0xb0] sm:$0xff]
          %v953 = vld [vmem:[#allocation2 + $0xb8] sm:$0xff]
          %v954 = vld [vmem:[#allocation2 + $0xc0] sm:$0xff]
          %v955 = vld [vmem:[#allocation2 + $0xc8] sm:$0xff]
          %v956 = vld [vmem:[#allocation2 + $0xd0] sm:$0xff]
          %v957 = vld [vmem:[#allocation2 + $0xd8] sm:$0xff]
          %v958 = vld [vmem:[#allocation2 + $0xe0] sm:$0xff]
          %v959 = vld [vmem:[#allocation2 + $0xe8] sm:$0xff]
          %v960 = vld [vmem:[#allocation2 + $0xf0] sm:$0xff]
          %v961 = vld [vmem:[#allocation2 + $0xf8] sm:$0xff]
          %v962 = vld [vmem:[%s277] sm:$0x1]
          %v964 = vlaneseq
          %v965 = vshrl.u32 %v964, 7
          %v966 = vsub.s32 0, %v965
          %v967 = vrot.slane %v962, %v966
          %v969 = vadd.f32 %v930, %v967
          %v970 = vadd.f32 %v931, %v967
          %v971 = vadd.f32 %v932, %v967
          %v972 = vadd.f32 %v933, %v967
          %v973 = vadd.f32 %v934, %v967
          %v974 = vadd.f32 %v935, %v967
          %v975 = vadd.f32 %v936, %v967
          %v976 = vadd.f32 %v937, %v967
          %v977 = vadd.f32 %v938, %v967
          %v978 = vadd.f32 %v939, %v967
          %v979 = vadd.f32 %v940, %v967
          %v980 = vadd.f32 %v941, %v967
          %v981 = vadd.f32 %v942, %v967
          %v982 = vadd.f32 %v943, %v967
          %v983 = vadd.f32 %v944, %v967
          %v984 = vadd.f32 %v945, %v967
          %v985 = vadd.f32 %v946, %v967
          %v986 = vadd.f32 %v947, %v967
          %v987 = vadd.f32 %v948, %v967
          %v988 = vadd.f32 %v949, %v967
          %v989 = vadd.f32 %v950, %v967
          %v990 = vadd.f32 %v951, %v967
          %v991 = vadd.f32 %v952, %v967
          %v992 = vadd.f32 %v953, %v967
          %v993 = vadd.f32 %v954, %v967
          %v994 = vadd.f32 %v955, %v967
          %v995 = vadd.f32 %v956, %v967
          %v996 = vadd.f32 %v957, %v967
          %v997 = vadd.f32 %v958, %v967
          %v998 = vadd.f32 %v959, %v967
          %v999 = vadd.f32 %v960, %v967
          %v1000 = vadd.f32 %v961, %v967
          %v1001 = vmax.f32 %v969, 0.0
          %v1002 = vmax.f32 %v970, 0.0
          %v1003 = vmax.f32 %v971, 0.0
          %v1004 = vmax.f32 %v972, 0.0
          %v1005 = vmax.f32 %v973, 0.0
          %v1006 = vmax.f32 %v974, 0.0
          %v1007 = vmax.f32 %v975, 0.0
          %v1008 = vmax.f32 %v976, 0.0
          %v1009 = vmax.f32 %v977, 0.0
          %v1010 = vmax.f32 %v978, 0.0
          %v1011 = vmax.f32 %v979, 0.0
          %v1012 = vmax.f32 %v980, 0.0
          %v1013 = vmax.f32 %v981, 0.0
          %v1014 = vmax.f32 %v982, 0.0
          %v1015 = vmax.f32 %v983, 0.0
          %v1016 = vmax.f32 %v984, 0.0
          %v1017 = vmax.f32 %v985, 0.0
          %v1018 = vmax.f32 %v986, 0.0
          %v1019 = vmax.f32 %v987, 0.0
          %v1020 = vmax.f32 %v988, 0.0
          %v1021 = vmax.f32 %v989, 0.0
          %v1022 = vmax.f32 %v990, 0.0
          %v1023 = vmax.f32 %v991, 0.0
          %v1024 = vmax.f32 %v992, 0.0
          %v1025 = vmax.f32 %v993, 0.0
          %v1026 = vmax.f32 %v994, 0.0
          %v1027 = vmax.f32 %v995, 0.0
          %v1028 = vmax.f32 %v996, 0.0
          %v1029 = vmax.f32 %v997, 0.0
          %v1030 = vmax.f32 %v998, 0.0
          %v1031 = vmax.f32 %v999, 0.0
          %v1032 = vmax.f32 %v1000, 0.0
          %1033 = vst [vmem:[%s308] sm:$0xff] %v1001
          %1034 = vst [vmem:[%s308 + $0x8] sm:$0xff] %v1002
          %1035 = vst [vmem:[%s308 + $0x10] sm:$0xff] %v1003
          %1036 = vst [vmem:[%s308 + $0x18] sm:$0xff] %v1004
          %1037 = vst [vmem:[%s308 + $0x20] sm:$0xff] %v1005
          %1038 = vst [vmem:[%s308 + $0x28] sm:$0xff] %v1006
          %1039 = vst [vmem:[%s308 + $0x30] sm:$0xff] %v1007
          %1040 = vst [vmem:[%s308 + $0x38] sm:$0xff] %v1008
          %1041 = vst [vmem:[%s308 + $0x40] sm:$0xff] %v1009
          %1042 = vst [vmem:[%s308 + $0x48] sm:$0xff] %v1010
          %1043 = vst [vmem:[%s308 + $0x50] sm:$0xff] %v1011
          %1044 = vst [vmem:[%s308 + $0x58] sm:$0xff] %v1012
          %1045 = vst [vmem:[%s308 + $0x60] sm:$0xff] %v1013
          %1046 = vst [vmem:[%s308 + $0x68] sm:$0xff] %v1014
          %1047 = vst [vmem:[%s308 + $0x70] sm:$0xff] %v1015
          %1048 = vst [vmem:[%s308 + $0x78] sm:$0xff] %v1016
          %1049 = vst [vmem:[%s308 + $0x80] sm:$0xff] %v1017
          %1050 = vst [vmem:[%s308 + $0x88] sm:$0xff] %v1018
          %1051 = vst [vmem:[%s308 + $0x90] sm:$0xff] %v1019
          %1052 = vst [vmem:[%s308 + $0x98] sm:$0xff] %v1020
          %1053 = vst [vmem:[%s308 + $0xa0] sm:$0xff] %v1021
          %1054 = vst [vmem:[%s308 + $0xa8] sm:$0xff] %v1022
          %1055 = vst [vmem:[%s308 + $0xb0] sm:$0xff] %v1023
          %1056 = vst [vmem:[%s308 + $0xb8] sm:$0xff] %v1024
          %1057 = vst [vmem:[%s308 + $0xc0] sm:$0xff] %v1025
          %1058 = vst [vmem:[%s308 + $0xc8] sm:$0xff] %v1026
          %1059 = vst [vmem:[%s308 + $0xd0] sm:$0xff] %v1027
          %1060 = vst [vmem:[%s308 + $0xd8] sm:$0xff] %v1028
          %1061 = vst [vmem:[%s308 + $0xe0] sm:$0xff] %v1029
          %1062 = vst [vmem:[%s308 + $0xe8] sm:$0xff] %v1030
          %1063 = vst [vmem:[%s308 + $0xf0] sm:$0xff] %v1031
          %1064 = vst [vmem:[%s308 + $0xf8] sm:$0xff] %v1032
        $region52: #{dcnn_nariqa_forward.5} parent=31 // pred_fallthru
          _
        %s1065 = sand.u32 %s149, 1
        %s1066 = scalar_lea.sflag [#allocation5], %s1065
        %s1067 = sand.u32 %s149, 1
        %s1068 = smul.addr %s1067, 256
        %s1069 = scalar_lea.vmem [#allocation9], %s1068
        // Predicated region
        $region53: #{dcnn_nariqa_forward.5} parent=31 // pred_check
          %p1070 = pneg %p159
        $region54: #{dcnn_nariqa_forward.5} parent=31 // pred_check_branch
          %1072 = sbr.rel (%p1070) target = $region56
        $region55: #{dcnn_nariqa_forward.5} parent=31 // pred_region
          %s1073 = smul.u32 32, %s30
          %s1075 = ssub.s32 4096, 4096
          %1076 = vsyncadd %s1066, %s1075
          %s1077 = sadd.s32 %s31, %s1073
          %s1078 = smul.addr %s29, 64
          %s1079 = sadd.s32 %s1077, %s1078
          %s1080 = smul.addr %s1079, 128
          %s1081 = scalar_lea.hbm %s3, %s1080
          %s1082 = sshll.u32 %s1069, 4
          %s1083 = int_to_ptr.vmem [resolvable:$true] %s1082
          %1088 = dma.vmem_to_hbm [thread:$0]  %s1083, 4096, %s1081, %s1066, 128, 128, 8
        $region56: #{dcnn_nariqa_forward.5} parent=31 // pred_fallthru
          _
      $region32: #{dcnn_nariqa_forward.5} parent=5 // pred_fallthru
        _
      %p1089 = scmp.le.s32.totalorder 2, %s18
      // Predicated region
      $region57: #{dcnn_nariqa_forward.5} parent=5 // pred_check
        %p1090 = pneg %p1089
      $region58: #{dcnn_nariqa_forward.5} parent=5 // pred_check_branch
        %1092 = sbr.rel (%p1090) target = $region60
      $region59: #{dcnn_nariqa_forward.5} parent=5 // pred_region
        %s1093 = ssub.s32 %s18, 2
        // Predicated region
        $region61: #{dcnn_nariqa_forward.5} parent=59 // pred_check
          %p1094 = pneg %p165
        $region62: #{dcnn_nariqa_forward.5} parent=59 // pred_check_branch
          %1096 = sbr.rel (%p1094) target = $region64
        $region63: #{dcnn_nariqa_forward.5} parent=59 // pred_region
          %s1097 = sand.u32 %s150, 1
          %s1098 = scalar_lea.sflag [#allocation5], %s1097
          %s1099 = sand.u32 %s150, 1
          %s1100 = smul.addr %s1099, 256
          %s1101 = scalar_lea.vmem [#allocation9], %s1100
          %1102 = dma.done %s1098, 4096
        $region64: #{dcnn_nariqa_forward.5} parent=59 // pred_fallthru
          _
      $region60: #{dcnn_nariqa_forward.5} parent=5 // pred_fallthru
        _
    $region6: #{dcnn_nariqa_forward.5} parent=1 // loop_footer
      %s22 = sadd.s32 1, %s18
    $region7: #{dcnn_nariqa_forward.5} parent=1 // loop_footer_branch
      %17 = sbr.rel target = $region3
    $region8: #{dcnn_nariqa_forward.5} parent=1 // loop_exit
      _
    %1103 = vsyncpa [#allocation4], 1
    %s1104 = scalar_lea.sflag [#allocation4], 1
    %1105 = vsyncpa %s1104, 1
    %1106 = vsyncpa [#allocation7], 1
    %s1107 = scalar_lea.sflag [#allocation7], 1
    %1108 = vsyncpa %s1107, 1
    %1109 = vsyncpa [#allocation5], 1
    %s1110 = scalar_lea.sflag [#allocation5], 1
    %1111 = vsyncpa %s1110, 1

// kernel: dcnn_nariqa_forward.6
$region0: #{dcnn_nariqa_forward.6}
  #allocation0 [shape = 'u32[]', space=smem, size = 0x4, offset = 0x4, fixed_abs, tag = 'smem constant byte address 0x4 - core index']
  #allocation1 [shape = 'u32[144,128]{1,0:T(1,128)}', space=vmem, size = 0x12000, scoped, tag = 'internal scratch']
  %s0 = inlined_call_operand.vmem [shape: f32[4,13,13,128], index: 0, kind: input, shape index: {}]
  %s1 = inlined_call_operand.vmem [shape: f32[4,9,9,128], index: 1, kind: output, shape index: {}]
  %s2 = sld [smem:[#allocation0]]
  $region37: #{dcnn_nariqa_forward.6} parent=0
    _
  %s4 = ssub.s32 1, %s2
  %s5 = scalar_select 0, %s4, %s2
  loop: start=0, step=1, limit=6
  $region2: #{dcnn_nariqa_forward.6} parent=0 // loop_pre_header
    _
  $region3: #{dcnn_nariqa_forward.6} parent=0 // loop_header
    %s7 = sphi 0, %s11
    %p8 = scmp.ge.s32.totalorder %s7, 6
    %s17 = sphi 0, %s19
    %s20 = sphi 0, %s17
    %s21 = sphi 0, %s20
    %s37 = sphi 0, %s21
    %s43 = sphi 0, %s45
    %s46 = sphi 0, %s43
    %s47 = sphi 0, %s46
    %s63 = sphi 0, %s47
  $region4: #{dcnn_nariqa_forward.6} parent=0 // loop_header_branch
    %10 = sbr.rel (%p8) target = $region8
  $region5: #{dcnn_nariqa_forward.6} parent=0 // loop_body
    %s12 = ssub.s32 %s7, 1
    %s13 = ssub.s32 %s7, 2
    %s14 = sadd.s32 %s7, 1
    %s15 = ssub.s32 %s7, %s14
    %p16 = scmp.eq.s32.totalorder %s15, 0
    %s18 = sadd.s32 %s17, 1
    %s19 = scalar_select %p16, %s17, %s18
    %p22 = pneg %p16
    %p23 = scmp.eq.s32.totalorder %s7, 3
    %p24 = por %p22, %p23
    %p25 = scmp.ne.s32.totalorder %s17, %s20
    %p26 = scmp.eq.s32.totalorder %s7, 0
    %p27 = por %p25, %p26
    %p28 = scmp.ne.s32.totalorder %s17, %s20
    %p29 = scmp.eq.s32.totalorder %s12, 3
    %p30 = por %p28, %p29
    %p31 = scmp.ne.s32.totalorder %s20, %s21
    %p32 = scmp.eq.s32.totalorder %s12, 0
    %p33 = por %p31, %p32
    %p34 = scmp.ne.s32.totalorder %s20, %s21
    %p35 = scmp.eq.s32.totalorder %s13, 3
    %p36 = por %p34, %p35
    %p38 = scmp.ne.s32.totalorder %s21, %s37
    %p39 = scmp.eq.s32.totalorder %s13, 0
    %p40 = por %p38, %p39
    %s41 = ssub.s32 %s7, %s14
    %p42 = scmp.eq.s32.totalorder %s41, 0
    %s44 = sadd.s32 %s43, 1
    %s45 = scalar_select %p42, %s43, %s44
    %p48 = pneg %p42
    %p49 = scmp.eq.s32.totalorder %s7, 3
    %p50 = por %p48, %p49
    %p51 = scmp.ne.s32.totalorder %s43, %s46
    %p52 = scmp.eq.s32.totalorder %s7, 0
    %p53 = por %p51, %p52
    %p54 = scmp.ne.s32.totalorder %s43, %s46
    %p55 = scmp.eq.s32.totalorder %s12, 3
    %p56 = por %p54, %p55
    %p57 = scmp.ne.s32.totalorder %s46, %s47
    %p58 = scmp.eq.s32.totalorder %s12, 0
    %p59 = por %p57, %p58
    %p60 = scmp.ne.s32.totalorder %s46, %s47
    %p61 = scmp.eq.s32.totalorder %s13, 3
    %p62 = por %p60, %p61
    %p64 = scmp.ne.s32.totalorder %s47, %s63
    %p65 = scmp.eq.s32.totalorder %s13, 0
    %p66 = por %p64, %p65
    %p67 = scmp.le.s32.totalorder 1, %s7
    %p68 = scmp.lt.s32.totalorder %s7, 5
    %p69 = pnand %p67, %p68
    %p70 = pneg %p69
    // Predicated region
    $region9: #{dcnn_nariqa_forward.6} parent=5 // pred_check
      _
    $region10: #{dcnn_nariqa_forward.6} parent=5 // pred_check_branch
      %72 = sbr.rel (%p69) target = $region12
    $region11: #{dcnn_nariqa_forward.6} parent=5 // pred_region
      %s73 = ssub.s32 %s7, 1
    $region12: #{dcnn_nariqa_forward.6} parent=5 // pred_fallthru
      _
    %p74 = scmp.lt.s32.totalorder %s7, 4
    // Predicated region
    $region13: #{dcnn_nariqa_forward.6} parent=5 // pred_check
      %p75 = pneg %p74
    $region14: #{dcnn_nariqa_forward.6} parent=5 // pred_check_branch
      %77 = sbr.rel (%p75) target = $region16
    $region15: #{dcnn_nariqa_forward.6} parent=5 // pred_region
      // Predicated region
      $region17: #{dcnn_nariqa_forward.6} parent=15 // pred_check
        %p78 = pneg %p27
      $region18: #{dcnn_nariqa_forward.6} parent=15 // pred_check_branch
        %80 = sbr.rel (%p78) target = $region20
      $region19: #{dcnn_nariqa_forward.6} parent=15 // pred_region
        %p81 = scmp.lt.s32.totalorder %s7, 3
        %s82 = scalar_select %p81, %s7, 3
        %s83 = smul.addr %s82, 26
        %s84 = smul.addr %s83, 8
        %s85 = scalar_lea.vmem %s0, %s84
      $region20: #{dcnn_nariqa_forward.6} parent=15 // pred_fallthru
        _
    $region16: #{dcnn_nariqa_forward.6} parent=5 // pred_fallthru
      _
    %p86 = scmp.le.s32.totalorder 1, %s7
    %p87 = scmp.lt.s32.totalorder %s7, 5
    %p88 = pnand %p86, %p87
    %p89 = pneg %p88
    // Predicated region
    $region21: #{dcnn_nariqa_forward.6} parent=5 // pred_check
      _
    $region22: #{dcnn_nariqa_forward.6} parent=5 // pred_check_branch
      %91 = sbr.rel (%p88) target = $region24
    $region23: #{dcnn_nariqa_forward.6} parent=5 // pred_region
      %s92 = ssub.s32 %s7, 1
      %p93 = scmp.lt.s32.totalorder %s12, 3
      %s94 = scalar_select %p93, %s12, 3
      %s95 = smul.addr %s94, 26
      %s96 = smul.addr %s95, 8
      %s97 = scalar_lea.vmem %s0, %s96
      %p98 = pneg %p33
      %p99 = pneg %p30
      %p100 = pneg %p59
      %p101 = pneg %p56
      %p102 = scmp.lt.s32.totalorder %s12, 3
      %s103 = scalar_select %p102, %s12, 3
      %s104 = smul.addr %s103, 18
      %s105 = smul.addr %s104, 8
      %s106 = scalar_lea.vmem %s1, %s105
      %p107 = scmp.lt.s32.totalorder %s12, 3
      %s108 = scalar_select %p107, %s12, 3
      %s109 = smul.addr %s108, 26
      %s110 = smul.addr %s109, 8
      %s111 = scalar_lea.vmem %s0, %s110
      %p112 = scmp.lt.s32.totalorder %s12, 3
      %s113 = scalar_select %p112, %s12, 3
      %s114 = smul.addr %s113, 18
      %s115 = smul.addr %s114, 8
      %s116 = scalar_lea.vmem %s1, %s115
      %v117 = vld [vmem:[%s111] sm:$0xff]
      %v118 = vld [vmem:[%s111 + $0x8] sm:$0x1f]
      %v119 = vld [vmem:[%s111 + $0x10] sm:$0xff]
      %v120 = vld [vmem:[%s111 + $0x18] sm:$0x1f]
      %v121 = vld [vmem:[%s111 + $0x20] sm:$0xff]
      %v122 = vld [vmem:[%s111 + $0x28] sm:$0x1f]
      %v123 = vld [vmem:[%s111 + $0x30] sm:$0xff]
      %v124 = vld [vmem:[%s111 + $0x38] sm:$0x1f]
      %v125 = vld [vmem:[%s111 + $0x40] sm:$0xff]
      %v126 = vld [vmem:[%s111 + $0x48] sm:$0x1f]
      %v127 = vld [vmem:[%s111 + $0x50] sm:$0xff]
      %v128 = vld [vmem:[%s111 + $0x58] sm:$0x1f]
      %v129 = vld [vmem:[%s111 + $0x60] sm:$0xff]
      %v130 = vld [vmem:[%s111 + $0x68] sm:$0x1f]
      %v131 = vld [vmem:[%s111 + $0x70] sm:$0xff]
      %v132 = vld [vmem:[%s111 + $0x78] sm:$0x1f]
      %v133 = vld [vmem:[%s111 + $0x80] sm:$0xff]
      %v134 = vld [vmem:[%s111 + $0x88] sm:$0x1f]
      %v135 = vld [vmem:[%s111 + $0x90] sm:$0xff]
      %v136 = vld [vmem:[%s111 + $0x98] sm:$0x1f]
      %v137 = vld [vmem:[%s111 + $0xa0] sm:$0xff]
      %v138 = vld [vmem:[%s111 + $0xa8] sm:$0x1f]
      %v139 = vld [vmem:[%s111 + $0xb0] sm:$0xff]
      %v140 = vld [vmem:[%s111 + $0xb8] sm:$0x1f]
      %v141 = vld [vmem:[%s111 + $0xc0] sm:$0xff]
      %v142 = vld [vmem:[%s111 + $0xc8] sm:$0x1f]
      %vm169 = vcmask 1046528
      %v170 = vrot.slane %v117, 1
      %v171 = vrot.slane %v118, 1
      %v172 = vsel %vm169, %v170, %v171
      %v173 = vrot.slane %v119, 1
      %v174 = vrot.slane %v120, 1
      %v175 = vsel %vm169, %v173, %v174
      %v176 = vrot.slane %v121, 1
      %v177 = vrot.slane %v122, 1
      %v178 = vsel %vm169, %v176, %v177
      %v179 = vrot.slane %v123, 1
      %v180 = vrot.slane %v124, 1
      %v181 = vsel %vm169, %v179, %v180
      %v182 = vrot.slane %v125, 1
      %v183 = vrot.slane %v126, 1
      %v184 = vsel %vm169, %v182, %v183
      %v185 = vrot.slane %v127, 1
      %v186 = vrot.slane %v128, 1
      %v187 = vsel %vm169, %v185, %v186
      %v188 = vrot.slane %v129, 1
      %v189 = vrot.slane %v130, 1
      %v190 = vsel %vm169, %v188, %v189
      %v191 = vrot.slane %v131, 1
      %v192 = vrot.slane %v132, 1
      %v193 = vsel %vm169, %v191, %v192
      %v194 = vrot.slane %v133, 1
      %v195 = vrot.slane %v134, 1
      %v196 = vsel %vm169, %v194, %v195
      %v197 = vrot.slane %v135, 1
      %v198 = vrot.slane %v136, 1
      %v199 = vsel %vm169, %v197, %v198
      %v200 = vrot.slane %v137, 1
      %v201 = vrot.slane %v138, 1
      %v202 = vsel %vm169, %v200, %v201
      %v203 = vrot.slane %v139, 1
      %v204 = vrot.slane %v140, 1
      %v205 = vsel %vm169, %v203, %v204
      %v206 = vrot.slane %v141, 1
      %v207 = vrot.slane %v142, 1
      %v208 = vsel %vm169, %v206, %v207
      %v235 = vmax.f32 %v117, %v172
      %v236 = vmax.f32 %v118, %v171
      %v237 = vmax.f32 %v119, %v175
      %v238 = vmax.f32 %v120, %v174
      %v239 = vmax.f32 %v121, %v178
      %v240 = vmax.f32 %v122, %v177
      %v241 = vmax.f32 %v123, %v181
      %v242 = vmax.f32 %v124, %v180
      %v243 = vmax.f32 %v125, %v184
      %v244 = vmax.f32 %v126, %v183
      %v245 = vmax.f32 %v127, %v187
      %v246 = vmax.f32 %v128, %v186
      %v247 = vmax.f32 %v129, %v190
      %v248 = vmax.f32 %v130, %v189
      %v249 = vmax.f32 %v131, %v193
      %v250 = vmax.f32 %v132, %v192
      %v251 = vmax.f32 %v133, %v196
      %v252 = vmax.f32 %v134, %v195
      %v253 = vmax.f32 %v135, %v199
      %v254 = vmax.f32 %v136, %v198
      %v255 = vmax.f32 %v137, %v202
      %v256 = vmax.f32 %v138, %v201
      %v257 = vmax.f32 %v139, %v205
      %v258 = vmax.f32 %v140, %v204
      %v259 = vmax.f32 %v141, %v208
      %v260 = vmax.f32 %v142, %v207
      %vm261 = vcmask 1045504
      %v262 = vrot.slane %v117, 2
      %v263 = vrot.slane %v118, 2
      %v264 = vsel %vm261, %v262, %v263
      %v265 = vrot.slane %v119, 2
      %v266 = vrot.slane %v120, 2
      %v267 = vsel %vm261, %v265, %v266
      %v268 = vrot.slane %v121, 2
      %v269 = vrot.slane %v122, 2
      %v270 = vsel %vm261, %v268, %v269
      %v271 = vrot.slane %v123, 2
      %v272 = vrot.slane %v124, 2
      %v273 = vsel %vm261, %v271, %v272
      %v274 = vrot.slane %v125, 2
      %v275 = vrot.slane %v126, 2
      %v276 = vsel %vm261, %v274, %v275
      %v277 = vrot.slane %v127, 2
      %v278 = vrot.slane %v128, 2
      %v279 = vsel %vm261, %v277, %v278
      %v280 = vrot.slane %v129, 2
      %v281 = vrot.slane %v130, 2
      %v282 = vsel %vm261, %v280, %v281
      %v283 = vrot.slane %v131, 2
      %v284 = vrot.slane %v132, 2
      %v285 = vsel %vm261, %v283, %v284
      %v286 = vrot.slane %v133, 2
      %v287 = vrot.slane %v134, 2
      %v288 = vsel %vm261, %v286, %v287
      %v289 = vrot.slane %v135, 2
      %v290 = vrot.slane %v136, 2
      %v291 = vsel %vm261, %v289, %v290
      %v292 = vrot.slane %v137, 2
      %v293 = vrot.slane %v138, 2
      %v294 = vsel %vm261, %v292, %v293
      %v295 = vrot.slane %v139, 2
      %v296 = vrot.slane %v140, 2
      %v297 = vsel %vm261, %v295, %v296
      %v298 = vrot.slane %v141, 2
      %v299 = vrot.slane %v142, 2
      %v300 = vsel %vm261, %v298, %v299
      %v327 = vmax.f32 %v235, %v264
      %v328 = vmax.f32 %v236, %v263
      %v329 = vmax.f32 %v237, %v267
      %v330 = vmax.f32 %v238, %v266
      %v331 = vmax.f32 %v239, %v270
      %v332 = vmax.f32 %v240, %v269
      %v333 = vmax.f32 %v241, %v273
      %v334 = vmax.f32 %v242, %v272
      %v335 = vmax.f32 %v243, %v276
      %v336 = vmax.f32 %v244, %v275
      %v337 = vmax.f32 %v245, %v279
      %v338 = vmax.f32 %v246, %v278
      %v339 = vmax.f32 %v247, %v282
      %v340 = vmax.f32 %v248, %v281
      %v341 = vmax.f32 %v249, %v285
      %v342 = vmax.f32 %v250, %v284
      %v343 = vmax.f32 %v251, %v288
      %v344 = vmax.f32 %v252, %v287
      %v345 = vmax.f32 %v253, %v291
      %v346 = vmax.f32 %v254, %v290
      %v347 = vmax.f32 %v255, %v294
      %v348 = vmax.f32 %v256, %v293
      %v349 = vmax.f32 %v257, %v297
      %v350 = vmax.f32 %v258, %v296
      %v351 = vmax.f32 %v259, %v300
      %v352 = vmax.f32 %v260, %v299
      %vm353 = vcmask 1044480
      %v354 = vrot.slane %v117, 3
      %v355 = vrot.slane %v118, 3
      %v356 = vsel %vm353, %v354, %v355
      %v357 = vrot.slane %v119, 3
      %v358 = vrot.slane %v120, 3
      %v359 = vsel %vm353, %v357, %v358
      %v360 = vrot.slane %v121, 3
      %v361 = vrot.slane %v122, 3
      %v362 = vsel %vm353, %v360, %v361
      %v363 = vrot.slane %v123, 3
      %v364 = vrot.slane %v124, 3
      %v365 = vsel %vm353, %v363, %v364
      %v366 = vrot.slane %v125, 3
      %v367 = vrot.slane %v126, 3
      %v368 = vsel %vm353, %v366, %v367
      %v369 = vrot.slane %v127, 3
      %v370 = vrot.slane %v128, 3
      %v371 = vsel %vm353, %v369, %v370
      %v372 = vrot.slane %v129, 3
      %v373 = vrot.slane %v130, 3
      %v374 = vsel %vm353, %v372, %v373
      %v375 = vrot.slane %v131, 3
      %v376 = vrot.slane %v132, 3
      %v377 = vsel %vm353, %v375, %v376
      %v378 = vrot.slane %v133, 3
      %v379 = vrot.slane %v134, 3
      %v380 = vsel %vm353, %v378, %v379
      %v381 = vrot.slane %v135, 3
      %v382 = vrot.slane %v136, 3
      %v383 = vsel %vm353, %v381, %v382
      %v384 = vrot.slane %v137, 3
      %v385 = vrot.slane %v138, 3
      %v386 = vsel %vm353, %v384, %v385
      %v387 = vrot.slane %v139, 3
      %v388 = vrot.slane %v140, 3
      %v389 = vsel %vm353, %v387, %v388
      %v390 = vrot.slane %v141, 3
      %v391 = vrot.slane %v142, 3
      %v392 = vsel %vm353, %v390, %v391
      %v419 = vmax.f32 %v327, %v356
      %v420 = vmax.f32 %v328, %v355
      %v421 = vmax.f32 %v329, %v359
      %v422 = vmax.f32 %v330, %v358
      %v423 = vmax.f32 %v331, %v362
      %v424 = vmax.f32 %v332, %v361
      %v425 = vmax.f32 %v333, %v365
      %v426 = vmax.f32 %v334, %v364
      %v427 = vmax.f32 %v335, %v368
      %v428 = vmax.f32 %v336, %v367
      %v429 = vmax.f32 %v337, %v371
      %v430 = vmax.f32 %v338, %v370
      %v431 = vmax.f32 %v339, %v374
      %v432 = vmax.f32 %v340, %v373
      %v433 = vmax.f32 %v341, %v377
      %v434 = vmax.f32 %v342, %v376
      %v435 = vmax.f32 %v343, %v380
      %v436 = vmax.f32 %v344, %v379
      %v437 = vmax.f32 %v345, %v383
      %v438 = vmax.f32 %v346, %v382
      %v439 = vmax.f32 %v347, %v386
      %v440 = vmax.f32 %v348, %v385
      %v441 = vmax.f32 %v349, %v389
      %v442 = vmax.f32 %v350, %v388
      %v443 = vmax.f32 %v351, %v392
      %v444 = vmax.f32 %v352, %v391
      %vm445 = vcmask 1043456
      %v446 = vrot.slane %v117, 4
      %v447 = vrot.slane %v118, 4
      %v448 = vsel %vm445, %v446, %v447
      %v449 = vrot.slane %v119, 4
      %v450 = vrot.slane %v120, 4
      %v451 = vsel %vm445, %v449, %v450
      %v452 = vrot.slane %v121, 4
      %v453 = vrot.slane %v122, 4
      %v454 = vsel %vm445, %v452, %v453
      %v455 = vrot.slane %v123, 4
      %v456 = vrot.slane %v124, 4
      %v457 = vsel %vm445, %v455, %v456
      %v458 = vrot.slane %v125, 4
      %v459 = vrot.slane %v126, 4
      %v460 = vsel %vm445, %v458, %v459
      %v461 = vrot.slane %v127, 4
      %v462 = vrot.slane %v128, 4
      %v463 = vsel %vm445, %v461, %v462
      %v464 = vrot.slane %v129, 4
      %v465 = vrot.slane %v130, 4
      %v466 = vsel %vm445, %v464, %v465
      %v467 = vrot.slane %v131, 4
      %v468 = vrot.slane %v132, 4
      %v469 = vsel %vm445, %v467, %v468
      %v470 = vrot.slane %v133, 4
      %v471 = vrot.slane %v134, 4
      %v472 = vsel %vm445, %v470, %v471
      %v473 = vrot.slane %v135, 4
      %v474 = vrot.slane %v136, 4
      %v475 = vsel %vm445, %v473, %v474
      %v476 = vrot.slane %v137, 4
      %v477 = vrot.slane %v138, 4
      %v478 = vsel %vm445, %v476, %v477
      %v479 = vrot.slane %v139, 4
      %v480 = vrot.slane %v140, 4
      %v481 = vsel %vm445, %v479, %v480
      %v482 = vrot.slane %v141, 4
      %v483 = vrot.slane %v142, 4
      %v484 = vsel %vm445, %v482, %v483
      %v511 = vmax.f32 %v419, %v448
      %v512 = vmax.f32 %v420, %v447
      %v513 = vmax.f32 %v421, %v451
      %v514 = vmax.f32 %v422, %v450
      %v515 = vmax.f32 %v423, %v454
      %v516 = vmax.f32 %v424, %v453
      %v517 = vmax.f32 %v425, %v457
      %v518 = vmax.f32 %v426, %v456
      %v519 = vmax.f32 %v427, %v460
      %v520 = vmax.f32 %v428, %v459
      %v521 = vmax.f32 %v429, %v463
      %v522 = vmax.f32 %v430, %v462
      %v523 = vmax.f32 %v431, %v466
      %v524 = vmax.f32 %v432, %v465
      %v525 = vmax.f32 %v433, %v469
      %v526 = vmax.f32 %v434, %v468
      %v527 = vmax.f32 %v435, %v472
      %v528 = vmax.f32 %v436, %v471
      %v529 = vmax.f32 %v437, %v475
      %v530 = vmax.f32 %v438, %v474
      %v531 = vmax.f32 %v439, %v478
      %v532 = vmax.f32 %v440, %v477
      %v533 = vmax.f32 %v441, %v481
      %v534 = vmax.f32 %v442, %v480
      %v535 = vmax.f32 %v443, %v484
      %v536 = vmax.f32 %v444, %v483
      %v537 = vmax.f32 %v511, %v513
      %v538 = vmax.f32 %v512, %v514
      %v539 = vmax.f32 %v513, %v515
      %v540 = vmax.f32 %v514, %v516
      %v541 = vmax.f32 %v515, %v517
      %v542 = vmax.f32 %v516, %v518
      %v543 = vmax.f32 %v517, %v519
      %v544 = vmax.f32 %v518, %v520
      %v545 = vmax.f32 %v519, %v521
      %v546 = vmax.f32 %v520, %v522
      %v547 = vmax.f32 %v521, %v523
      %v548 = vmax.f32 %v522, %v524
      %v549 = vmax.f32 %v523, %v525
      %v550 = vmax.f32 %v524, %v526
      %v551 = vmax.f32 %v525, %v527
      %v552 = vmax.f32 %v526, %v528
      %v553 = vmax.f32 %v527, %v529
      %v554 = vmax.f32 %v528, %v530
      %v555 = vmax.f32 %v537, %v515
      %v556 = vmax.f32 %v538, %v516
      %v557 = vmax.f32 %v539, %v517
      %v558 = vmax.f32 %v540, %v518
      %v559 = vmax.f32 %v541, %v519
      %v560 = vmax.f32 %v542, %v520
      %v561 = vmax.f32 %v543, %v521
      %v562 = vmax.f32 %v544, %v522
      %v563 = vmax.f32 %v545, %v523
      %v564 = vmax.f32 %v546, %v524
      %v565 = vmax.f32 %v547, %v525
      %v566 = vmax.f32 %v548, %v526
      %v567 = vmax.f32 %v549, %v527
      %v568 = vmax.f32 %v550, %v528
      %v569 = vmax.f32 %v551, %v529
      %v570 = vmax.f32 %v552, %v530
      %v571 = vmax.f32 %v553, %v531
      %v572 = vmax.f32 %v554, %v532
      %v573 = vmax.f32 %v555, %v517
      %v574 = vmax.f32 %v556, %v518
      %v575 = vmax.f32 %v557, %v519
      %v576 = vmax.f32 %v558, %v520
      %v577 = vmax.f32 %v559, %v521
      %v578 = vmax.f32 %v560, %v522
      %v579 = vmax.f32 %v561, %v523
      %v580 = vmax.f32 %v562, %v524
      %v581 = vmax.f32 %v563, %v525
      %v582 = vmax.f32 %v564, %v526
      %v583 = vmax.f32 %v565, %v527
      %v584 = vmax.f32 %v566, %v528
      %v585 = vmax.f32 %v567, %v529
      %v586 = vmax.f32 %v568, %v530
      %v587 = vmax.f32 %v569, %v531
      %v588 = vmax.f32 %v570, %v532
      %v589 = vmax.f32 %v571, %v533
      %v590 = vmax.f32 %v572, %v534
      %v591 = vmax.f32 %v573, %v519
      %v592 = vmax.f32 %v574, %v520
      %v593 = vmax.f32 %v575, %v521
      %v594 = vmax.f32 %v576, %v522
      %v595 = vmax.f32 %v577, %v523
      %v596 = vmax.f32 %v578, %v524
      %v597 = vmax.f32 %v579, %v525
      %v598 = vmax.f32 %v580, %v526
      %v599 = vmax.f32 %v581, %v527
      %v600 = vmax.f32 %v582, %v528
      %v601 = vmax.f32 %v583, %v529
      %v602 = vmax.f32 %v584, %v530
      %v603 = vmax.f32 %v585, %v531
      %v604 = vmax.f32 %v586, %v532
      %v605 = vmax.f32 %v587, %v533
      %v606 = vmax.f32 %v588, %v534
      %v607 = vmax.f32 %v589, %v535
      %v608 = vmax.f32 %v590, %v536
      %609 = vst [vmem:[%s116] sm:$0xff] %v591
      %610 = vst [vmem:[%s116 + $0x8] sm:$0x1] %v592
      %611 = vst [vmem:[%s116 + $0x10] sm:$0xff] %v593
      %612 = vst [vmem:[%s116 + $0x18] sm:$0x1] %v594
      %613 = vst [vmem:[%s116 + $0x20] sm:$0xff] %v595
      %614 = vst [vmem:[%s116 + $0x28] sm:$0x1] %v596
      %615 = vst [vmem:[%s116 + $0x30] sm:$0xff] %v597
      %616 = vst [vmem:[%s116 + $0x38] sm:$0x1] %v598
      %617 = vst [vmem:[%s116 + $0x40] sm:$0xff] %v599
      %618 = vst [vmem:[%s116 + $0x48] sm:$0x1] %v600
      %619 = vst [vmem:[%s116 + $0x50] sm:$0xff] %v601
      %620 = vst [vmem:[%s116 + $0x58] sm:$0x1] %v602
      %621 = vst [vmem:[%s116 + $0x60] sm:$0xff] %v603
      %622 = vst [vmem:[%s116 + $0x68] sm:$0x1] %v604
      %623 = vst [vmem:[%s116 + $0x70] sm:$0xff] %v605
      %624 = vst [vmem:[%s116 + $0x78] sm:$0x1] %v606
      %625 = vst [vmem:[%s116 + $0x80] sm:$0xff] %v607
      %626 = vst [vmem:[%s116 + $0x88] sm:$0x1] %v608
      %p627 = scmp.lt.s32.totalorder %s12, 3
      %s628 = scalar_select %p627, %s12, 3
      %s629 = smul.addr %s628, 18
      %s630 = smul.addr %s629, 8
      %s631 = scalar_lea.vmem %s1, %s630
      // Predicated region
      $region25: #{dcnn_nariqa_forward.6} parent=23 // pred_check
        %p632 = pneg %p56
      $region26: #{dcnn_nariqa_forward.6} parent=23 // pred_check_branch
        %634 = sbr.rel (%p632) target = $region28
      $region27: #{dcnn_nariqa_forward.6} parent=23 // pred_region
        _
      $region28: #{dcnn_nariqa_forward.6} parent=23 // pred_fallthru
        _
    $region24: #{dcnn_nariqa_forward.6} parent=5 // pred_fallthru
      _
    %p635 = scmp.le.s32.totalorder 2, %s7
    // Predicated region
    $region29: #{dcnn_nariqa_forward.6} parent=5 // pred_check
      %p636 = pneg %p635
    $region30: #{dcnn_nariqa_forward.6} parent=5 // pred_check_branch
      %638 = sbr.rel (%p636) target = $region32
    $region31: #{dcnn_nariqa_forward.6} parent=5 // pred_region
      %s639 = ssub.s32 %s7, 2
      // Predicated region
      $region33: #{dcnn_nariqa_forward.6} parent=31 // pred_check
        %p640 = pneg %p62
      $region34: #{dcnn_nariqa_forward.6} parent=31 // pred_check_branch
        %642 = sbr.rel (%p640) target = $region36
      $region35: #{dcnn_nariqa_forward.6} parent=31 // pred_region
        %p643 = scmp.lt.s32.totalorder %s13, 3
        %s644 = scalar_select %p643, %s13, 3
        %s645 = smul.addr %s644, 18
        %s646 = smul.addr %s645, 8
        %s647 = scalar_lea.vmem %s1, %s646
      $region36: #{dcnn_nariqa_forward.6} parent=31 // pred_fallthru
        _
    $region32: #{dcnn_nariqa_forward.6} parent=5 // pred_fallthru
      _
  $region6: #{dcnn_nariqa_forward.6} parent=0 // loop_footer
    %s11 = sadd.s32 1, %s7
  $region7: #{dcnn_nariqa_forward.6} parent=0 // loop_footer_branch
    %6 = sbr.rel target = $region3
  $region8: #{dcnn_nariqa_forward.6} parent=0 // loop_exit
    _

// kernel: dcnn_nariqa_forward.7
$region0: #{dcnn_nariqa_forward.7}
  #allocation0 [shape = 'u32[]', space=smem, size = 0x4, offset = 0x4, fixed_abs, tag = 'smem constant byte address 0x4 - core index']
  #allocation1 [shape = 'u32[144,128]{1,0:T(1,128)}', space=vmem, size = 0x12000, scoped, tag = 'internal scratch']
  #allocation2 [shape = 'f32[16,128]{1,0:T(8,128)}', space=vmem, size = 0x2000, scoped, tag = 'scratch operand']
  %s0 = inlined_call_operand.hbm [shape: bf16[2,16,5632], index: 0, kind: input, shape index: {}]
  %s1 = inlined_call_operand.hbm [shape: bf16[2,5632,128], index: 1, kind: input, shape index: {}]
  %s2 = inlined_call_operand.hbm [shape: f32[2,1,128], index: 2, kind: input, shape index: {}]
  %s3 = inlined_call_operand.hbm [shape: f32[2,16,128], index: 3, kind: output, shape index: {}]
  %s4 = sld [smem:[#allocation0]]
  $region65: #{dcnn_nariqa_forward.7} parent=0
    _
  %s6 = ssub.s32 1, %s4
  %s7 = scalar_select 0, %s6, %s4
  $region1: #{dcnn_nariqa_forward.7} parent=0
    #allocation3 [shape = 'u8[32768]{0}', space=vmem, size = 0x8000, scoped, tag = 'input window, operand 0']
    #allocation4 [shape = 's32[2]{0}', space=sflag, size = 0x8, scoped, tag = 'scoped memory for dcnn_nariqa_forward.7']
    #allocation5 [shape = 's32[2]{0}', space=sflag, size = 0x8, scoped, tag = 'scoped memory for dcnn_nariqa_forward.7']
    #allocation6 [shape = 'u8[262144]{0}', space=vmem, size = 0x40000, scoped, tag = 'input window, operand 1']
    #allocation7 [shape = 's32[2]{0}', space=sflag, size = 0x8, scoped, tag = 'scoped memory for dcnn_nariqa_forward.7']
    #allocation8 [shape = 'u8[1024]{0}', space=vmem, size = 0x400, scoped, tag = 'input window, operand 2']
    #allocation9 [shape = 'u8[16384]{0}', space=vmem, size = 0x4000, scoped, tag = 'output window, operand 0']
    %8 = vsyncpa [#allocation4], 0
    %s9 = scalar_lea.sflag [#allocation4], 1
    %10 = vsyncpa %s9, 0
    %11 = vsyncpa [#allocation7], 0
    %s12 = scalar_lea.sflag [#allocation7], 1
    %13 = vsyncpa %s12, 0
    %14 = vsyncpa [#allocation5], 0
    %s15 = scalar_lea.sflag [#allocation5], 1
    %16 = vsyncpa %s15, 0
    loop: start=0, step=1, limit=24
    $region2: #{dcnn_nariqa_forward.7} parent=1 // loop_pre_header
      _
    $region3: #{dcnn_nariqa_forward.7} parent=1 // loop_header
      %s18 = sphi 0, %s22
      %p19 = scmp.ge.s32.totalorder %s18, 24
      %s25 = sphi 0, %s51
      %s26 = sphi 0, %s47
      %s27 = sphi 0, %s43
      %s28 = sphi 0, %s39
      %s29 = sphi 0, %s25
      %s30 = sphi 0, %s26
      %s31 = sphi 0, %s27
      %s32 = sphi 0, %s28
      %s33 = sphi 0, %s29
      %s34 = sphi 0, %s30
      %s35 = sphi 0, %s31
      %s36 = sphi 0, %s32
      %s58 = sphi 0, %s60
      %s61 = sphi 0, %s58
      %s62 = sphi 0, %s61
      %s78 = sphi 0, %s62
      %s88 = sphi 0, %s90
      %s91 = sphi 0, %s88
      %s92 = sphi 0, %s91
      %s108 = sphi 0, %s92
      %s116 = sphi 0, %s118
      %s119 = sphi 0, %s116
      %s120 = sphi 0, %s119
      %s136 = sphi 0, %s120
      %s146 = sphi 0, %s148
      %s149 = sphi 0, %s146
      %s150 = sphi 0, %s149
      %s166 = sphi 0, %s150
    $region4: #{dcnn_nariqa_forward.7} parent=1 // loop_header_branch
      %21 = sbr.rel (%p19) target = $region8
    $region5: #{dcnn_nariqa_forward.7} parent=1 // loop_body
      %s23 = ssub.s32 %s18, 1
      %s24 = ssub.s32 %s18, 2
      %s37 = sadd.s32 1, %s28
      %p38 = scmp.ge.s32.totalorder %s37, 11
      %s39 = scalar_select %p38, 0, %s37
      %s40 = sadd.s32 1, %s27
      %s41 = scalar_select %p38, %s40, %s27
      %p42 = scmp.ge.s32.totalorder %s41, 1
      %s43 = scalar_select %p42, 0, %s41
      %s44 = sadd.s32 1, %s26
      %s45 = scalar_select %p42, %s44, %s26
      %p46 = scmp.ge.s32.totalorder %s45, 1
      %s47 = scalar_select %p46, 0, %s45
      %s48 = sadd.s32 1, %s25
      %s49 = scalar_select %p46, %s48, %s25
      %p50 = scmp.ge.s32.totalorder %s49, 2
      %s51 = scalar_select %p50, 0, %s49
      %s52 = ssub.s32 %s25, %s51
      %s53 = ssub.s32 %s26, %s47
      %s54 = sor.u32 %s52, %s53
      %s55 = ssub.s32 %s28, %s39
      %s56 = sor.u32 %s54, %s55
      %p57 = scmp.eq.s32.totalorder %s56, 0
      %s59 = sadd.s32 %s58, 1
      %s60 = scalar_select %p57, %s58, %s59
      %p63 = pneg %p57
      %p64 = scmp.eq.s32.totalorder %s18, 21
      %p65 = por %p63, %p64
      %p66 = scmp.ne.s32.totalorder %s58, %s61
      %p67 = scmp.eq.s32.totalorder %s18, 0
      %p68 = por %p66, %p67
      %p69 = scmp.ne.s32.totalorder %s58, %s61
      %p70 = scmp.eq.s32.totalorder %s23, 21
      %p71 = por %p69, %p70
      %p72 = scmp.ne.s32.totalorder %s61, %s62
      %p73 = scmp.eq.s32.totalorder %s23, 0
      %p74 = por %p72, %p73
      %p75 = scmp.ne.s32.totalorder %s61, %s62
      %p76 = scmp.eq.s32.totalorder %s24, 21
      %p77 = por %p75, %p76
      %p79 = scmp.ne.s32.totalorder %s62, %s78
      %p80 = scmp.eq.s32.totalorder %s24, 0
      %p81 = por %p79, %p80
      %s82 = ssub.s32 %s25, %s51
      %s83 = ssub.s32 %s28, %s39
      %s84 = sor.u32 %s82, %s83
      %s85 = ssub.s32 %s27, %s43
      %s86 = sor.u32 %s84, %s85
      %p87 = scmp.eq.s32.totalorder %s86, 0
      %s89 = sadd.s32 %s88, 1
      %s90 = scalar_select %p87, %s88, %s89
      %p93 = pneg %p87
      %p94 = scmp.eq.s32.totalorder %s18, 21
      %p95 = por %p93, %p94
      %p96 = scmp.ne.s32.totalorder %s88, %s91
      %p97 = scmp.eq.s32.totalorder %s18, 0
      %p98 = por %p96, %p97
      %p99 = scmp.ne.s32.totalorder %s88, %s91
      %p100 = scmp.eq.s32.totalorder %s23, 21
      %p101 = por %p99, %p100
      %p102 = scmp.ne.s32.totalorder %s91, %s92
      %p103 = scmp.eq.s32.totalorder %s23, 0
      %p104 = por %p102, %p103
      %p105 = scmp.ne.s32.totalorder %s91, %s92
      %p106 = scmp.eq.s32.totalorder %s24, 21
      %p107 = por %p105, %p106
      %p109 = scmp.ne.s32.totalorder %s92, %s108
      %p110 = scmp.eq.s32.totalorder %s24, 0
      %p111 = por %p109, %p110
      %s112 = ssub.s32 %s25, %s51
      %s113 = ssub.s32 %s27, %s43
      %s114 = sor.u32 %s112, %s113
      %p115 = scmp.eq.s32.totalorder %s114, 0
      %s117 = sadd.s32 %s116, 1
      %s118 = scalar_select %p115, %s116, %s117
      %p121 = pneg %p115
      %p122 = scmp.eq.s32.totalorder %s18, 21
      %p123 = por %p121, %p122
      %p124 = scmp.ne.s32.totalorder %s116, %s119
      %p125 = scmp.eq.s32.totalorder %s18, 0
      %p126 = por %p124, %p125
      %p127 = scmp.ne.s32.totalorder %s116, %s119
      %p128 = scmp.eq.s32.totalorder %s23, 21
      %p129 = por %p127, %p128
      %p130 = scmp.ne.s32.totalorder %s119, %s120
      %p131 = scmp.eq.s32.totalorder %s23, 0
      %p132 = por %p130, %p131
      %p133 = scmp.ne.s32.totalorder %s119, %s120
      %p134 = scmp.eq.s32.totalorder %s24, 21
      %p135 = por %p133, %p134
      %p137 = scmp.ne.s32.totalorder %s120, %s136
      %p138 = scmp.eq.s32.totalorder %s24, 0
      %p139 = por %p137, %p138
      %s140 = ssub.s32 %s25, %s51
      %s141 = ssub.s32 %s26, %s47
      %s142 = sor.u32 %s140, %s141
      %s143 = ssub.s32 %s27, %s43
      %s144 = sor.u32 %s142, %s143
      %p145 = scmp.eq.s32.totalorder %s144, 0
      %s147 = sadd.s32 %s146, 1
      %s148 = scalar_select %p145, %s146, %s147
      %p151 = pneg %p145
      %p152 = scmp.eq.s32.totalorder %s18, 21
      %p153 = por %p151, %p152
      %p154 = scmp.ne.s32.totalorder %s146, %s149
      %p155 = scmp.eq.s32.totalorder %s18, 0
      %p156 = por %p154, %p155
      %p157 = scmp.ne.s32.totalorder %s146, %s149
      %p158 = scmp.eq.s32.totalorder %s23, 21
      %p159 = por %p157, %p158
      %p160 = scmp.ne.s32.totalorder %s149, %s150
      %p161 = scmp.eq.s32.totalorder %s23, 0
      %p162 = por %p160, %p161
      %p163 = scmp.ne.s32.totalorder %s149, %s150
      %p164 = scmp.eq.s32.totalorder %s24, 21
      %p165 = por %p163, %p164
      %p167 = scmp.ne.s32.totalorder %s150, %s166
      %p168 = scmp.eq.s32.totalorder %s24, 0
      %p169 = por %p167, %p168
      %p170 = scmp.le.s32.totalorder 1, %s18
      %p171 = scmp.lt.s32.totalorder %s18, 23
      %p172 = pnand %p170, %p171
      %p173 = pneg %p172
      // Predicated region
      $region9: #{dcnn_nariqa_forward.7} parent=5 // pred_check
        _
      $region10: #{dcnn_nariqa_forward.7} parent=5 // pred_check_branch
        %175 = sbr.rel (%p172) target = $region12
      $region11: #{dcnn_nariqa_forward.7} parent=5 // pred_region
        %s176 = ssub.s32 %s18, 1
      $region12: #{dcnn_nariqa_forward.7} parent=5 // pred_fallthru
        _
      %p177 = scmp.lt.s32.totalorder %s18, 22
      // Predicated region
      $region13: #{dcnn_nariqa_forward.7} parent=5 // pred_check
        %p178 = pneg %p177
      $region14: #{dcnn_nariqa_forward.7} parent=5 // pred_check_branch
        %180 = sbr.rel (%p178) target = $region16
      $region15: #{dcnn_nariqa_forward.7} parent=5 // pred_region
        // Predicated region
        $region17: #{dcnn_nariqa_forward.7} parent=15 // pred_check
          %p181 = pneg %p68
        $region18: #{dcnn_nariqa_forward.7} parent=15 // pred_check_branch
          %183 = sbr.rel (%p181) target = $region20
        $region19: #{dcnn_nariqa_forward.7} parent=15 // pred_region
          %s184 = sand.u32 %s58, 1
          %s185 = scalar_lea.sflag [#allocation4], %s184
          %s186 = sand.u32 %s58, 1
          %s187 = smul.addr %s186, 32
          %s188 = scalar_lea.vmem [#allocation3], %s187
          %s189 = smul.u32 2, %s26
          %s190 = smul.u32 4, %s28
          %s192 = ssub.s32 512, 512
          %193 = vsyncadd %s185, %s192
          %s194 = smul.addr %s189, 44
          %s195 = sadd.s32 %s190, %s194
          %s196 = smul.addr %s25, 88
          %s197 = sadd.s32 %s195, %s196
          %s198 = smul.addr %s197, 64
          %s199 = scalar_lea.hbm %s0, %s198
          %s200 = sshll.u32 %s188, 4
          %s201 = int_to_ptr.vmem [resolvable:$true] %s200
          %206 = dma.hbm_to_vmem [thread:$0]  %s199, 512, %s201, %s185, 2816, 256, 16
        $region20: #{dcnn_nariqa_forward.7} parent=15 // pred_fallthru
          _
        // Predicated region
        $region21: #{dcnn_nariqa_forward.7} parent=15 // pred_check
          %p207 = pneg %p98
        $region22: #{dcnn_nariqa_forward.7} parent=15 // pred_check_branch
          %209 = sbr.rel (%p207) target = $region24
        $region23: #{dcnn_nariqa_forward.7} parent=15 // pred_region
          %s210 = sand.u32 %s18, 1
          %s211 = scalar_lea.sflag [#allocation7], %s210
          %s212 = sand.u32 %s88, 1
          %s213 = smul.addr %s212, 256
          %s214 = scalar_lea.vmem [#allocation6], %s213
          %s215 = smul.u32 64, %s28
          %s217 = ssub.s32 4096, 4096
          %218 = vsyncadd %s211, %s217
          %s219 = sadd.s32 %s27, %s215
          %s220 = smul.addr %s25, 704
          %s221 = sadd.s32 %s219, %s220
          %s222 = smul.addr %s221, 64
          %s223 = scalar_lea.hbm %s1, %s222
          %s224 = sshll.u32 %s214, 4
          %s225 = int_to_ptr.vmem [resolvable:$true] %s224
          %230 = dma.hbm_to_vmem [thread:$0]  %s223, 4096, %s225, %s211, 64, 64, 4
        $region24: #{dcnn_nariqa_forward.7} parent=15 // pred_fallthru
          _
        // Predicated region
        $region25: #{dcnn_nariqa_forward.7} parent=15 // pred_check
          %p231 = pneg %p126
        $region26: #{dcnn_nariqa_forward.7} parent=15 // pred_check_branch
          %233 = sbr.rel (%p231) target = $region28
        $region27: #{dcnn_nariqa_forward.7} parent=15 // pred_region
          %s234 = sand.u32 %s18, 1
          %s235 = scalar_lea.sflag [#allocation7], %s234
          %s236 = sand.u32 %s116, 1
          %s237 = scalar_lea.vmem [#allocation8], %s236
          %s239 = ssub.s32 16, 16
          %240 = vsyncadd %s235, %s239
          %s241 = sadd.s32 %s27, %s25
          %s242 = smul.addr %s241, 16
          %s243 = scalar_lea.hbm %s2, %s242
          %s245 = sshll.u32 %s237, 4
          %s246 = int_to_ptr.vmem [resolvable:$true] %s245
          %248 = dma.hbm_to_vmem [thread:$0]  %s243, 16, %s246, %s235
        $region28: #{dcnn_nariqa_forward.7} parent=15 // pred_fallthru
          _
      $region16: #{dcnn_nariqa_forward.7} parent=5 // pred_fallthru
        _
      %p249 = scmp.le.s32.totalorder 1, %s18
      %p250 = scmp.lt.s32.totalorder %s18, 23
      %p251 = pnand %p249, %p250
      %p252 = pneg %p251
      // Predicated region
      $region29: #{dcnn_nariqa_forward.7} parent=5 // pred_check
        _
      $region30: #{dcnn_nariqa_forward.7} parent=5 // pred_check_branch
        %254 = sbr.rel (%p251) target = $region32
      $region31: #{dcnn_nariqa_forward.7} parent=5 // pred_region
        %s255 = ssub.s32 %s18, 1
        %s256 = sand.u32 %s61, 1
        %s257 = scalar_lea.sflag [#allocation4], %s256
        %s258 = sand.u32 %s61, 1
        %s259 = smul.addr %s258, 32
        %s260 = scalar_lea.vmem [#allocation3], %s259
        // Predicated region
        $region33: #{dcnn_nariqa_forward.7} parent=31 // pred_check
          %p261 = pneg %p74
        $region34: #{dcnn_nariqa_forward.7} parent=31 // pred_check_branch
          %263 = sbr.rel (%p261) target = $region36
        $region35: #{dcnn_nariqa_forward.7} parent=31 // pred_region
          %264 = dma.done %s257, 512
        $region36: #{dcnn_nariqa_forward.7} parent=31 // pred_fallthru
          _
        %s265 = sand.u32 %s23, 1
        %s266 = scalar_lea.sflag [#allocation7], %s265
        %s267 = sand.u32 %s91, 1
        %s268 = smul.addr %s267, 256
        %s269 = scalar_lea.vmem [#allocation6], %s268
        // Predicated region
        $region37: #{dcnn_nariqa_forward.7} parent=31 // pred_check
          %p270 = pneg %p104
        $region38: #{dcnn_nariqa_forward.7} parent=31 // pred_check_branch
          %272 = sbr.rel (%p270) target = $region40
        $region39: #{dcnn_nariqa_forward.7} parent=31 // pred_region
          %273 = dma.done %s266, 4096
        $region40: #{dcnn_nariqa_forward.7} parent=31 // pred_fallthru
          _
        %s274 = sand.u32 %s23, 1
        %s275 = scalar_lea.sflag [#allocation7], %s274
        %s276 = sand.u32 %s119, 1
        %s277 = scalar_lea.vmem [#allocation8], %s276
        // Predicated region
        $region41: #{dcnn_nariqa_forward.7} parent=31 // pred_check
          %p278 = pneg %p132
        $region42: #{dcnn_nariqa_forward.7} parent=31 // pred_check_branch
          %280 = sbr.rel (%p278) target = $region44
        $region43: #{dcnn_nariqa_forward.7} parent=31 // pred_region
          %281 = dma.done %s275, 16
        $region44: #{dcnn_nariqa_forward.7} parent=31 // pred_fallthru
          _
        %s282 = sand.u32 %s61, 1
        %s283 = scalar_lea.sflag [#allocation4], %s282
        %s284 = sand.u32 %s61, 1
        %s285 = smul.addr %s284, 32
        %s286 = scalar_lea.vmem [#allocation3], %s285
        %p287 = pneg %p74
        %p288 = pneg %p71
        %s289 = sand.u32 %s23, 1
        %s290 = scalar_lea.sflag [#allocation7], %s289
        %s291 = sand.u32 %s91, 1
        %s292 = smul.addr %s291, 256
        %s293 = scalar_lea.vmem [#allocation6], %s292
        %p294 = pneg %p104
        %p295 = pneg %p101
        %s296 = sand.u32 %s23, 1
        %s297 = scalar_lea.sflag [#allocation7], %s296
        %s298 = sand.u32 %s119, 1
        %s299 = scalar_lea.vmem [#allocation8], %s298
        %p300 = pneg %p132
        %p301 = pneg %p129
        %p302 = pneg %p162
        %p303 = pneg %p159
        %s304 = sand.u32 %s149, 1
        %s305 = scalar_lea.sflag [#allocation5], %s304
        %s306 = sand.u32 %s149, 1
        %s307 = smul.addr %s306, 16
        %s308 = scalar_lea.vmem [#allocation9], %s307
        %s309 = smul.u32 2, %s30
        %s310 = smul.u32 4, %s32
        %s311 = smul.u32 64, %s32
        %s312 = smul.u32 2, %s30
        %p314 = scmp.eq.s32.totalorder %s32, 0
        // Predicated region
        $region45: #{dcnn_nariqa_forward.7} parent=31 // pred_check
          %p315 = pneg %p314
        $region46: #{dcnn_nariqa_forward.7} parent=31 // pred_check_branch
          %317 = sbr.rel (%p315) target = $region48
        $region47: #{dcnn_nariqa_forward.7} parent=31 // pred_region
          %318 = vst [vmem:[#allocation2] sm:$0xff] 0.0
          %319 = vst [vmem:[#allocation2 + $0x8] sm:$0xff] 0.0
        $region48: #{dcnn_nariqa_forward.7} parent=31 // pred_fallthru
          _
        %v320 = vld [vmem:[#allocation2] sm:$0xff]
        %v321 = vld [vmem:[#allocation2 + $0x8] sm:$0xff]
        %v322 = vld [vmem:[%s260] sm:$0xff]
        %v323 = vld [vmem:[%s260 + $0x8] sm:$0xff]
        %v324 = vld [vmem:[%s260 + $0x10] sm:$0xff]
        %v325 = vld [vmem:[%s260 + $0x18] sm:$0xff]
        %v326 = vld [vmem:[%s269] sm:$0xf]
        %v327 = vld [vmem:[%s269 + $0x4] sm:$0xf]
        %v328 = vld [vmem:[%s269 + $0x8] sm:$0xf]
        %v329 = vld [vmem:[%s269 + $0xc] sm:$0xf]
        %v330 = vld [vmem:[%s269 + $0x10] sm:$0xf]
        %v331 = vld [vmem:[%s269 + $0x14] sm:$0xf]
        %v332 = vld [vmem:[%s269 + $0x18] sm:$0xf]
        %v333 = vld [vmem:[%s269 + $0x1c] sm:$0xf]
        %v334 = vld [vmem:[%s269 + $0x20] sm:$0xf]
        %v335 = vld [vmem:[%s269 + $0x24] sm:$0xf]
        %v336 = vld [vmem:[%s269 + $0x28] sm:$0xf]
        %v337 = vld [vmem:[%s269 + $0x2c] sm:$0xf]
        %v338 = vld [vmem:[%s269 + $0x30] sm:$0xf]
        %v339 = vld [vmem:[%s269 + $0x34] sm:$0xf]
        %v340 = vld [vmem:[%s269 + $0x38] sm:$0xf]
        %v341 = vld [vmem:[%s269 + $0x3c] sm:$0xf]
        %v342 = vld [vmem:[%s269 + $0x40] sm:$0xf]
        %v343 = vld [vmem:[%s269 + $0x44] sm:$0xf]
        %v344 = vld [vmem:[%s269 + $0x48] sm:$0xf]
        %v345 = vld [vmem:[%s269 + $0x4c] sm:$0xf]
        %v346 = vld [vmem:[%s269 + $0x50] sm:$0xf]
        %v347 = vld [vmem:[%s269 + $0x54] sm:$0xf]
        %v348 = vld [vmem:[%s269 + $0x58] sm:$0xf]
        %v349 = vld [vmem:[%s269 + $0x5c] sm:$0xf]
        %v350 = vld [vmem:[%s269 + $0x60] sm:$0xf]
        %v351 = vld [vmem:[%s269 + $0x64] sm:$0xf]
        %v352 = vld [vmem:[%s269 + $0x68] sm:$0xf]
        %v353 = vld [vmem:[%s269 + $0x6c] sm:$0xf]
        %v354 = vld [vmem:[%s269 + $0x70] sm:$0xf]
        %v355 = vld [vmem:[%s269 + $0x74] sm:$0xf]
        %v356 = vld [vmem:[%s269 + $0x78] sm:$0xf]
        %v357 = vld [vmem:[%s269 + $0x7c] sm:$0xf]
        %v358 = vld [vmem:[%s269 + $0x80] sm:$0xf]
        %v359 = vld [vmem:[%s269 + $0x84] sm:$0xf]
        %v360 = vld [vmem:[%s269 + $0x88] sm:$0xf]
        %v361 = vld [vmem:[%s269 + $0x8c] sm:$0xf]
        %v362 = vld [vmem:[%s269 + $0x90] sm:$0xf]
        %v363 = vld [vmem:[%s269 + $0x94] sm:$0xf]
        %v364 = vld [vmem:[%s269 + $0x98] sm:$0xf]
        %v365 = vld [vmem:[%s269 + $0x9c] sm:$0xf]
        %v366 = vld [vmem:[%s269 + $0xa0] sm:$0xf]
        %v367 = vld [vmem:[%s269 + $0xa4] sm:$0xf]
        %v368 = vld [vmem:[%s269 + $0xa8] sm:$0xf]
        %v369 = vld [vmem:[%s269 + $0xac] sm:$0xf]
        %v370 = vld [vmem:[%s269 + $0xb0] sm:$0xf]
        %v371 = vld [vmem:[%s269 + $0xb4] sm:$0xf]
        %v372 = vld [vmem:[%s269 + $0xb8] sm:$0xf]
        %v373 = vld [vmem:[%s269 + $0xbc] sm:$0xf]
        %v374 = vld [vmem:[%s269 + $0xc0] sm:$0xf]
        %v375 = vld [vmem:[%s269 + $0xc4] sm:$0xf]
        %v376 = vld [vmem:[%s269 + $0xc8] sm:$0xf]
        %v377 = vld [vmem:[%s269 + $0xcc] sm:$0xf]
        %v378 = vld [vmem:[%s269 + $0xd0] sm:$0xf]
        %v379 = vld [vmem:[%s269 + $0xd4] sm:$0xf]
        %v380 = vld [vmem:[%s269 + $0xd8] sm:$0xf]
        %v381 = vld [vmem:[%s269 + $0xdc] sm:$0xf]
        %v382 = vld [vmem:[%s269 + $0xe0] sm:$0xf]
        %v383 = vld [vmem:[%s269 + $0xe4] sm:$0xf]
        %v384 = vld [vmem:[%s269 + $0xe8] sm:$0xf]
        %v385 = vld [vmem:[%s269 + $0xec] sm:$0xf]
        %v386 = vld [vmem:[%s269 + $0xf0] sm:$0xf]
        %v387 = vld [vmem:[%s269 + $0xf4] sm:$0xf]
        %v388 = vld [vmem:[%s269 + $0xf8] sm:$0xf]
        %v389 = vld [vmem:[%s269 + $0xfc] sm:$0xf]
        %v394 = vunpack.c.l.b16 %v322
        %v395 = vunpack.c.h.b16 %v322
        %v396 = vunpack.c.l.b16 %v323
        %v397 = vunpack.c.h.b16 %v323
        %v398 = vunpack.c.l.b16 %v324
        %v399 = vunpack.c.h.b16 %v324
        %v400 = vunpack.c.l.b16 %v325
        %v401 = vunpack.c.h.b16 %v325
        %v402 = vpack.c.b16 %v398, %v394
        %v403 = vpack.c.b16 %v399, %v395
        %v404 = vpack.c.b16 %v400, %v396
        %v405 = vpack.c.b16 %v401, %v397
        %v474 = vunpack.c.l.b16 %v326
        %v475 = vunpack.c.l.b16 %v327
        %v476 = vunpack.c.l.b16 %v328
        %v477 = vunpack.c.l.b16 %v329
        %v478 = vunpack.c.l.b16 %v330
        %v479 = vunpack.c.l.b16 %v331
        %v480 = vunpack.c.l.b16 %v332
        %v481 = vunpack.c.l.b16 %v333
        %v482 = vunpack.c.l.b16 %v334
        %v483 = vunpack.c.l.b16 %v335
        %v484 = vunpack.c.l.b16 %v336
        %v485 = vunpack.c.l.b16 %v337
        %v486 = vunpack.c.l.b16 %v338
        %v487 = vunpack.c.l.b16 %v339
        %v488 = vunpack.c.l.b16 %v340
        %v489 = vunpack.c.l.b16 %v341
        %v490 = vunpack.c.l.b16 %v342
        %v491 = vunpack.c.l.b16 %v343
        %v492 = vunpack.c.l.b16 %v344
        %v493 = vunpack.c.l.b16 %v345
        %v494 = vunpack.c.l.b16 %v346
        %v495 = vunpack.c.l.b16 %v347
        %v496 = vunpack.c.l.b16 %v348
        %v497 = vunpack.c.l.b16 %v349
        %v498 = vunpack.c.l.b16 %v350
        %v499 = vunpack.c.l.b16 %v351
        %v500 = vunpack.c.l.b16 %v352
        %v501 = vunpack.c.l.b16 %v353
        %v502 = vunpack.c.l.b16 %v354
        %v503 = vunpack.c.l.b16 %v355
        %v504 = vunpack.c.l.b16 %v356
        %v505 = vunpack.c.l.b16 %v357
        %v506 = vunpack.c.l.b16 %v358
        %v507 = vunpack.c.l.b16 %v359
        %v508 = vunpack.c.l.b16 %v360
        %v509 = vunpack.c.l.b16 %v361
        %v510 = vunpack.c.l.b16 %v362
        %v511 = vunpack.c.l.b16 %v363
        %v512 = vunpack.c.l.b16 %v364
        %v513 = vunpack.c.l.b16 %v365
        %v514 = vunpack.c.l.b16 %v366
        %v515 = vunpack.c.l.b16 %v367
        %v516 = vunpack.c.l.b16 %v368
        %v517 = vunpack.c.l.b16 %v369
        %v518 = vunpack.c.l.b16 %v370
        %v519 = vunpack.c.l.b16 %v371
        %v520 = vunpack.c.l.b16 %v372
        %v521 = vunpack.c.l.b16 %v373
        %v522 = vunpack.c.l.b16 %v374
        %v523 = vunpack.c.l.b16 %v375
        %v524 = vunpack.c.l.b16 %v376
        %v525 = vunpack.c.l.b16 %v377
        %v526 = vunpack.c.l.b16 %v378
        %v527 = vunpack.c.l.b16 %v379
        %v528 = vunpack.c.l.b16 %v380
        %v529 = vunpack.c.l.b16 %v381
        %v530 = vunpack.c.l.b16 %v382
        %v531 = vunpack.c.l.b16 %v383
        %v532 = vunpack.c.l.b16 %v384
        %v533 = vunpack.c.l.b16 %v385
        %v534 = vunpack.c.l.b16 %v386
        %v535 = vunpack.c.l.b16 %v387
        %v536 = vunpack.c.l.b16 %v388
        %v537 = vunpack.c.l.b16 %v389
        %v538 = vpack.c.b16 %v475, %v474
        %v539 = vpack.c.b16 %v477, %v476
        %v540 = vpack.c.b16 %v479, %v478
        %v541 = vpack.c.b16 %v481, %v480
        %v542 = vpack.c.b16 %v483, %v482
        %v543 = vpack.c.b16 %v485, %v484
        %v544 = vpack.c.b16 %v487, %v486
        %v545 = vpack.c.b16 %v489, %v488
        %v546 = vpack.c.b16 %v491, %v490
        %v547 = vpack.c.b16 %v493, %v492
        %v548 = vpack.c.b16 %v495, %v494
        %v549 = vpack.c.b16 %v497, %v496
        %v550 = vpack.c.b16 %v499, %v498
        %v551 = vpack.c.b16 %v501, %v500
        %v552 = vpack.c.b16 %v503, %v502
        %v553 = vpack.c.b16 %v505, %v504
        %v554 = vpack.c.b16 %v507, %v506
        %v555 = vpack.c.b16 %v509, %v508
        %v556 = vpack.c.b16 %v511, %v510
        %v557 = vpack.c.b16 %v513, %v512
        %v558 = vpack.c.b16 %v515, %v514
        %v559 = vpack.c.b16 %v517, %v516
        %v560 = vpack.c.b16 %v519, %v518
        %v561 = vpack.c.b16 %v521, %v520
        %v562 = vpack.c.b16 %v523, %v522
        %v563 = vpack.c.b16 %v525, %v524
        %v564 = vpack.c.b16 %v527, %v526
        %v565 = vpack.c.b16 %v529, %v528
        %v566 = vpack.c.b16 %v531, %v530
        %v567 = vpack.c.b16 %v533, %v532
        %v568 = vpack.c.b16 %v535, %v534
        %v569 = vpack.c.b16 %v537, %v536
        %602 = vmatprep.subr.bf16.mxu0 0
        %603 = vmatpush1.bf16.msra.mxu0 %v538
        %604 = vmatprep.subr.bf16.mxu0 0
        %605 = vmatpush1.bf16.msra.mxu0 %v539
        %606 = vmatprep.subr.bf16.mxu0 0
        %607 = vmatpush1.bf16.msra.mxu0 %v540
        %608 = vmatprep.subr.bf16.mxu0 0
        %609 = vmatpush1.bf16.msra.mxu0 %v541
        %610 = vmatprep.subr.bf16.mxu0 0
        %611 = vmatpush1.bf16.msra.mxu0 %v542
        %612 = vmatprep.subr.bf16.mxu0 0
        %613 = vmatpush1.bf16.msra.mxu0 %v543
        %614 = vmatprep.subr.bf16.mxu0 0
        %615 = vmatpush1.bf16.msra.mxu0 %v544
        %616 = vmatprep.subr.bf16.mxu0 0
        %617 = vmatpush1.bf16.msra.mxu0 %v545
        %618 = vmatprep.subr.bf16.mxu0 0
        %619 = vmatpush1.bf16.msra.mxu0 %v546
        %620 = vmatprep.subr.bf16.mxu0 0
        %621 = vmatpush1.bf16.msra.mxu0 %v547
        %622 = vmatprep.subr.bf16.mxu0 0
        %623 = vmatpush1.bf16.msra.mxu0 %v548
        %624 = vmatprep.subr.bf16.mxu0 0
        %625 = vmatpush1.bf16.msra.mxu0 %v549
        %626 = vmatprep.subr.bf16.mxu0 0
        %627 = vmatpush1.bf16.msra.mxu0 %v550
        %628 = vmatprep.subr.bf16.mxu0 0
        %629 = vmatpush1.bf16.msra.mxu0 %v551
        %630 = vmatprep.subr.bf16.mxu0 0
        %631 = vmatpush1.bf16.msra.mxu0 %v552
        %632 = vmatprep.subr.bf16.mxu0 0
        %633 = vmatpush1.bf16.msra.mxu0 %v553
        %634 = vmatprep.mubr.bf16.mxu0 %v403
        %635 = vmatmul.mubr.bf16.gmra.mrb[0].mxu0 %v402
        %v636 = vpop.f32.mrb[0].mxu0
        %v637 = vadd.f32 0.0, %v636
        %v638 = vpop.f32.mrb[0].mxu0
        %v639 = vpop.f32.mrb[0].mxu0
        %v640 = vadd.f32 0.0, %v639
        %v641 = vpop.f32.mrb[0].mxu0
        %642 = vdwg.mxu0
        %643 = vmatprep.subr.bf16.mxu0 0
        %644 = vmatpush1.bf16.msra.mxu0 %v554
        %645 = vmatprep.subr.bf16.mxu0 0
        %646 = vmatpush1.bf16.msra.mxu0 %v555
        %647 = vmatprep.subr.bf16.mxu0 0
        %648 = vmatpush1.bf16.msra.mxu0 %v556
        %649 = vmatprep.subr.bf16.mxu0 0
        %650 = vmatpush1.bf16.msra.mxu0 %v557
        %651 = vmatprep.subr.bf16.mxu0 0
        %652 = vmatpush1.bf16.msra.mxu0 %v558
        %653 = vmatprep.subr.bf16.mxu0 0
        %654 = vmatpush1.bf16.msra.mxu0 %v559
        %655 = vmatprep.subr.bf16.mxu0 0
        %656 = vmatpush1.bf16.msra.mxu0 %v560
        %657 = vmatprep.subr.bf16.mxu0 0
        %658 = vmatpush1.bf16.msra.mxu0 %v561
        %659 = vmatprep.subr.bf16.mxu0 0
        %660 = vmatpush1.bf16.msra.mxu0 %v562
        %661 = vmatprep.subr.bf16.mxu0 0
        %662 = vmatpush1.bf16.msra.mxu0 %v563
        %663 = vmatprep.subr.bf16.mxu0 0
        %664 = vmatpush1.bf16.msra.mxu0 %v564
        %665 = vmatprep.subr.bf16.mxu0 0
        %666 = vmatpush1.bf16.msra.mxu0 %v565
        %667 = vmatprep.subr.bf16.mxu0 0
        %668 = vmatpush1.bf16.msra.mxu0 %v566
        %669 = vmatprep.subr.bf16.mxu0 0
        %670 = vmatpush1.bf16.msra.mxu0 %v567
        %671 = vmatprep.subr.bf16.mxu0 0
        %672 = vmatpush1.bf16.msra.mxu0 %v568
        %673 = vmatprep.subr.bf16.mxu0 0
        %674 = vmatpush1.bf16.msra.mxu0 %v569
        %675 = vmatprep.mubr.bf16.mxu0 %v405
        %676 = vmatmul.mubr.bf16.gmra.mrb[0].mxu0 %v404
        %v677 = vpop.f32.mrb[0].mxu0
        %v678 = vadd.f32 %v637, %v677
        %v679 = vpop.f32.mrb[0].mxu0
        %v680 = vpop.f32.mrb[0].mxu0
        %v681 = vadd.f32 %v640, %v680
        %v682 = vpop.f32.mrb[0].mxu0
        %683 = vdwg.mxu0
        %v684 = vadd.f32 %v320, %v678
        %v685 = vadd.f32 %v321, %v681
        %686 = vst [vmem:[#allocation2] sm:$0xff] %v684
        %687 = vst [vmem:[#allocation2 + $0x8] sm:$0xff] %v685
        %p688 = scmp.eq.s32.totalorder %s32, 10
        // Predicated region
        $region49: #{dcnn_nariqa_forward.7} parent=31 // pred_check
          %p689 = pneg %p688
        $region50: #{dcnn_nariqa_forward.7} parent=31 // pred_check_branch
          %691 = sbr.rel (%p689) target = $region52
        $region51: #{dcnn_nariqa_forward.7} parent=31 // pred_region
          %v692 = vld [vmem:[#allocation2] sm:$0xff]
          %v693 = vld [vmem:[#allocation2 + $0x8] sm:$0xff]
          %v694 = vld [vmem:[%s277] sm:$0x1]
          %v696 = vlaneseq
          %v697 = vshrl.u32 %v696, 7
          %v698 = vsub.s32 0, %v697
          %v699 = vrot.slane %v694, %v698
          %v701 = vadd.f32 %v692, %v699
          %v702 = vadd.f32 %v693, %v699
          %v703 = vmax.f32 %v701, 0.0
          %v704 = vmax.f32 %v702, 0.0
          %705 = vst [vmem:[%s308] sm:$0xff] %v703
          %706 = vst [vmem:[%s308 + $0x8] sm:$0xff] %v704
        $region52: #{dcnn_nariqa_forward.7} parent=31 // pred_fallthru
          _
        %s707 = sand.u32 %s149, 1
        %s708 = scalar_lea.sflag [#allocation5], %s707
        %s709 = sand.u32 %s149, 1
        %s710 = smul.addr %s709, 16
        %s711 = scalar_lea.vmem [#allocation9], %s710
        // Predicated region
        $region53: #{dcnn_nariqa_forward.7} parent=31 // pred_check
          %p712 = pneg %p159
        $region54: #{dcnn_nariqa_forward.7} parent=31 // pred_check_branch
          %714 = sbr.rel (%p712) target = $region56
        $region55: #{dcnn_nariqa_forward.7} parent=31 // pred_region
          %s715 = smul.u32 2, %s30
          %s717 = ssub.s32 256, 256
          %718 = vsyncadd %s708, %s717
          %s719 = sadd.s32 %s31, %s715
          %s720 = smul.addr %s29, 2
          %s721 = sadd.s32 %s719, %s720
          %s722 = smul.addr %s721, 128
          %s723 = scalar_lea.hbm %s3, %s722
          %s724 = sshll.u32 %s711, 4
          %s725 = int_to_ptr.vmem [resolvable:$true] %s724
          %730 = dma.vmem_to_hbm [thread:$0]  %s725, 256, %s723, %s708, 128, 128, 8
        $region56: #{dcnn_nariqa_forward.7} parent=31 // pred_fallthru
          _
      $region32: #{dcnn_nariqa_forward.7} parent=5 // pred_fallthru
        _
      %p731 = scmp.le.s32.totalorder 2, %s18
      // Predicated region
      $region57: #{dcnn_nariqa_forward.7} parent=5 // pred_check
        %p732 = pneg %p731
      $region58: #{dcnn_nariqa_forward.7} parent=5 // pred_check_branch
        %734 = sbr.rel (%p732) target = $region60
      $region59: #{dcnn_nariqa_forward.7} parent=5 // pred_region
        %s735 = ssub.s32 %s18, 2
        // Predicated region
        $region61: #{dcnn_nariqa_forward.7} parent=59 // pred_check
          %p736 = pneg %p165
        $region62: #{dcnn_nariqa_forward.7} parent=59 // pred_check_branch
          %738 = sbr.rel (%p736) target = $region64
        $region63: #{dcnn_nariqa_forward.7} parent=59 // pred_region
          %s739 = sand.u32 %s150, 1
          %s740 = scalar_lea.sflag [#allocation5], %s739
          %s741 = sand.u32 %s150, 1
          %s742 = smul.addr %s741, 16
          %s743 = scalar_lea.vmem [#allocation9], %s742
          %744 = dma.done %s740, 256
        $region64: #{dcnn_nariqa_forward.7} parent=59 // pred_fallthru
          _
      $region60: #{dcnn_nariqa_forward.7} parent=5 // pred_fallthru
        _
    $region6: #{dcnn_nariqa_forward.7} parent=1 // loop_footer
      %s22 = sadd.s32 1, %s18
    $region7: #{dcnn_nariqa_forward.7} parent=1 // loop_footer_branch
      %17 = sbr.rel target = $region3
    $region8: #{dcnn_nariqa_forward.7} parent=1 // loop_exit
      _
    %745 = vsyncpa [#allocation4], 1
    %s746 = scalar_lea.sflag [#allocation4], 1
    %747 = vsyncpa %s746, 1
    %748 = vsyncpa [#allocation7], 1
    %s749 = scalar_lea.sflag [#allocation7], 1
    %750 = vsyncpa %s749, 1
    %751 = vsyncpa [#allocation5], 1
    %s752 = scalar_lea.sflag [#allocation5], 1
    %753 = vsyncpa %s752, 1

// kernel: dcnn_nariqa_forward.8
$region0: #{dcnn_nariqa_forward.8}
  #allocation0 [shape = 'u32[]', space=smem, size = 0x4, offset = 0x4, fixed_abs, tag = 'smem constant byte address 0x4 - core index']
  #allocation1 [shape = 'u32[144,128]{1,0:T(1,128)}', space=vmem, size = 0x12000, scoped, tag = 'internal scratch']
  #allocation2 [shape = 'f32[16,256]{1,0:T(8,128)}', space=vmem, size = 0x4000, scoped, tag = 'scratch operand']
  %s0 = inlined_call_operand.hbm [shape: bf16[2,16,128], index: 0, kind: input, shape index: {}]
  %s1 = inlined_call_operand.hbm [shape: bf16[2,128,1024], index: 1, kind: input, shape index: {}]
  %s2 = inlined_call_operand.hbm [shape: f32[2,1,1024], index: 2, kind: input, shape index: {}]
  %s3 = inlined_call_operand.hbm [shape: f32[2,16,1024], index: 3, kind: output, shape index: {}]
  %s4 = sld [smem:[#allocation0]]
  $region65: #{dcnn_nariqa_forward.8} parent=0
    _
  %s6 = ssub.s32 1, %s4
  %s7 = scalar_select 0, %s6, %s4
  $region1: #{dcnn_nariqa_forward.8} parent=0
    #allocation3 [shape = 'u8[8192]{0}', space=vmem, size = 0x2000, scoped, tag = 'input window, operand 0']
    #allocation4 [shape = 's32[2]{0}', space=sflag, size = 0x8, scoped, tag = 'scoped memory for dcnn_nariqa_forward.8']
    #allocation5 [shape = 's32[2]{0}', space=sflag, size = 0x8, scoped, tag = 'scoped memory for dcnn_nariqa_forward.8']
    #allocation6 [shape = 'u8[131072]{0}', space=vmem, size = 0x20000, scoped, tag = 'input window, operand 1']
    #allocation7 [shape = 's32[2]{0}', space=sflag, size = 0x8, scoped, tag = 'scoped memory for dcnn_nariqa_forward.8']
    #allocation8 [shape = 'u8[2048]{0}', space=vmem, size = 0x800, scoped, tag = 'input window, operand 2']
    #allocation9 [shape = 'u8[32768]{0}', space=vmem, size = 0x8000, scoped, tag = 'output window, operand 0']
    %8 = vsyncpa [#allocation4], 0
    %s9 = scalar_lea.sflag [#allocation4], 1
    %10 = vsyncpa %s9, 0
    %11 = vsyncpa [#allocation7], 0
    %s12 = scalar_lea.sflag [#allocation7], 1
    %13 = vsyncpa %s12, 0
    %14 = vsyncpa [#allocation5], 0
    %s15 = scalar_lea.sflag [#allocation5], 1
    %16 = vsyncpa %s15, 0
    loop: start=0, step=1, limit=10
    $region2: #{dcnn_nariqa_forward.8} parent=1 // loop_pre_header
      _
    $region3: #{dcnn_nariqa_forward.8} parent=1 // loop_header
      %s18 = sphi 0, %s22
      %p19 = scmp.ge.s32.totalorder %s18, 10
      %s25 = sphi 0, %s51
      %s26 = sphi 0, %s47
      %s27 = sphi 0, %s43
      %s28 = sphi 0, %s39
      %s29 = sphi 0, %s25
      %s30 = sphi 0, %s26
      %s31 = sphi 0, %s27
      %s32 = sphi 0, %s28
      %s33 = sphi 0, %s29
      %s34 = sphi 0, %s30
      %s35 = sphi 0, %s31
      %s36 = sphi 0, %s32
      %s58 = sphi 0, %s60
      %s61 = sphi 0, %s58
      %s62 = sphi 0, %s61
      %s78 = sphi 0, %s62
      %s88 = sphi 0, %s90
      %s91 = sphi 0, %s88
      %s92 = sphi 0, %s91
      %s108 = sphi 0, %s92
      %s116 = sphi 0, %s118
      %s119 = sphi 0, %s116
      %s120 = sphi 0, %s119
      %s136 = sphi 0, %s120
      %s146 = sphi 0, %s148
      %s149 = sphi 0, %s146
      %s150 = sphi 0, %s149
      %s166 = sphi 0, %s150
    $region4: #{dcnn_nariqa_forward.8} parent=1 // loop_header_branch
      %21 = sbr.rel (%p19) target = $region8
    $region5: #{dcnn_nariqa_forward.8} parent=1 // loop_body
      %s23 = ssub.s32 %s18, 1
      %s24 = ssub.s32 %s18, 2
      %s37 = sadd.s32 1, %s28
      %p38 = scmp.ge.s32.totalorder %s37, 1
      %s39 = scalar_select %p38, 0, %s37
      %s40 = sadd.s32 1, %s27
      %s41 = scalar_select %p38, %s40, %s27
      %p42 = scmp.ge.s32.totalorder %s41, 4
      %s43 = scalar_select %p42, 0, %s41
      %s44 = sadd.s32 1, %s26
      %s45 = scalar_select %p42, %s44, %s26
      %p46 = scmp.ge.s32.totalorder %s45, 1
      %s47 = scalar_select %p46, 0, %s45
      %s48 = sadd.s32 1, %s25
      %s49 = scalar_select %p46, %s48, %s25
      %p50 = scmp.ge.s32.totalorder %s49, 2
      %s51 = scalar_select %p50, 0, %s49
      %s52 = ssub.s32 %s25, %s51
      %s53 = ssub.s32 %s26, %s47
      %s54 = sor.u32 %s52, %s53
      %s55 = ssub.s32 %s28, %s39
      %s56 = sor.u32 %s54, %s55
      %p57 = scmp.eq.s32.totalorder %s56, 0
      %s59 = sadd.s32 %s58, 1
      %s60 = scalar_select %p57, %s58, %s59
      %p63 = pneg %p57
      %p64 = scmp.eq.s32.totalorder %s18, 7
      %p65 = por %p63, %p64
      %p66 = scmp.ne.s32.totalorder %s58, %s61
      %p67 = scmp.eq.s32.totalorder %s18, 0
      %p68 = por %p66, %p67
      %p69 = scmp.ne.s32.totalorder %s58, %s61
      %p70 = scmp.eq.s32.totalorder %s23, 7
      %p71 = por %p69, %p70
      %p72 = scmp.ne.s32.totalorder %s61, %s62
      %p73 = scmp.eq.s32.totalorder %s23, 0
      %p74 = por %p72, %p73
      %p75 = scmp.ne.s32.totalorder %s61, %s62
      %p76 = scmp.eq.s32.totalorder %s24, 7
      %p77 = por %p75, %p76
      %p79 = scmp.ne.s32.totalorder %s62, %s78
      %p80 = scmp.eq.s32.totalorder %s24, 0
      %p81 = por %p79, %p80
      %s82 = ssub.s32 %s25, %s51
      %s83 = ssub.s32 %s28, %s39
      %s84 = sor.u32 %s82, %s83
      %s85 = ssub.s32 %s27, %s43
      %s86 = sor.u32 %s84, %s85
      %p87 = scmp.eq.s32.totalorder %s86, 0
      %s89 = sadd.s32 %s88, 1
      %s90 = scalar_select %p87, %s88, %s89
      %p93 = pneg %p87
      %p94 = scmp.eq.s32.totalorder %s18, 7
      %p95 = por %p93, %p94
      %p96 = scmp.ne.s32.totalorder %s88, %s91
      %p97 = scmp.eq.s32.totalorder %s18, 0
      %p98 = por %p96, %p97
      %p99 = scmp.ne.s32.totalorder %s88, %s91
      %p100 = scmp.eq.s32.totalorder %s23, 7
      %p101 = por %p99, %p100
      %p102 = scmp.ne.s32.totalorder %s91, %s92
      %p103 = scmp.eq.s32.totalorder %s23, 0
      %p104 = por %p102, %p103
      %p105 = scmp.ne.s32.totalorder %s91, %s92
      %p106 = scmp.eq.s32.totalorder %s24, 7
      %p107 = por %p105, %p106
      %p109 = scmp.ne.s32.totalorder %s92, %s108
      %p110 = scmp.eq.s32.totalorder %s24, 0
      %p111 = por %p109, %p110
      %s112 = ssub.s32 %s25, %s51
      %s113 = ssub.s32 %s27, %s43
      %s114 = sor.u32 %s112, %s113
      %p115 = scmp.eq.s32.totalorder %s114, 0
      %s117 = sadd.s32 %s116, 1
      %s118 = scalar_select %p115, %s116, %s117
      %p121 = pneg %p115
      %p122 = scmp.eq.s32.totalorder %s18, 7
      %p123 = por %p121, %p122
      %p124 = scmp.ne.s32.totalorder %s116, %s119
      %p125 = scmp.eq.s32.totalorder %s18, 0
      %p126 = por %p124, %p125
      %p127 = scmp.ne.s32.totalorder %s116, %s119
      %p128 = scmp.eq.s32.totalorder %s23, 7
      %p129 = por %p127, %p128
      %p130 = scmp.ne.s32.totalorder %s119, %s120
      %p131 = scmp.eq.s32.totalorder %s23, 0
      %p132 = por %p130, %p131
      %p133 = scmp.ne.s32.totalorder %s119, %s120
      %p134 = scmp.eq.s32.totalorder %s24, 7
      %p135 = por %p133, %p134
      %p137 = scmp.ne.s32.totalorder %s120, %s136
      %p138 = scmp.eq.s32.totalorder %s24, 0
      %p139 = por %p137, %p138
      %s140 = ssub.s32 %s25, %s51
      %s141 = ssub.s32 %s26, %s47
      %s142 = sor.u32 %s140, %s141
      %s143 = ssub.s32 %s27, %s43
      %s144 = sor.u32 %s142, %s143
      %p145 = scmp.eq.s32.totalorder %s144, 0
      %s147 = sadd.s32 %s146, 1
      %s148 = scalar_select %p145, %s146, %s147
      %p151 = pneg %p145
      %p152 = scmp.eq.s32.totalorder %s18, 7
      %p153 = por %p151, %p152
      %p154 = scmp.ne.s32.totalorder %s146, %s149
      %p155 = scmp.eq.s32.totalorder %s18, 0
      %p156 = por %p154, %p155
      %p157 = scmp.ne.s32.totalorder %s146, %s149
      %p158 = scmp.eq.s32.totalorder %s23, 7
      %p159 = por %p157, %p158
      %p160 = scmp.ne.s32.totalorder %s149, %s150
      %p161 = scmp.eq.s32.totalorder %s23, 0
      %p162 = por %p160, %p161
      %p163 = scmp.ne.s32.totalorder %s149, %s150
      %p164 = scmp.eq.s32.totalorder %s24, 7
      %p165 = por %p163, %p164
      %p167 = scmp.ne.s32.totalorder %s150, %s166
      %p168 = scmp.eq.s32.totalorder %s24, 0
      %p169 = por %p167, %p168
      %p170 = scmp.le.s32.totalorder 1, %s18
      %p171 = scmp.lt.s32.totalorder %s18, 9
      %p172 = pnand %p170, %p171
      %p173 = pneg %p172
      // Predicated region
      $region9: #{dcnn_nariqa_forward.8} parent=5 // pred_check
        _
      $region10: #{dcnn_nariqa_forward.8} parent=5 // pred_check_branch
        %175 = sbr.rel (%p172) target = $region12
      $region11: #{dcnn_nariqa_forward.8} parent=5 // pred_region
        %s176 = ssub.s32 %s18, 1
      $region12: #{dcnn_nariqa_forward.8} parent=5 // pred_fallthru
        _
      %p177 = scmp.lt.s32.totalorder %s18, 8
      // Predicated region
      $region13: #{dcnn_nariqa_forward.8} parent=5 // pred_check
        %p178 = pneg %p177
      $region14: #{dcnn_nariqa_forward.8} parent=5 // pred_check_branch
        %180 = sbr.rel (%p178) target = $region16
      $region15: #{dcnn_nariqa_forward.8} parent=5 // pred_region
        // Predicated region
        $region17: #{dcnn_nariqa_forward.8} parent=15 // pred_check
          %p181 = pneg %p68
        $region18: #{dcnn_nariqa_forward.8} parent=15 // pred_check_branch
          %183 = sbr.rel (%p181) target = $region20
        $region19: #{dcnn_nariqa_forward.8} parent=15 // pred_region
          %s184 = sand.u32 %s58, 1
          %s185 = scalar_lea.sflag [#allocation4], %s184
          %s186 = sand.u32 %s58, 1
          %s187 = smul.addr %s186, 8
          %s188 = scalar_lea.vmem [#allocation3], %s187
          %s189 = smul.u32 2, %s26
          %s191 = ssub.s32 128, 128
          %192 = vsyncadd %s185, %s191
          %s193 = sadd.s32 %s28, %s189
          %s194 = smul.addr %s25, 2
          %s195 = sadd.s32 %s193, %s194
          %s196 = smul.addr %s195, 64
          %s197 = scalar_lea.hbm %s0, %s196
          %s198 = sshll.u32 %s188, 4
          %s199 = int_to_ptr.vmem [resolvable:$true] %s198
          %204 = dma.hbm_to_vmem [thread:$0]  %s197, 128, %s199, %s185, 64, 64, 4
        $region20: #{dcnn_nariqa_forward.8} parent=15 // pred_fallthru
          _
        // Predicated region
        $region21: #{dcnn_nariqa_forward.8} parent=15 // pred_check
          %p205 = pneg %p98
        $region22: #{dcnn_nariqa_forward.8} parent=15 // pred_check_branch
          %207 = sbr.rel (%p205) target = $region24
        $region23: #{dcnn_nariqa_forward.8} parent=15 // pred_region
          %s208 = sand.u32 %s18, 1
          %s209 = scalar_lea.sflag [#allocation7], %s208
          %s210 = sand.u32 %s88, 1
          %s211 = smul.addr %s210, 128
          %s212 = scalar_lea.vmem [#allocation6], %s211
          %s213 = smul.u32 16, %s28
          %s214 = smul.u32 2, %s27
          %s216 = ssub.s32 2048, 2048
          %217 = vsyncadd %s209, %s216
          %s218 = smul.addr %s213, 8
          %s219 = sadd.s32 %s214, %s218
          %s220 = smul.addr %s25, 128
          %s221 = sadd.s32 %s219, %s220
          %s222 = smul.addr %s221, 64
          %s223 = scalar_lea.hbm %s1, %s222
          %s224 = sshll.u32 %s212, 4
          %s225 = int_to_ptr.vmem [resolvable:$true] %s224
          %230 = dma.hbm_to_vmem [thread:$0]  %s223, 2048, %s225, %s209, 512, 128, 8
        $region24: #{dcnn_nariqa_forward.8} parent=15 // pred_fallthru
          _
        // Predicated region
        $region25: #{dcnn_nariqa_forward.8} parent=15 // pred_check
          %p231 = pneg %p126
        $region26: #{dcnn_nariqa_forward.8} parent=15 // pred_check_branch
          %233 = sbr.rel (%p231) target = $region28
        $region27: #{dcnn_nariqa_forward.8} parent=15 // pred_region
          %s234 = sand.u32 %s18, 1
          %s235 = scalar_lea.sflag [#allocation7], %s234
          %s236 = sand.u32 %s116, 1
          %s237 = smul.addr %s236, 2
          %s238 = scalar_lea.vmem [#allocation8], %s237
          %s239 = smul.u32 2, %s27
          %s241 = ssub.s32 32, 32
          %242 = vsyncadd %s235, %s241
          %s243 = smul.addr %s25, 8
          %s244 = sadd.s32 %s239, %s243
          %s245 = smul.addr %s244, 16
          %s246 = scalar_lea.hbm %s2, %s245
          %s248 = sshll.u32 %s238, 4
          %s249 = int_to_ptr.vmem [resolvable:$true] %s248
          %251 = dma.hbm_to_vmem [thread:$0]  %s246, 32, %s249, %s235
        $region28: #{dcnn_nariqa_forward.8} parent=15 // pred_fallthru
          _
      $region16: #{dcnn_nariqa_forward.8} parent=5 // pred_fallthru
        _
      %p252 = scmp.le.s32.totalorder 1, %s18
      %p253 = scmp.lt.s32.totalorder %s18, 9
      %p254 = pnand %p252, %p253
      %p255 = pneg %p254
      // Predicated region
      $region29: #{dcnn_nariqa_forward.8} parent=5 // pred_check
        _
      $region30: #{dcnn_nariqa_forward.8} parent=5 // pred_check_branch
        %257 = sbr.rel (%p254) target = $region32
      $region31: #{dcnn_nariqa_forward.8} parent=5 // pred_region
        %s258 = ssub.s32 %s18, 1
        %s259 = sand.u32 %s61, 1
        %s260 = scalar_lea.sflag [#allocation4], %s259
        %s261 = sand.u32 %s61, 1
        %s262 = smul.addr %s261, 8
        %s263 = scalar_lea.vmem [#allocation3], %s262
        // Predicated region
        $region33: #{dcnn_nariqa_forward.8} parent=31 // pred_check
          %p264 = pneg %p74
        $region34: #{dcnn_nariqa_forward.8} parent=31 // pred_check_branch
          %266 = sbr.rel (%p264) target = $region36
        $region35: #{dcnn_nariqa_forward.8} parent=31 // pred_region
          %267 = dma.done %s260, 128
        $region36: #{dcnn_nariqa_forward.8} parent=31 // pred_fallthru
          _
        %s268 = sand.u32 %s23, 1
        %s269 = scalar_lea.sflag [#allocation7], %s268
        %s270 = sand.u32 %s91, 1
        %s271 = smul.addr %s270, 128
        %s272 = scalar_lea.vmem [#allocation6], %s271
        // Predicated region
        $region37: #{dcnn_nariqa_forward.8} parent=31 // pred_check
          %p273 = pneg %p104
        $region38: #{dcnn_nariqa_forward.8} parent=31 // pred_check_branch
          %275 = sbr.rel (%p273) target = $region40
        $region39: #{dcnn_nariqa_forward.8} parent=31 // pred_region
          %276 = dma.done %s269, 2048
        $region40: #{dcnn_nariqa_forward.8} parent=31 // pred_fallthru
          _
        %s277 = sand.u32 %s23, 1
        %s278 = scalar_lea.sflag [#allocation7], %s277
        %s279 = sand.u32 %s119, 1
        %s280 = smul.addr %s279, 2
        %s281 = scalar_lea.vmem [#allocation8], %s280
        // Predicated region
        $region41: #{dcnn_nariqa_forward.8} parent=31 // pred_check
          %p282 = pneg %p132
        $region42: #{dcnn_nariqa_forward.8} parent=31 // pred_check_branch
          %284 = sbr.rel (%p282) target = $region44
        $region43: #{dcnn_nariqa_forward.8} parent=31 // pred_region
          %285 = dma.done %s278, 32
        $region44: #{dcnn_nariqa_forward.8} parent=31 // pred_fallthru
          _
        %s286 = sand.u32 %s61, 1
        %s287 = scalar_lea.sflag [#allocation4], %s286
        %s288 = sand.u32 %s61, 1
        %s289 = smul.addr %s288, 8
        %s290 = scalar_lea.vmem [#allocation3], %s289
        %p291 = pneg %p74
        %p292 = pneg %p71
        %s293 = sand.u32 %s23, 1
        %s294 = scalar_lea.sflag [#allocation7], %s293
        %s295 = sand.u32 %s91, 1
        %s296 = smul.addr %s295, 128
        %s297 = scalar_lea.vmem [#allocation6], %s296
        %p298 = pneg %p104
        %p299 = pneg %p101
        %s300 = sand.u32 %s23, 1
        %s301 = scalar_lea.sflag [#allocation7], %s300
        %s302 = sand.u32 %s119, 1
        %s303 = smul.addr %s302, 2
        %s304 = scalar_lea.vmem [#allocation8], %s303
        %p305 = pneg %p132
        %p306 = pneg %p129
        %p307 = pneg %p162
        %p308 = pneg %p159
        %s309 = sand.u32 %s149, 1
        %s310 = scalar_lea.sflag [#allocation5], %s309
        %s311 = sand.u32 %s149, 1
        %s312 = smul.addr %s311, 32
        %s313 = scalar_lea.vmem [#allocation9], %s312
        %s314 = smul.u32 2, %s30
        %s315 = smul.u32 16, %s32
        %s316 = smul.u32 2, %s31
        %s317 = smul.u32 2, %s31
        %s318 = smul.u32 2, %s30
        %s319 = smul.u32 2, %s31
        %p321 = scmp.eq.s32.totalorder %s32, 0
        // Predicated region
        $region45: #{dcnn_nariqa_forward.8} parent=31 // pred_check
          %p322 = pneg %p321
        $region46: #{dcnn_nariqa_forward.8} parent=31 // pred_check_branch
          %324 = sbr.rel (%p322) target = $region48
        $region47: #{dcnn_nariqa_forward.8} parent=31 // pred_region
          %325 = vst [vmem:[#allocation2] sm:$0xff] 0.0
          %326 = vst [vmem:[#allocation2 + $0x8] sm:$0xff] 0.0
          %327 = vst [vmem:[#allocation2 + $0x10] sm:$0xff] 0.0
          %328 = vst [vmem:[#allocation2 + $0x18] sm:$0xff] 0.0
        $region48: #{dcnn_nariqa_forward.8} parent=31 // pred_fallthru
          _
        %v329 = vld [vmem:[#allocation2] sm:$0xff]
        %v330 = vld [vmem:[#allocation2 + $0x8] sm:$0xff]
        %v331 = vld [vmem:[#allocation2 + $0x10] sm:$0xff]
        %v332 = vld [vmem:[#allocation2 + $0x18] sm:$0xff]
        %v333 = vld [vmem:[%s263] sm:$0xf]
        %v334 = vld [vmem:[%s263 + $0x4] sm:$0xf]
        %v335 = vld [vmem:[%s272] sm:$0xff]
        %v336 = vld [vmem:[%s272 + $0x8] sm:$0xff]
        %v337 = vld [vmem:[%s272 + $0x10] sm:$0xff]
        %v338 = vld [vmem:[%s272 + $0x18] sm:$0xff]
        %v339 = vld [vmem:[%s272 + $0x20] sm:$0xff]
        %v340 = vld [vmem:[%s272 + $0x28] sm:$0xff]
        %v341 = vld [vmem:[%s272 + $0x30] sm:$0xff]
        %v342 = vld [vmem:[%s272 + $0x38] sm:$0xff]
        %v343 = vld [vmem:[%s272 + $0x40] sm:$0xff]
        %v344 = vld [vmem:[%s272 + $0x48] sm:$0xff]
        %v345 = vld [vmem:[%s272 + $0x50] sm:$0xff]
        %v346 = vld [vmem:[%s272 + $0x58] sm:$0xff]
        %v347 = vld [vmem:[%s272 + $0x60] sm:$0xff]
        %v348 = vld [vmem:[%s272 + $0x68] sm:$0xff]
        %v349 = vld [vmem:[%s272 + $0x70] sm:$0xff]
        %v350 = vld [vmem:[%s272 + $0x78] sm:$0xff]
        %v353 = vunpack.c.l.b16 %v333
        %v354 = vunpack.c.l.b16 %v334
        %v355 = vpack.c.b16 %v354, %v353
        %v373 = vunpack.c.l.b16 %v335
        %v374 = vunpack.c.h.b16 %v335
        %v375 = vunpack.c.l.b16 %v336
        %v376 = vunpack.c.h.b16 %v336
        %v377 = vunpack.c.l.b16 %v337
        %v378 = vunpack.c.h.b16 %v337
        %v379 = vunpack.c.l.b16 %v338
        %v380 = vunpack.c.h.b16 %v338
        %v381 = vunpack.c.l.b16 %v339
        %v382 = vunpack.c.h.b16 %v339
        %v383 = vunpack.c.l.b16 %v340
        %v384 = vunpack.c.h.b16 %v340
        %v385 = vunpack.c.l.b16 %v341
        %v386 = vunpack.c.h.b16 %v341
        %v387 = vunpack.c.l.b16 %v342
        %v388 = vunpack.c.h.b16 %v342
        %v389 = vunpack.c.l.b16 %v343
        %v390 = vunpack.c.h.b16 %v343
        %v391 = vunpack.c.l.b16 %v344
        %v392 = vunpack.c.h.b16 %v344
        %v393 = vunpack.c.l.b16 %v345
        %v394 = vunpack.c.h.b16 %v345
        %v395 = vunpack.c.l.b16 %v346
        %v396 = vunpack.c.h.b16 %v346
        %v397 = vunpack.c.l.b16 %v347
        %v398 = vunpack.c.h.b16 %v347
        %v399 = vunpack.c.l.b16 %v348
        %v400 = vunpack.c.h.b16 %v348
        %v401 = vunpack.c.l.b16 %v349
        %v402 = vunpack.c.h.b16 %v349
        %v403 = vunpack.c.l.b16 %v350
        %v404 = vunpack.c.h.b16 %v350
        %v405 = vpack.c.b16 %v375, %v373
        %v406 = vpack.c.b16 %v376, %v374
        %v407 = vpack.c.b16 %v379, %v377
        %v408 = vpack.c.b16 %v380, %v378
        %v409 = vpack.c.b16 %v383, %v381
        %v410 = vpack.c.b16 %v384, %v382
        %v411 = vpack.c.b16 %v387, %v385
        %v412 = vpack.c.b16 %v388, %v386
        %v413 = vpack.c.b16 %v391, %v389
        %v414 = vpack.c.b16 %v392, %v390
        %v415 = vpack.c.b16 %v395, %v393
        %v416 = vpack.c.b16 %v396, %v394
        %v417 = vpack.c.b16 %v399, %v397
        %v418 = vpack.c.b16 %v400, %v398
        %v419 = vpack.c.b16 %v403, %v401
        %v420 = vpack.c.b16 %v404, %v402
        %437 = vmatprep.subr.bf16.mxu0 %v406
        %438 = vmatpush1.bf16.msra.mxu0 %v405
        %439 = vmatprep.subr.bf16.mxu0 %v408
        %440 = vmatpush1.bf16.msra.mxu0 %v407
        %441 = vmatprep.subr.bf16.mxu0 %v410
        %442 = vmatpush1.bf16.msra.mxu0 %v409
        %443 = vmatprep.subr.bf16.mxu0 %v412
        %444 = vmatpush1.bf16.msra.mxu0 %v411
        %445 = vmatprep.subr.bf16.mxu0 %v414
        %446 = vmatpush1.bf16.msra.mxu0 %v413
        %447 = vmatprep.subr.bf16.mxu0 %v416
        %448 = vmatpush1.bf16.msra.mxu0 %v415
        %449 = vmatprep.subr.bf16.mxu0 %v418
        %450 = vmatpush1.bf16.msra.mxu0 %v417
        %451 = vmatprep.subr.bf16.mxu0 %v420
        %452 = vmatpush1.bf16.msra.mxu0 %v419
        %453 = vmatprep.subr.bf16.mxu0 0
        %454 = vmatpush1.bf16.msra.mxu0 0
        %455 = vmatprep.subr.bf16.mxu0 0
        %456 = vmatpush1.bf16.msra.mxu0 0
        %457 = vmatprep.subr.bf16.mxu0 0
        %458 = vmatpush1.bf16.msra.mxu0 0
        %459 = vmatprep.subr.bf16.mxu0 0
        %460 = vmatpush1.bf16.msra.mxu0 0
        %461 = vmatprep.subr.bf16.mxu0 0
        %462 = vmatpush1.bf16.msra.mxu0 0
        %463 = vmatprep.subr.bf16.mxu0 0
        %464 = vmatpush1.bf16.msra.mxu0 0
        %465 = vmatprep.subr.bf16.mxu0 0
        %466 = vmatpush1.bf16.msra.mxu0 0
        %467 = vmatprep.subr.bf16.mxu0 0
        %468 = vmatpush1.bf16.msra.mxu0 0
        %469 = vmatprep.mubr.bf16.mxu0 0
        %470 = vmatmul.mubr.bf16.gmra.mrb[0].mxu0 %v355
        %v471 = vpop.f32.mrb[0].mxu0
        %v472 = vadd.f32 0.0, %v471
        %v473 = vpop.f32.mrb[0].mxu0
        %v474 = vadd.f32 0.0, %v473
        %v475 = vpop.f32.mrb[0].mxu0
        %v476 = vadd.f32 0.0, %v475
        %v477 = vpop.f32.mrb[0].mxu0
        %v478 = vadd.f32 0.0, %v477
        %479 = vdwg.mxu0
        %v480 = vadd.f32 %v329, %v472
        %v481 = vadd.f32 %v330, %v474
        %v482 = vadd.f32 %v331, %v476
        %v483 = vadd.f32 %v332, %v478
        %484 = vst [vmem:[#allocation2] sm:$0xff] %v480
        %485 = vst [vmem:[#allocation2 + $0x8] sm:$0xff] %v481
        %486 = vst [vmem:[#allocation2 + $0x10] sm:$0xff] %v482
        %487 = vst [vmem:[#allocation2 + $0x18] sm:$0xff] %v483
        // Predicated region
        $region49: #{dcnn_nariqa_forward.8} parent=31 // pred_check
          %p488 = pneg %p321
        $region50: #{dcnn_nariqa_forward.8} parent=31 // pred_check_branch
          %490 = sbr.rel (%p488) target = $region52
        $region51: #{dcnn_nariqa_forward.8} parent=31 // pred_region
          %v491 = vld [vmem:[#allocation2] sm:$0xff]
          %v492 = vld [vmem:[#allocation2 + $0x8] sm:$0xff]
          %v493 = vld [vmem:[#allocation2 + $0x10] sm:$0xff]
          %v494 = vld [vmem:[#allocation2 + $0x18] sm:$0xff]
          %v495 = vld [vmem:[%s281] sm:$0x3]
          %v497 = vlaneseq
          %v498 = vshrl.u32 %v497, 7
          %v499 = vsub.s32 0, %v498
          %v500 = vrot.slane %v495, %v499
          %v501 = vlaneseq
          %v502 = vshrl.u32 %v501, 7
          %v503 = vsub.s32 1, %v502
          %v504 = vrot.slane %v495, %v503
          %v507 = vadd.f32 %v491, %v500
          %v508 = vadd.f32 %v492, %v504
          %v509 = vadd.f32 %v493, %v500
          %v510 = vadd.f32 %v494, %v504
          %511 = vst [vmem:[%s313] sm:$0xff] %v507
          %512 = vst [vmem:[%s313 + $0x8] sm:$0xff] %v508
          %513 = vst [vmem:[%s313 + $0x10] sm:$0xff] %v509
          %514 = vst [vmem:[%s313 + $0x18] sm:$0xff] %v510
        $region52: #{dcnn_nariqa_forward.8} parent=31 // pred_fallthru
          _
        %s515 = sand.u32 %s149, 1
        %s516 = scalar_lea.sflag [#allocation5], %s515
        %s517 = sand.u32 %s149, 1
        %s518 = smul.addr %s517, 32
        %s519 = scalar_lea.vmem [#allocation9], %s518
        // Predicated region
        $region53: #{dcnn_nariqa_forward.8} parent=31 // pred_check
          %p520 = pneg %p159
        $region54: #{dcnn_nariqa_forward.8} parent=31 // pred_check_branch
          %522 = sbr.rel (%p520) target = $region56
        $region55: #{dcnn_nariqa_forward.8} parent=31 // pred_region
          %s523 = smul.u32 2, %s30
          %s524 = smul.u32 2, %s31
          %s526 = ssub.s32 512, 512
          %527 = vsyncadd %s516, %s526
          %s528 = smul.addr %s523, 8
          %s529 = sadd.s32 %s524, %s528
          %s530 = smul.addr %s29, 16
          %s531 = sadd.s32 %s529, %s530
          %s532 = smul.addr %s531, 128
          %s533 = scalar_lea.hbm %s3, %s532
          %s534 = sshll.u32 %s519, 4
          %s535 = int_to_ptr.vmem [resolvable:$true] %s534
          %540 = dma.vmem_to_hbm [thread:$0]  %s535, 512, %s533, %s516, 256, 1024, 16
        $region56: #{dcnn_nariqa_forward.8} parent=31 // pred_fallthru
          _
      $region32: #{dcnn_nariqa_forward.8} parent=5 // pred_fallthru
        _
      %p541 = scmp.le.s32.totalorder 2, %s18
      // Predicated region
      $region57: #{dcnn_nariqa_forward.8} parent=5 // pred_check
        %p542 = pneg %p541
      $region58: #{dcnn_nariqa_forward.8} parent=5 // pred_check_branch
        %544 = sbr.rel (%p542) target = $region60
      $region59: #{dcnn_nariqa_forward.8} parent=5 // pred_region
        %s545 = ssub.s32 %s18, 2
        // Predicated region
        $region61: #{dcnn_nariqa_forward.8} parent=59 // pred_check
          %p546 = pneg %p165
        $region62: #{dcnn_nariqa_forward.8} parent=59 // pred_check_branch
          %548 = sbr.rel (%p546) target = $region64
        $region63: #{dcnn_nariqa_forward.8} parent=59 // pred_region
          %s549 = sand.u32 %s150, 1
          %s550 = scalar_lea.sflag [#allocation5], %s549
          %s551 = sand.u32 %s150, 1
          %s552 = smul.addr %s551, 32
          %s553 = scalar_lea.vmem [#allocation9], %s552
          %554 = dma.done %s550, 512
        $region64: #{dcnn_nariqa_forward.8} parent=59 // pred_fallthru
          _
      $region60: #{dcnn_nariqa_forward.8} parent=5 // pred_fallthru
        _
    $region6: #{dcnn_nariqa_forward.8} parent=1 // loop_footer
      %s22 = sadd.s32 1, %s18
    $region7: #{dcnn_nariqa_forward.8} parent=1 // loop_footer_branch
      %17 = sbr.rel target = $region3
    $region8: #{dcnn_nariqa_forward.8} parent=1 // loop_exit
      _
    %555 = vsyncpa [#allocation4], 1
    %s556 = scalar_lea.sflag [#allocation4], 1
    %557 = vsyncpa %s556, 1
    %558 = vsyncpa [#allocation7], 1
    %s559 = scalar_lea.sflag [#allocation7], 1
    %560 = vsyncpa %s559, 1
    %561 = vsyncpa [#allocation5], 1
    %s562 = scalar_lea.sflag [#allocation5], 1
    %563 = vsyncpa %s562, 1

// kernel: dcnn_nariqa_forward.9
$region0: #{dcnn_nariqa_forward.9}
  #allocation0 [shape = 'u32[]', space=smem, size = 0x4, offset = 0x4, fixed_abs, tag = 'smem constant byte address 0x4 - core index']
  #allocation1 [shape = 'u32[144,128]{1,0:T(1,128)}', space=vmem, size = 0x12000, scoped, tag = 'internal scratch']
  #allocation2 [shape = 'f32[1,1]{1,0:T(1,128)S(1)}', space=vmem, size = 0x200, scoped, tag = 'scoped memory for dcnn_nariqa_forward.9']
  %s0 = inlined_call_operand.vmem [shape: bf16[2,2048], index: 0, kind: input, shape index: {}]
  %s1 = inlined_call_operand.vmem [shape: bf16[2048,1024], index: 1, kind: input, shape index: {}]
  %s2 = inlined_call_operand.vmem [shape: f32[1,1024], index: 2, kind: input, shape index: {}]
  %s3 = inlined_call_operand.vmem [shape: f32[1,1024], index: 3, kind: input, shape index: {}]
  %s4 = inlined_call_operand.<no memory space> [shape: f32[1,1], index: 4, kind: input, shape index: {}]
  %s5 = inlined_call_operand.vmem [shape: f32[2,1], index: 5, kind: output, shape index: {}]
  %s6 = sld [smem:[#allocation0]]
  $region30: #{dcnn_nariqa_forward.9} parent=0
    _
  %s8 = ssub.s32 1, %s6
  %s9 = scalar_select 0, %s8, %s6
  %v10 = vstv %s4
  %11 = vst [vmem:[#allocation2] sm:$0x1] %v10
  // Predicated region
  $region2: #{dcnn_nariqa_forward.9} parent=0 // pred_check
    _
  $region3: #{dcnn_nariqa_forward.9} parent=0 // pred_check_branch
    %13 = sbr.rel (0) target = $region5
  $region4: #{dcnn_nariqa_forward.9} parent=0 // pred_region
    _
  $region5: #{dcnn_nariqa_forward.9} parent=0 // pred_fallthru
    _
  // Predicated region
  $region6: #{dcnn_nariqa_forward.9} parent=0 // pred_check
    _
  $region7: #{dcnn_nariqa_forward.9} parent=0 // pred_check_branch
    %15 = sbr.rel (0) target = $region9
  $region8: #{dcnn_nariqa_forward.9} parent=0 // pred_region
    _
  $region9: #{dcnn_nariqa_forward.9} parent=0 // pred_fallthru
    _
  // Predicated region
  $region10: #{dcnn_nariqa_forward.9} parent=0 // pred_check
    _
  $region11: #{dcnn_nariqa_forward.9} parent=0 // pred_check_branch
    %17 = sbr.rel (0) target = $region13
  $region12: #{dcnn_nariqa_forward.9} parent=0 // pred_region
    _
  $region13: #{dcnn_nariqa_forward.9} parent=0 // pred_fallthru
    _
  // Predicated region
  $region14: #{dcnn_nariqa_forward.9} parent=0 // pred_check
    _
  $region15: #{dcnn_nariqa_forward.9} parent=0 // pred_check_branch
    %19 = sbr.rel (0) target = $region17
  $region16: #{dcnn_nariqa_forward.9} parent=0 // pred_region
    _
  $region17: #{dcnn_nariqa_forward.9} parent=0 // pred_fallthru
    _
  // Predicated region
  $region18: #{dcnn_nariqa_forward.9} parent=0 // pred_check
    _
  $region19: #{dcnn_nariqa_forward.9} parent=0 // pred_check_branch
    %21 = sbr.rel (0) target = $region21
  $region20: #{dcnn_nariqa_forward.9} parent=0 // pred_region
    _
  $region21: #{dcnn_nariqa_forward.9} parent=0 // pred_fallthru
    _
  %v22 = vld [vmem:[%s0] sm:$0xff]
  %v23 = vld [vmem:[%s0 + $0x8] sm:$0xff]
  %v24 = vld [vmem:[%s1] sm:$0xff]
  %v25 = vld [vmem:[%s1 + $0x8] sm:$0xff]
  %v26 = vld [vmem:[%s1 + $0x10] sm:$0xff]
  %v27 = vld [vmem:[%s1 + $0x18] sm:$0xff]
  %v28 = vld [vmem:[%s1 + $0x20] sm:$0xff]
  %v29 = vld [vmem:[%s1 + $0x28] sm:$0xff]
  %v30 = vld [vmem:[%s1 + $0x30] sm:$0xff]
  %v31 = vld [vmem:[%s1 + $0x38] sm:$0xff]
  %v32 = vld [vmem:[%s1 + $0x40] sm:$0xff]
  %v33 = vld [vmem:[%s1 + $0x48] sm:$0xff]
  %v34 = vld [vmem:[%s1 + $0x50] sm:$0xff]
  %v35 = vld [vmem:[%s1 + $0x58] sm:$0xff]
  %v36 = vld [vmem:[%s1 + $0x60] sm:$0xff]
  %v37 = vld [vmem:[%s1 + $0x68] sm:$0xff]
  %v38 = vld [vmem:[%s1 + $0x70] sm:$0xff]
  %v39 = vld [vmem:[%s1 + $0x78] sm:$0xff]
  %v40 = vld [vmem:[%s1 + $0x80] sm:$0xff]
  %v41 = vld [vmem:[%s1 + $0x88] sm:$0xff]
  %v42 = vld [vmem:[%s1 + $0x90] sm:$0xff]
  %v43 = vld [vmem:[%s1 + $0x98] sm:$0xff]
  %v44 = vld [vmem:[%s1 + $0xa0] sm:$0xff]
  %v45 = vld [vmem:[%s1 + $0xa8] sm:$0xff]
  %v46 = vld [vmem:[%s1 + $0xb0] sm:$0xff]
  %v47 = vld [vmem:[%s1 + $0xb8] sm:$0xff]
  %v48 = vld [vmem:[%s1 + $0xc0] sm:$0xff]
  %v49 = vld [vmem:[%s1 + $0xc8] sm:$0xff]
  %v50 = vld [vmem:[%s1 + $0xd0] sm:$0xff]
  %v51 = vld [vmem:[%s1 + $0xd8] sm:$0xff]
  %v52 = vld [vmem:[%s1 + $0xe0] sm:$0xff]
  %v53 = vld [vmem:[%s1 + $0xe8] sm:$0xff]
  %v54 = vld [vmem:[%s1 + $0xf0] sm:$0xff]
  %v55 = vld [vmem:[%s1 + $0xf8] sm:$0xff]
  %v56 = vld [vmem:[%s1 + $0x100] sm:$0xff]
  %v57 = vld [vmem:[%s1 + $0x108] sm:$0xff]
  %v58 = vld [vmem:[%s1 + $0x110] sm:$0xff]
  %v59 = vld [vmem:[%s1 + $0x118] sm:$0xff]
  %v60 = vld [vmem:[%s1 + $0x120] sm:$0xff]
  %v61 = vld [vmem:[%s1 + $0x128] sm:$0xff]
  %v62 = vld [vmem:[%s1 + $0x130] sm:$0xff]
  %v63 = vld [vmem:[%s1 + $0x138] sm:$0xff]
  %v64 = vld [vmem:[%s1 + $0x140] sm:$0xff]
  %v65 = vld [vmem:[%s1 + $0x148] sm:$0xff]
  %v66 = vld [vmem:[%s1 + $0x150] sm:$0xff]
  %v67 = vld [vmem:[%s1 + $0x158] sm:$0xff]
  %v68 = vld [vmem:[%s1 + $0x160] sm:$0xff]
  %v69 = vld [vmem:[%s1 + $0x168] sm:$0xff]
  %v70 = vld [vmem:[%s1 + $0x170] sm:$0xff]
  %v71 = vld [vmem:[%s1 + $0x178] sm:$0xff]
  %v72 = vld [vmem:[%s1 + $0x180] sm:$0xff]
  %v73 = vld [vmem:[%s1 + $0x188] sm:$0xff]
  %v74 = vld [vmem:[%s1 + $0x190] sm:$0xff]
  %v75 = vld [vmem:[%s1 + $0x198] sm:$0xff]
  %v76 = vld [vmem:[%s1 + $0x1a0] sm:$0xff]
  %v77 = vld [vmem:[%s1 + $0x1a8] sm:$0xff]
  %v78 = vld [vmem:[%s1 + $0x1b0] sm:$0xff]
  %v79 = vld [vmem:[%s1 + $0x1b8] sm:$0xff]
  %v80 = vld [vmem:[%s1 + $0x1c0] sm:$0xff]
  %v81 = vld [vmem:[%s1 + $0x1c8] sm:$0xff]
  %v82 = vld [vmem:[%s1 + $0x1d0] sm:$0xff]
  %v83 = vld [vmem:[%s1 + $0x1d8] sm:$0xff]
  %v84 = vld [vmem:[%s1 + $0x1e0] sm:$0xff]
  %v85 = vld [vmem:[%s1 + $0x1e8] sm:$0xff]
  %v86 = vld [vmem:[%s1 + $0x1f0] sm:$0xff]
  %v87 = vld [vmem:[%s1 + $0x1f8] sm:$0xff]
  %v88 = vld [vmem:[%s1 + $0x200] sm:$0xff]
  %v89 = vld [vmem:[%s1 + $0x208] sm:$0xff]
  %v90 = vld [vmem:[%s1 + $0x210] sm:$0xff]
  %v91 = vld [vmem:[%s1 + $0x218] sm:$0xff]
  %v92 = vld [vmem:[%s1 + $0x220] sm:$0xff]
  %v93 = vld [vmem:[%s1 + $0x228] sm:$0xff]
  %v94 = vld [vmem:[%s1 + $0x230] sm:$0xff]
  %v95 = vld [vmem:[%s1 + $0x238] sm:$0xff]
  %v96 = vld [vmem:[%s1 + $0x240] sm:$0xff]
  %v97 = vld [vmem:[%s1 + $0x248] sm:$0xff]
  %v98 = vld [vmem:[%s1 + $0x250] sm:$0xff]
  %v99 = vld [vmem:[%s1 + $0x258] sm:$0xff]
  %v100 = vld [vmem:[%s1 + $0x260] sm:$0xff]
  %v101 = vld [vmem:[%s1 + $0x268] sm:$0xff]
  %v102 = vld [vmem:[%s1 + $0x270] sm:$0xff]
  %v103 = vld [vmem:[%s1 + $0x278] sm:$0xff]
  %v104 = vld [vmem:[%s1 + $0x280] sm:$0xff]
  %v105 = vld [vmem:[%s1 + $0x288] sm:$0xff]
  %v106 = vld [vmem:[%s1 + $0x290] sm:$0xff]
  %v107 = vld [vmem:[%s1 + $0x298] sm:$0xff]
  %v108 = vld [vmem:[%s1 + $0x2a0] sm:$0xff]
  %v109 = vld [vmem:[%s1 + $0x2a8] sm:$0xff]
  %v110 = vld [vmem:[%s1 + $0x2b0] sm:$0xff]
  %v111 = vld [vmem:[%s1 + $0x2b8] sm:$0xff]
  %v112 = vld [vmem:[%s1 + $0x2c0] sm:$0xff]
  %v113 = vld [vmem:[%s1 + $0x2c8] sm:$0xff]
  %v114 = vld [vmem:[%s1 + $0x2d0] sm:$0xff]
  %v115 = vld [vmem:[%s1 + $0x2d8] sm:$0xff]
  %v116 = vld [vmem:[%s1 + $0x2e0] sm:$0xff]
  %v117 = vld [vmem:[%s1 + $0x2e8] sm:$0xff]
  %v118 = vld [vmem:[%s1 + $0x2f0] sm:$0xff]
  %v119 = vld [vmem:[%s1 + $0x2f8] sm:$0xff]
  %v120 = vld [vmem:[%s1 + $0x300] sm:$0xff]
  %v121 = vld [vmem:[%s1 + $0x308] sm:$0xff]
  %v122 = vld [vmem:[%s1 + $0x310] sm:$0xff]
  %v123 = vld [vmem:[%s1 + $0x318] sm:$0xff]
  %v124 = vld [vmem:[%s1 + $0x320] sm:$0xff]
  %v125 = vld [vmem:[%s1 + $0x328] sm:$0xff]
  %v126 = vld [vmem:[%s1 + $0x330] sm:$0xff]
  %v127 = vld [vmem:[%s1 + $0x338] sm:$0xff]
  %v128 = vld [vmem:[%s1 + $0x340] sm:$0xff]
  %v129 = vld [vmem:[%s1 + $0x348] sm:$0xff]
  %v130 = vld [vmem:[%s1 + $0x350] sm:$0xff]
  %v131 = vld [vmem:[%s1 + $0x358] sm:$0xff]
  %v132 = vld [vmem:[%s1 + $0x360] sm:$0xff]
  %v133 = vld [vmem:[%s1 + $0x368] sm:$0xff]
  %v134 = vld [vmem:[%s1 + $0x370] sm:$0xff]
  %v135 = vld [vmem:[%s1 + $0x378] sm:$0xff]
  %v136 = vld [vmem:[%s1 + $0x380] sm:$0xff]
  %v137 = vld [vmem:[%s1 + $0x388] sm:$0xff]
  %v138 = vld [vmem:[%s1 + $0x390] sm:$0xff]
  %v139 = vld [vmem:[%s1 + $0x398] sm:$0xff]
  %v140 = vld [vmem:[%s1 + $0x3a0] sm:$0xff]
  %v141 = vld [vmem:[%s1 + $0x3a8] sm:$0xff]
  %v142 = vld [vmem:[%s1 + $0x3b0] sm:$0xff]
  %v143 = vld [vmem:[%s1 + $0x3b8] sm:$0xff]
  %v144 = vld [vmem:[%s1 + $0x3c0] sm:$0xff]
  %v145 = vld [vmem:[%s1 + $0x3c8] sm:$0xff]
  %v146 = vld [vmem:[%s1 + $0x3d0] sm:$0xff]
  %v147 = vld [vmem:[%s1 + $0x3d8] sm:$0xff]
  %v148 = vld [vmem:[%s1 + $0x3e0] sm:$0xff]
  %v149 = vld [vmem:[%s1 + $0x3e8] sm:$0xff]
  %v150 = vld [vmem:[%s1 + $0x3f0] sm:$0xff]
  %v151 = vld [vmem:[%s1 + $0x3f8] sm:$0xff]
  %v152 = vld [vmem:[%s1 + $0x400] sm:$0xff]
  %v153 = vld [vmem:[%s1 + $0x408] sm:$0xff]
  %v154 = vld [vmem:[%s1 + $0x410] sm:$0xff]
  %v155 = vld [vmem:[%s1 + $0x418] sm:$0xff]
  %v156 = vld [vmem:[%s1 + $0x420] sm:$0xff]
  %v157 = vld [vmem:[%s1 + $0x428] sm:$0xff]
  %v158 = vld [vmem:[%s1 + $0x430] sm:$0xff]
  %v159 = vld [vmem:[%s1 + $0x438] sm:$0xff]
  %v160 = vld [vmem:[%s1 + $0x440] sm:$0xff]
  %v161 = vld [vmem:[%s1 + $0x448] sm:$0xff]
  %v162 = vld [vmem:[%s1 + $0x450] sm:$0xff]
  %v163 = vld [vmem:[%s1 + $0x458] sm:$0xff]
  %v164 = vld [vmem:[%s1 + $0x460] sm:$0xff]
  %v165 = vld [vmem:[%s1 + $0x468] sm:$0xff]
  %v166 = vld [vmem:[%s1 + $0x470] sm:$0xff]
  %v167 = vld [vmem:[%s1 + $0x478] sm:$0xff]
  %v168 = vld [vmem:[%s1 + $0x480] sm:$0xff]
  %v169 = vld [vmem:[%s1 + $0x488] sm:$0xff]
  %v170 = vld [vmem:[%s1 + $0x490] sm:$0xff]
  %v171 = vld [vmem:[%s1 + $0x498] sm:$0xff]
  %v172 = vld [vmem:[%s1 + $0x4a0] sm:$0xff]
  %v173 = vld [vmem:[%s1 + $0x4a8] sm:$0xff]
  %v174 = vld [vmem:[%s1 + $0x4b0] sm:$0xff]
  %v175 = vld [vmem:[%s1 + $0x4b8] sm:$0xff]
  %v176 = vld [vmem:[%s1 + $0x4c0] sm:$0xff]
  %v177 = vld [vmem:[%s1 + $0x4c8] sm:$0xff]
  %v178 = vld [vmem:[%s1 + $0x4d0] sm:$0xff]
  %v179 = vld [vmem:[%s1 + $0x4d8] sm:$0xff]
  %v180 = vld [vmem:[%s1 + $0x4e0] sm:$0xff]
  %v181 = vld [vmem:[%s1 + $0x4e8] sm:$0xff]
  %v182 = vld [vmem:[%s1 + $0x4f0] sm:$0xff]
  %v183 = vld [vmem:[%s1 + $0x4f8] sm:$0xff]
  %v184 = vld [vmem:[%s1 + $0x500] sm:$0xff]
  %v185 = vld [vmem:[%s1 + $0x508] sm:$0xff]
  %v186 = vld [vmem:[%s1 + $0x510] sm:$0xff]
  %v187 = vld [vmem:[%s1 + $0x518] sm:$0xff]
  %v188 = vld [vmem:[%s1 + $0x520] sm:$0xff]
  %v189 = vld [vmem:[%s1 + $0x528] sm:$0xff]
  %v190 = vld [vmem:[%s1 + $0x530] sm:$0xff]
  %v191 = vld [vmem:[%s1 + $0x538] sm:$0xff]
  %v192 = vld [vmem:[%s1 + $0x540] sm:$0xff]
  %v193 = vld [vmem:[%s1 + $0x548] sm:$0xff]
  %v194 = vld [vmem:[%s1 + $0x550] sm:$0xff]
  %v195 = vld [vmem:[%s1 + $0x558] sm:$0xff]
  %v196 = vld [vmem:[%s1 + $0x560] sm:$0xff]
  %v197 = vld [vmem:[%s1 + $0x568] sm:$0xff]
  %v198 = vld [vmem:[%s1 + $0x570] sm:$0xff]
  %v199 = vld [vmem:[%s1 + $0x578] sm:$0xff]
  %v200 = vld [vmem:[%s1 + $0x580] sm:$0xff]
  %v201 = vld [vmem:[%s1 + $0x588] sm:$0xff]
  %v202 = vld [vmem:[%s1 + $0x590] sm:$0xff]
  %v203 = vld [vmem:[%s1 + $0x598] sm:$0xff]
  %v204 = vld [vmem:[%s1 + $0x5a0] sm:$0xff]
  %v205 = vld [vmem:[%s1 + $0x5a8] sm:$0xff]
  %v206 = vld [vmem:[%s1 + $0x5b0] sm:$0xff]
  %v207 = vld [vmem:[%s1 + $0x5b8] sm:$0xff]
  %v208 = vld [vmem:[%s1 + $0x5c0] sm:$0xff]
  %v209 = vld [vmem:[%s1 + $0x5c8] sm:$0xff]
  %v210 = vld [vmem:[%s1 + $0x5d0] sm:$0xff]
  %v211 = vld [vmem:[%s1 + $0x5d8] sm:$0xff]
  %v212 = vld [vmem:[%s1 + $0x5e0] sm:$0xff]
  %v213 = vld [vmem:[%s1 + $0x5e8] sm:$0xff]
  %v214 = vld [vmem:[%s1 + $0x5f0] sm:$0xff]
  %v215 = vld [vmem:[%s1 + $0x5f8] sm:$0xff]
  %v216 = vld [vmem:[%s1 + $0x600] sm:$0xff]
  %v217 = vld [vmem:[%s1 + $0x608] sm:$0xff]
  %v218 = vld [vmem:[%s1 + $0x610] sm:$0xff]
  %v219 = vld [vmem:[%s1 + $0x618] sm:$0xff]
  %v220 = vld [vmem:[%s1 + $0x620] sm:$0xff]
  %v221 = vld [vmem:[%s1 + $0x628] sm:$0xff]
  %v222 = vld [vmem:[%s1 + $0x630] sm:$0xff]
  %v223 = vld [vmem:[%s1 + $0x638] sm:$0xff]
  %v224 = vld [vmem:[%s1 + $0x640] sm:$0xff]
  %v225 = vld [vmem:[%s1 + $0x648] sm:$0xff]
  %v226 = vld [vmem:[%s1 + $0x650] sm:$0xff]
  %v227 = vld [vmem:[%s1 + $0x658] sm:$0xff]
  %v228 = vld [vmem:[%s1 + $0x660] sm:$0xff]
  %v229 = vld [vmem:[%s1 + $0x668] sm:$0xff]
  %v230 = vld [vmem:[%s1 + $0x670] sm:$0xff]
  %v231 = vld [vmem:[%s1 + $0x678] sm:$0xff]
  %v232 = vld [vmem:[%s1 + $0x680] sm:$0xff]
  %v233 = vld [vmem:[%s1 + $0x688] sm:$0xff]
  %v234 = vld [vmem:[%s1 + $0x690] sm:$0xff]
  %v235 = vld [vmem:[%s1 + $0x698] sm:$0xff]
  %v236 = vld [vmem:[%s1 + $0x6a0] sm:$0xff]
  %v237 = vld [vmem:[%s1 + $0x6a8] sm:$0xff]
  %v238 = vld [vmem:[%s1 + $0x6b0] sm:$0xff]
  %v239 = vld [vmem:[%s1 + $0x6b8] sm:$0xff]
  %v240 = vld [vmem:[%s1 + $0x6c0] sm:$0xff]
  %v241 = vld [vmem:[%s1 + $0x6c8] sm:$0xff]
  %v242 = vld [vmem:[%s1 + $0x6d0] sm:$0xff]
  %v243 = vld [vmem:[%s1 + $0x6d8] sm:$0xff]
  %v244 = vld [vmem:[%s1 + $0x6e0] sm:$0xff]
  %v245 = vld [vmem:[%s1 + $0x6e8] sm:$0xff]
  %v246 = vld [vmem:[%s1 + $0x6f0] sm:$0xff]
  %v247 = vld [vmem:[%s1 + $0x6f8] sm:$0xff]
  %v248 = vld [vmem:[%s1 + $0x700] sm:$0xff]
  %v249 = vld [vmem:[%s1 + $0x708] sm:$0xff]
  %v250 = vld [vmem:[%s1 + $0x710] sm:$0xff]
  %v251 = vld [vmem:[%s1 + $0x718] sm:$0xff]
  %v252 = vld [vmem:[%s1 + $0x720] sm:$0xff]
  %v253 = vld [vmem:[%s1 + $0x728] sm:$0xff]
  %v254 = vld [vmem:[%s1 + $0x730] sm:$0xff]
  %v255 = vld [vmem:[%s1 + $0x738] sm:$0xff]
  %v256 = vld [vmem:[%s1 + $0x740] sm:$0xff]
  %v257 = vld [vmem:[%s1 + $0x748] sm:$0xff]
  %v258 = vld [vmem:[%s1 + $0x750] sm:$0xff]
  %v259 = vld [vmem:[%s1 + $0x758] sm:$0xff]
  %v260 = vld [vmem:[%s1 + $0x760] sm:$0xff]
  %v261 = vld [vmem:[%s1 + $0x768] sm:$0xff]
  %v262 = vld [vmem:[%s1 + $0x770] sm:$0xff]
  %v263 = vld [vmem:[%s1 + $0x778] sm:$0xff]
  %v264 = vld [vmem:[%s1 + $0x780] sm:$0xff]
  %v265 = vld [vmem:[%s1 + $0x788] sm:$0xff]
  %v266 = vld [vmem:[%s1 + $0x790] sm:$0xff]
  %v267 = vld [vmem:[%s1 + $0x798] sm:$0xff]
  %v268 = vld [vmem:[%s1 + $0x7a0] sm:$0xff]
  %v269 = vld [vmem:[%s1 + $0x7a8] sm:$0xff]
  %v270 = vld [vmem:[%s1 + $0x7b0] sm:$0xff]
  %v271 = vld [vmem:[%s1 + $0x7b8] sm:$0xff]
  %v272 = vld [vmem:[%s1 + $0x7c0] sm:$0xff]
  %v273 = vld [vmem:[%s1 + $0x7c8] sm:$0xff]
  %v274 = vld [vmem:[%s1 + $0x7d0] sm:$0xff]
  %v275 = vld [vmem:[%s1 + $0x7d8] sm:$0xff]
  %v276 = vld [vmem:[%s1 + $0x7e0] sm:$0xff]
  %v277 = vld [vmem:[%s1 + $0x7e8] sm:$0xff]
  %v278 = vld [vmem:[%s1 + $0x7f0] sm:$0xff]
  %v279 = vld [vmem:[%s1 + $0x7f8] sm:$0xff]
  %v280 = vld [vmem:[%s1 + $0x800] sm:$0xff]
  %v281 = vld [vmem:[%s1 + $0x808] sm:$0xff]
  %v282 = vld [vmem:[%s1 + $0x810] sm:$0xff]
  %v283 = vld [vmem:[%s1 + $0x818] sm:$0xff]
  %v284 = vld [vmem:[%s1 + $0x820] sm:$0xff]
  %v285 = vld [vmem:[%s1 + $0x828] sm:$0xff]
  %v286 = vld [vmem:[%s1 + $0x830] sm:$0xff]
  %v287 = vld [vmem:[%s1 + $0x838] sm:$0xff]
  %v288 = vld [vmem:[%s1 + $0x840] sm:$0xff]
  %v289 = vld [vmem:[%s1 + $0x848] sm:$0xff]
  %v290 = vld [vmem:[%s1 + $0x850] sm:$0xff]
  %v291 = vld [vmem:[%s1 + $0x858] sm:$0xff]
  %v292 = vld [vmem:[%s1 + $0x860] sm:$0xff]
  %v293 = vld [vmem:[%s1 + $0x868] sm:$0xff]
  %v294 = vld [vmem:[%s1 + $0x870] sm:$0xff]
  %v295 = vld [vmem:[%s1 + $0x878] sm:$0xff]
  %v296 = vld [vmem:[%s1 + $0x880] sm:$0xff]
  %v297 = vld [vmem:[%s1 + $0x888] sm:$0xff]
  %v298 = vld [vmem:[%s1 + $0x890] sm:$0xff]
  %v299 = vld [vmem:[%s1 + $0x898] sm:$0xff]
  %v300 = vld [vmem:[%s1 + $0x8a0] sm:$0xff]
  %v301 = vld [vmem:[%s1 + $0x8a8] sm:$0xff]
  %v302 = vld [vmem:[%s1 + $0x8b0] sm:$0xff]
  %v303 = vld [vmem:[%s1 + $0x8b8] sm:$0xff]
  %v304 = vld [vmem:[%s1 + $0x8c0] sm:$0xff]
  %v305 = vld [vmem:[%s1 + $0x8c8] sm:$0xff]
  %v306 = vld [vmem:[%s1 + $0x8d0] sm:$0xff]
  %v307 = vld [vmem:[%s1 + $0x8d8] sm:$0xff]
  %v308 = vld [vmem:[%s1 + $0x8e0] sm:$0xff]
  %v309 = vld [vmem:[%s1 + $0x8e8] sm:$0xff]
  %v310 = vld [vmem:[%s1 + $0x8f0] sm:$0xff]
  %v311 = vld [vmem:[%s1 + $0x8f8] sm:$0xff]
  %v312 = vld [vmem:[%s1 + $0x900] sm:$0xff]
  %v313 = vld [vmem:[%s1 + $0x908] sm:$0xff]
  %v314 = vld [vmem:[%s1 + $0x910] sm:$0xff]
  %v315 = vld [vmem:[%s1 + $0x918] sm:$0xff]
  %v316 = vld [vmem:[%s1 + $0x920] sm:$0xff]
  %v317 = vld [vmem:[%s1 + $0x928] sm:$0xff]
  %v318 = vld [vmem:[%s1 + $0x930] sm:$0xff]
  %v319 = vld [vmem:[%s1 + $0x938] sm:$0xff]
  %v320 = vld [vmem:[%s1 + $0x940] sm:$0xff]
  %v321 = vld [vmem:[%s1 + $0x948] sm:$0xff]
  %v322 = vld [vmem:[%s1 + $0x950] sm:$0xff]
  %v323 = vld [vmem:[%s1 + $0x958] sm:$0xff]
  %v324 = vld [vmem:[%s1 + $0x960] sm:$0xff]
  %v325 = vld [vmem:[%s1 + $0x968] sm:$0xff]
  %v326 = vld [vmem:[%s1 + $0x970] sm:$0xff]
  %v327 = vld [vmem:[%s1 + $0x978] sm:$0xff]
  %v328 = vld [vmem:[%s1 + $0x980] sm:$0xff]
  %v329 = vld [vmem:[%s1 + $0x988] sm:$0xff]
  %v330 = vld [vmem:[%s1 + $0x990] sm:$0xff]
  %v331 = vld [vmem:[%s1 + $0x998] sm:$0xff]
  %v332 = vld [vmem:[%s1 + $0x9a0] sm:$0xff]
  %v333 = vld [vmem:[%s1 + $0x9a8] sm:$0xff]
  %v334 = vld [vmem:[%s1 + $0x9b0] sm:$0xff]
  %v335 = vld [vmem:[%s1 + $0x9b8] sm:$0xff]
  %v336 = vld [vmem:[%s1 + $0x9c0] sm:$0xff]
  %v337 = vld [vmem:[%s1 + $0x9c8] sm:$0xff]
  %v338 = vld [vmem:[%s1 + $0x9d0] sm:$0xff]
  %v339 = vld [vmem:[%s1 + $0x9d8] sm:$0xff]
  %v340 = vld [vmem:[%s1 + $0x9e0] sm:$0xff]
  %v341 = vld [vmem:[%s1 + $0x9e8] sm:$0xff]
  %v342 = vld [vmem:[%s1 + $0x9f0] sm:$0xff]
  %v343 = vld [vmem:[%s1 + $0x9f8] sm:$0xff]
  %v344 = vld [vmem:[%s1 + $0xa00] sm:$0xff]
  %v345 = vld [vmem:[%s1 + $0xa08] sm:$0xff]
  %v346 = vld [vmem:[%s1 + $0xa10] sm:$0xff]
  %v347 = vld [vmem:[%s1 + $0xa18] sm:$0xff]
  %v348 = vld [vmem:[%s1 + $0xa20] sm:$0xff]
  %v349 = vld [vmem:[%s1 + $0xa28] sm:$0xff]
  %v350 = vld [vmem:[%s1 + $0xa30] sm:$0xff]
  %v351 = vld [vmem:[%s1 + $0xa38] sm:$0xff]
  %v352 = vld [vmem:[%s1 + $0xa40] sm:$0xff]
  %v353 = vld [vmem:[%s1 + $0xa48] sm:$0xff]
  %v354 = vld [vmem:[%s1 + $0xa50] sm:$0xff]
  %v355 = vld [vmem:[%s1 + $0xa58] sm:$0xff]
  %v356 = vld [vmem:[%s1 + $0xa60] sm:$0xff]
  %v357 = vld [vmem:[%s1 + $0xa68] sm:$0xff]
  %v358 = vld [vmem:[%s1 + $0xa70] sm:$0xff]
  %v359 = vld [vmem:[%s1 + $0xa78] sm:$0xff]
  %v360 = vld [vmem:[%s1 + $0xa80] sm:$0xff]
  %v361 = vld [vmem:[%s1 + $0xa88] sm:$0xff]
  %v362 = vld [vmem:[%s1 + $0xa90] sm:$0xff]
  %v363 = vld [vmem:[%s1 + $0xa98] sm:$0xff]
  %v364 = vld [vmem:[%s1 + $0xaa0] sm:$0xff]
  %v365 = vld [vmem:[%s1 + $0xaa8] sm:$0xff]
  %v366 = vld [vmem:[%s1 + $0xab0] sm:$0xff]
  %v367 = vld [vmem:[%s1 + $0xab8] sm:$0xff]
  %v368 = vld [vmem:[%s1 + $0xac0] sm:$0xff]
  %v369 = vld [vmem:[%s1 + $0xac8] sm:$0xff]
  %v370 = vld [vmem:[%s1 + $0xad0] sm:$0xff]
  %v371 = vld [vmem:[%s1 + $0xad8] sm:$0xff]
  %v372 = vld [vmem:[%s1 + $0xae0] sm:$0xff]
  %v373 = vld [vmem:[%s1 + $0xae8] sm:$0xff]
  %v374 = vld [vmem:[%s1 + $0xaf0] sm:$0xff]
  %v375 = vld [vmem:[%s1 + $0xaf8] sm:$0xff]
  %v376 = vld [vmem:[%s1 + $0xb00] sm:$0xff]
  %v377 = vld [vmem:[%s1 + $0xb08] sm:$0xff]
  %v378 = vld [vmem:[%s1 + $0xb10] sm:$0xff]
  %v379 = vld [vmem:[%s1 + $0xb18] sm:$0xff]
  %v380 = vld [vmem:[%s1 + $0xb20] sm:$0xff]
  %v381 = vld [vmem:[%s1 + $0xb28] sm:$0xff]
  %v382 = vld [vmem:[%s1 + $0xb30] sm:$0xff]
  %v383 = vld [vmem:[%s1 + $0xb38] sm:$0xff]
  %v384 = vld [vmem:[%s1 + $0xb40] sm:$0xff]
  %v385 = vld [vmem:[%s1 + $0xb48] sm:$0xff]
  %v386 = vld [vmem:[%s1 + $0xb50] sm:$0xff]
  %v387 = vld [vmem:[%s1 + $0xb58] sm:$0xff]
  %v388 = vld [vmem:[%s1 + $0xb60] sm:$0xff]
  %v389 = vld [vmem:[%s1 + $0xb68] sm:$0xff]
  %v390 = vld [vmem:[%s1 + $0xb70] sm:$0xff]
  %v391 = vld [vmem:[%s1 + $0xb78] sm:$0xff]
  %v392 = vld [vmem:[%s1 + $0xb80] sm:$0xff]
  %v393 = vld [vmem:[%s1 + $0xb88] sm:$0xff]
  %v394 = vld [vmem:[%s1 + $0xb90] sm:$0xff]
  %v395 = vld [vmem:[%s1 + $0xb98] sm:$0xff]
  %v396 = vld [vmem:[%s1 + $0xba0] sm:$0xff]
  %v397 = vld [vmem:[%s1 + $0xba8] sm:$0xff]
  %v398 = vld [vmem:[%s1 + $0xbb0] sm:$0xff]
  %v399 = vld [vmem:[%s1 + $0xbb8] sm:$0xff]
  %v400 = vld [vmem:[%s1 + $0xbc0] sm:$0xff]
  %v401 = vld [vmem:[%s1 + $0xbc8] sm:$0xff]
  %v402 = vld [vmem:[%s1 + $0xbd0] sm:$0xff]
  %v403 = vld [vmem:[%s1 + $0xbd8] sm:$0xff]
  %v404 = vld [vmem:[%s1 + $0xbe0] sm:$0xff]
  %v405 = vld [vmem:[%s1 + $0xbe8] sm:$0xff]
  %v406 = vld [vmem:[%s1 + $0xbf0] sm:$0xff]
  %v407 = vld [vmem:[%s1 + $0xbf8] sm:$0xff]
  %v408 = vld [vmem:[%s1 + $0xc00] sm:$0xff]
  %v409 = vld [vmem:[%s1 + $0xc08] sm:$0xff]
  %v410 = vld [vmem:[%s1 + $0xc10] sm:$0xff]
  %v411 = vld [vmem:[%s1 + $0xc18] sm:$0xff]
  %v412 = vld [vmem:[%s1 + $0xc20] sm:$0xff]
  %v413 = vld [vmem:[%s1 + $0xc28] sm:$0xff]
  %v414 = vld [vmem:[%s1 + $0xc30] sm:$0xff]
  %v415 = vld [vmem:[%s1 + $0xc38] sm:$0xff]
  %v416 = vld [vmem:[%s1 + $0xc40] sm:$0xff]
  %v417 = vld [vmem:[%s1 + $0xc48] sm:$0xff]
  %v418 = vld [vmem:[%s1 + $0xc50] sm:$0xff]
  %v419 = vld [vmem:[%s1 + $0xc58] sm:$0xff]
  %v420 = vld [vmem:[%s1 + $0xc60] sm:$0xff]
  %v421 = vld [vmem:[%s1 + $0xc68] sm:$0xff]
  %v422 = vld [vmem:[%s1 + $0xc70] sm:$0xff]
  %v423 = vld [vmem:[%s1 + $0xc78] sm:$0xff]
  %v424 = vld [vmem:[%s1 + $0xc80] sm:$0xff]
  %v425 = vld [vmem:[%s1 + $0xc88] sm:$0xff]
  %v426 = vld [vmem:[%s1 + $0xc90] sm:$0xff]
  %v427 = vld [vmem:[%s1 + $0xc98] sm:$0xff]
  %v428 = vld [vmem:[%s1 + $0xca0] sm:$0xff]
  %v429 = vld [vmem:[%s1 + $0xca8] sm:$0xff]
  %v430 = vld [vmem:[%s1 + $0xcb0] sm:$0xff]
  %v431 = vld [vmem:[%s1 + $0xcb8] sm:$0xff]
  %v432 = vld [vmem:[%s1 + $0xcc0] sm:$0xff]
  %v433 = vld [vmem:[%s1 + $0xcc8] sm:$0xff]
  %v434 = vld [vmem:[%s1 + $0xcd0] sm:$0xff]
  %v435 = vld [vmem:[%s1 + $0xcd8] sm:$0xff]
  %v436 = vld [vmem:[%s1 + $0xce0] sm:$0xff]
  %v437 = vld [vmem:[%s1 + $0xce8] sm:$0xff]
  %v438 = vld [vmem:[%s1 + $0xcf0] sm:$0xff]
  %v439 = vld [vmem:[%s1 + $0xcf8] sm:$0xff]
  %v440 = vld [vmem:[%s1 + $0xd00] sm:$0xff]
  %v441 = vld [vmem:[%s1 + $0xd08] sm:$0xff]
  %v442 = vld [vmem:[%s1 + $0xd10] sm:$0xff]
  %v443 = vld [vmem:[%s1 + $0xd18] sm:$0xff]
  %v444 = vld [vmem:[%s1 + $0xd20] sm:$0xff]
  %v445 = vld [vmem:[%s1 + $0xd28] sm:$0xff]
  %v446 = vld [vmem:[%s1 + $0xd30] sm:$0xff]
  %v447 = vld [vmem:[%s1 + $0xd38] sm:$0xff]
  %v448 = vld [vmem:[%s1 + $0xd40] sm:$0xff]
  %v449 = vld [vmem:[%s1 + $0xd48] sm:$0xff]
  %v450 = vld [vmem:[%s1 + $0xd50] sm:$0xff]
  %v451 = vld [vmem:[%s1 + $0xd58] sm:$0xff]
  %v452 = vld [vmem:[%s1 + $0xd60] sm:$0xff]
  %v453 = vld [vmem:[%s1 + $0xd68] sm:$0xff]
  %v454 = vld [vmem:[%s1 + $0xd70] sm:$0xff]
  %v455 = vld [vmem:[%s1 + $0xd78] sm:$0xff]
  %v456 = vld [vmem:[%s1 + $0xd80] sm:$0xff]
  %v457 = vld [vmem:[%s1 + $0xd88] sm:$0xff]
  %v458 = vld [vmem:[%s1 + $0xd90] sm:$0xff]
  %v459 = vld [vmem:[%s1 + $0xd98] sm:$0xff]
  %v460 = vld [vmem:[%s1 + $0xda0] sm:$0xff]
  %v461 = vld [vmem:[%s1 + $0xda8] sm:$0xff]
  %v462 = vld [vmem:[%s1 + $0xdb0] sm:$0xff]
  %v463 = vld [vmem:[%s1 + $0xdb8] sm:$0xff]
  %v464 = vld [vmem:[%s1 + $0xdc0] sm:$0xff]
  %v465 = vld [vmem:[%s1 + $0xdc8] sm:$0xff]
  %v466 = vld [vmem:[%s1 + $0xdd0] sm:$0xff]
  %v467 = vld [vmem:[%s1 + $0xdd8] sm:$0xff]
  %v468 = vld [vmem:[%s1 + $0xde0] sm:$0xff]
  %v469 = vld [vmem:[%s1 + $0xde8] sm:$0xff]
  %v470 = vld [vmem:[%s1 + $0xdf0] sm:$0xff]
  %v471 = vld [vmem:[%s1 + $0xdf8] sm:$0xff]
  %v472 = vld [vmem:[%s1 + $0xe00] sm:$0xff]
  %v473 = vld [vmem:[%s1 + $0xe08] sm:$0xff]
  %v474 = vld [vmem:[%s1 + $0xe10] sm:$0xff]
  %v475 = vld [vmem:[%s1 + $0xe18] sm:$0xff]
  %v476 = vld [vmem:[%s1 + $0xe20] sm:$0xff]
  %v477 = vld [vmem:[%s1 + $0xe28] sm:$0xff]
  %v478 = vld [vmem:[%s1 + $0xe30] sm:$0xff]
  %v479 = vld [vmem:[%s1 + $0xe38] sm:$0xff]
  %v480 = vld [vmem:[%s1 + $0xe40] sm:$0xff]
  %v481 = vld [vmem:[%s1 + $0xe48] sm:$0xff]
  %v482 = vld [vmem:[%s1 + $0xe50] sm:$0xff]
  %v483 = vld [vmem:[%s1 + $0xe58] sm:$0xff]
  %v484 = vld [vmem:[%s1 + $0xe60] sm:$0xff]
  %v485 = vld [vmem:[%s1 + $0xe68] sm:$0xff]
  %v486 = vld [vmem:[%s1 + $0xe70] sm:$0xff]
  %v487 = vld [vmem:[%s1 + $0xe78] sm:$0xff]
  %v488 = vld [vmem:[%s1 + $0xe80] sm:$0xff]
  %v489 = vld [vmem:[%s1 + $0xe88] sm:$0xff]
  %v490 = vld [vmem:[%s1 + $0xe90] sm:$0xff]
  %v491 = vld [vmem:[%s1 + $0xe98] sm:$0xff]
  %v492 = vld [vmem:[%s1 + $0xea0] sm:$0xff]
  %v493 = vld [vmem:[%s1 + $0xea8] sm:$0xff]
  %v494 = vld [vmem:[%s1 + $0xeb0] sm:$0xff]
  %v495 = vld [vmem:[%s1 + $0xeb8] sm:$0xff]
  %v496 = vld [vmem:[%s1 + $0xec0] sm:$0xff]
  %v497 = vld [vmem:[%s1 + $0xec8] sm:$0xff]
  %v498 = vld [vmem:[%s1 + $0xed0] sm:$0xff]
  %v499 = vld [vmem:[%s1 + $0xed8] sm:$0xff]
  %v500 = vld [vmem:[%s1 + $0xee0] sm:$0xff]
  %v501 = vld [vmem:[%s1 + $0xee8] sm:$0xff]
  %v502 = vld [vmem:[%s1 + $0xef0] sm:$0xff]
  %v503 = vld [vmem:[%s1 + $0xef8] sm:$0xff]
  %v504 = vld [vmem:[%s1 + $0xf00] sm:$0xff]
  %v505 = vld [vmem:[%s1 + $0xf08] sm:$0xff]
  %v506 = vld [vmem:[%s1 + $0xf10] sm:$0xff]
  %v507 = vld [vmem:[%s1 + $0xf18] sm:$0xff]
  %v508 = vld [vmem:[%s1 + $0xf20] sm:$0xff]
  %v509 = vld [vmem:[%s1 + $0xf28] sm:$0xff]
  %v510 = vld [vmem:[%s1 + $0xf30] sm:$0xff]
  %v511 = vld [vmem:[%s1 + $0xf38] sm:$0xff]
  %v512 = vld [vmem:[%s1 + $0xf40] sm:$0xff]
  %v513 = vld [vmem:[%s1 + $0xf48] sm:$0xff]
  %v514 = vld [vmem:[%s1 + $0xf50] sm:$0xff]
  %v515 = vld [vmem:[%s1 + $0xf58] sm:$0xff]
  %v516 = vld [vmem:[%s1 + $0xf60] sm:$0xff]
  %v517 = vld [vmem:[%s1 + $0xf68] sm:$0xff]
  %v518 = vld [vmem:[%s1 + $0xf70] sm:$0xff]
  %v519 = vld [vmem:[%s1 + $0xf78] sm:$0xff]
  %v520 = vld [vmem:[%s1 + $0xf80] sm:$0xff]
  %v521 = vld [vmem:[%s1 + $0xf88] sm:$0xff]
  %v522 = vld [vmem:[%s1 + $0xf90] sm:$0xff]
  %v523 = vld [vmem:[%s1 + $0xf98] sm:$0xff]
  %v524 = vld [vmem:[%s1 + $0xfa0] sm:$0xff]
  %v525 = vld [vmem:[%s1 + $0xfa8] sm:$0xff]
  %v526 = vld [vmem:[%s1 + $0xfb0] sm:$0xff]
  %v527 = vld [vmem:[%s1 + $0xfb8] sm:$0xff]
  %v528 = vld [vmem:[%s1 + $0xfc0] sm:$0xff]
  %v529 = vld [vmem:[%s1 + $0xfc8] sm:$0xff]
  %v530 = vld [vmem:[%s1 + $0xfd0] sm:$0xff]
  %v531 = vld [vmem:[%s1 + $0xfd8] sm:$0xff]
  %v532 = vld [vmem:[%s1 + $0xfe0] sm:$0xff]
  %v533 = vld [vmem:[%s1 + $0xfe8] sm:$0xff]
  %v534 = vld [vmem:[%s1 + $0xff0] sm:$0xff]
  %v535 = vld [vmem:[%s1 + $0xff8] sm:$0xff]
  %v536 = vld [vmem:[%s1 + $0x1000] sm:$0xff]
  %v537 = vld [vmem:[%s1 + $0x1008] sm:$0xff]
  %v538 = vld [vmem:[%s1 + $0x1010] sm:$0xff]
  %v539 = vld [vmem:[%s1 + $0x1018] sm:$0xff]
  %v540 = vld [vmem:[%s1 + $0x1020] sm:$0xff]
  %v541 = vld [vmem:[%s1 + $0x1028] sm:$0xff]
  %v542 = vld [vmem:[%s1 + $0x1030] sm:$0xff]
  %v543 = vld [vmem:[%s1 + $0x1038] sm:$0xff]
  %v544 = vld [vmem:[%s1 + $0x1040] sm:$0xff]
  %v545 = vld [vmem:[%s1 + $0x1048] sm:$0xff]
  %v546 = vld [vmem:[%s1 + $0x1050] sm:$0xff]
  %v547 = vld [vmem:[%s1 + $0x1058] sm:$0xff]
  %v548 = vld [vmem:[%s1 + $0x1060] sm:$0xff]
  %v549 = vld [vmem:[%s1 + $0x1068] sm:$0xff]
  %v550 = vld [vmem:[%s1 + $0x1070] sm:$0xff]
  %v551 = vld [vmem:[%s1 + $0x1078] sm:$0xff]
  %v552 = vld [vmem:[%s1 + $0x1080] sm:$0xff]
  %v553 = vld [vmem:[%s1 + $0x1088] sm:$0xff]
  %v554 = vld [vmem:[%s1 + $0x1090] sm:$0xff]
  %v555 = vld [vmem:[%s1 + $0x1098] sm:$0xff]
  %v556 = vld [vmem:[%s1 + $0x10a0] sm:$0xff]
  %v557 = vld [vmem:[%s1 + $0x10a8] sm:$0xff]
  %v558 = vld [vmem:[%s1 + $0x10b0] sm:$0xff]
  %v559 = vld [vmem:[%s1 + $0x10b8] sm:$0xff]
  %v560 = vld [vmem:[%s1 + $0x10c0] sm:$0xff]
  %v561 = vld [vmem:[%s1 + $0x10c8] sm:$0xff]
  %v562 = vld [vmem:[%s1 + $0x10d0] sm:$0xff]
  %v563 = vld [vmem:[%s1 + $0x10d8] sm:$0xff]
  %v564 = vld [vmem:[%s1 + $0x10e0] sm:$0xff]
  %v565 = vld [vmem:[%s1 + $0x10e8] sm:$0xff]
  %v566 = vld [vmem:[%s1 + $0x10f0] sm:$0xff]
  %v567 = vld [vmem:[%s1 + $0x10f8] sm:$0xff]
  %v568 = vld [vmem:[%s1 + $0x1100] sm:$0xff]
  %v569 = vld [vmem:[%s1 + $0x1108] sm:$0xff]
  %v570 = vld [vmem:[%s1 + $0x1110] sm:$0xff]
  %v571 = vld [vmem:[%s1 + $0x1118] sm:$0xff]
  %v572 = vld [vmem:[%s1 + $0x1120] sm:$0xff]
  %v573 = vld [vmem:[%s1 + $0x1128] sm:$0xff]
  %v574 = vld [vmem:[%s1 + $0x1130] sm:$0xff]
  %v575 = vld [vmem:[%s1 + $0x1138] sm:$0xff]
  %v576 = vld [vmem:[%s1 + $0x1140] sm:$0xff]
  %v577 = vld [vmem:[%s1 + $0x1148] sm:$0xff]
  %v578 = vld [vmem:[%s1 + $0x1150] sm:$0xff]
  %v579 = vld [vmem:[%s1 + $0x1158] sm:$0xff]
  %v580 = vld [vmem:[%s1 + $0x1160] sm:$0xff]
  %v581 = vld [vmem:[%s1 + $0x1168] sm:$0xff]
  %v582 = vld [vmem:[%s1 + $0x1170] sm:$0xff]
  %v583 = vld [vmem:[%s1 + $0x1178] sm:$0xff]
  %v584 = vld [vmem:[%s1 + $0x1180] sm:$0xff]
  %v585 = vld [vmem:[%s1 + $0x1188] sm:$0xff]
  %v586 = vld [vmem:[%s1 + $0x1190] sm:$0xff]
  %v587 = vld [vmem:[%s1 + $0x1198] sm:$0xff]
  %v588 = vld [vmem:[%s1 + $0x11a0] sm:$0xff]
  %v589 = vld [vmem:[%s1 + $0x11a8] sm:$0xff]
  %v590 = vld [vmem:[%s1 + $0x11b0] sm:$0xff]
  %v591 = vld [vmem:[%s1 + $0x11b8] sm:$0xff]
  %v592 = vld [vmem:[%s1 + $0x11c0] sm:$0xff]
  %v593 = vld [vmem:[%s1 + $0x11c8] sm:$0xff]
  %v594 = vld [vmem:[%s1 + $0x11d0] sm:$0xff]
  %v595 = vld [vmem:[%s1 + $0x11d8] sm:$0xff]
  %v596 = vld [vmem:[%s1 + $0x11e0] sm:$0xff]
  %v597 = vld [vmem:[%s1 + $0x11e8] sm:$0xff]
  %v598 = vld [vmem:[%s1 + $0x11f0] sm:$0xff]
  %v599 = vld [vmem:[%s1 + $0x11f8] sm:$0xff]
  %v600 = vld [vmem:[%s1 + $0x1200] sm:$0xff]
  %v601 = vld [vmem:[%s1 + $0x1208] sm:$0xff]
  %v602 = vld [vmem:[%s1 + $0x1210] sm:$0xff]
  %v603 = vld [vmem:[%s1 + $0x1218] sm:$0xff]
  %v604 = vld [vmem:[%s1 + $0x1220] sm:$0xff]
  %v605 = vld [vmem:[%s1 + $0x1228] sm:$0xff]
  %v606 = vld [vmem:[%s1 + $0x1230] sm:$0xff]
  %v607 = vld [vmem:[%s1 + $0x1238] sm:$0xff]
  %v608 = vld [vmem:[%s1 + $0x1240] sm:$0xff]
  %v609 = vld [vmem:[%s1 + $0x1248] sm:$0xff]
  %v610 = vld [vmem:[%s1 + $0x1250] sm:$0xff]
  %v611 = vld [vmem:[%s1 + $0x1258] sm:$0xff]
  %v612 = vld [vmem:[%s1 + $0x1260] sm:$0xff]
  %v613 = vld [vmem:[%s1 + $0x1268] sm:$0xff]
  %v614 = vld [vmem:[%s1 + $0x1270] sm:$0xff]
  %v615 = vld [vmem:[%s1 + $0x1278] sm:$0xff]
  %v616 = vld [vmem:[%s1 + $0x1280] sm:$0xff]
  %v617 = vld [vmem:[%s1 + $0x1288] sm:$0xff]
  %v618 = vld [vmem:[%s1 + $0x1290] sm:$0xff]
  %v619 = vld [vmem:[%s1 + $0x1298] sm:$0xff]
  %v620 = vld [vmem:[%s1 + $0x12a0] sm:$0xff]
  %v621 = vld [vmem:[%s1 + $0x12a8] sm:$0xff]
  %v622 = vld [vmem:[%s1 + $0x12b0] sm:$0xff]
  %v623 = vld [vmem:[%s1 + $0x12b8] sm:$0xff]
  %v624 = vld [vmem:[%s1 + $0x12c0] sm:$0xff]
  %v625 = vld [vmem:[%s1 + $0x12c8] sm:$0xff]
  %v626 = vld [vmem:[%s1 + $0x12d0] sm:$0xff]
  %v627 = vld [vmem:[%s1 + $0x12d8] sm:$0xff]
  %v628 = vld [vmem:[%s1 + $0x12e0] sm:$0xff]
  %v629 = vld [vmem:[%s1 + $0x12e8] sm:$0xff]
  %v630 = vld [vmem:[%s1 + $0x12f0] sm:$0xff]
  %v631 = vld [vmem:[%s1 + $0x12f8] sm:$0xff]
  %v632 = vld [vmem:[%s1 + $0x1300] sm:$0xff]
  %v633 = vld [vmem:[%s1 + $0x1308] sm:$0xff]
  %v634 = vld [vmem:[%s1 + $0x1310] sm:$0xff]
  %v635 = vld [vmem:[%s1 + $0x1318] sm:$0xff]
  %v636 = vld [vmem:[%s1 + $0x1320] sm:$0xff]
  %v637 = vld [vmem:[%s1 + $0x1328] sm:$0xff]
  %v638 = vld [vmem:[%s1 + $0x1330] sm:$0xff]
  %v639 = vld [vmem:[%s1 + $0x1338] sm:$0xff]
  %v640 = vld [vmem:[%s1 + $0x1340] sm:$0xff]
  %v641 = vld [vmem:[%s1 + $0x1348] sm:$0xff]
  %v642 = vld [vmem:[%s1 + $0x1350] sm:$0xff]
  %v643 = vld [vmem:[%s1 + $0x1358] sm:$0xff]
  %v644 = vld [vmem:[%s1 + $0x1360] sm:$0xff]
  %v645 = vld [vmem:[%s1 + $0x1368] sm:$0xff]
  %v646 = vld [vmem:[%s1 + $0x1370] sm:$0xff]
  %v647 = vld [vmem:[%s1 + $0x1378] sm:$0xff]
  %v648 = vld [vmem:[%s1 + $0x1380] sm:$0xff]
  %v649 = vld [vmem:[%s1 + $0x1388] sm:$0xff]
  %v650 = vld [vmem:[%s1 + $0x1390] sm:$0xff]
  %v651 = vld [vmem:[%s1 + $0x1398] sm:$0xff]
  %v652 = vld [vmem:[%s1 + $0x13a0] sm:$0xff]
  %v653 = vld [vmem:[%s1 + $0x13a8] sm:$0xff]
  %v654 = vld [vmem:[%s1 + $0x13b0] sm:$0xff]
  %v655 = vld [vmem:[%s1 + $0x13b8] sm:$0xff]
  %v656 = vld [vmem:[%s1 + $0x13c0] sm:$0xff]
  %v657 = vld [vmem:[%s1 + $0x13c8] sm:$0xff]
  %v658 = vld [vmem:[%s1 + $0x13d0] sm:$0xff]
  %v659 = vld [vmem:[%s1 + $0x13d8] sm:$0xff]
  %v660 = vld [vmem:[%s1 + $0x13e0] sm:$0xff]
  %v661 = vld [vmem:[%s1 + $0x13e8] sm:$0xff]
  %v662 = vld [vmem:[%s1 + $0x13f0] sm:$0xff]
  %v663 = vld [vmem:[%s1 + $0x13f8] sm:$0xff]
  %v664 = vld [vmem:[%s1 + $0x1400] sm:$0xff]
  %v665 = vld [vmem:[%s1 + $0x1408] sm:$0xff]
  %v666 = vld [vmem:[%s1 + $0x1410] sm:$0xff]
  %v667 = vld [vmem:[%s1 + $0x1418] sm:$0xff]
  %v668 = vld [vmem:[%s1 + $0x1420] sm:$0xff]
  %v669 = vld [vmem:[%s1 + $0x1428] sm:$0xff]
  %v670 = vld [vmem:[%s1 + $0x1430] sm:$0xff]
  %v671 = vld [vmem:[%s1 + $0x1438] sm:$0xff]
  %v672 = vld [vmem:[%s1 + $0x1440] sm:$0xff]
  %v673 = vld [vmem:[%s1 + $0x1448] sm:$0xff]
  %v674 = vld [vmem:[%s1 + $0x1450] sm:$0xff]
  %v675 = vld [vmem:[%s1 + $0x1458] sm:$0xff]
  %v676 = vld [vmem:[%s1 + $0x1460] sm:$0xff]
  %v677 = vld [vmem:[%s1 + $0x1468] sm:$0xff]
  %v678 = vld [vmem:[%s1 + $0x1470] sm:$0xff]
  %v679 = vld [vmem:[%s1 + $0x1478] sm:$0xff]
  %v680 = vld [vmem:[%s1 + $0x1480] sm:$0xff]
  %v681 = vld [vmem:[%s1 + $0x1488] sm:$0xff]
  %v682 = vld [vmem:[%s1 + $0x1490] sm:$0xff]
  %v683 = vld [vmem:[%s1 + $0x1498] sm:$0xff]
  %v684 = vld [vmem:[%s1 + $0x14a0] sm:$0xff]
  %v685 = vld [vmem:[%s1 + $0x14a8] sm:$0xff]
  %v686 = vld [vmem:[%s1 + $0x14b0] sm:$0xff]
  %v687 = vld [vmem:[%s1 + $0x14b8] sm:$0xff]
  %v688 = vld [vmem:[%s1 + $0x14c0] sm:$0xff]
  %v689 = vld [vmem:[%s1 + $0x14c8] sm:$0xff]
  %v690 = vld [vmem:[%s1 + $0x14d0] sm:$0xff]
  %v691 = vld [vmem:[%s1 + $0x14d8] sm:$0xff]
  %v692 = vld [vmem:[%s1 + $0x14e0] sm:$0xff]
  %v693 = vld [vmem:[%s1 + $0x14e8] sm:$0xff]
  %v694 = vld [vmem:[%s1 + $0x14f0] sm:$0xff]
  %v695 = vld [vmem:[%s1 + $0x14f8] sm:$0xff]
  %v696 = vld [vmem:[%s1 + $0x1500] sm:$0xff]
  %v697 = vld [vmem:[%s1 + $0x1508] sm:$0xff]
  %v698 = vld [vmem:[%s1 + $0x1510] sm:$0xff]
  %v699 = vld [vmem:[%s1 + $0x1518] sm:$0xff]
  %v700 = vld [vmem:[%s1 + $0x1520] sm:$0xff]
  %v701 = vld [vmem:[%s1 + $0x1528] sm:$0xff]
  %v702 = vld [vmem:[%s1 + $0x1530] sm:$0xff]
  %v703 = vld [vmem:[%s1 + $0x1538] sm:$0xff]
  %v704 = vld [vmem:[%s1 + $0x1540] sm:$0xff]
  %v705 = vld [vmem:[%s1 + $0x1548] sm:$0xff]
  %v706 = vld [vmem:[%s1 + $0x1550] sm:$0xff]
  %v707 = vld [vmem:[%s1 + $0x1558] sm:$0xff]
  %v708 = vld [vmem:[%s1 + $0x1560] sm:$0xff]
  %v709 = vld [vmem:[%s1 + $0x1568] sm:$0xff]
  %v710 = vld [vmem:[%s1 + $0x1570] sm:$0xff]
  %v711 = vld [vmem:[%s1 + $0x1578] sm:$0xff]
  %v712 = vld [vmem:[%s1 + $0x1580] sm:$0xff]
  %v713 = vld [vmem:[%s1 + $0x1588] sm:$0xff]
  %v714 = vld [vmem:[%s1 + $0x1590] sm:$0xff]
  %v715 = vld [vmem:[%s1 + $0x1598] sm:$0xff]
  %v716 = vld [vmem:[%s1 + $0x15a0] sm:$0xff]
  %v717 = vld [vmem:[%s1 + $0x15a8] sm:$0xff]
  %v718 = vld [vmem:[%s1 + $0x15b0] sm:$0xff]
  %v719 = vld [vmem:[%s1 + $0x15b8] sm:$0xff]
  %v720 = vld [vmem:[%s1 + $0x15c0] sm:$0xff]
  %v721 = vld [vmem:[%s1 + $0x15c8] sm:$0xff]
  %v722 = vld [vmem:[%s1 + $0x15d0] sm:$0xff]
  %v723 = vld [vmem:[%s1 + $0x15d8] sm:$0xff]
  %v724 = vld [vmem:[%s1 + $0x15e0] sm:$0xff]
  %v725 = vld [vmem:[%s1 + $0x15e8] sm:$0xff]
  %v726 = vld [vmem:[%s1 + $0x15f0] sm:$0xff]
  %v727 = vld [vmem:[%s1 + $0x15f8] sm:$0xff]
  %v728 = vld [vmem:[%s1 + $0x1600] sm:$0xff]
  %v729 = vld [vmem:[%s1 + $0x1608] sm:$0xff]
  %v730 = vld [vmem:[%s1 + $0x1610] sm:$0xff]
  %v731 = vld [vmem:[%s1 + $0x1618] sm:$0xff]
  %v732 = vld [vmem:[%s1 + $0x1620] sm:$0xff]
  %v733 = vld [vmem:[%s1 + $0x1628] sm:$0xff]
  %v734 = vld [vmem:[%s1 + $0x1630] sm:$0xff]
  %v735 = vld [vmem:[%s1 + $0x1638] sm:$0xff]
  %v736 = vld [vmem:[%s1 + $0x1640] sm:$0xff]
  %v737 = vld [vmem:[%s1 + $0x1648] sm:$0xff]
  %v738 = vld [vmem:[%s1 + $0x1650] sm:$0xff]
  %v739 = vld [vmem:[%s1 + $0x1658] sm:$0xff]
  %v740 = vld [vmem:[%s1 + $0x1660] sm:$0xff]
  %v741 = vld [vmem:[%s1 + $0x1668] sm:$0xff]
  %v742 = vld [vmem:[%s1 + $0x1670] sm:$0xff]
  %v743 = vld [vmem:[%s1 + $0x1678] sm:$0xff]
  %v744 = vld [vmem:[%s1 + $0x1680] sm:$0xff]
  %v745 = vld [vmem:[%s1 + $0x1688] sm:$0xff]
  %v746 = vld [vmem:[%s1 + $0x1690] sm:$0xff]
  %v747 = vld [vmem:[%s1 + $0x1698] sm:$0xff]
  %v748 = vld [vmem:[%s1 + $0x16a0] sm:$0xff]
  %v749 = vld [vmem:[%s1 + $0x16a8] sm:$0xff]
  %v750 = vld [vmem:[%s1 + $0x16b0] sm:$0xff]
  %v751 = vld [vmem:[%s1 + $0x16b8] sm:$0xff]
  %v752 = vld [vmem:[%s1 + $0x16c0] sm:$0xff]
  %v753 = vld [vmem:[%s1 + $0x16c8] sm:$0xff]
  %v754 = vld [vmem:[%s1 + $0x16d0] sm:$0xff]
  %v755 = vld [vmem:[%s1 + $0x16d8] sm:$0xff]
  %v756 = vld [vmem:[%s1 + $0x16e0] sm:$0xff]
  %v757 = vld [vmem:[%s1 + $0x16e8] sm:$0xff]
  %v758 = vld [vmem:[%s1 + $0x16f0] sm:$0xff]
  %v759 = vld [vmem:[%s1 + $0x16f8] sm:$0xff]
  %v760 = vld [vmem:[%s1 + $0x1700] sm:$0xff]
  %v761 = vld [vmem:[%s1 + $0x1708] sm:$0xff]
  %v762 = vld [vmem:[%s1 + $0x1710] sm:$0xff]
  %v763 = vld [vmem:[%s1 + $0x1718] sm:$0xff]
  %v764 = vld [vmem:[%s1 + $0x1720] sm:$0xff]
  %v765 = vld [vmem:[%s1 + $0x1728] sm:$0xff]
  %v766 = vld [vmem:[%s1 + $0x1730] sm:$0xff]
  %v767 = vld [vmem:[%s1 + $0x1738] sm:$0xff]
  %v768 = vld [vmem:[%s1 + $0x1740] sm:$0xff]
  %v769 = vld [vmem:[%s1 + $0x1748] sm:$0xff]
  %v770 = vld [vmem:[%s1 + $0x1750] sm:$0xff]
  %v771 = vld [vmem:[%s1 + $0x1758] sm:$0xff]
  %v772 = vld [vmem:[%s1 + $0x1760] sm:$0xff]
  %v773 = vld [vmem:[%s1 + $0x1768] sm:$0xff]
  %v774 = vld [vmem:[%s1 + $0x1770] sm:$0xff]
  %v775 = vld [vmem:[%s1 + $0x1778] sm:$0xff]
  %v776 = vld [vmem:[%s1 + $0x1780] sm:$0xff]
  %v777 = vld [vmem:[%s1 + $0x1788] sm:$0xff]
  %v778 = vld [vmem:[%s1 + $0x1790] sm:$0xff]
  %v779 = vld [vmem:[%s1 + $0x1798] sm:$0xff]
  %v780 = vld [vmem:[%s1 + $0x17a0] sm:$0xff]
  %v781 = vld [vmem:[%s1 + $0x17a8] sm:$0xff]
  %v782 = vld [vmem:[%s1 + $0x17b0] sm:$0xff]
  %v783 = vld [vmem:[%s1 + $0x17b8] sm:$0xff]
  %v784 = vld [vmem:[%s1 + $0x17c0] sm:$0xff]
  %v785 = vld [vmem:[%s1 + $0x17c8] sm:$0xff]
  %v786 = vld [vmem:[%s1 + $0x17d0] sm:$0xff]
  %v787 = vld [vmem:[%s1 + $0x17d8] sm:$0xff]
  %v788 = vld [vmem:[%s1 + $0x17e0] sm:$0xff]
  %v789 = vld [vmem:[%s1 + $0x17e8] sm:$0xff]
  %v790 = vld [vmem:[%s1 + $0x17f0] sm:$0xff]
  %v791 = vld [vmem:[%s1 + $0x17f8] sm:$0xff]
  %v792 = vld [vmem:[%s1 + $0x1800] sm:$0xff]
  %v793 = vld [vmem:[%s1 + $0x1808] sm:$0xff]
  %v794 = vld [vmem:[%s1 + $0x1810] sm:$0xff]
  %v795 = vld [vmem:[%s1 + $0x1818] sm:$0xff]
  %v796 = vld [vmem:[%s1 + $0x1820] sm:$0xff]
  %v797 = vld [vmem:[%s1 + $0x1828] sm:$0xff]
  %v798 = vld [vmem:[%s1 + $0x1830] sm:$0xff]
  %v799 = vld [vmem:[%s1 + $0x1838] sm:$0xff]
  %v800 = vld [vmem:[%s1 + $0x1840] sm:$0xff]
  %v801 = vld [vmem:[%s1 + $0x1848] sm:$0xff]
  %v802 = vld [vmem:[%s1 + $0x1850] sm:$0xff]
  %v803 = vld [vmem:[%s1 + $0x1858] sm:$0xff]
  %v804 = vld [vmem:[%s1 + $0x1860] sm:$0xff]
  %v805 = vld [vmem:[%s1 + $0x1868] sm:$0xff]
  %v806 = vld [vmem:[%s1 + $0x1870] sm:$0xff]
  %v807 = vld [vmem:[%s1 + $0x1878] sm:$0xff]
  %v808 = vld [vmem:[%s1 + $0x1880] sm:$0xff]
  %v809 = vld [vmem:[%s1 + $0x1888] sm:$0xff]
  %v810 = vld [vmem:[%s1 + $0x1890] sm:$0xff]
  %v811 = vld [vmem:[%s1 + $0x1898] sm:$0xff]
  %v812 = vld [vmem:[%s1 + $0x18a0] sm:$0xff]
  %v813 = vld [vmem:[%s1 + $0x18a8] sm:$0xff]
  %v814 = vld [vmem:[%s1 + $0x18b0] sm:$0xff]
  %v815 = vld [vmem:[%s1 + $0x18b8] sm:$0xff]
  %v816 = vld [vmem:[%s1 + $0x18c0] sm:$0xff]
  %v817 = vld [vmem:[%s1 + $0x18c8] sm:$0xff]
  %v818 = vld [vmem:[%s1 + $0x18d0] sm:$0xff]
  %v819 = vld [vmem:[%s1 + $0x18d8] sm:$0xff]
  %v820 = vld [vmem:[%s1 + $0x18e0] sm:$0xff]
  %v821 = vld [vmem:[%s1 + $0x18e8] sm:$0xff]
  %v822 = vld [vmem:[%s1 + $0x18f0] sm:$0xff]
  %v823 = vld [vmem:[%s1 + $0x18f8] sm:$0xff]
  %v824 = vld [vmem:[%s1 + $0x1900] sm:$0xff]
  %v825 = vld [vmem:[%s1 + $0x1908] sm:$0xff]
  %v826 = vld [vmem:[%s1 + $0x1910] sm:$0xff]
  %v827 = vld [vmem:[%s1 + $0x1918] sm:$0xff]
  %v828 = vld [vmem:[%s1 + $0x1920] sm:$0xff]
  %v829 = vld [vmem:[%s1 + $0x1928] sm:$0xff]
  %v830 = vld [vmem:[%s1 + $0x1930] sm:$0xff]
  %v831 = vld [vmem:[%s1 + $0x1938] sm:$0xff]
  %v832 = vld [vmem:[%s1 + $0x1940] sm:$0xff]
  %v833 = vld [vmem:[%s1 + $0x1948] sm:$0xff]
  %v834 = vld [vmem:[%s1 + $0x1950] sm:$0xff]
  %v835 = vld [vmem:[%s1 + $0x1958] sm:$0xff]
  %v836 = vld [vmem:[%s1 + $0x1960] sm:$0xff]
  %v837 = vld [vmem:[%s1 + $0x1968] sm:$0xff]
  %v838 = vld [vmem:[%s1 + $0x1970] sm:$0xff]
  %v839 = vld [vmem:[%s1 + $0x1978] sm:$0xff]
  %v840 = vld [vmem:[%s1 + $0x1980] sm:$0xff]
  %v841 = vld [vmem:[%s1 + $0x1988] sm:$0xff]
  %v842 = vld [vmem:[%s1 + $0x1990] sm:$0xff]
  %v843 = vld [vmem:[%s1 + $0x1998] sm:$0xff]
  %v844 = vld [vmem:[%s1 + $0x19a0] sm:$0xff]
  %v845 = vld [vmem:[%s1 + $0x19a8] sm:$0xff]
  %v846 = vld [vmem:[%s1 + $0x19b0] sm:$0xff]
  %v847 = vld [vmem:[%s1 + $0x19b8] sm:$0xff]
  %v848 = vld [vmem:[%s1 + $0x19c0] sm:$0xff]
  %v849 = vld [vmem:[%s1 + $0x19c8] sm:$0xff]
  %v850 = vld [vmem:[%s1 + $0x19d0] sm:$0xff]
  %v851 = vld [vmem:[%s1 + $0x19d8] sm:$0xff]
  %v852 = vld [vmem:[%s1 + $0x19e0] sm:$0xff]
  %v853 = vld [vmem:[%s1 + $0x19e8] sm:$0xff]
  %v854 = vld [vmem:[%s1 + $0x19f0] sm:$0xff]
  %v855 = vld [vmem:[%s1 + $0x19f8] sm:$0xff]
  %v856 = vld [vmem:[%s1 + $0x1a00] sm:$0xff]
  %v857 = vld [vmem:[%s1 + $0x1a08] sm:$0xff]
  %v858 = vld [vmem:[%s1 + $0x1a10] sm:$0xff]
  %v859 = vld [vmem:[%s1 + $0x1a18] sm:$0xff]
  %v860 = vld [vmem:[%s1 + $0x1a20] sm:$0xff]
  %v861 = vld [vmem:[%s1 + $0x1a28] sm:$0xff]
  %v862 = vld [vmem:[%s1 + $0x1a30] sm:$0xff]
  %v863 = vld [vmem:[%s1 + $0x1a38] sm:$0xff]
  %v864 = vld [vmem:[%s1 + $0x1a40] sm:$0xff]
  %v865 = vld [vmem:[%s1 + $0x1a48] sm:$0xff]
  %v866 = vld [vmem:[%s1 + $0x1a50] sm:$0xff]
  %v867 = vld [vmem:[%s1 + $0x1a58] sm:$0xff]
  %v868 = vld [vmem:[%s1 + $0x1a60] sm:$0xff]
  %v869 = vld [vmem:[%s1 + $0x1a68] sm:$0xff]
  %v870 = vld [vmem:[%s1 + $0x1a70] sm:$0xff]
  %v871 = vld [vmem:[%s1 + $0x1a78] sm:$0xff]
  %v872 = vld [vmem:[%s1 + $0x1a80] sm:$0xff]
  %v873 = vld [vmem:[%s1 + $0x1a88] sm:$0xff]
  %v874 = vld [vmem:[%s1 + $0x1a90] sm:$0xff]
  %v875 = vld [vmem:[%s1 + $0x1a98] sm:$0xff]
  %v876 = vld [vmem:[%s1 + $0x1aa0] sm:$0xff]
  %v877 = vld [vmem:[%s1 + $0x1aa8] sm:$0xff]
  %v878 = vld [vmem:[%s1 + $0x1ab0] sm:$0xff]
  %v879 = vld [vmem:[%s1 + $0x1ab8] sm:$0xff]
  %v880 = vld [vmem:[%s1 + $0x1ac0] sm:$0xff]
  %v881 = vld [vmem:[%s1 + $0x1ac8] sm:$0xff]
  %v882 = vld [vmem:[%s1 + $0x1ad0] sm:$0xff]
  %v883 = vld [vmem:[%s1 + $0x1ad8] sm:$0xff]
  %v884 = vld [vmem:[%s1 + $0x1ae0] sm:$0xff]
  %v885 = vld [vmem:[%s1 + $0x1ae8] sm:$0xff]
  %v886 = vld [vmem:[%s1 + $0x1af0] sm:$0xff]
  %v887 = vld [vmem:[%s1 + $0x1af8] sm:$0xff]
  %v888 = vld [vmem:[%s1 + $0x1b00] sm:$0xff]
  %v889 = vld [vmem:[%s1 + $0x1b08] sm:$0xff]
  %v890 = vld [vmem:[%s1 + $0x1b10] sm:$0xff]
  %v891 = vld [vmem:[%s1 + $0x1b18] sm:$0xff]
  %v892 = vld [vmem:[%s1 + $0x1b20] sm:$0xff]
  %v893 = vld [vmem:[%s1 + $0x1b28] sm:$0xff]
  %v894 = vld [vmem:[%s1 + $0x1b30] sm:$0xff]
  %v895 = vld [vmem:[%s1 + $0x1b38] sm:$0xff]
  %v896 = vld [vmem:[%s1 + $0x1b40] sm:$0xff]
  %v897 = vld [vmem:[%s1 + $0x1b48] sm:$0xff]
  %v898 = vld [vmem:[%s1 + $0x1b50] sm:$0xff]
  %v899 = vld [vmem:[%s1 + $0x1b58] sm:$0xff]
  %v900 = vld [vmem:[%s1 + $0x1b60] sm:$0xff]
  %v901 = vld [vmem:[%s1 + $0x1b68] sm:$0xff]
  %v902 = vld [vmem:[%s1 + $0x1b70] sm:$0xff]
  %v903 = vld [vmem:[%s1 + $0x1b78] sm:$0xff]
  %v904 = vld [vmem:[%s1 + $0x1b80] sm:$0xff]
  %v905 = vld [vmem:[%s1 + $0x1b88] sm:$0xff]
  %v906 = vld [vmem:[%s1 + $0x1b90] sm:$0xff]
  %v907 = vld [vmem:[%s1 + $0x1b98] sm:$0xff]
  %v908 = vld [vmem:[%s1 + $0x1ba0] sm:$0xff]
  %v909 = vld [vmem:[%s1 + $0x1ba8] sm:$0xff]
  %v910 = vld [vmem:[%s1 + $0x1bb0] sm:$0xff]
  %v911 = vld [vmem:[%s1 + $0x1bb8] sm:$0xff]
  %v912 = vld [vmem:[%s1 + $0x1bc0] sm:$0xff]
  %v913 = vld [vmem:[%s1 + $0x1bc8] sm:$0xff]
  %v914 = vld [vmem:[%s1 + $0x1bd0] sm:$0xff]
  %v915 = vld [vmem:[%s1 + $0x1bd8] sm:$0xff]
  %v916 = vld [vmem:[%s1 + $0x1be0] sm:$0xff]
  %v917 = vld [vmem:[%s1 + $0x1be8] sm:$0xff]
  %v918 = vld [vmem:[%s1 + $0x1bf0] sm:$0xff]
  %v919 = vld [vmem:[%s1 + $0x1bf8] sm:$0xff]
  %v920 = vld [vmem:[%s1 + $0x1c00] sm:$0xff]
  %v921 = vld [vmem:[%s1 + $0x1c08] sm:$0xff]
  %v922 = vld [vmem:[%s1 + $0x1c10] sm:$0xff]
  %v923 = vld [vmem:[%s1 + $0x1c18] sm:$0xff]
  %v924 = vld [vmem:[%s1 + $0x1c20] sm:$0xff]
  %v925 = vld [vmem:[%s1 + $0x1c28] sm:$0xff]
  %v926 = vld [vmem:[%s1 + $0x1c30] sm:$0xff]
  %v927 = vld [vmem:[%s1 + $0x1c38] sm:$0xff]
  %v928 = vld [vmem:[%s1 + $0x1c40] sm:$0xff]
  %v929 = vld [vmem:[%s1 + $0x1c48] sm:$0xff]
  %v930 = vld [vmem:[%s1 + $0x1c50] sm:$0xff]
  %v931 = vld [vmem:[%s1 + $0x1c58] sm:$0xff]
  %v932 = vld [vmem:[%s1 + $0x1c60] sm:$0xff]
  %v933 = vld [vmem:[%s1 + $0x1c68] sm:$0xff]
  %v934 = vld [vmem:[%s1 + $0x1c70] sm:$0xff]
  %v935 = vld [vmem:[%s1 + $0x1c78] sm:$0xff]
  %v936 = vld [vmem:[%s1 + $0x1c80] sm:$0xff]
  %v937 = vld [vmem:[%s1 + $0x1c88] sm:$0xff]
  %v938 = vld [vmem:[%s1 + $0x1c90] sm:$0xff]
  %v939 = vld [vmem:[%s1 + $0x1c98] sm:$0xff]
  %v940 = vld [vmem:[%s1 + $0x1ca0] sm:$0xff]
  %v941 = vld [vmem:[%s1 + $0x1ca8] sm:$0xff]
  %v942 = vld [vmem:[%s1 + $0x1cb0] sm:$0xff]
  %v943 = vld [vmem:[%s1 + $0x1cb8] sm:$0xff]
  %v944 = vld [vmem:[%s1 + $0x1cc0] sm:$0xff]
  %v945 = vld [vmem:[%s1 + $0x1cc8] sm:$0xff]
  %v946 = vld [vmem:[%s1 + $0x1cd0] sm:$0xff]
  %v947 = vld [vmem:[%s1 + $0x1cd8] sm:$0xff]
  %v948 = vld [vmem:[%s1 + $0x1ce0] sm:$0xff]
  %v949 = vld [vmem:[%s1 + $0x1ce8] sm:$0xff]
  %v950 = vld [vmem:[%s1 + $0x1cf0] sm:$0xff]
  %v951 = vld [vmem:[%s1 + $0x1cf8] sm:$0xff]
  %v952 = vld [vmem:[%s1 + $0x1d00] sm:$0xff]
  %v953 = vld [vmem:[%s1 + $0x1d08] sm:$0xff]
  %v954 = vld [vmem:[%s1 + $0x1d10] sm:$0xff]
  %v955 = vld [vmem:[%s1 + $0x1d18] sm:$0xff]
  %v956 = vld [vmem:[%s1 + $0x1d20] sm:$0xff]
  %v957 = vld [vmem:[%s1 + $0x1d28] sm:$0xff]
  %v958 = vld [vmem:[%s1 + $0x1d30] sm:$0xff]
  %v959 = vld [vmem:[%s1 + $0x1d38] sm:$0xff]
  %v960 = vld [vmem:[%s1 + $0x1d40] sm:$0xff]
  %v961 = vld [vmem:[%s1 + $0x1d48] sm:$0xff]
  %v962 = vld [vmem:[%s1 + $0x1d50] sm:$0xff]
  %v963 = vld [vmem:[%s1 + $0x1d58] sm:$0xff]
  %v964 = vld [vmem:[%s1 + $0x1d60] sm:$0xff]
  %v965 = vld [vmem:[%s1 + $0x1d68] sm:$0xff]
  %v966 = vld [vmem:[%s1 + $0x1d70] sm:$0xff]
  %v967 = vld [vmem:[%s1 + $0x1d78] sm:$0xff]
  %v968 = vld [vmem:[%s1 + $0x1d80] sm:$0xff]
  %v969 = vld [vmem:[%s1 + $0x1d88] sm:$0xff]
  %v970 = vld [vmem:[%s1 + $0x1d90] sm:$0xff]
  %v971 = vld [vmem:[%s1 + $0x1d98] sm:$0xff]
  %v972 = vld [vmem:[%s1 + $0x1da0] sm:$0xff]
  %v973 = vld [vmem:[%s1 + $0x1da8] sm:$0xff]
  %v974 = vld [vmem:[%s1 + $0x1db0] sm:$0xff]
  %v975 = vld [vmem:[%s1 + $0x1db8] sm:$0xff]
  %v976 = vld [vmem:[%s1 + $0x1dc0] sm:$0xff]
  %v977 = vld [vmem:[%s1 + $0x1dc8] sm:$0xff]
  %v978 = vld [vmem:[%s1 + $0x1dd0] sm:$0xff]
  %v979 = vld [vmem:[%s1 + $0x1dd8] sm:$0xff]
  %v980 = vld [vmem:[%s1 + $0x1de0] sm:$0xff]
  %v981 = vld [vmem:[%s1 + $0x1de8] sm:$0xff]
  %v982 = vld [vmem:[%s1 + $0x1df0] sm:$0xff]
  %v983 = vld [vmem:[%s1 + $0x1df8] sm:$0xff]
  %v984 = vld [vmem:[%s1 + $0x1e00] sm:$0xff]
  %v985 = vld [vmem:[%s1 + $0x1e08] sm:$0xff]
  %v986 = vld [vmem:[%s1 + $0x1e10] sm:$0xff]
  %v987 = vld [vmem:[%s1 + $0x1e18] sm:$0xff]
  %v988 = vld [vmem:[%s1 + $0x1e20] sm:$0xff]
  %v989 = vld [vmem:[%s1 + $0x1e28] sm:$0xff]
  %v990 = vld [vmem:[%s1 + $0x1e30] sm:$0xff]
  %v991 = vld [vmem:[%s1 + $0x1e38] sm:$0xff]
  %v992 = vld [vmem:[%s1 + $0x1e40] sm:$0xff]
  %v993 = vld [vmem:[%s1 + $0x1e48] sm:$0xff]
  %v994 = vld [vmem:[%s1 + $0x1e50] sm:$0xff]
  %v995 = vld [vmem:[%s1 + $0x1e58] sm:$0xff]
  %v996 = vld [vmem:[%s1 + $0x1e60] sm:$0xff]
  %v997 = vld [vmem:[%s1 + $0x1e68] sm:$0xff]
  %v998 = vld [vmem:[%s1 + $0x1e70] sm:$0xff]
  %v999 = vld [vmem:[%s1 + $0x1e78] sm:$0xff]
  %v1000 = vld [vmem:[%s1 + $0x1e80] sm:$0xff]
  %v1001 = vld [vmem:[%s1 + $0x1e88] sm:$0xff]
  %v1002 = vld [vmem:[%s1 + $0x1e90] sm:$0xff]
  %v1003 = vld [vmem:[%s1 + $0x1e98] sm:$0xff]
  %v1004 = vld [vmem:[%s1 + $0x1ea0] sm:$0xff]
  %v1005 = vld [vmem:[%s1 + $0x1ea8] sm:$0xff]
  %v1006 = vld [vmem:[%s1 + $0x1eb0] sm:$0xff]
  %v1007 = vld [vmem:[%s1 + $0x1eb8] sm:$0xff]
  %v1008 = vld [vmem:[%s1 + $0x1ec0] sm:$0xff]
  %v1009 = vld [vmem:[%s1 + $0x1ec8] sm:$0xff]
  %v1010 = vld [vmem:[%s1 + $0x1ed0] sm:$0xff]
  %v1011 = vld [vmem:[%s1 + $0x1ed8] sm:$0xff]
  %v1012 = vld [vmem:[%s1 + $0x1ee0] sm:$0xff]
  %v1013 = vld [vmem:[%s1 + $0x1ee8] sm:$0xff]
  %v1014 = vld [vmem:[%s1 + $0x1ef0] sm:$0xff]
  %v1015 = vld [vmem:[%s1 + $0x1ef8] sm:$0xff]
  %v1016 = vld [vmem:[%s1 + $0x1f00] sm:$0xff]
  %v1017 = vld [vmem:[%s1 + $0x1f08] sm:$0xff]
  %v1018 = vld [vmem:[%s1 + $0x1f10] sm:$0xff]
  %v1019 = vld [vmem:[%s1 + $0x1f18] sm:$0xff]
  %v1020 = vld [vmem:[%s1 + $0x1f20] sm:$0xff]
  %v1021 = vld [vmem:[%s1 + $0x1f28] sm:$0xff]
  %v1022 = vld [vmem:[%s1 + $0x1f30] sm:$0xff]
  %v1023 = vld [vmem:[%s1 + $0x1f38] sm:$0xff]
  %v1024 = vld [vmem:[%s1 + $0x1f40] sm:$0xff]
  %v1025 = vld [vmem:[%s1 + $0x1f48] sm:$0xff]
  %v1026 = vld [vmem:[%s1 + $0x1f50] sm:$0xff]
  %v1027 = vld [vmem:[%s1 + $0x1f58] sm:$0xff]
  %v1028 = vld [vmem:[%s1 + $0x1f60] sm:$0xff]
  %v1029 = vld [vmem:[%s1 + $0x1f68] sm:$0xff]
  %v1030 = vld [vmem:[%s1 + $0x1f70] sm:$0xff]
  %v1031 = vld [vmem:[%s1 + $0x1f78] sm:$0xff]
  %v1032 = vld [vmem:[%s1 + $0x1f80] sm:$0xff]
  %v1033 = vld [vmem:[%s1 + $0x1f88] sm:$0xff]
  %v1034 = vld [vmem:[%s1 + $0x1f90] sm:$0xff]
  %v1035 = vld [vmem:[%s1 + $0x1f98] sm:$0xff]
  %v1036 = vld [vmem:[%s1 + $0x1fa0] sm:$0xff]
  %v1037 = vld [vmem:[%s1 + $0x1fa8] sm:$0xff]
  %v1038 = vld [vmem:[%s1 + $0x1fb0] sm:$0xff]
  %v1039 = vld [vmem:[%s1 + $0x1fb8] sm:$0xff]
  %v1040 = vld [vmem:[%s1 + $0x1fc0] sm:$0xff]
  %v1041 = vld [vmem:[%s1 + $0x1fc8] sm:$0xff]
  %v1042 = vld [vmem:[%s1 + $0x1fd0] sm:$0xff]
  %v1043 = vld [vmem:[%s1 + $0x1fd8] sm:$0xff]
  %v1044 = vld [vmem:[%s1 + $0x1fe0] sm:$0xff]
  %v1045 = vld [vmem:[%s1 + $0x1fe8] sm:$0xff]
  %v1046 = vld [vmem:[%s1 + $0x1ff0] sm:$0xff]
  %v1047 = vld [vmem:[%s1 + $0x1ff8] sm:$0xff]
  %v1048 = vld [vmem:[%s2] sm:$0xff]
  %v1050 = vlaneseq
  %v1051 = vshrl.u32 %v1050, 7
  %v1052 = vsub.s32 0, %v1051
  %v1053 = vrot.slane %v1048, %v1052
  %v1054 = vlaneseq
  %v1055 = vshrl.u32 %v1054, 7
  %v1056 = vsub.s32 1, %v1055
  %v1057 = vrot.slane %v1048, %v1056
  %v1058 = vlaneseq
  %v1059 = vshrl.u32 %v1058, 7
  %v1060 = vsub.s32 2, %v1059
  %v1061 = vrot.slane %v1048, %v1060
  %v1062 = vlaneseq
  %v1063 = vshrl.u32 %v1062, 7
  %v1064 = vsub.s32 3, %v1063
  %v1065 = vrot.slane %v1048, %v1064
  %v1066 = vlaneseq
  %v1067 = vshrl.u32 %v1066, 7
  %v1068 = vsub.s32 4, %v1067
  %v1069 = vrot.slane %v1048, %v1068
  %v1070 = vlaneseq
  %v1071 = vshrl.u32 %v1070, 7
  %v1072 = vsub.s32 5, %v1071
  %v1073 = vrot.slane %v1048, %v1072
  %v1074 = vlaneseq
  %v1075 = vshrl.u32 %v1074, 7
  %v1076 = vsub.s32 6, %v1075
  %v1077 = vrot.slane %v1048, %v1076
  %v1078 = vlaneseq
  %v1079 = vshrl.u32 %v1078, 7
  %v1080 = vsub.s32 7, %v1079
  %v1081 = vrot.slane %v1048, %v1080
  %v1092 = vcombine.high %v22, %v22
  %v1094 = vunpack.c.l.s4 1966171168
  %v1095 = vunpack.c.0.s8 %v1094
  %v1096 = vlaneseq
  %v1097 = vshrl.u32 %v1096, 7
  %v1098 = vsub.s32 %v1095, %v1097
  %v1099 = vrot.slane %v22, %v1098
  %v1101 = vunpack.c.l.s4 1966171168
  %v1102 = vunpack.c.0.s8 %v1101
  %v1103 = vlaneseq
  %v1104 = vshrl.u32 %v1103, 7
  %v1105 = vsub.s32 %v1102, %v1104
  %v1106 = vrot.slane %v1092, %v1105
  %v1107 = vcombine.high %v1099, %v1099
  %v1108 = vcombine.high %v1106, %v1106
  %v1110 = vunpack.c.l.s4 1966171168
  %v1111 = vunpack.c.0.s8 %v1110
  %v1112 = vlaneseq
  %v1113 = vshrl.u32 %v1112, 7
  %v1114 = vsub.s32 %v1111, %v1113
  %v1115 = vrot.slane %v1099, %v1114
  %v1117 = vunpack.c.l.s4 1966171168
  %v1118 = vunpack.c.0.s8 %v1117
  %v1119 = vlaneseq
  %v1120 = vshrl.u32 %v1119, 7
  %v1121 = vsub.s32 %v1118, %v1120
  %v1122 = vrot.slane %v1106, %v1121
  %v1124 = vunpack.c.l.s4 1966171168
  %v1125 = vunpack.c.0.s8 %v1124
  %v1126 = vlaneseq
  %v1127 = vshrl.u32 %v1126, 7
  %v1128 = vsub.s32 %v1125, %v1127
  %v1129 = vrot.slane %v1107, %v1128
  %v1131 = vunpack.c.l.s4 1966171168
  %v1132 = vunpack.c.0.s8 %v1131
  %v1133 = vlaneseq
  %v1134 = vshrl.u32 %v1133, 7
  %v1135 = vsub.s32 %v1132, %v1134
  %v1136 = vrot.slane %v1108, %v1135
  %v1137 = vcombine.high %v1115, %v1115
  %v1138 = vcombine.high %v1122, %v1122
  %v1139 = vcombine.high %v1129, %v1129
  %v1140 = vcombine.high %v1136, %v1136
  %v1141 = vcombine.high %v23, %v23
  %v1143 = vunpack.c.l.s4 1966171168
  %v1144 = vunpack.c.0.s8 %v1143
  %v1145 = vlaneseq
  %v1146 = vshrl.u32 %v1145, 7
  %v1147 = vsub.s32 %v1144, %v1146
  %v1148 = vrot.slane %v23, %v1147
  %v1150 = vunpack.c.l.s4 1966171168
  %v1151 = vunpack.c.0.s8 %v1150
  %v1152 = vlaneseq
  %v1153 = vshrl.u32 %v1152, 7
  %v1154 = vsub.s32 %v1151, %v1153
  %v1155 = vrot.slane %v1141, %v1154
  %v1156 = vcombine.high %v1148, %v1148
  %v1157 = vcombine.high %v1155, %v1155
  %v1159 = vunpack.c.l.s4 1966171168
  %v1160 = vunpack.c.0.s8 %v1159
  %v1161 = vlaneseq
  %v1162 = vshrl.u32 %v1161, 7
  %v1163 = vsub.s32 %v1160, %v1162
  %v1164 = vrot.slane %v1148, %v1163
  %v1166 = vunpack.c.l.s4 1966171168
  %v1167 = vunpack.c.0.s8 %v1166
  %v1168 = vlaneseq
  %v1169 = vshrl.u32 %v1168, 7
  %v1170 = vsub.s32 %v1167, %v1169
  %v1171 = vrot.slane %v1155, %v1170
  %v1173 = vunpack.c.l.s4 1966171168
  %v1174 = vunpack.c.0.s8 %v1173
  %v1175 = vlaneseq
  %v1176 = vshrl.u32 %v1175, 7
  %v1177 = vsub.s32 %v1174, %v1176
  %v1178 = vrot.slane %v1156, %v1177
  %v1180 = vunpack.c.l.s4 1966171168
  %v1181 = vunpack.c.0.s8 %v1180
  %v1182 = vlaneseq
  %v1183 = vshrl.u32 %v1182, 7
  %v1184 = vsub.s32 %v1181, %v1183
  %v1185 = vrot.slane %v1157, %v1184
  %v1186 = vcombine.high %v1164, %v1164
  %v1187 = vcombine.high %v1171, %v1171
  %v1188 = vcombine.high %v1178, %v1178
  %v1189 = vcombine.high %v1185, %v1185
  %v2230 = vunpack.c.l.b16 %v24
  %v2231 = vunpack.c.h.b16 %v24
  %v2232 = vunpack.c.l.b16 %v25
  %v2233 = vunpack.c.h.b16 %v25
  %v2234 = vunpack.c.l.b16 %v26
  %v2235 = vunpack.c.h.b16 %v26
  %v2236 = vunpack.c.l.b16 %v27
  %v2237 = vunpack.c.h.b16 %v27
  %v2238 = vunpack.c.l.b16 %v28
  %v2239 = vunpack.c.h.b16 %v28
  %v2240 = vunpack.c.l.b16 %v29
  %v2241 = vunpack.c.h.b16 %v29
  %v2242 = vunpack.c.l.b16 %v30
  %v2243 = vunpack.c.h.b16 %v30
  %v2244 = vunpack.c.l.b16 %v31
  %v2245 = vunpack.c.h.b16 %v31
  %v2246 = vunpack.c.l.b16 %v32
  %v2247 = vunpack.c.h.b16 %v32
  %v2248 = vunpack.c.l.b16 %v33
  %v2249 = vunpack.c.h.b16 %v33
  %v2250 = vunpack.c.l.b16 %v34
  %v2251 = vunpack.c.h.b16 %v34
  %v2252 = vunpack.c.l.b16 %v35
  %v2253 = vunpack.c.h.b16 %v35
  %v2254 = vunpack.c.l.b16 %v36
  %v2255 = vunpack.c.h.b16 %v36
  %v2256 = vunpack.c.l.b16 %v37
  %v2257 = vunpack.c.h.b16 %v37
  %v2258 = vunpack.c.l.b16 %v38
  %v2259 = vunpack.c.h.b16 %v38
  %v2260 = vunpack.c.l.b16 %v39
  %v2261 = vunpack.c.h.b16 %v39
  %v2262 = vunpack.c.l.b16 %v40
  %v2263 = vunpack.c.h.b16 %v40
  %v2264 = vunpack.c.l.b16 %v41
  %v2265 = vunpack.c.h.b16 %v41
  %v2266 = vunpack.c.l.b16 %v42
  %v2267 = vunpack.c.h.b16 %v42
  %v2268 = vunpack.c.l.b16 %v43
  %v2269 = vunpack.c.h.b16 %v43
  %v2270 = vunpack.c.l.b16 %v44
  %v2271 = vunpack.c.h.b16 %v44
  %v2272 = vunpack.c.l.b16 %v45
  %v2273 = vunpack.c.h.b16 %v45
  %v2274 = vunpack.c.l.b16 %v46
  %v2275 = vunpack.c.h.b16 %v46
  %v2276 = vunpack.c.l.b16 %v47
  %v2277 = vunpack.c.h.b16 %v47
  %v2278 = vunpack.c.l.b16 %v48
  %v2279 = vunpack.c.h.b16 %v48
  %v2280 = vunpack.c.l.b16 %v49
  %v2281 = vunpack.c.h.b16 %v49
  %v2282 = vunpack.c.l.b16 %v50
  %v2283 = vunpack.c.h.b16 %v50
  %v2284 = vunpack.c.l.b16 %v51
  %v2285 = vunpack.c.h.b16 %v51
  %v2286 = vunpack.c.l.b16 %v52
  %v2287 = vunpack.c.h.b16 %v52
  %v2288 = vunpack.c.l.b16 %v53
  %v2289 = vunpack.c.h.b16 %v53
  %v2290 = vunpack.c.l.b16 %v54
  %v2291 = vunpack.c.h.b16 %v54
  %v2292 = vunpack.c.l.b16 %v55
  %v2293 = vunpack.c.h.b16 %v55
  %v2294 = vunpack.c.l.b16 %v56
  %v2295 = vunpack.c.h.b16 %v56
  %v2296 = vunpack.c.l.b16 %v57
  %v2297 = vunpack.c.h.b16 %v57
  %v2298 = vunpack.c.l.b16 %v58
  %v2299 = vunpack.c.h.b16 %v58
  %v2300 = vunpack.c.l.b16 %v59
  %v2301 = vunpack.c.h.b16 %v59
  %v2302 = vunpack.c.l.b16 %v60
  %v2303 = vunpack.c.h.b16 %v60
  %v2304 = vunpack.c.l.b16 %v61
  %v2305 = vunpack.c.h.b16 %v61
  %v2306 = vunpack.c.l.b16 %v62
  %v2307 = vunpack.c.h.b16 %v62
  %v2308 = vunpack.c.l.b16 %v63
  %v2309 = vunpack.c.h.b16 %v63
  %v2310 = vunpack.c.l.b16 %v64
  %v2311 = vunpack.c.h.b16 %v64
  %v2312 = vunpack.c.l.b16 %v65
  %v2313 = vunpack.c.h.b16 %v65
  %v2314 = vunpack.c.l.b16 %v66
  %v2315 = vunpack.c.h.b16 %v66
  %v2316 = vunpack.c.l.b16 %v67
  %v2317 = vunpack.c.h.b16 %v67
  %v2318 = vunpack.c.l.b16 %v68
  %v2319 = vunpack.c.h.b16 %v68
  %v2320 = vunpack.c.l.b16 %v69
  %v2321 = vunpack.c.h.b16 %v69
  %v2322 = vunpack.c.l.b16 %v70
  %v2323 = vunpack.c.h.b16 %v70
  %v2324 = vunpack.c.l.b16 %v71
  %v2325 = vunpack.c.h.b16 %v71
  %v2326 = vunpack.c.l.b16 %v72
  %v2327 = vunpack.c.h.b16 %v72
  %v2328 = vunpack.c.l.b16 %v73
  %v2329 = vunpack.c.h.b16 %v73
  %v2330 = vunpack.c.l.b16 %v74
  %v2331 = vunpack.c.h.b16 %v74
  %v2332 = vunpack.c.l.b16 %v75
  %v2333 = vunpack.c.h.b16 %v75
  %v2334 = vunpack.c.l.b16 %v76
  %v2335 = vunpack.c.h.b16 %v76
  %v2336 = vunpack.c.l.b16 %v77
  %v2337 = vunpack.c.h.b16 %v77
  %v2338 = vunpack.c.l.b16 %v78
  %v2339 = vunpack.c.h.b16 %v78
  %v2340 = vunpack.c.l.b16 %v79
  %v2341 = vunpack.c.h.b16 %v79
  %v2342 = vunpack.c.l.b16 %v80
  %v2343 = vunpack.c.h.b16 %v80
  %v2344 = vunpack.c.l.b16 %v81
  %v2345 = vunpack.c.h.b16 %v81
  %v2346 = vunpack.c.l.b16 %v82
  %v2347 = vunpack.c.h.b16 %v82
  %v2348 = vunpack.c.l.b16 %v83
  %v2349 = vunpack.c.h.b16 %v83
  %v2350 = vunpack.c.l.b16 %v84
  %v2351 = vunpack.c.h.b16 %v84
  %v2352 = vunpack.c.l.b16 %v85
  %v2353 = vunpack.c.h.b16 %v85
  %v2354 = vunpack.c.l.b16 %v86
  %v2355 = vunpack.c.h.b16 %v86
  %v2356 = vunpack.c.l.b16 %v87
  %v2357 = vunpack.c.h.b16 %v87
  %v2358 = vunpack.c.l.b16 %v88
  %v2359 = vunpack.c.h.b16 %v88
  %v2360 = vunpack.c.l.b16 %v89
  %v2361 = vunpack.c.h.b16 %v89
  %v2362 = vunpack.c.l.b16 %v90
  %v2363 = vunpack.c.h.b16 %v90
  %v2364 = vunpack.c.l.b16 %v91
  %v2365 = vunpack.c.h.b16 %v91
  %v2366 = vunpack.c.l.b16 %v92
  %v2367 = vunpack.c.h.b16 %v92
  %v2368 = vunpack.c.l.b16 %v93
  %v2369 = vunpack.c.h.b16 %v93
  %v2370 = vunpack.c.l.b16 %v94
  %v2371 = vunpack.c.h.b16 %v94
  %v2372 = vunpack.c.l.b16 %v95
  %v2373 = vunpack.c.h.b16 %v95
  %v2374 = vunpack.c.l.b16 %v96
  %v2375 = vunpack.c.h.b16 %v96
  %v2376 = vunpack.c.l.b16 %v97
  %v2377 = vunpack.c.h.b16 %v97
  %v2378 = vunpack.c.l.b16 %v98
  %v2379 = vunpack.c.h.b16 %v98
  %v2380 = vunpack.c.l.b16 %v99
  %v2381 = vunpack.c.h.b16 %v99
  %v2382 = vunpack.c.l.b16 %v100
  %v2383 = vunpack.c.h.b16 %v100
  %v2384 = vunpack.c.l.b16 %v101
  %v2385 = vunpack.c.h.b16 %v101
  %v2386 = vunpack.c.l.b16 %v102
  %v2387 = vunpack.c.h.b16 %v102
  %v2388 = vunpack.c.l.b16 %v103
  %v2389 = vunpack.c.h.b16 %v103
  %v2390 = vunpack.c.l.b16 %v104
  %v2391 = vunpack.c.h.b16 %v104
  %v2392 = vunpack.c.l.b16 %v105
  %v2393 = vunpack.c.h.b16 %v105
  %v2394 = vunpack.c.l.b16 %v106
  %v2395 = vunpack.c.h.b16 %v106
  %v2396 = vunpack.c.l.b16 %v107
  %v2397 = vunpack.c.h.b16 %v107
  %v2398 = vunpack.c.l.b16 %v108
  %v2399 = vunpack.c.h.b16 %v108
  %v2400 = vunpack.c.l.b16 %v109
  %v2401 = vunpack.c.h.b16 %v109
  %v2402 = vunpack.c.l.b16 %v110
  %v2403 = vunpack.c.h.b16 %v110
  %v2404 = vunpack.c.l.b16 %v111
  %v2405 = vunpack.c.h.b16 %v111
  %v2406 = vunpack.c.l.b16 %v112
  %v2407 = vunpack.c.h.b16 %v112
  %v2408 = vunpack.c.l.b16 %v113
  %v2409 = vunpack.c.h.b16 %v113
  %v2410 = vunpack.c.l.b16 %v114
  %v2411 = vunpack.c.h.b16 %v114
  %v2412 = vunpack.c.l.b16 %v115
  %v2413 = vunpack.c.h.b16 %v115
  %v2414 = vunpack.c.l.b16 %v116
  %v2415 = vunpack.c.h.b16 %v116
  %v2416 = vunpack.c.l.b16 %v117
  %v2417 = vunpack.c.h.b16 %v117
  %v2418 = vunpack.c.l.b16 %v118
  %v2419 = vunpack.c.h.b16 %v118
  %v2420 = vunpack.c.l.b16 %v119
  %v2421 = vunpack.c.h.b16 %v119
  %v2422 = vunpack.c.l.b16 %v120
  %v2423 = vunpack.c.h.b16 %v120
  %v2424 = vunpack.c.l.b16 %v121
  %v2425 = vunpack.c.h.b16 %v121
  %v2426 = vunpack.c.l.b16 %v122
  %v2427 = vunpack.c.h.b16 %v122
  %v2428 = vunpack.c.l.b16 %v123
  %v2429 = vunpack.c.h.b16 %v123
  %v2430 = vunpack.c.l.b16 %v124
  %v2431 = vunpack.c.h.b16 %v124
  %v2432 = vunpack.c.l.b16 %v125
  %v2433 = vunpack.c.h.b16 %v125
  %v2434 = vunpack.c.l.b16 %v126
  %v2435 = vunpack.c.h.b16 %v126
  %v2436 = vunpack.c.l.b16 %v127
  %v2437 = vunpack.c.h.b16 %v127
  %v2438 = vunpack.c.l.b16 %v128
  %v2439 = vunpack.c.h.b16 %v128
  %v2440 = vunpack.c.l.b16 %v129
  %v2441 = vunpack.c.h.b16 %v129
  %v2442 = vunpack.c.l.b16 %v130
  %v2443 = vunpack.c.h.b16 %v130
  %v2444 = vunpack.c.l.b16 %v131
  %v2445 = vunpack.c.h.b16 %v131
  %v2446 = vunpack.c.l.b16 %v132
  %v2447 = vunpack.c.h.b16 %v132
  %v2448 = vunpack.c.l.b16 %v133
  %v2449 = vunpack.c.h.b16 %v133
  %v2450 = vunpack.c.l.b16 %v134
  %v2451 = vunpack.c.h.b16 %v134
  %v2452 = vunpack.c.l.b16 %v135
  %v2453 = vunpack.c.h.b16 %v135
  %v2454 = vunpack.c.l.b16 %v136
  %v2455 = vunpack.c.h.b16 %v136
  %v2456 = vunpack.c.l.b16 %v137
  %v2457 = vunpack.c.h.b16 %v137
  %v2458 = vunpack.c.l.b16 %v138
  %v2459 = vunpack.c.h.b16 %v138
  %v2460 = vunpack.c.l.b16 %v139
  %v2461 = vunpack.c.h.b16 %v139
  %v2462 = vunpack.c.l.b16 %v140
  %v2463 = vunpack.c.h.b16 %v140
  %v2464 = vunpack.c.l.b16 %v141
  %v2465 = vunpack.c.h.b16 %v141
  %v2466 = vunpack.c.l.b16 %v142
  %v2467 = vunpack.c.h.b16 %v142
  %v2468 = vunpack.c.l.b16 %v143
  %v2469 = vunpack.c.h.b16 %v143
  %v2470 = vunpack.c.l.b16 %v144
  %v2471 = vunpack.c.h.b16 %v144
  %v2472 = vunpack.c.l.b16 %v145
  %v2473 = vunpack.c.h.b16 %v145
  %v2474 = vunpack.c.l.b16 %v146
  %v2475 = vunpack.c.h.b16 %v146
  %v2476 = vunpack.c.l.b16 %v147
  %v2477 = vunpack.c.h.b16 %v147
  %v2478 = vunpack.c.l.b16 %v148
  %v2479 = vunpack.c.h.b16 %v148
  %v2480 = vunpack.c.l.b16 %v149
  %v2481 = vunpack.c.h.b16 %v149
  %v2482 = vunpack.c.l.b16 %v150
  %v2483 = vunpack.c.h.b16 %v150
  %v2484 = vunpack.c.l.b16 %v151
  %v2485 = vunpack.c.h.b16 %v151
  %v2486 = vunpack.c.l.b16 %v152
  %v2487 = vunpack.c.h.b16 %v152
  %v2488 = vunpack.c.l.b16 %v153
  %v2489 = vunpack.c.h.b16 %v153
  %v2490 = vunpack.c.l.b16 %v154
  %v2491 = vunpack.c.h.b16 %v154
  %v2492 = vunpack.c.l.b16 %v155
  %v2493 = vunpack.c.h.b16 %v155
  %v2494 = vunpack.c.l.b16 %v156
  %v2495 = vunpack.c.h.b16 %v156
  %v2496 = vunpack.c.l.b16 %v157
  %v2497 = vunpack.c.h.b16 %v157
  %v2498 = vunpack.c.l.b16 %v158
  %v2499 = vunpack.c.h.b16 %v158
  %v2500 = vunpack.c.l.b16 %v159
  %v2501 = vunpack.c.h.b16 %v159
  %v2502 = vunpack.c.l.b16 %v160
  %v2503 = vunpack.c.h.b16 %v160
  %v2504 = vunpack.c.l.b16 %v161
  %v2505 = vunpack.c.h.b16 %v161
  %v2506 = vunpack.c.l.b16 %v162
  %v2507 = vunpack.c.h.b16 %v162
  %v2508 = vunpack.c.l.b16 %v163
  %v2509 = vunpack.c.h.b16 %v163
  %v2510 = vunpack.c.l.b16 %v164
  %v2511 = vunpack.c.h.b16 %v164
  %v2512 = vunpack.c.l.b16 %v165
  %v2513 = vunpack.c.h.b16 %v165
  %v2514 = vunpack.c.l.b16 %v166
  %v2515 = vunpack.c.h.b16 %v166
  %v2516 = vunpack.c.l.b16 %v167
  %v2517 = vunpack.c.h.b16 %v167
  %v2518 = vunpack.c.l.b16 %v168
  %v2519 = vunpack.c.h.b16 %v168
  %v2520 = vunpack.c.l.b16 %v169
  %v2521 = vunpack.c.h.b16 %v169
  %v2522 = vunpack.c.l.b16 %v170
  %v2523 = vunpack.c.h.b16 %v170
  %v2524 = vunpack.c.l.b16 %v171
  %v2525 = vunpack.c.h.b16 %v171
  %v2526 = vunpack.c.l.b16 %v172
  %v2527 = vunpack.c.h.b16 %v172
  %v2528 = vunpack.c.l.b16 %v173
  %v2529 = vunpack.c.h.b16 %v173
  %v2530 = vunpack.c.l.b16 %v174
  %v2531 = vunpack.c.h.b16 %v174
  %v2532 = vunpack.c.l.b16 %v175
  %v2533 = vunpack.c.h.b16 %v175
  %v2534 = vunpack.c.l.b16 %v176
  %v2535 = vunpack.c.h.b16 %v176
  %v2536 = vunpack.c.l.b16 %v177
  %v2537 = vunpack.c.h.b16 %v177
  %v2538 = vunpack.c.l.b16 %v178
  %v2539 = vunpack.c.h.b16 %v178
  %v2540 = vunpack.c.l.b16 %v179
  %v2541 = vunpack.c.h.b16 %v179
  %v2542 = vunpack.c.l.b16 %v180
  %v2543 = vunpack.c.h.b16 %v180
  %v2544 = vunpack.c.l.b16 %v181
  %v2545 = vunpack.c.h.b16 %v181
  %v2546 = vunpack.c.l.b16 %v182
  %v2547 = vunpack.c.h.b16 %v182
  %v2548 = vunpack.c.l.b16 %v183
  %v2549 = vunpack.c.h.b16 %v183
  %v2550 = vunpack.c.l.b16 %v184
  %v2551 = vunpack.c.h.b16 %v184
  %v2552 = vunpack.c.l.b16 %v185
  %v2553 = vunpack.c.h.b16 %v185
  %v2554 = vunpack.c.l.b16 %v186
  %v2555 = vunpack.c.h.b16 %v186
  %v2556 = vunpack.c.l.b16 %v187
  %v2557 = vunpack.c.h.b16 %v187
  %v2558 = vunpack.c.l.b16 %v188
  %v2559 = vunpack.c.h.b16 %v188
  %v2560 = vunpack.c.l.b16 %v189
  %v2561 = vunpack.c.h.b16 %v189
  %v2562 = vunpack.c.l.b16 %v190
  %v2563 = vunpack.c.h.b16 %v190
  %v2564 = vunpack.c.l.b16 %v191
  %v2565 = vunpack.c.h.b16 %v191
  %v2566 = vunpack.c.l.b16 %v192
  %v2567 = vunpack.c.h.b16 %v192
  %v2568 = vunpack.c.l.b16 %v193
  %v2569 = vunpack.c.h.b16 %v193
  %v2570 = vunpack.c.l.b16 %v194
  %v2571 = vunpack.c.h.b16 %v194
  %v2572 = vunpack.c.l.b16 %v195
  %v2573 = vunpack.c.h.b16 %v195
  %v2574 = vunpack.c.l.b16 %v196
  %v2575 = vunpack.c.h.b16 %v196
  %v2576 = vunpack.c.l.b16 %v197
  %v2577 = vunpack.c.h.b16 %v197
  %v2578 = vunpack.c.l.b16 %v198
  %v2579 = vunpack.c.h.b16 %v198
  %v2580 = vunpack.c.l.b16 %v199
  %v2581 = vunpack.c.h.b16 %v199
  %v2582 = vunpack.c.l.b16 %v200
  %v2583 = vunpack.c.h.b16 %v200
  %v2584 = vunpack.c.l.b16 %v201
  %v2585 = vunpack.c.h.b16 %v201
  %v2586 = vunpack.c.l.b16 %v202
  %v2587 = vunpack.c.h.b16 %v202
  %v2588 = vunpack.c.l.b16 %v203
  %v2589 = vunpack.c.h.b16 %v203
  %v2590 = vunpack.c.l.b16 %v204
  %v2591 = vunpack.c.h.b16 %v204
  %v2592 = vunpack.c.l.b16 %v205
  %v2593 = vunpack.c.h.b16 %v205
  %v2594 = vunpack.c.l.b16 %v206
  %v2595 = vunpack.c.h.b16 %v206
  %v2596 = vunpack.c.l.b16 %v207
  %v2597 = vunpack.c.h.b16 %v207
  %v2598 = vunpack.c.l.b16 %v208
  %v2599 = vunpack.c.h.b16 %v208
  %v2600 = vunpack.c.l.b16 %v209
  %v2601 = vunpack.c.h.b16 %v209
  %v2602 = vunpack.c.l.b16 %v210
  %v2603 = vunpack.c.h.b16 %v210
  %v2604 = vunpack.c.l.b16 %v211
  %v2605 = vunpack.c.h.b16 %v211
  %v2606 = vunpack.c.l.b16 %v212
  %v2607 = vunpack.c.h.b16 %v212
  %v2608 = vunpack.c.l.b16 %v213
  %v2609 = vunpack.c.h.b16 %v213
  %v2610 = vunpack.c.l.b16 %v214
  %v2611 = vunpack.c.h.b16 %v214
  %v2612 = vunpack.c.l.b16 %v215
  %v2613 = vunpack.c.h.b16 %v215
  %v2614 = vunpack.c.l.b16 %v216
  %v2615 = vunpack.c.h.b16 %v216
  %v2616 = vunpack.c.l.b16 %v217
  %v2617 = vunpack.c.h.b16 %v217
  %v2618 = vunpack.c.l.b16 %v218
  %v2619 = vunpack.c.h.b16 %v218
  %v2620 = vunpack.c.l.b16 %v219
  %v2621 = vunpack.c.h.b16 %v219
  %v2622 = vunpack.c.l.b16 %v220
  %v2623 = vunpack.c.h.b16 %v220
  %v2624 = vunpack.c.l.b16 %v221
  %v2625 = vunpack.c.h.b16 %v221
  %v2626 = vunpack.c.l.b16 %v222
  %v2627 = vunpack.c.h.b16 %v222
  %v2628 = vunpack.c.l.b16 %v223
  %v2629 = vunpack.c.h.b16 %v223
  %v2630 = vunpack.c.l.b16 %v224
  %v2631 = vunpack.c.h.b16 %v224
  %v2632 = vunpack.c.l.b16 %v225
  %v2633 = vunpack.c.h.b16 %v225
  %v2634 = vunpack.c.l.b16 %v226
  %v2635 = vunpack.c.h.b16 %v226
  %v2636 = vunpack.c.l.b16 %v227
  %v2637 = vunpack.c.h.b16 %v227
  %v2638 = vunpack.c.l.b16 %v228
  %v2639 = vunpack.c.h.b16 %v228
  %v2640 = vunpack.c.l.b16 %v229
  %v2641 = vunpack.c.h.b16 %v229
  %v2642 = vunpack.c.l.b16 %v230
  %v2643 = vunpack.c.h.b16 %v230
  %v2644 = vunpack.c.l.b16 %v231
  %v2645 = vunpack.c.h.b16 %v231
  %v2646 = vunpack.c.l.b16 %v232
  %v2647 = vunpack.c.h.b16 %v232
  %v2648 = vunpack.c.l.b16 %v233
  %v2649 = vunpack.c.h.b16 %v233
  %v2650 = vunpack.c.l.b16 %v234
  %v2651 = vunpack.c.h.b16 %v234
  %v2652 = vunpack.c.l.b16 %v235
  %v2653 = vunpack.c.h.b16 %v235
  %v2654 = vunpack.c.l.b16 %v236
  %v2655 = vunpack.c.h.b16 %v236
  %v2656 = vunpack.c.l.b16 %v237
  %v2657 = vunpack.c.h.b16 %v237
  %v2658 = vunpack.c.l.b16 %v238
  %v2659 = vunpack.c.h.b16 %v238
  %v2660 = vunpack.c.l.b16 %v239
  %v2661 = vunpack.c.h.b16 %v239
  %v2662 = vunpack.c.l.b16 %v240
  %v2663 = vunpack.c.h.b16 %v240
  %v2664 = vunpack.c.l.b16 %v241
  %v2665 = vunpack.c.h.b16 %v241
  %v2666 = vunpack.c.l.b16 %v242
  %v2667 = vunpack.c.h.b16 %v242
  %v2668 = vunpack.c.l.b16 %v243
  %v2669 = vunpack.c.h.b16 %v243
  %v2670 = vunpack.c.l.b16 %v244
  %v2671 = vunpack.c.h.b16 %v244
  %v2672 = vunpack.c.l.b16 %v245
  %v2673 = vunpack.c.h.b16 %v245
  %v2674 = vunpack.c.l.b16 %v246
  %v2675 = vunpack.c.h.b16 %v246
  %v2676 = vunpack.c.l.b16 %v247
  %v2677 = vunpack.c.h.b16 %v247
  %v2678 = vunpack.c.l.b16 %v248
  %v2679 = vunpack.c.h.b16 %v248
  %v2680 = vunpack.c.l.b16 %v249
  %v2681 = vunpack.c.h.b16 %v249
  %v2682 = vunpack.c.l.b16 %v250
  %v2683 = vunpack.c.h.b16 %v250
  %v2684 = vunpack.c.l.b16 %v251
  %v2685 = vunpack.c.h.b16 %v251
  %v2686 = vunpack.c.l.b16 %v252
  %v2687 = vunpack.c.h.b16 %v252
  %v2688 = vunpack.c.l.b16 %v253
  %v2689 = vunpack.c.h.b16 %v253
  %v2690 = vunpack.c.l.b16 %v254
  %v2691 = vunpack.c.h.b16 %v254
  %v2692 = vunpack.c.l.b16 %v255
  %v2693 = vunpack.c.h.b16 %v255
  %v2694 = vunpack.c.l.b16 %v256
  %v2695 = vunpack.c.h.b16 %v256
  %v2696 = vunpack.c.l.b16 %v257
  %v2697 = vunpack.c.h.b16 %v257
  %v2698 = vunpack.c.l.b16 %v258
  %v2699 = vunpack.c.h.b16 %v258
  %v2700 = vunpack.c.l.b16 %v259
  %v2701 = vunpack.c.h.b16 %v259
  %v2702 = vunpack.c.l.b16 %v260
  %v2703 = vunpack.c.h.b16 %v260
  %v2704 = vunpack.c.l.b16 %v261
  %v2705 = vunpack.c.h.b16 %v261
  %v2706 = vunpack.c.l.b16 %v262
  %v2707 = vunpack.c.h.b16 %v262
  %v2708 = vunpack.c.l.b16 %v263
  %v2709 = vunpack.c.h.b16 %v263
  %v2710 = vunpack.c.l.b16 %v264
  %v2711 = vunpack.c.h.b16 %v264
  %v2712 = vunpack.c.l.b16 %v265
  %v2713 = vunpack.c.h.b16 %v265
  %v2714 = vunpack.c.l.b16 %v266
  %v2715 = vunpack.c.h.b16 %v266
  %v2716 = vunpack.c.l.b16 %v267
  %v2717 = vunpack.c.h.b16 %v267
  %v2718 = vunpack.c.l.b16 %v268
  %v2719 = vunpack.c.h.b16 %v268
  %v2720 = vunpack.c.l.b16 %v269
  %v2721 = vunpack.c.h.b16 %v269
  %v2722 = vunpack.c.l.b16 %v270
  %v2723 = vunpack.c.h.b16 %v270
  %v2724 = vunpack.c.l.b16 %v271
  %v2725 = vunpack.c.h.b16 %v271
  %v2726 = vunpack.c.l.b16 %v272
  %v2727 = vunpack.c.h.b16 %v272
  %v2728 = vunpack.c.l.b16 %v273
  %v2729 = vunpack.c.h.b16 %v273
  %v2730 = vunpack.c.l.b16 %v274
  %v2731 = vunpack.c.h.b16 %v274
  %v2732 = vunpack.c.l.b16 %v275
  %v2733 = vunpack.c.h.b16 %v275
  %v2734 = vunpack.c.l.b16 %v276
  %v2735 = vunpack.c.h.b16 %v276
  %v2736 = vunpack.c.l.b16 %v277
  %v2737 = vunpack.c.h.b16 %v277
  %v2738 = vunpack.c.l.b16 %v278
  %v2739 = vunpack.c.h.b16 %v278
  %v2740 = vunpack.c.l.b16 %v279
  %v2741 = vunpack.c.h.b16 %v279
  %v2742 = vunpack.c.l.b16 %v280
  %v2743 = vunpack.c.h.b16 %v280
  %v2744 = vunpack.c.l.b16 %v281
  %v2745 = vunpack.c.h.b16 %v281
  %v2746 = vunpack.c.l.b16 %v282
  %v2747 = vunpack.c.h.b16 %v282
  %v2748 = vunpack.c.l.b16 %v283
  %v2749 = vunpack.c.h.b16 %v283
  %v2750 = vunpack.c.l.b16 %v284
  %v2751 = vunpack.c.h.b16 %v284
  %v2752 = vunpack.c.l.b16 %v285
  %v2753 = vunpack.c.h.b16 %v285
  %v2754 = vunpack.c.l.b16 %v286
  %v2755 = vunpack.c.h.b16 %v286
  %v2756 = vunpack.c.l.b16 %v287
  %v2757 = vunpack.c.h.b16 %v287
  %v2758 = vunpack.c.l.b16 %v288
  %v2759 = vunpack.c.h.b16 %v288
  %v2760 = vunpack.c.l.b16 %v289
  %v2761 = vunpack.c.h.b16 %v289
  %v2762 = vunpack.c.l.b16 %v290
  %v2763 = vunpack.c.h.b16 %v290
  %v2764 = vunpack.c.l.b16 %v291
  %v2765 = vunpack.c.h.b16 %v291
  %v2766 = vunpack.c.l.b16 %v292
  %v2767 = vunpack.c.h.b16 %v292
  %v2768 = vunpack.c.l.b16 %v293
  %v2769 = vunpack.c.h.b16 %v293
  %v2770 = vunpack.c.l.b16 %v294
  %v2771 = vunpack.c.h.b16 %v294
  %v2772 = vunpack.c.l.b16 %v295
  %v2773 = vunpack.c.h.b16 %v295
  %v2774 = vunpack.c.l.b16 %v296
  %v2775 = vunpack.c.h.b16 %v296
  %v2776 = vunpack.c.l.b16 %v297
  %v2777 = vunpack.c.h.b16 %v297
  %v2778 = vunpack.c.l.b16 %v298
  %v2779 = vunpack.c.h.b16 %v298
  %v2780 = vunpack.c.l.b16 %v299
  %v2781 = vunpack.c.h.b16 %v299
  %v2782 = vunpack.c.l.b16 %v300
  %v2783 = vunpack.c.h.b16 %v300
  %v2784 = vunpack.c.l.b16 %v301
  %v2785 = vunpack.c.h.b16 %v301
  %v2786 = vunpack.c.l.b16 %v302
  %v2787 = vunpack.c.h.b16 %v302
  %v2788 = vunpack.c.l.b16 %v303
  %v2789 = vunpack.c.h.b16 %v303
  %v2790 = vunpack.c.l.b16 %v304
  %v2791 = vunpack.c.h.b16 %v304
  %v2792 = vunpack.c.l.b16 %v305
  %v2793 = vunpack.c.h.b16 %v305
  %v2794 = vunpack.c.l.b16 %v306
  %v2795 = vunpack.c.h.b16 %v306
  %v2796 = vunpack.c.l.b16 %v307
  %v2797 = vunpack.c.h.b16 %v307
  %v2798 = vunpack.c.l.b16 %v308
  %v2799 = vunpack.c.h.b16 %v308
  %v2800 = vunpack.c.l.b16 %v309
  %v2801 = vunpack.c.h.b16 %v309
  %v2802 = vunpack.c.l.b16 %v310
  %v2803 = vunpack.c.h.b16 %v310
  %v2804 = vunpack.c.l.b16 %v311
  %v2805 = vunpack.c.h.b16 %v311
  %v2806 = vunpack.c.l.b16 %v312
  %v2807 = vunpack.c.h.b16 %v312
  %v2808 = vunpack.c.l.b16 %v313
  %v2809 = vunpack.c.h.b16 %v313
  %v2810 = vunpack.c.l.b16 %v314
  %v2811 = vunpack.c.h.b16 %v314
  %v2812 = vunpack.c.l.b16 %v315
  %v2813 = vunpack.c.h.b16 %v315
  %v2814 = vunpack.c.l.b16 %v316
  %v2815 = vunpack.c.h.b16 %v316
  %v2816 = vunpack.c.l.b16 %v317
  %v2817 = vunpack.c.h.b16 %v317
  %v2818 = vunpack.c.l.b16 %v318
  %v2819 = vunpack.c.h.b16 %v318
  %v2820 = vunpack.c.l.b16 %v319
  %v2821 = vunpack.c.h.b16 %v319
  %v2822 = vunpack.c.l.b16 %v320
  %v2823 = vunpack.c.h.b16 %v320
  %v2824 = vunpack.c.l.b16 %v321
  %v2825 = vunpack.c.h.b16 %v321
  %v2826 = vunpack.c.l.b16 %v322
  %v2827 = vunpack.c.h.b16 %v322
  %v2828 = vunpack.c.l.b16 %v323
  %v2829 = vunpack.c.h.b16 %v323
  %v2830 = vunpack.c.l.b16 %v324
  %v2831 = vunpack.c.h.b16 %v324
  %v2832 = vunpack.c.l.b16 %v325
  %v2833 = vunpack.c.h.b16 %v325
  %v2834 = vunpack.c.l.b16 %v326
  %v2835 = vunpack.c.h.b16 %v326
  %v2836 = vunpack.c.l.b16 %v327
  %v2837 = vunpack.c.h.b16 %v327
  %v2838 = vunpack.c.l.b16 %v328
  %v2839 = vunpack.c.h.b16 %v328
  %v2840 = vunpack.c.l.b16 %v329
  %v2841 = vunpack.c.h.b16 %v329
  %v2842 = vunpack.c.l.b16 %v330
  %v2843 = vunpack.c.h.b16 %v330
  %v2844 = vunpack.c.l.b16 %v331
  %v2845 = vunpack.c.h.b16 %v331
  %v2846 = vunpack.c.l.b16 %v332
  %v2847 = vunpack.c.h.b16 %v332
  %v2848 = vunpack.c.l.b16 %v333
  %v2849 = vunpack.c.h.b16 %v333
  %v2850 = vunpack.c.l.b16 %v334
  %v2851 = vunpack.c.h.b16 %v334
  %v2852 = vunpack.c.l.b16 %v335
  %v2853 = vunpack.c.h.b16 %v335
  %v2854 = vunpack.c.l.b16 %v336
  %v2855 = vunpack.c.h.b16 %v336
  %v2856 = vunpack.c.l.b16 %v337
  %v2857 = vunpack.c.h.b16 %v337
  %v2858 = vunpack.c.l.b16 %v338
  %v2859 = vunpack.c.h.b16 %v338
  %v2860 = vunpack.c.l.b16 %v339
  %v2861 = vunpack.c.h.b16 %v339
  %v2862 = vunpack.c.l.b16 %v340
  %v2863 = vunpack.c.h.b16 %v340
  %v2864 = vunpack.c.l.b16 %v341
  %v2865 = vunpack.c.h.b16 %v341
  %v2866 = vunpack.c.l.b16 %v342
  %v2867 = vunpack.c.h.b16 %v342
  %v2868 = vunpack.c.l.b16 %v343
  %v2869 = vunpack.c.h.b16 %v343
  %v2870 = vunpack.c.l.b16 %v344
  %v2871 = vunpack.c.h.b16 %v344
  %v2872 = vunpack.c.l.b16 %v345
  %v2873 = vunpack.c.h.b16 %v345
  %v2874 = vunpack.c.l.b16 %v346
  %v2875 = vunpack.c.h.b16 %v346
  %v2876 = vunpack.c.l.b16 %v347
  %v2877 = vunpack.c.h.b16 %v347
  %v2878 = vunpack.c.l.b16 %v348
  %v2879 = vunpack.c.h.b16 %v348
  %v2880 = vunpack.c.l.b16 %v349
  %v2881 = vunpack.c.h.b16 %v349
  %v2882 = vunpack.c.l.b16 %v350
  %v2883 = vunpack.c.h.b16 %v350
  %v2884 = vunpack.c.l.b16 %v351
  %v2885 = vunpack.c.h.b16 %v351
  %v2886 = vunpack.c.l.b16 %v352
  %v2887 = vunpack.c.h.b16 %v352
  %v2888 = vunpack.c.l.b16 %v353
  %v2889 = vunpack.c.h.b16 %v353
  %v2890 = vunpack.c.l.b16 %v354
  %v2891 = vunpack.c.h.b16 %v354
  %v2892 = vunpack.c.l.b16 %v355
  %v2893 = vunpack.c.h.b16 %v355
  %v2894 = vunpack.c.l.b16 %v356
  %v2895 = vunpack.c.h.b16 %v356
  %v2896 = vunpack.c.l.b16 %v357
  %v2897 = vunpack.c.h.b16 %v357
  %v2898 = vunpack.c.l.b16 %v358
  %v2899 = vunpack.c.h.b16 %v358
  %v2900 = vunpack.c.l.b16 %v359
  %v2901 = vunpack.c.h.b16 %v359
  %v2902 = vunpack.c.l.b16 %v360
  %v2903 = vunpack.c.h.b16 %v360
  %v2904 = vunpack.c.l.b16 %v361
  %v2905 = vunpack.c.h.b16 %v361
  %v2906 = vunpack.c.l.b16 %v362
  %v2907 = vunpack.c.h.b16 %v362
  %v2908 = vunpack.c.l.b16 %v363
  %v2909 = vunpack.c.h.b16 %v363
  %v2910 = vunpack.c.l.b16 %v364
  %v2911 = vunpack.c.h.b16 %v364
  %v2912 = vunpack.c.l.b16 %v365
  %v2913 = vunpack.c.h.b16 %v365
  %v2914 = vunpack.c.l.b16 %v366
  %v2915 = vunpack.c.h.b16 %v366
  %v2916 = vunpack.c.l.b16 %v367
  %v2917 = vunpack.c.h.b16 %v367
  %v2918 = vunpack.c.l.b16 %v368
  %v2919 = vunpack.c.h.b16 %v368
  %v2920 = vunpack.c.l.b16 %v369
  %v2921 = vunpack.c.h.b16 %v369
  %v2922 = vunpack.c.l.b16 %v370
  %v2923 = vunpack.c.h.b16 %v370
  %v2924 = vunpack.c.l.b16 %v371
  %v2925 = vunpack.c.h.b16 %v371
  %v2926 = vunpack.c.l.b16 %v372
  %v2927 = vunpack.c.h.b16 %v372
  %v2928 = vunpack.c.l.b16 %v373
  %v2929 = vunpack.c.h.b16 %v373
  %v2930 = vunpack.c.l.b16 %v374
  %v2931 = vunpack.c.h.b16 %v374
  %v2932 = vunpack.c.l.b16 %v375
  %v2933 = vunpack.c.h.b16 %v375
  %v2934 = vunpack.c.l.b16 %v376
  %v2935 = vunpack.c.h.b16 %v376
  %v2936 = vunpack.c.l.b16 %v377
  %v2937 = vunpack.c.h.b16 %v377
  %v2938 = vunpack.c.l.b16 %v378
  %v2939 = vunpack.c.h.b16 %v378
  %v2940 = vunpack.c.l.b16 %v379
  %v2941 = vunpack.c.h.b16 %v379
  %v2942 = vunpack.c.l.b16 %v380
  %v2943 = vunpack.c.h.b16 %v380
  %v2944 = vunpack.c.l.b16 %v381
  %v2945 = vunpack.c.h.b16 %v381
  %v2946 = vunpack.c.l.b16 %v382
  %v2947 = vunpack.c.h.b16 %v382
  %v2948 = vunpack.c.l.b16 %v383
  %v2949 = vunpack.c.h.b16 %v383
  %v2950 = vunpack.c.l.b16 %v384
  %v2951 = vunpack.c.h.b16 %v384
  %v2952 = vunpack.c.l.b16 %v385
  %v2953 = vunpack.c.h.b16 %v385
  %v2954 = vunpack.c.l.b16 %v386
  %v2955 = vunpack.c.h.b16 %v386
  %v2956 = vunpack.c.l.b16 %v387
  %v2957 = vunpack.c.h.b16 %v387
  %v2958 = vunpack.c.l.b16 %v388
  %v2959 = vunpack.c.h.b16 %v388
  %v2960 = vunpack.c.l.b16 %v389
  %v2961 = vunpack.c.h.b16 %v389
  %v2962 = vunpack.c.l.b16 %v390
  %v2963 = vunpack.c.h.b16 %v390
  %v2964 = vunpack.c.l.b16 %v391
  %v2965 = vunpack.c.h.b16 %v391
  %v2966 = vunpack.c.l.b16 %v392
  %v2967 = vunpack.c.h.b16 %v392
  %v2968 = vunpack.c.l.b16 %v393
  %v2969 = vunpack.c.h.b16 %v393
  %v2970 = vunpack.c.l.b16 %v394
  %v2971 = vunpack.c.h.b16 %v394
  %v2972 = vunpack.c.l.b16 %v395
  %v2973 = vunpack.c.h.b16 %v395
  %v2974 = vunpack.c.l.b16 %v396
  %v2975 = vunpack.c.h.b16 %v396
  %v2976 = vunpack.c.l.b16 %v397
  %v2977 = vunpack.c.h.b16 %v397
  %v2978 = vunpack.c.l.b16 %v398
  %v2979 = vunpack.c.h.b16 %v398
  %v2980 = vunpack.c.l.b16 %v399
  %v2981 = vunpack.c.h.b16 %v399
  %v2982 = vunpack.c.l.b16 %v400
  %v2983 = vunpack.c.h.b16 %v400
  %v2984 = vunpack.c.l.b16 %v401
  %v2985 = vunpack.c.h.b16 %v401
  %v2986 = vunpack.c.l.b16 %v402
  %v2987 = vunpack.c.h.b16 %v402
  %v2988 = vunpack.c.l.b16 %v403
  %v2989 = vunpack.c.h.b16 %v403
  %v2990 = vunpack.c.l.b16 %v404
  %v2991 = vunpack.c.h.b16 %v404
  %v2992 = vunpack.c.l.b16 %v405
  %v2993 = vunpack.c.h.b16 %v405
  %v2994 = vunpack.c.l.b16 %v406
  %v2995 = vunpack.c.h.b16 %v406
  %v2996 = vunpack.c.l.b16 %v407
  %v2997 = vunpack.c.h.b16 %v407
  %v2998 = vunpack.c.l.b16 %v408
  %v2999 = vunpack.c.h.b16 %v408
  %v3000 = vunpack.c.l.b16 %v409
  %v3001 = vunpack.c.h.b16 %v409
  %v3002 = vunpack.c.l.b16 %v410
  %v3003 = vunpack.c.h.b16 %v410
  %v3004 = vunpack.c.l.b16 %v411
  %v3005 = vunpack.c.h.b16 %v411
  %v3006 = vunpack.c.l.b16 %v412
  %v3007 = vunpack.c.h.b16 %v412
  %v3008 = vunpack.c.l.b16 %v413
  %v3009 = vunpack.c.h.b16 %v413
  %v3010 = vunpack.c.l.b16 %v414
  %v3011 = vunpack.c.h.b16 %v414
  %v3012 = vunpack.c.l.b16 %v415
  %v3013 = vunpack.c.h.b16 %v415
  %v3014 = vunpack.c.l.b16 %v416
  %v3015 = vunpack.c.h.b16 %v416
  %v3016 = vunpack.c.l.b16 %v417
  %v3017 = vunpack.c.h.b16 %v417
  %v3018 = vunpack.c.l.b16 %v418
  %v3019 = vunpack.c.h.b16 %v418
  %v3020 = vunpack.c.l.b16 %v419
  %v3021 = vunpack.c.h.b16 %v419
  %v3022 = vunpack.c.l.b16 %v420
  %v3023 = vunpack.c.h.b16 %v420
  %v3024 = vunpack.c.l.b16 %v421
  %v3025 = vunpack.c.h.b16 %v421
  %v3026 = vunpack.c.l.b16 %v422
  %v3027 = vunpack.c.h.b16 %v422
  %v3028 = vunpack.c.l.b16 %v423
  %v3029 = vunpack.c.h.b16 %v423
  %v3030 = vunpack.c.l.b16 %v424
  %v3031 = vunpack.c.h.b16 %v424
  %v3032 = vunpack.c.l.b16 %v425
  %v3033 = vunpack.c.h.b16 %v425
  %v3034 = vunpack.c.l.b16 %v426
  %v3035 = vunpack.c.h.b16 %v426
  %v3036 = vunpack.c.l.b16 %v427
  %v3037 = vunpack.c.h.b16 %v427
  %v3038 = vunpack.c.l.b16 %v428
  %v3039 = vunpack.c.h.b16 %v428
  %v3040 = vunpack.c.l.b16 %v429
  %v3041 = vunpack.c.h.b16 %v429
  %v3042 = vunpack.c.l.b16 %v430
  %v3043 = vunpack.c.h.b16 %v430
  %v3044 = vunpack.c.l.b16 %v431
  %v3045 = vunpack.c.h.b16 %v431
  %v3046 = vunpack.c.l.b16 %v432
  %v3047 = vunpack.c.h.b16 %v432
  %v3048 = vunpack.c.l.b16 %v433
  %v3049 = vunpack.c.h.b16 %v433
  %v3050 = vunpack.c.l.b16 %v434
  %v3051 = vunpack.c.h.b16 %v434
  %v3052 = vunpack.c.l.b16 %v435
  %v3053 = vunpack.c.h.b16 %v435
  %v3054 = vunpack.c.l.b16 %v436
  %v3055 = vunpack.c.h.b16 %v436
  %v3056 = vunpack.c.l.b16 %v437
  %v3057 = vunpack.c.h.b16 %v437
  %v3058 = vunpack.c.l.b16 %v438
  %v3059 = vunpack.c.h.b16 %v438
  %v3060 = vunpack.c.l.b16 %v439
  %v3061 = vunpack.c.h.b16 %v439
  %v3062 = vunpack.c.l.b16 %v440
  %v3063 = vunpack.c.h.b16 %v440
  %v3064 = vunpack.c.l.b16 %v441
  %v3065 = vunpack.c.h.b16 %v441
  %v3066 = vunpack.c.l.b16 %v442
  %v3067 = vunpack.c.h.b16 %v442
  %v3068 = vunpack.c.l.b16 %v443
  %v3069 = vunpack.c.h.b16 %v443
  %v3070 = vunpack.c.l.b16 %v444
  %v3071 = vunpack.c.h.b16 %v444
  %v3072 = vunpack.c.l.b16 %v445
  %v3073 = vunpack.c.h.b16 %v445
  %v3074 = vunpack.c.l.b16 %v446
  %v3075 = vunpack.c.h.b16 %v446
  %v3076 = vunpack.c.l.b16 %v447
  %v3077 = vunpack.c.h.b16 %v447
  %v3078 = vunpack.c.l.b16 %v448
  %v3079 = vunpack.c.h.b16 %v448
  %v3080 = vunpack.c.l.b16 %v449
  %v3081 = vunpack.c.h.b16 %v449
  %v3082 = vunpack.c.l.b16 %v450
  %v3083 = vunpack.c.h.b16 %v450
  %v3084 = vunpack.c.l.b16 %v451
  %v3085 = vunpack.c.h.b16 %v451
  %v3086 = vunpack.c.l.b16 %v452
  %v3087 = vunpack.c.h.b16 %v452
  %v3088 = vunpack.c.l.b16 %v453
  %v3089 = vunpack.c.h.b16 %v453
  %v3090 = vunpack.c.l.b16 %v454
  %v3091 = vunpack.c.h.b16 %v454
  %v3092 = vunpack.c.l.b16 %v455
  %v3093 = vunpack.c.h.b16 %v455
  %v3094 = vunpack.c.l.b16 %v456
  %v3095 = vunpack.c.h.b16 %v456
  %v3096 = vunpack.c.l.b16 %v457
  %v3097 = vunpack.c.h.b16 %v457
  %v3098 = vunpack.c.l.b16 %v458
  %v3099 = vunpack.c.h.b16 %v458
  %v3100 = vunpack.c.l.b16 %v459
  %v3101 = vunpack.c.h.b16 %v459
  %v3102 = vunpack.c.l.b16 %v460
  %v3103 = vunpack.c.h.b16 %v460
  %v3104 = vunpack.c.l.b16 %v461
  %v3105 = vunpack.c.h.b16 %v461
  %v3106 = vunpack.c.l.b16 %v462
  %v3107 = vunpack.c.h.b16 %v462
  %v3108 = vunpack.c.l.b16 %v463
  %v3109 = vunpack.c.h.b16 %v463
  %v3110 = vunpack.c.l.b16 %v464
  %v3111 = vunpack.c.h.b16 %v464
  %v3112 = vunpack.c.l.b16 %v465
  %v3113 = vunpack.c.h.b16 %v465
  %v3114 = vunpack.c.l.b16 %v466
  %v3115 = vunpack.c.h.b16 %v466
  %v3116 = vunpack.c.l.b16 %v467
  %v3117 = vunpack.c.h.b16 %v467
  %v3118 = vunpack.c.l.b16 %v468
  %v3119 = vunpack.c.h.b16 %v468
  %v3120 = vunpack.c.l.b16 %v469
  %v3121 = vunpack.c.h.b16 %v469
  %v3122 = vunpack.c.l.b16 %v470
  %v3123 = vunpack.c.h.b16 %v470
  %v3124 = vunpack.c.l.b16 %v471
  %v3125 = vunpack.c.h.b16 %v471
  %v3126 = vunpack.c.l.b16 %v472
  %v3127 = vunpack.c.h.b16 %v472
  %v3128 = vunpack.c.l.b16 %v473
  %v3129 = vunpack.c.h.b16 %v473
  %v3130 = vunpack.c.l.b16 %v474
  %v3131 = vunpack.c.h.b16 %v474
  %v3132 = vunpack.c.l.b16 %v475
  %v3133 = vunpack.c.h.b16 %v475
  %v3134 = vunpack.c.l.b16 %v476
  %v3135 = vunpack.c.h.b16 %v476
  %v3136 = vunpack.c.l.b16 %v477
  %v3137 = vunpack.c.h.b16 %v477
  %v3138 = vunpack.c.l.b16 %v478
  %v3139 = vunpack.c.h.b16 %v478
  %v3140 = vunpack.c.l.b16 %v479
  %v3141 = vunpack.c.h.b16 %v479
  %v3142 = vunpack.c.l.b16 %v480
  %v3143 = vunpack.c.h.b16 %v480
  %v3144 = vunpack.c.l.b16 %v481
  %v3145 = vunpack.c.h.b16 %v481
  %v3146 = vunpack.c.l.b16 %v482
  %v3147 = vunpack.c.h.b16 %v482
  %v3148 = vunpack.c.l.b16 %v483
  %v3149 = vunpack.c.h.b16 %v483
  %v3150 = vunpack.c.l.b16 %v484
  %v3151 = vunpack.c.h.b16 %v484
  %v3152 = vunpack.c.l.b16 %v485
  %v3153 = vunpack.c.h.b16 %v485
  %v3154 = vunpack.c.l.b16 %v486
  %v3155 = vunpack.c.h.b16 %v486
  %v3156 = vunpack.c.l.b16 %v487
  %v3157 = vunpack.c.h.b16 %v487
  %v3158 = vunpack.c.l.b16 %v488
  %v3159 = vunpack.c.h.b16 %v488
  %v3160 = vunpack.c.l.b16 %v489
  %v3161 = vunpack.c.h.b16 %v489
  %v3162 = vunpack.c.l.b16 %v490
  %v3163 = vunpack.c.h.b16 %v490
  %v3164 = vunpack.c.l.b16 %v491
  %v3165 = vunpack.c.h.b16 %v491
  %v3166 = vunpack.c.l.b16 %v492
  %v3167 = vunpack.c.h.b16 %v492
  %v3168 = vunpack.c.l.b16 %v493
  %v3169 = vunpack.c.h.b16 %v493
  %v3170 = vunpack.c.l.b16 %v494
  %v3171 = vunpack.c.h.b16 %v494
  %v3172 = vunpack.c.l.b16 %v495
  %v3173 = vunpack.c.h.b16 %v495
  %v3174 = vunpack.c.l.b16 %v496
  %v3175 = vunpack.c.h.b16 %v496
  %v3176 = vunpack.c.l.b16 %v497
  %v3177 = vunpack.c.h.b16 %v497
  %v3178 = vunpack.c.l.b16 %v498
  %v3179 = vunpack.c.h.b16 %v498
  %v3180 = vunpack.c.l.b16 %v499
  %v3181 = vunpack.c.h.b16 %v499
  %v3182 = vunpack.c.l.b16 %v500
  %v3183 = vunpack.c.h.b16 %v500
  %v3184 = vunpack.c.l.b16 %v501
  %v3185 = vunpack.c.h.b16 %v501
  %v3186 = vunpack.c.l.b16 %v502
  %v3187 = vunpack.c.h.b16 %v502
  %v3188 = vunpack.c.l.b16 %v503
  %v3189 = vunpack.c.h.b16 %v503
  %v3190 = vunpack.c.l.b16 %v504
  %v3191 = vunpack.c.h.b16 %v504
  %v3192 = vunpack.c.l.b16 %v505
  %v3193 = vunpack.c.h.b16 %v505
  %v3194 = vunpack.c.l.b16 %v506
  %v3195 = vunpack.c.h.b16 %v506
  %v3196 = vunpack.c.l.b16 %v507
  %v3197 = vunpack.c.h.b16 %v507
  %v3198 = vunpack.c.l.b16 %v508
  %v3199 = vunpack.c.h.b16 %v508
  %v3200 = vunpack.c.l.b16 %v509
  %v3201 = vunpack.c.h.b16 %v509
  %v3202 = vunpack.c.l.b16 %v510
  %v3203 = vunpack.c.h.b16 %v510
  %v3204 = vunpack.c.l.b16 %v511
  %v3205 = vunpack.c.h.b16 %v511
  %v3206 = vunpack.c.l.b16 %v512
  %v3207 = vunpack.c.h.b16 %v512
  %v3208 = vunpack.c.l.b16 %v513
  %v3209 = vunpack.c.h.b16 %v513
  %v3210 = vunpack.c.l.b16 %v514
  %v3211 = vunpack.c.h.b16 %v514
  %v3212 = vunpack.c.l.b16 %v515
  %v3213 = vunpack.c.h.b16 %v515
  %v3214 = vunpack.c.l.b16 %v516
  %v3215 = vunpack.c.h.b16 %v516
  %v3216 = vunpack.c.l.b16 %v517
  %v3217 = vunpack.c.h.b16 %v517
  %v3218 = vunpack.c.l.b16 %v518
  %v3219 = vunpack.c.h.b16 %v518
  %v3220 = vunpack.c.l.b16 %v519
  %v3221 = vunpack.c.h.b16 %v519
  %v3222 = vunpack.c.l.b16 %v520
  %v3223 = vunpack.c.h.b16 %v520
  %v3224 = vunpack.c.l.b16 %v521
  %v3225 = vunpack.c.h.b16 %v521
  %v3226 = vunpack.c.l.b16 %v522
  %v3227 = vunpack.c.h.b16 %v522
  %v3228 = vunpack.c.l.b16 %v523
  %v3229 = vunpack.c.h.b16 %v523
  %v3230 = vunpack.c.l.b16 %v524
  %v3231 = vunpack.c.h.b16 %v524
  %v3232 = vunpack.c.l.b16 %v525
  %v3233 = vunpack.c.h.b16 %v525
  %v3234 = vunpack.c.l.b16 %v526
  %v3235 = vunpack.c.h.b16 %v526
  %v3236 = vunpack.c.l.b16 %v527
  %v3237 = vunpack.c.h.b16 %v527
  %v3238 = vunpack.c.l.b16 %v528
  %v3239 = vunpack.c.h.b16 %v528
  %v3240 = vunpack.c.l.b16 %v529
  %v3241 = vunpack.c.h.b16 %v529
  %v3242 = vunpack.c.l.b16 %v530
  %v3243 = vunpack.c.h.b16 %v530
  %v3244 = vunpack.c.l.b16 %v531
  %v3245 = vunpack.c.h.b16 %v531
  %v3246 = vunpack.c.l.b16 %v532
  %v3247 = vunpack.c.h.b16 %v532
  %v3248 = vunpack.c.l.b16 %v533
  %v3249 = vunpack.c.h.b16 %v533
  %v3250 = vunpack.c.l.b16 %v534
  %v3251 = vunpack.c.h.b16 %v534
  %v3252 = vunpack.c.l.b16 %v535
  %v3253 = vunpack.c.h.b16 %v535
  %v3254 = vunpack.c.l.b16 %v536
  %v3255 = vunpack.c.h.b16 %v536
  %v3256 = vunpack.c.l.b16 %v537
  %v3257 = vunpack.c.h.b16 %v537
  %v3258 = vunpack.c.l.b16 %v538
  %v3259 = vunpack.c.h.b16 %v538
  %v3260 = vunpack.c.l.b16 %v539
  %v3261 = vunpack.c.h.b16 %v539
  %v3262 = vunpack.c.l.b16 %v540
  %v3263 = vunpack.c.h.b16 %v540
  %v3264 = vunpack.c.l.b16 %v541
  %v3265 = vunpack.c.h.b16 %v541
  %v3266 = vunpack.c.l.b16 %v542
  %v3267 = vunpack.c.h.b16 %v542
  %v3268 = vunpack.c.l.b16 %v543
  %v3269 = vunpack.c.h.b16 %v543
  %v3270 = vunpack.c.l.b16 %v544
  %v3271 = vunpack.c.h.b16 %v544
  %v3272 = vunpack.c.l.b16 %v545
  %v3273 = vunpack.c.h.b16 %v545
  %v3274 = vunpack.c.l.b16 %v546
  %v3275 = vunpack.c.h.b16 %v546
  %v3276 = vunpack.c.l.b16 %v547
  %v3277 = vunpack.c.h.b16 %v547
  %v3278 = vunpack.c.l.b16 %v548
  %v3279 = vunpack.c.h.b16 %v548
  %v3280 = vunpack.c.l.b16 %v549
  %v3281 = vunpack.c.h.b16 %v549
  %v3282 = vunpack.c.l.b16 %v550
  %v3283 = vunpack.c.h.b16 %v550
  %v3284 = vunpack.c.l.b16 %v551
  %v3285 = vunpack.c.h.b16 %v551
  %v3286 = vunpack.c.l.b16 %v552
  %v3287 = vunpack.c.h.b16 %v552
  %v3288 = vunpack.c.l.b16 %v553
  %v3289 = vunpack.c.h.b16 %v553
  %v3290 = vunpack.c.l.b16 %v554
  %v3291 = vunpack.c.h.b16 %v554
  %v3292 = vunpack.c.l.b16 %v555
  %v3293 = vunpack.c.h.b16 %v555
  %v3294 = vunpack.c.l.b16 %v556
  %v3295 = vunpack.c.h.b16 %v556
  %v3296 = vunpack.c.l.b16 %v557
  %v3297 = vunpack.c.h.b16 %v557
  %v3298 = vunpack.c.l.b16 %v558
  %v3299 = vunpack.c.h.b16 %v558
  %v3300 = vunpack.c.l.b16 %v559
  %v3301 = vunpack.c.h.b16 %v559
  %v3302 = vunpack.c.l.b16 %v560
  %v3303 = vunpack.c.h.b16 %v560
  %v3304 = vunpack.c.l.b16 %v561
  %v3305 = vunpack.c.h.b16 %v561
  %v3306 = vunpack.c.l.b16 %v562
  %v3307 = vunpack.c.h.b16 %v562
  %v3308 = vunpack.c.l.b16 %v563
  %v3309 = vunpack.c.h.b16 %v563
  %v3310 = vunpack.c.l.b16 %v564
  %v3311 = vunpack.c.h.b16 %v564
  %v3312 = vunpack.c.l.b16 %v565
  %v3313 = vunpack.c.h.b16 %v565
  %v3314 = vunpack.c.l.b16 %v566
  %v3315 = vunpack.c.h.b16 %v566
  %v3316 = vunpack.c.l.b16 %v567
  %v3317 = vunpack.c.h.b16 %v567
  %v3318 = vunpack.c.l.b16 %v568
  %v3319 = vunpack.c.h.b16 %v568
  %v3320 = vunpack.c.l.b16 %v569
  %v3321 = vunpack.c.h.b16 %v569
  %v3322 = vunpack.c.l.b16 %v570
  %v3323 = vunpack.c.h.b16 %v570
  %v3324 = vunpack.c.l.b16 %v571
  %v3325 = vunpack.c.h.b16 %v571
  %v3326 = vunpack.c.l.b16 %v572
  %v3327 = vunpack.c.h.b16 %v572
  %v3328 = vunpack.c.l.b16 %v573
  %v3329 = vunpack.c.h.b16 %v573
  %v3330 = vunpack.c.l.b16 %v574
  %v3331 = vunpack.c.h.b16 %v574
  %v3332 = vunpack.c.l.b16 %v575
  %v3333 = vunpack.c.h.b16 %v575
  %v3334 = vunpack.c.l.b16 %v576
  %v3335 = vunpack.c.h.b16 %v576
  %v3336 = vunpack.c.l.b16 %v577
  %v3337 = vunpack.c.h.b16 %v577
  %v3338 = vunpack.c.l.b16 %v578
  %v3339 = vunpack.c.h.b16 %v578
  %v3340 = vunpack.c.l.b16 %v579
  %v3341 = vunpack.c.h.b16 %v579
  %v3342 = vunpack.c.l.b16 %v580
  %v3343 = vunpack.c.h.b16 %v580
  %v3344 = vunpack.c.l.b16 %v581
  %v3345 = vunpack.c.h.b16 %v581
  %v3346 = vunpack.c.l.b16 %v582
  %v3347 = vunpack.c.h.b16 %v582
  %v3348 = vunpack.c.l.b16 %v583
  %v3349 = vunpack.c.h.b16 %v583
  %v3350 = vunpack.c.l.b16 %v584
  %v3351 = vunpack.c.h.b16 %v584
  %v3352 = vunpack.c.l.b16 %v585
  %v3353 = vunpack.c.h.b16 %v585
  %v3354 = vunpack.c.l.b16 %v586
  %v3355 = vunpack.c.h.b16 %v586
  %v3356 = vunpack.c.l.b16 %v587
  %v3357 = vunpack.c.h.b16 %v587
  %v3358 = vunpack.c.l.b16 %v588
  %v3359 = vunpack.c.h.b16 %v588
  %v3360 = vunpack.c.l.b16 %v589
  %v3361 = vunpack.c.h.b16 %v589
  %v3362 = vunpack.c.l.b16 %v590
  %v3363 = vunpack.c.h.b16 %v590
  %v3364 = vunpack.c.l.b16 %v591
  %v3365 = vunpack.c.h.b16 %v591
  %v3366 = vunpack.c.l.b16 %v592
  %v3367 = vunpack.c.h.b16 %v592
  %v3368 = vunpack.c.l.b16 %v593
  %v3369 = vunpack.c.h.b16 %v593
  %v3370 = vunpack.c.l.b16 %v594
  %v3371 = vunpack.c.h.b16 %v594
  %v3372 = vunpack.c.l.b16 %v595
  %v3373 = vunpack.c.h.b16 %v595
  %v3374 = vunpack.c.l.b16 %v596
  %v3375 = vunpack.c.h.b16 %v596
  %v3376 = vunpack.c.l.b16 %v597
  %v3377 = vunpack.c.h.b16 %v597
  %v3378 = vunpack.c.l.b16 %v598
  %v3379 = vunpack.c.h.b16 %v598
  %v3380 = vunpack.c.l.b16 %v599
  %v3381 = vunpack.c.h.b16 %v599
  %v3382 = vunpack.c.l.b16 %v600
  %v3383 = vunpack.c.h.b16 %v600
  %v3384 = vunpack.c.l.b16 %v601
  %v3385 = vunpack.c.h.b16 %v601
  %v3386 = vunpack.c.l.b16 %v602
  %v3387 = vunpack.c.h.b16 %v602
  %v3388 = vunpack.c.l.b16 %v603
  %v3389 = vunpack.c.h.b16 %v603
  %v3390 = vunpack.c.l.b16 %v604
  %v3391 = vunpack.c.h.b16 %v604
  %v3392 = vunpack.c.l.b16 %v605
  %v3393 = vunpack.c.h.b16 %v605
  %v3394 = vunpack.c.l.b16 %v606
  %v3395 = vunpack.c.h.b16 %v606
  %v3396 = vunpack.c.l.b16 %v607
  %v3397 = vunpack.c.h.b16 %v607
  %v3398 = vunpack.c.l.b16 %v608
  %v3399 = vunpack.c.h.b16 %v608
  %v3400 = vunpack.c.l.b16 %v609
  %v3401 = vunpack.c.h.b16 %v609
  %v3402 = vunpack.c.l.b16 %v610
  %v3403 = vunpack.c.h.b16 %v610
  %v3404 = vunpack.c.l.b16 %v611
  %v3405 = vunpack.c.h.b16 %v611
  %v3406 = vunpack.c.l.b16 %v612
  %v3407 = vunpack.c.h.b16 %v612
  %v3408 = vunpack.c.l.b16 %v613
  %v3409 = vunpack.c.h.b16 %v613
  %v3410 = vunpack.c.l.b16 %v614
  %v3411 = vunpack.c.h.b16 %v614
  %v3412 = vunpack.c.l.b16 %v615
  %v3413 = vunpack.c.h.b16 %v615
  %v3414 = vunpack.c.l.b16 %v616
  %v3415 = vunpack.c.h.b16 %v616
  %v3416 = vunpack.c.l.b16 %v617
  %v3417 = vunpack.c.h.b16 %v617
  %v3418 = vunpack.c.l.b16 %v618
  %v3419 = vunpack.c.h.b16 %v618
  %v3420 = vunpack.c.l.b16 %v619
  %v3421 = vunpack.c.h.b16 %v619
  %v3422 = vunpack.c.l.b16 %v620
  %v3423 = vunpack.c.h.b16 %v620
  %v3424 = vunpack.c.l.b16 %v621
  %v3425 = vunpack.c.h.b16 %v621
  %v3426 = vunpack.c.l.b16 %v622
  %v3427 = vunpack.c.h.b16 %v622
  %v3428 = vunpack.c.l.b16 %v623
  %v3429 = vunpack.c.h.b16 %v623
  %v3430 = vunpack.c.l.b16 %v624
  %v3431 = vunpack.c.h.b16 %v624
  %v3432 = vunpack.c.l.b16 %v625
  %v3433 = vunpack.c.h.b16 %v625
  %v3434 = vunpack.c.l.b16 %v626
  %v3435 = vunpack.c.h.b16 %v626
  %v3436 = vunpack.c.l.b16 %v627
  %v3437 = vunpack.c.h.b16 %v627
  %v3438 = vunpack.c.l.b16 %v628
  %v3439 = vunpack.c.h.b16 %v628
  %v3440 = vunpack.c.l.b16 %v629
  %v3441 = vunpack.c.h.b16 %v629
  %v3442 = vunpack.c.l.b16 %v630
  %v3443 = vunpack.c.h.b16 %v630
  %v3444 = vunpack.c.l.b16 %v631
  %v3445 = vunpack.c.h.b16 %v631
  %v3446 = vunpack.c.l.b16 %v632
  %v3447 = vunpack.c.h.b16 %v632
  %v3448 = vunpack.c.l.b16 %v633
  %v3449 = vunpack.c.h.b16 %v633
  %v3450 = vunpack.c.l.b16 %v634
  %v3451 = vunpack.c.h.b16 %v634
  %v3452 = vunpack.c.l.b16 %v635
  %v3453 = vunpack.c.h.b16 %v635
  %v3454 = vunpack.c.l.b16 %v636
  %v3455 = vunpack.c.h.b16 %v636
  %v3456 = vunpack.c.l.b16 %v637
  %v3457 = vunpack.c.h.b16 %v637
  %v3458 = vunpack.c.l.b16 %v638
  %v3459 = vunpack.c.h.b16 %v638
  %v3460 = vunpack.c.l.b16 %v639
  %v3461 = vunpack.c.h.b16 %v639
  %v3462 = vunpack.c.l.b16 %v640
  %v3463 = vunpack.c.h.b16 %v640
  %v3464 = vunpack.c.l.b16 %v641
  %v3465 = vunpack.c.h.b16 %v641
  %v3466 = vunpack.c.l.b16 %v642
  %v3467 = vunpack.c.h.b16 %v642
  %v3468 = vunpack.c.l.b16 %v643
  %v3469 = vunpack.c.h.b16 %v643
  %v3470 = vunpack.c.l.b16 %v644
  %v3471 = vunpack.c.h.b16 %v644
  %v3472 = vunpack.c.l.b16 %v645
  %v3473 = vunpack.c.h.b16 %v645
  %v3474 = vunpack.c.l.b16 %v646
  %v3475 = vunpack.c.h.b16 %v646
  %v3476 = vunpack.c.l.b16 %v647
  %v3477 = vunpack.c.h.b16 %v647
  %v3478 = vunpack.c.l.b16 %v648
  %v3479 = vunpack.c.h.b16 %v648
  %v3480 = vunpack.c.l.b16 %v649
  %v3481 = vunpack.c.h.b16 %v649
  %v3482 = vunpack.c.l.b16 %v650
  %v3483 = vunpack.c.h.b16 %v650
  %v3484 = vunpack.c.l.b16 %v651
  %v3485 = vunpack.c.h.b16 %v651
  %v3486 = vunpack.c.l.b16 %v652
  %v3487 = vunpack.c.h.b16 %v652
  %v3488 = vunpack.c.l.b16 %v653
  %v3489 = vunpack.c.h.b16 %v653
  %v3490 = vunpack.c.l.b16 %v654
  %v3491 = vunpack.c.h.b16 %v654
  %v3492 = vunpack.c.l.b16 %v655
  %v3493 = vunpack.c.h.b16 %v655
  %v3494 = vunpack.c.l.b16 %v656
  %v3495 = vunpack.c.h.b16 %v656
  %v3496 = vunpack.c.l.b16 %v657
  %v3497 = vunpack.c.h.b16 %v657
  %v3498 = vunpack.c.l.b16 %v658
  %v3499 = vunpack.c.h.b16 %v658
  %v3500 = vunpack.c.l.b16 %v659
  %v3501 = vunpack.c.h.b16 %v659
  %v3502 = vunpack.c.l.b16 %v660
  %v3503 = vunpack.c.h.b16 %v660
  %v3504 = vunpack.c.l.b16 %v661
  %v3505 = vunpack.c.h.b16 %v661
  %v3506 = vunpack.c.l.b16 %v662
  %v3507 = vunpack.c.h.b16 %v662
  %v3508 = vunpack.c.l.b16 %v663
  %v3509 = vunpack.c.h.b16 %v663
  %v3510 = vunpack.c.l.b16 %v664
  %v3511 = vunpack.c.h.b16 %v664
  %v3512 = vunpack.c.l.b16 %v665
  %v3513 = vunpack.c.h.b16 %v665
  %v3514 = vunpack.c.l.b16 %v666
  %v3515 = vunpack.c.h.b16 %v666
  %v3516 = vunpack.c.l.b16 %v667
  %v3517 = vunpack.c.h.b16 %v667
  %v3518 = vunpack.c.l.b16 %v668
  %v3519 = vunpack.c.h.b16 %v668
  %v3520 = vunpack.c.l.b16 %v669
  %v3521 = vunpack.c.h.b16 %v669
  %v3522 = vunpack.c.l.b16 %v670
  %v3523 = vunpack.c.h.b16 %v670
  %v3524 = vunpack.c.l.b16 %v671
  %v3525 = vunpack.c.h.b16 %v671
  %v3526 = vunpack.c.l.b16 %v672
  %v3527 = vunpack.c.h.b16 %v672
  %v3528 = vunpack.c.l.b16 %v673
  %v3529 = vunpack.c.h.b16 %v673
  %v3530 = vunpack.c.l.b16 %v674
  %v3531 = vunpack.c.h.b16 %v674
  %v3532 = vunpack.c.l.b16 %v675
  %v3533 = vunpack.c.h.b16 %v675
  %v3534 = vunpack.c.l.b16 %v676
  %v3535 = vunpack.c.h.b16 %v676
  %v3536 = vunpack.c.l.b16 %v677
  %v3537 = vunpack.c.h.b16 %v677
  %v3538 = vunpack.c.l.b16 %v678
  %v3539 = vunpack.c.h.b16 %v678
  %v3540 = vunpack.c.l.b16 %v679
  %v3541 = vunpack.c.h.b16 %v679
  %v3542 = vunpack.c.l.b16 %v680
  %v3543 = vunpack.c.h.b16 %v680
  %v3544 = vunpack.c.l.b16 %v681
  %v3545 = vunpack.c.h.b16 %v681
  %v3546 = vunpack.c.l.b16 %v682
  %v3547 = vunpack.c.h.b16 %v682
  %v3548 = vunpack.c.l.b16 %v683
  %v3549 = vunpack.c.h.b16 %v683
  %v3550 = vunpack.c.l.b16 %v684
  %v3551 = vunpack.c.h.b16 %v684
  %v3552 = vunpack.c.l.b16 %v685
  %v3553 = vunpack.c.h.b16 %v685
  %v3554 = vunpack.c.l.b16 %v686
  %v3555 = vunpack.c.h.b16 %v686
  %v3556 = vunpack.c.l.b16 %v687
  %v3557 = vunpack.c.h.b16 %v687
  %v3558 = vunpack.c.l.b16 %v688
  %v3559 = vunpack.c.h.b16 %v688
  %v3560 = vunpack.c.l.b16 %v689
  %v3561 = vunpack.c.h.b16 %v689
  %v3562 = vunpack.c.l.b16 %v690
  %v3563 = vunpack.c.h.b16 %v690
  %v3564 = vunpack.c.l.b16 %v691
  %v3565 = vunpack.c.h.b16 %v691
  %v3566 = vunpack.c.l.b16 %v692
  %v3567 = vunpack.c.h.b16 %v692
  %v3568 = vunpack.c.l.b16 %v693
  %v3569 = vunpack.c.h.b16 %v693
  %v3570 = vunpack.c.l.b16 %v694
  %v3571 = vunpack.c.h.b16 %v694
  %v3572 = vunpack.c.l.b16 %v695
  %v3573 = vunpack.c.h.b16 %v695
  %v3574 = vunpack.c.l.b16 %v696
  %v3575 = vunpack.c.h.b16 %v696
  %v3576 = vunpack.c.l.b16 %v697
  %v3577 = vunpack.c.h.b16 %v697
  %v3578 = vunpack.c.l.b16 %v698
  %v3579 = vunpack.c.h.b16 %v698
  %v3580 = vunpack.c.l.b16 %v699
  %v3581 = vunpack.c.h.b16 %v699
  %v3582 = vunpack.c.l.b16 %v700
  %v3583 = vunpack.c.h.b16 %v700
  %v3584 = vunpack.c.l.b16 %v701
  %v3585 = vunpack.c.h.b16 %v701
  %v3586 = vunpack.c.l.b16 %v702
  %v3587 = vunpack.c.h.b16 %v702
  %v3588 = vunpack.c.l.b16 %v703
  %v3589 = vunpack.c.h.b16 %v703
  %v3590 = vunpack.c.l.b16 %v704
  %v3591 = vunpack.c.h.b16 %v704
  %v3592 = vunpack.c.l.b16 %v705
  %v3593 = vunpack.c.h.b16 %v705
  %v3594 = vunpack.c.l.b16 %v706
  %v3595 = vunpack.c.h.b16 %v706
  %v3596 = vunpack.c.l.b16 %v707
  %v3597 = vunpack.c.h.b16 %v707
  %v3598 = vunpack.c.l.b16 %v708
  %v3599 = vunpack.c.h.b16 %v708
  %v3600 = vunpack.c.l.b16 %v709
  %v3601 = vunpack.c.h.b16 %v709
  %v3602 = vunpack.c.l.b16 %v710
  %v3603 = vunpack.c.h.b16 %v710
  %v3604 = vunpack.c.l.b16 %v711
  %v3605 = vunpack.c.h.b16 %v711
  %v3606 = vunpack.c.l.b16 %v712
  %v3607 = vunpack.c.h.b16 %v712
  %v3608 = vunpack.c.l.b16 %v713
  %v3609 = vunpack.c.h.b16 %v713
  %v3610 = vunpack.c.l.b16 %v714
  %v3611 = vunpack.c.h.b16 %v714
  %v3612 = vunpack.c.l.b16 %v715
  %v3613 = vunpack.c.h.b16 %v715
  %v3614 = vunpack.c.l.b16 %v716
  %v3615 = vunpack.c.h.b16 %v716
  %v3616 = vunpack.c.l.b16 %v717
  %v3617 = vunpack.c.h.b16 %v717
  %v3618 = vunpack.c.l.b16 %v718
  %v3619 = vunpack.c.h.b16 %v718
  %v3620 = vunpack.c.l.b16 %v719
  %v3621 = vunpack.c.h.b16 %v719
  %v3622 = vunpack.c.l.b16 %v720
  %v3623 = vunpack.c.h.b16 %v720
  %v3624 = vunpack.c.l.b16 %v721
  %v3625 = vunpack.c.h.b16 %v721
  %v3626 = vunpack.c.l.b16 %v722
  %v3627 = vunpack.c.h.b16 %v722
  %v3628 = vunpack.c.l.b16 %v723
  %v3629 = vunpack.c.h.b16 %v723
  %v3630 = vunpack.c.l.b16 %v724
  %v3631 = vunpack.c.h.b16 %v724
  %v3632 = vunpack.c.l.b16 %v725
  %v3633 = vunpack.c.h.b16 %v725
  %v3634 = vunpack.c.l.b16 %v726
  %v3635 = vunpack.c.h.b16 %v726
  %v3636 = vunpack.c.l.b16 %v727
  %v3637 = vunpack.c.h.b16 %v727
  %v3638 = vunpack.c.l.b16 %v728
  %v3639 = vunpack.c.h.b16 %v728
  %v3640 = vunpack.c.l.b16 %v729
  %v3641 = vunpack.c.h.b16 %v729
  %v3642 = vunpack.c.l.b16 %v730
  %v3643 = vunpack.c.h.b16 %v730
  %v3644 = vunpack.c.l.b16 %v731
  %v3645 = vunpack.c.h.b16 %v731
  %v3646 = vunpack.c.l.b16 %v732
  %v3647 = vunpack.c.h.b16 %v732
  %v3648 = vunpack.c.l.b16 %v733
  %v3649 = vunpack.c.h.b16 %v733
  %v3650 = vunpack.c.l.b16 %v734
  %v3651 = vunpack.c.h.b16 %v734
  %v3652 = vunpack.c.l.b16 %v735
  %v3653 = vunpack.c.h.b16 %v735
  %v3654 = vunpack.c.l.b16 %v736
  %v3655 = vunpack.c.h.b16 %v736
  %v3656 = vunpack.c.l.b16 %v737
  %v3657 = vunpack.c.h.b16 %v737
  %v3658 = vunpack.c.l.b16 %v738
  %v3659 = vunpack.c.h.b16 %v738
  %v3660 = vunpack.c.l.b16 %v739
  %v3661 = vunpack.c.h.b16 %v739
  %v3662 = vunpack.c.l.b16 %v740
  %v3663 = vunpack.c.h.b16 %v740
  %v3664 = vunpack.c.l.b16 %v741
  %v3665 = vunpack.c.h.b16 %v741
  %v3666 = vunpack.c.l.b16 %v742
  %v3667 = vunpack.c.h.b16 %v742
  %v3668 = vunpack.c.l.b16 %v743
  %v3669 = vunpack.c.h.b16 %v743
  %v3670 = vunpack.c.l.b16 %v744
  %v3671 = vunpack.c.h.b16 %v744
  %v3672 = vunpack.c.l.b16 %v745
  %v3673 = vunpack.c.h.b16 %v745
  %v3674 = vunpack.c.l.b16 %v746
  %v3675 = vunpack.c.h.b16 %v746
  %v3676 = vunpack.c.l.b16 %v747
  %v3677 = vunpack.c.h.b16 %v747
  %v3678 = vunpack.c.l.b16 %v748
  %v3679 = vunpack.c.h.b16 %v748
  %v3680 = vunpack.c.l.b16 %v749
  %v3681 = vunpack.c.h.b16 %v749
  %v3682 = vunpack.c.l.b16 %v750
  %v3683 = vunpack.c.h.b16 %v750
  %v3684 = vunpack.c.l.b16 %v751
  %v3685 = vunpack.c.h.b16 %v751
  %v3686 = vunpack.c.l.b16 %v752
  %v3687 = vunpack.c.h.b16 %v752
  %v3688 = vunpack.c.l.b16 %v753
  %v3689 = vunpack.c.h.b16 %v753
  %v3690 = vunpack.c.l.b16 %v754
  %v3691 = vunpack.c.h.b16 %v754
  %v3692 = vunpack.c.l.b16 %v755
  %v3693 = vunpack.c.h.b16 %v755
  %v3694 = vunpack.c.l.b16 %v756
  %v3695 = vunpack.c.h.b16 %v756
  %v3696 = vunpack.c.l.b16 %v757
  %v3697 = vunpack.c.h.b16 %v757
  %v3698 = vunpack.c.l.b16 %v758
  %v3699 = vunpack.c.h.b16 %v758
  %v3700 = vunpack.c.l.b16 %v759
  %v3701 = vunpack.c.h.b16 %v759
  %v3702 = vunpack.c.l.b16 %v760
  %v3703 = vunpack.c.h.b16 %v760
  %v3704 = vunpack.c.l.b16 %v761
  %v3705 = vunpack.c.h.b16 %v761
  %v3706 = vunpack.c.l.b16 %v762
  %v3707 = vunpack.c.h.b16 %v762
  %v3708 = vunpack.c.l.b16 %v763
  %v3709 = vunpack.c.h.b16 %v763
  %v3710 = vunpack.c.l.b16 %v764
  %v3711 = vunpack.c.h.b16 %v764
  %v3712 = vunpack.c.l.b16 %v765
  %v3713 = vunpack.c.h.b16 %v765
  %v3714 = vunpack.c.l.b16 %v766
  %v3715 = vunpack.c.h.b16 %v766
  %v3716 = vunpack.c.l.b16 %v767
  %v3717 = vunpack.c.h.b16 %v767
  %v3718 = vunpack.c.l.b16 %v768
  %v3719 = vunpack.c.h.b16 %v768
  %v3720 = vunpack.c.l.b16 %v769
  %v3721 = vunpack.c.h.b16 %v769
  %v3722 = vunpack.c.l.b16 %v770
  %v3723 = vunpack.c.h.b16 %v770
  %v3724 = vunpack.c.l.b16 %v771
  %v3725 = vunpack.c.h.b16 %v771
  %v3726 = vunpack.c.l.b16 %v772
  %v3727 = vunpack.c.h.b16 %v772
  %v3728 = vunpack.c.l.b16 %v773
  %v3729 = vunpack.c.h.b16 %v773
  %v3730 = vunpack.c.l.b16 %v774
  %v3731 = vunpack.c.h.b16 %v774
  %v3732 = vunpack.c.l.b16 %v775
  %v3733 = vunpack.c.h.b16 %v775
  %v3734 = vunpack.c.l.b16 %v776
  %v3735 = vunpack.c.h.b16 %v776
  %v3736 = vunpack.c.l.b16 %v777
  %v3737 = vunpack.c.h.b16 %v777
  %v3738 = vunpack.c.l.b16 %v778
  %v3739 = vunpack.c.h.b16 %v778
  %v3740 = vunpack.c.l.b16 %v779
  %v3741 = vunpack.c.h.b16 %v779
  %v3742 = vunpack.c.l.b16 %v780
  %v3743 = vunpack.c.h.b16 %v780
  %v3744 = vunpack.c.l.b16 %v781
  %v3745 = vunpack.c.h.b16 %v781
  %v3746 = vunpack.c.l.b16 %v782
  %v3747 = vunpack.c.h.b16 %v782
  %v3748 = vunpack.c.l.b16 %v783
  %v3749 = vunpack.c.h.b16 %v783
  %v3750 = vunpack.c.l.b16 %v784
  %v3751 = vunpack.c.h.b16 %v784
  %v3752 = vunpack.c.l.b16 %v785
  %v3753 = vunpack.c.h.b16 %v785
  %v3754 = vunpack.c.l.b16 %v786
  %v3755 = vunpack.c.h.b16 %v786
  %v3756 = vunpack.c.l.b16 %v787
  %v3757 = vunpack.c.h.b16 %v787
  %v3758 = vunpack.c.l.b16 %v788
  %v3759 = vunpack.c.h.b16 %v788
  %v3760 = vunpack.c.l.b16 %v789
  %v3761 = vunpack.c.h.b16 %v789
  %v3762 = vunpack.c.l.b16 %v790
  %v3763 = vunpack.c.h.b16 %v790
  %v3764 = vunpack.c.l.b16 %v791
  %v3765 = vunpack.c.h.b16 %v791
  %v3766 = vunpack.c.l.b16 %v792
  %v3767 = vunpack.c.h.b16 %v792
  %v3768 = vunpack.c.l.b16 %v793
  %v3769 = vunpack.c.h.b16 %v793
  %v3770 = vunpack.c.l.b16 %v794
  %v3771 = vunpack.c.h.b16 %v794
  %v3772 = vunpack.c.l.b16 %v795
  %v3773 = vunpack.c.h.b16 %v795
  %v3774 = vunpack.c.l.b16 %v796
  %v3775 = vunpack.c.h.b16 %v796
  %v3776 = vunpack.c.l.b16 %v797
  %v3777 = vunpack.c.h.b16 %v797
  %v3778 = vunpack.c.l.b16 %v798
  %v3779 = vunpack.c.h.b16 %v798
  %v3780 = vunpack.c.l.b16 %v799
  %v3781 = vunpack.c.h.b16 %v799
  %v3782 = vunpack.c.l.b16 %v800
  %v3783 = vunpack.c.h.b16 %v800
  %v3784 = vunpack.c.l.b16 %v801
  %v3785 = vunpack.c.h.b16 %v801
  %v3786 = vunpack.c.l.b16 %v802
  %v3787 = vunpack.c.h.b16 %v802
  %v3788 = vunpack.c.l.b16 %v803
  %v3789 = vunpack.c.h.b16 %v803
  %v3790 = vunpack.c.l.b16 %v804
  %v3791 = vunpack.c.h.b16 %v804
  %v3792 = vunpack.c.l.b16 %v805
  %v3793 = vunpack.c.h.b16 %v805
  %v3794 = vunpack.c.l.b16 %v806
  %v3795 = vunpack.c.h.b16 %v806
  %v3796 = vunpack.c.l.b16 %v807
  %v3797 = vunpack.c.h.b16 %v807
  %v3798 = vunpack.c.l.b16 %v808
  %v3799 = vunpack.c.h.b16 %v808
  %v3800 = vunpack.c.l.b16 %v809
  %v3801 = vunpack.c.h.b16 %v809
  %v3802 = vunpack.c.l.b16 %v810
  %v3803 = vunpack.c.h.b16 %v810
  %v3804 = vunpack.c.l.b16 %v811
  %v3805 = vunpack.c.h.b16 %v811
  %v3806 = vunpack.c.l.b16 %v812
  %v3807 = vunpack.c.h.b16 %v812
  %v3808 = vunpack.c.l.b16 %v813
  %v3809 = vunpack.c.h.b16 %v813
  %v3810 = vunpack.c.l.b16 %v814
  %v3811 = vunpack.c.h.b16 %v814
  %v3812 = vunpack.c.l.b16 %v815
  %v3813 = vunpack.c.h.b16 %v815
  %v3814 = vunpack.c.l.b16 %v816
  %v3815 = vunpack.c.h.b16 %v816
  %v3816 = vunpack.c.l.b16 %v817
  %v3817 = vunpack.c.h.b16 %v817
  %v3818 = vunpack.c.l.b16 %v818
  %v3819 = vunpack.c.h.b16 %v818
  %v3820 = vunpack.c.l.b16 %v819
  %v3821 = vunpack.c.h.b16 %v819
  %v3822 = vunpack.c.l.b16 %v820
  %v3823 = vunpack.c.h.b16 %v820
  %v3824 = vunpack.c.l.b16 %v821
  %v3825 = vunpack.c.h.b16 %v821
  %v3826 = vunpack.c.l.b16 %v822
  %v3827 = vunpack.c.h.b16 %v822
  %v3828 = vunpack.c.l.b16 %v823
  %v3829 = vunpack.c.h.b16 %v823
  %v3830 = vunpack.c.l.b16 %v824
  %v3831 = vunpack.c.h.b16 %v824
  %v3832 = vunpack.c.l.b16 %v825
  %v3833 = vunpack.c.h.b16 %v825
  %v3834 = vunpack.c.l.b16 %v826
  %v3835 = vunpack.c.h.b16 %v826
  %v3836 = vunpack.c.l.b16 %v827
  %v3837 = vunpack.c.h.b16 %v827
  %v3838 = vunpack.c.l.b16 %v828
  %v3839 = vunpack.c.h.b16 %v828
  %v3840 = vunpack.c.l.b16 %v829
  %v3841 = vunpack.c.h.b16 %v829
  %v3842 = vunpack.c.l.b16 %v830
  %v3843 = vunpack.c.h.b16 %v830
  %v3844 = vunpack.c.l.b16 %v831
  %v3845 = vunpack.c.h.b16 %v831
  %v3846 = vunpack.c.l.b16 %v832
  %v3847 = vunpack.c.h.b16 %v832
  %v3848 = vunpack.c.l.b16 %v833
  %v3849 = vunpack.c.h.b16 %v833
  %v3850 = vunpack.c.l.b16 %v834
  %v3851 = vunpack.c.h.b16 %v834
  %v3852 = vunpack.c.l.b16 %v835
  %v3853 = vunpack.c.h.b16 %v835
  %v3854 = vunpack.c.l.b16 %v836
  %v3855 = vunpack.c.h.b16 %v836
  %v3856 = vunpack.c.l.b16 %v837
  %v3857 = vunpack.c.h.b16 %v837
  %v3858 = vunpack.c.l.b16 %v838
  %v3859 = vunpack.c.h.b16 %v838
  %v3860 = vunpack.c.l.b16 %v839
  %v3861 = vunpack.c.h.b16 %v839
  %v3862 = vunpack.c.l.b16 %v840
  %v3863 = vunpack.c.h.b16 %v840
  %v3864 = vunpack.c.l.b16 %v841
  %v3865 = vunpack.c.h.b16 %v841
  %v3866 = vunpack.c.l.b16 %v842
  %v3867 = vunpack.c.h.b16 %v842
  %v3868 = vunpack.c.l.b16 %v843
  %v3869 = vunpack.c.h.b16 %v843
  %v3870 = vunpack.c.l.b16 %v844
  %v3871 = vunpack.c.h.b16 %v844
  %v3872 = vunpack.c.l.b16 %v845
  %v3873 = vunpack.c.h.b16 %v845
  %v3874 = vunpack.c.l.b16 %v846
  %v3875 = vunpack.c.h.b16 %v846
  %v3876 = vunpack.c.l.b16 %v847
  %v3877 = vunpack.c.h.b16 %v847
  %v3878 = vunpack.c.l.b16 %v848
  %v3879 = vunpack.c.h.b16 %v848
  %v3880 = vunpack.c.l.b16 %v849
  %v3881 = vunpack.c.h.b16 %v849
  %v3882 = vunpack.c.l.b16 %v850
  %v3883 = vunpack.c.h.b16 %v850
  %v3884 = vunpack.c.l.b16 %v851
  %v3885 = vunpack.c.h.b16 %v851
  %v3886 = vunpack.c.l.b16 %v852
  %v3887 = vunpack.c.h.b16 %v852
  %v3888 = vunpack.c.l.b16 %v853
  %v3889 = vunpack.c.h.b16 %v853
  %v3890 = vunpack.c.l.b16 %v854
  %v3891 = vunpack.c.h.b16 %v854
  %v3892 = vunpack.c.l.b16 %v855
  %v3893 = vunpack.c.h.b16 %v855
  %v3894 = vunpack.c.l.b16 %v856
  %v3895 = vunpack.c.h.b16 %v856
  %v3896 = vunpack.c.l.b16 %v857
  %v3897 = vunpack.c.h.b16 %v857
  %v3898 = vunpack.c.l.b16 %v858
  %v3899 = vunpack.c.h.b16 %v858
  %v3900 = vunpack.c.l.b16 %v859
  %v3901 = vunpack.c.h.b16 %v859
  %v3902 = vunpack.c.l.b16 %v860
  %v3903 = vunpack.c.h.b16 %v860
  %v3904 = vunpack.c.l.b16 %v861
  %v3905 = vunpack.c.h.b16 %v861
  %v3906 = vunpack.c.l.b16 %v862
  %v3907 = vunpack.c.h.b16 %v862
  %v3908 = vunpack.c.l.b16 %v863
  %v3909 = vunpack.c.h.b16 %v863
  %v3910 = vunpack.c.l.b16 %v864
  %v3911 = vunpack.c.h.b16 %v864
  %v3912 = vunpack.c.l.b16 %v865
  %v3913 = vunpack.c.h.b16 %v865
  %v3914 = vunpack.c.l.b16 %v866
  %v3915 = vunpack.c.h.b16 %v866
  %v3916 = vunpack.c.l.b16 %v867
  %v3917 = vunpack.c.h.b16 %v867
  %v3918 = vunpack.c.l.b16 %v868
  %v3919 = vunpack.c.h.b16 %v868
  %v3920 = vunpack.c.l.b16 %v869
  %v3921 = vunpack.c.h.b16 %v869
  %v3922 = vunpack.c.l.b16 %v870
  %v3923 = vunpack.c.h.b16 %v870
  %v3924 = vunpack.c.l.b16 %v871
  %v3925 = vunpack.c.h.b16 %v871
  %v3926 = vunpack.c.l.b16 %v872
  %v3927 = vunpack.c.h.b16 %v872
  %v3928 = vunpack.c.l.b16 %v873
  %v3929 = vunpack.c.h.b16 %v873
  %v3930 = vunpack.c.l.b16 %v874
  %v3931 = vunpack.c.h.b16 %v874
  %v3932 = vunpack.c.l.b16 %v875
  %v3933 = vunpack.c.h.b16 %v875
  %v3934 = vunpack.c.l.b16 %v876
  %v3935 = vunpack.c.h.b16 %v876
  %v3936 = vunpack.c.l.b16 %v877
  %v3937 = vunpack.c.h.b16 %v877
  %v3938 = vunpack.c.l.b16 %v878
  %v3939 = vunpack.c.h.b16 %v878
  %v3940 = vunpack.c.l.b16 %v879
  %v3941 = vunpack.c.h.b16 %v879
  %v3942 = vunpack.c.l.b16 %v880
  %v3943 = vunpack.c.h.b16 %v880
  %v3944 = vunpack.c.l.b16 %v881
  %v3945 = vunpack.c.h.b16 %v881
  %v3946 = vunpack.c.l.b16 %v882
  %v3947 = vunpack.c.h.b16 %v882
  %v3948 = vunpack.c.l.b16 %v883
  %v3949 = vunpack.c.h.b16 %v883
  %v3950 = vunpack.c.l.b16 %v884
  %v3951 = vunpack.c.h.b16 %v884
  %v3952 = vunpack.c.l.b16 %v885
  %v3953 = vunpack.c.h.b16 %v885
  %v3954 = vunpack.c.l.b16 %v886
  %v3955 = vunpack.c.h.b16 %v886
  %v3956 = vunpack.c.l.b16 %v887
  %v3957 = vunpack.c.h.b16 %v887
  %v3958 = vunpack.c.l.b16 %v888
  %v3959 = vunpack.c.h.b16 %v888
  %v3960 = vunpack.c.l.b16 %v889
  %v3961 = vunpack.c.h.b16 %v889
  %v3962 = vunpack.c.l.b16 %v890
  %v3963 = vunpack.c.h.b16 %v890
  %v3964 = vunpack.c.l.b16 %v891
  %v3965 = vunpack.c.h.b16 %v891
  %v3966 = vunpack.c.l.b16 %v892
  %v3967 = vunpack.c.h.b16 %v892
  %v3968 = vunpack.c.l.b16 %v893
  %v3969 = vunpack.c.h.b16 %v893
  %v3970 = vunpack.c.l.b16 %v894
  %v3971 = vunpack.c.h.b16 %v894
  %v3972 = vunpack.c.l.b16 %v895
  %v3973 = vunpack.c.h.b16 %v895
  %v3974 = vunpack.c.l.b16 %v896
  %v3975 = vunpack.c.h.b16 %v896
  %v3976 = vunpack.c.l.b16 %v897
  %v3977 = vunpack.c.h.b16 %v897
  %v3978 = vunpack.c.l.b16 %v898
  %v3979 = vunpack.c.h.b16 %v898
  %v3980 = vunpack.c.l.b16 %v899
  %v3981 = vunpack.c.h.b16 %v899
  %v3982 = vunpack.c.l.b16 %v900
  %v3983 = vunpack.c.h.b16 %v900
  %v3984 = vunpack.c.l.b16 %v901
  %v3985 = vunpack.c.h.b16 %v901
  %v3986 = vunpack.c.l.b16 %v902
  %v3987 = vunpack.c.h.b16 %v902
  %v3988 = vunpack.c.l.b16 %v903
  %v3989 = vunpack.c.h.b16 %v903
  %v3990 = vunpack.c.l.b16 %v904
  %v3991 = vunpack.c.h.b16 %v904
  %v3992 = vunpack.c.l.b16 %v905
  %v3993 = vunpack.c.h.b16 %v905
  %v3994 = vunpack.c.l.b16 %v906
  %v3995 = vunpack.c.h.b16 %v906
  %v3996 = vunpack.c.l.b16 %v907
  %v3997 = vunpack.c.h.b16 %v907
  %v3998 = vunpack.c.l.b16 %v908
  %v3999 = vunpack.c.h.b16 %v908
  %v4000 = vunpack.c.l.b16 %v909
  %v4001 = vunpack.c.h.b16 %v909
  %v4002 = vunpack.c.l.b16 %v910
  %v4003 = vunpack.c.h.b16 %v910
  %v4004 = vunpack.c.l.b16 %v911
  %v4005 = vunpack.c.h.b16 %v911
  %v4006 = vunpack.c.l.b16 %v912
  %v4007 = vunpack.c.h.b16 %v912
  %v4008 = vunpack.c.l.b16 %v913
  %v4009 = vunpack.c.h.b16 %v913
  %v4010 = vunpack.c.l.b16 %v914
  %v4011 = vunpack.c.h.b16 %v914
  %v4012 = vunpack.c.l.b16 %v915
  %v4013 = vunpack.c.h.b16 %v915
  %v4014 = vunpack.c.l.b16 %v916
  %v4015 = vunpack.c.h.b16 %v916
  %v4016 = vunpack.c.l.b16 %v917
  %v4017 = vunpack.c.h.b16 %v917
  %v4018 = vunpack.c.l.b16 %v918
  %v4019 = vunpack.c.h.b16 %v918
  %v4020 = vunpack.c.l.b16 %v919
  %v4021 = vunpack.c.h.b16 %v919
  %v4022 = vunpack.c.l.b16 %v920
  %v4023 = vunpack.c.h.b16 %v920
  %v4024 = vunpack.c.l.b16 %v921
  %v4025 = vunpack.c.h.b16 %v921
  %v4026 = vunpack.c.l.b16 %v922
  %v4027 = vunpack.c.h.b16 %v922
  %v4028 = vunpack.c.l.b16 %v923
  %v4029 = vunpack.c.h.b16 %v923
  %v4030 = vunpack.c.l.b16 %v924
  %v4031 = vunpack.c.h.b16 %v924
  %v4032 = vunpack.c.l.b16 %v925
  %v4033 = vunpack.c.h.b16 %v925
  %v4034 = vunpack.c.l.b16 %v926
  %v4035 = vunpack.c.h.b16 %v926
  %v4036 = vunpack.c.l.b16 %v927
  %v4037 = vunpack.c.h.b16 %v927
  %v4038 = vunpack.c.l.b16 %v928
  %v4039 = vunpack.c.h.b16 %v928
  %v4040 = vunpack.c.l.b16 %v929
  %v4041 = vunpack.c.h.b16 %v929
  %v4042 = vunpack.c.l.b16 %v930
  %v4043 = vunpack.c.h.b16 %v930
  %v4044 = vunpack.c.l.b16 %v931
  %v4045 = vunpack.c.h.b16 %v931
  %v4046 = vunpack.c.l.b16 %v932
  %v4047 = vunpack.c.h.b16 %v932
  %v4048 = vunpack.c.l.b16 %v933
  %v4049 = vunpack.c.h.b16 %v933
  %v4050 = vunpack.c.l.b16 %v934
  %v4051 = vunpack.c.h.b16 %v934
  %v4052 = vunpack.c.l.b16 %v935
  %v4053 = vunpack.c.h.b16 %v935
  %v4054 = vunpack.c.l.b16 %v936
  %v4055 = vunpack.c.h.b16 %v936
  %v4056 = vunpack.c.l.b16 %v937
  %v4057 = vunpack.c.h.b16 %v937
  %v4058 = vunpack.c.l.b16 %v938
  %v4059 = vunpack.c.h.b16 %v938
  %v4060 = vunpack.c.l.b16 %v939
  %v4061 = vunpack.c.h.b16 %v939
  %v4062 = vunpack.c.l.b16 %v940
  %v4063 = vunpack.c.h.b16 %v940
  %v4064 = vunpack.c.l.b16 %v941
  %v4065 = vunpack.c.h.b16 %v941
  %v4066 = vunpack.c.l.b16 %v942
  %v4067 = vunpack.c.h.b16 %v942
  %v4068 = vunpack.c.l.b16 %v943
  %v4069 = vunpack.c.h.b16 %v943
  %v4070 = vunpack.c.l.b16 %v944
  %v4071 = vunpack.c.h.b16 %v944
  %v4072 = vunpack.c.l.b16 %v945
  %v4073 = vunpack.c.h.b16 %v945
  %v4074 = vunpack.c.l.b16 %v946
  %v4075 = vunpack.c.h.b16 %v946
  %v4076 = vunpack.c.l.b16 %v947
  %v4077 = vunpack.c.h.b16 %v947
  %v4078 = vunpack.c.l.b16 %v948
  %v4079 = vunpack.c.h.b16 %v948
  %v4080 = vunpack.c.l.b16 %v949
  %v4081 = vunpack.c.h.b16 %v949
  %v4082 = vunpack.c.l.b16 %v950
  %v4083 = vunpack.c.h.b16 %v950
  %v4084 = vunpack.c.l.b16 %v951
  %v4085 = vunpack.c.h.b16 %v951
  %v4086 = vunpack.c.l.b16 %v952
  %v4087 = vunpack.c.h.b16 %v952
  %v4088 = vunpack.c.l.b16 %v953
  %v4089 = vunpack.c.h.b16 %v953
  %v4090 = vunpack.c.l.b16 %v954
  %v4091 = vunpack.c.h.b16 %v954
  %v4092 = vunpack.c.l.b16 %v955
  %v4093 = vunpack.c.h.b16 %v955
  %v4094 = vunpack.c.l.b16 %v956
  %v4095 = vunpack.c.h.b16 %v956
  %v4096 = vunpack.c.l.b16 %v957
  %v4097 = vunpack.c.h.b16 %v957
  %v4098 = vunpack.c.l.b16 %v958
  %v4099 = vunpack.c.h.b16 %v958
  %v4100 = vunpack.c.l.b16 %v959
  %v4101 = vunpack.c.h.b16 %v959
  %v4102 = vunpack.c.l.b16 %v960
  %v4103 = vunpack.c.h.b16 %v960
  %v4104 = vunpack.c.l.b16 %v961
  %v4105 = vunpack.c.h.b16 %v961
  %v4106 = vunpack.c.l.b16 %v962
  %v4107 = vunpack.c.h.b16 %v962
  %v4108 = vunpack.c.l.b16 %v963
  %v4109 = vunpack.c.h.b16 %v963
  %v4110 = vunpack.c.l.b16 %v964
  %v4111 = vunpack.c.h.b16 %v964
  %v4112 = vunpack.c.l.b16 %v965
  %v4113 = vunpack.c.h.b16 %v965
  %v4114 = vunpack.c.l.b16 %v966
  %v4115 = vunpack.c.h.b16 %v966
  %v4116 = vunpack.c.l.b16 %v967
  %v4117 = vunpack.c.h.b16 %v967
  %v4118 = vunpack.c.l.b16 %v968
  %v4119 = vunpack.c.h.b16 %v968
  %v4120 = vunpack.c.l.b16 %v969
  %v4121 = vunpack.c.h.b16 %v969
  %v4122 = vunpack.c.l.b16 %v970
  %v4123 = vunpack.c.h.b16 %v970
  %v4124 = vunpack.c.l.b16 %v971
  %v4125 = vunpack.c.h.b16 %v971
  %v4126 = vunpack.c.l.b16 %v972
  %v4127 = vunpack.c.h.b16 %v972
  %v4128 = vunpack.c.l.b16 %v973
  %v4129 = vunpack.c.h.b16 %v973
  %v4130 = vunpack.c.l.b16 %v974
  %v4131 = vunpack.c.h.b16 %v974
  %v4132 = vunpack.c.l.b16 %v975
  %v4133 = vunpack.c.h.b16 %v975
  %v4134 = vunpack.c.l.b16 %v976
  %v4135 = vunpack.c.h.b16 %v976
  %v4136 = vunpack.c.l.b16 %v977
  %v4137 = vunpack.c.h.b16 %v977
  %v4138 = vunpack.c.l.b16 %v978
  %v4139 = vunpack.c.h.b16 %v978
  %v4140 = vunpack.c.l.b16 %v979
  %v4141 = vunpack.c.h.b16 %v979
  %v4142 = vunpack.c.l.b16 %v980
  %v4143 = vunpack.c.h.b16 %v980
  %v4144 = vunpack.c.l.b16 %v981
  %v4145 = vunpack.c.h.b16 %v981
  %v4146 = vunpack.c.l.b16 %v982
  %v4147 = vunpack.c.h.b16 %v982
  %v4148 = vunpack.c.l.b16 %v983
  %v4149 = vunpack.c.h.b16 %v983
  %v4150 = vunpack.c.l.b16 %v984
  %v4151 = vunpack.c.h.b16 %v984
  %v4152 = vunpack.c.l.b16 %v985
  %v4153 = vunpack.c.h.b16 %v985
  %v4154 = vunpack.c.l.b16 %v986
  %v4155 = vunpack.c.h.b16 %v986
  %v4156 = vunpack.c.l.b16 %v987
  %v4157 = vunpack.c.h.b16 %v987
  %v4158 = vunpack.c.l.b16 %v988
  %v4159 = vunpack.c.h.b16 %v988
  %v4160 = vunpack.c.l.b16 %v989
  %v4161 = vunpack.c.h.b16 %v989
  %v4162 = vunpack.c.l.b16 %v990
  %v4163 = vunpack.c.h.b16 %v990
  %v4164 = vunpack.c.l.b16 %v991
  %v4165 = vunpack.c.h.b16 %v991
  %v4166 = vunpack.c.l.b16 %v992
  %v4167 = vunpack.c.h.b16 %v992
  %v4168 = vunpack.c.l.b16 %v993
  %v4169 = vunpack.c.h.b16 %v993
  %v4170 = vunpack.c.l.b16 %v994
  %v4171 = vunpack.c.h.b16 %v994
  %v4172 = vunpack.c.l.b16 %v995
  %v4173 = vunpack.c.h.b16 %v995
  %v4174 = vunpack.c.l.b16 %v996
  %v4175 = vunpack.c.h.b16 %v996
  %v4176 = vunpack.c.l.b16 %v997
  %v4177 = vunpack.c.h.b16 %v997
  %v4178 = vunpack.c.l.b16 %v998
  %v4179 = vunpack.c.h.b16 %v998
  %v4180 = vunpack.c.l.b16 %v999
  %v4181 = vunpack.c.h.b16 %v999
  %v4182 = vunpack.c.l.b16 %v1000
  %v4183 = vunpack.c.h.b16 %v1000
  %v4184 = vunpack.c.l.b16 %v1001
  %v4185 = vunpack.c.h.b16 %v1001
  %v4186 = vunpack.c.l.b16 %v1002
  %v4187 = vunpack.c.h.b16 %v1002
  %v4188 = vunpack.c.l.b16 %v1003
  %v4189 = vunpack.c.h.b16 %v1003
  %v4190 = vunpack.c.l.b16 %v1004
  %v4191 = vunpack.c.h.b16 %v1004
  %v4192 = vunpack.c.l.b16 %v1005
  %v4193 = vunpack.c.h.b16 %v1005
  %v4194 = vunpack.c.l.b16 %v1006
  %v4195 = vunpack.c.h.b16 %v1006
  %v4196 = vunpack.c.l.b16 %v1007
  %v4197 = vunpack.c.h.b16 %v1007
  %v4198 = vunpack.c.l.b16 %v1008
  %v4199 = vunpack.c.h.b16 %v1008
  %v4200 = vunpack.c.l.b16 %v1009
  %v4201 = vunpack.c.h.b16 %v1009
  %v4202 = vunpack.c.l.b16 %v1010
  %v4203 = vunpack.c.h.b16 %v1010
  %v4204 = vunpack.c.l.b16 %v1011
  %v4205 = vunpack.c.h.b16 %v1011
  %v4206 = vunpack.c.l.b16 %v1012
  %v4207 = vunpack.c.h.b16 %v1012
  %v4208 = vunpack.c.l.b16 %v1013
  %v4209 = vunpack.c.h.b16 %v1013
  %v4210 = vunpack.c.l.b16 %v1014
  %v4211 = vunpack.c.h.b16 %v1014
  %v4212 = vunpack.c.l.b16 %v1015
  %v4213 = vunpack.c.h.b16 %v1015
  %v4214 = vunpack.c.l.b16 %v1016
  %v4215 = vunpack.c.h.b16 %v1016
  %v4216 = vunpack.c.l.b16 %v1017
  %v4217 = vunpack.c.h.b16 %v1017
  %v4218 = vunpack.c.l.b16 %v1018
  %v4219 = vunpack.c.h.b16 %v1018
  %v4220 = vunpack.c.l.b16 %v1019
  %v4221 = vunpack.c.h.b16 %v1019
  %v4222 = vunpack.c.l.b16 %v1020
  %v4223 = vunpack.c.h.b16 %v1020
  %v4224 = vunpack.c.l.b16 %v1021
  %v4225 = vunpack.c.h.b16 %v1021
  %v4226 = vunpack.c.l.b16 %v1022
  %v4227 = vunpack.c.h.b16 %v1022
  %v4228 = vunpack.c.l.b16 %v1023
  %v4229 = vunpack.c.h.b16 %v1023
  %v4230 = vunpack.c.l.b16 %v1024
  %v4231 = vunpack.c.h.b16 %v1024
  %v4232 = vunpack.c.l.b16 %v1025
  %v4233 = vunpack.c.h.b16 %v1025
  %v4234 = vunpack.c.l.b16 %v1026
  %v4235 = vunpack.c.h.b16 %v1026
  %v4236 = vunpack.c.l.b16 %v1027
  %v4237 = vunpack.c.h.b16 %v1027
  %v4238 = vunpack.c.l.b16 %v1028
  %v4239 = vunpack.c.h.b16 %v1028
  %v4240 = vunpack.c.l.b16 %v1029
  %v4241 = vunpack.c.h.b16 %v1029
  %v4242 = vunpack.c.l.b16 %v1030
  %v4243 = vunpack.c.h.b16 %v1030
  %v4244 = vunpack.c.l.b16 %v1031
  %v4245 = vunpack.c.h.b16 %v1031
  %v4246 = vunpack.c.l.b16 %v1032
  %v4247 = vunpack.c.h.b16 %v1032
  %v4248 = vunpack.c.l.b16 %v1033
  %v4249 = vunpack.c.h.b16 %v1033
  %v4250 = vunpack.c.l.b16 %v1034
  %v4251 = vunpack.c.h.b16 %v1034
  %v4252 = vunpack.c.l.b16 %v1035
  %v4253 = vunpack.c.h.b16 %v1035
  %v4254 = vunpack.c.l.b16 %v1036
  %v4255 = vunpack.c.h.b16 %v1036
  %v4256 = vunpack.c.l.b16 %v1037
  %v4257 = vunpack.c.h.b16 %v1037
  %v4258 = vunpack.c.l.b16 %v1038
  %v4259 = vunpack.c.h.b16 %v1038
  %v4260 = vunpack.c.l.b16 %v1039
  %v4261 = vunpack.c.h.b16 %v1039
  %v4262 = vunpack.c.l.b16 %v1040
  %v4263 = vunpack.c.h.b16 %v1040
  %v4264 = vunpack.c.l.b16 %v1041
  %v4265 = vunpack.c.h.b16 %v1041
  %v4266 = vunpack.c.l.b16 %v1042
  %v4267 = vunpack.c.h.b16 %v1042
  %v4268 = vunpack.c.l.b16 %v1043
  %v4269 = vunpack.c.h.b16 %v1043
  %v4270 = vunpack.c.l.b16 %v1044
  %v4271 = vunpack.c.h.b16 %v1044
  %v4272 = vunpack.c.l.b16 %v1045
  %v4273 = vunpack.c.h.b16 %v1045
  %v4274 = vunpack.c.l.b16 %v1046
  %v4275 = vunpack.c.h.b16 %v1046
  %v4276 = vunpack.c.l.b16 %v1047
  %v4277 = vunpack.c.h.b16 %v1047
  %v4278 = vpack.c.b16 %v2238, %v2230
  %v4279 = vpack.c.b16 %v2239, %v2231
  %v4280 = vpack.c.b16 %v2240, %v2232
  %v4281 = vpack.c.b16 %v2241, %v2233
  %v4282 = vpack.c.b16 %v2242, %v2234
  %v4283 = vpack.c.b16 %v2243, %v2235
  %v4284 = vpack.c.b16 %v2244, %v2236
  %v4285 = vpack.c.b16 %v2245, %v2237
  %v4286 = vpack.c.b16 %v2254, %v2246
  %v4287 = vpack.c.b16 %v2255, %v2247
  %v4288 = vpack.c.b16 %v2256, %v2248
  %v4289 = vpack.c.b16 %v2257, %v2249
  %v4290 = vpack.c.b16 %v2258, %v2250
  %v4291 = vpack.c.b16 %v2259, %v2251
  %v4292 = vpack.c.b16 %v2260, %v2252
  %v4293 = vpack.c.b16 %v2261, %v2253
  %v4294 = vpack.c.b16 %v2270, %v2262
  %v4295 = vpack.c.b16 %v2271, %v2263
  %v4296 = vpack.c.b16 %v2272, %v2264
  %v4297 = vpack.c.b16 %v2273, %v2265
  %v4298 = vpack.c.b16 %v2274, %v2266
  %v4299 = vpack.c.b16 %v2275, %v2267
  %v4300 = vpack.c.b16 %v2276, %v2268
  %v4301 = vpack.c.b16 %v2277, %v2269
  %v4302 = vpack.c.b16 %v2286, %v2278
  %v4303 = vpack.c.b16 %v2287, %v2279
  %v4304 = vpack.c.b16 %v2288, %v2280
  %v4305 = vpack.c.b16 %v2289, %v2281
  %v4306 = vpack.c.b16 %v2290, %v2282
  %v4307 = vpack.c.b16 %v2291, %v2283
  %v4308 = vpack.c.b16 %v2292, %v2284
  %v4309 = vpack.c.b16 %v2293, %v2285
  %v4310 = vpack.c.b16 %v2302, %v2294
  %v4311 = vpack.c.b16 %v2303, %v2295
  %v4312 = vpack.c.b16 %v2304, %v2296
  %v4313 = vpack.c.b16 %v2305, %v2297
  %v4314 = vpack.c.b16 %v2306, %v2298
  %v4315 = vpack.c.b16 %v2307, %v2299
  %v4316 = vpack.c.b16 %v2308, %v2300
  %v4317 = vpack.c.b16 %v2309, %v2301
  %v4318 = vpack.c.b16 %v2318, %v2310
  %v4319 = vpack.c.b16 %v2319, %v2311
  %v4320 = vpack.c.b16 %v2320, %v2312
  %v4321 = vpack.c.b16 %v2321, %v2313
  %v4322 = vpack.c.b16 %v2322, %v2314
  %v4323 = vpack.c.b16 %v2323, %v2315
  %v4324 = vpack.c.b16 %v2324, %v2316
  %v4325 = vpack.c.b16 %v2325, %v2317
  %v4326 = vpack.c.b16 %v2334, %v2326
  %v4327 = vpack.c.b16 %v2335, %v2327
  %v4328 = vpack.c.b16 %v2336, %v2328
  %v4329 = vpack.c.b16 %v2337, %v2329
  %v4330 = vpack.c.b16 %v2338, %v2330
  %v4331 = vpack.c.b16 %v2339, %v2331
  %v4332 = vpack.c.b16 %v2340, %v2332
  %v4333 = vpack.c.b16 %v2341, %v2333
  %v4334 = vpack.c.b16 %v2350, %v2342
  %v4335 = vpack.c.b16 %v2351, %v2343
  %v4336 = vpack.c.b16 %v2352, %v2344
  %v4337 = vpack.c.b16 %v2353, %v2345
  %v4338 = vpack.c.b16 %v2354, %v2346
  %v4339 = vpack.c.b16 %v2355, %v2347
  %v4340 = vpack.c.b16 %v2356, %v2348
  %v4341 = vpack.c.b16 %v2357, %v2349
  %v4342 = vpack.c.b16 %v2366, %v2358
  %v4343 = vpack.c.b16 %v2367, %v2359
  %v4344 = vpack.c.b16 %v2368, %v2360
  %v4345 = vpack.c.b16 %v2369, %v2361
  %v4346 = vpack.c.b16 %v2370, %v2362
  %v4347 = vpack.c.b16 %v2371, %v2363
  %v4348 = vpack.c.b16 %v2372, %v2364
  %v4349 = vpack.c.b16 %v2373, %v2365
  %v4350 = vpack.c.b16 %v2382, %v2374
  %v4351 = vpack.c.b16 %v2383, %v2375
  %v4352 = vpack.c.b16 %v2384, %v2376
  %v4353 = vpack.c.b16 %v2385, %v2377
  %v4354 = vpack.c.b16 %v2386, %v2378
  %v4355 = vpack.c.b16 %v2387, %v2379
  %v4356 = vpack.c.b16 %v2388, %v2380
  %v4357 = vpack.c.b16 %v2389, %v2381
  %v4358 = vpack.c.b16 %v2398, %v2390
  %v4359 = vpack.c.b16 %v2399, %v2391
  %v4360 = vpack.c.b16 %v2400, %v2392
  %v4361 = vpack.c.b16 %v2401, %v2393
  %v4362 = vpack.c.b16 %v2402, %v2394
  %v4363 = vpack.c.b16 %v2403, %v2395
  %v4364 = vpack.c.b16 %v2404, %v2396
  %v4365 = vpack.c.b16 %v2405, %v2397
  %v4366 = vpack.c.b16 %v2414, %v2406
  %v4367 = vpack.c.b16 %v2415, %v2407
  %v4368 = vpack.c.b16 %v2416, %v2408
  %v4369 = vpack.c.b16 %v2417, %v2409
  %v4370 = vpack.c.b16 %v2418, %v2410
  %v4371 = vpack.c.b16 %v2419, %v2411
  %v4372 = vpack.c.b16 %v2420, %v2412
  %v4373 = vpack.c.b16 %v2421, %v2413
  %v4374 = vpack.c.b16 %v2430, %v2422
  %v4375 = vpack.c.b16 %v2431, %v2423
  %v4376 = vpack.c.b16 %v2432, %v2424
  %v4377 = vpack.c.b16 %v2433, %v2425
  %v4378 = vpack.c.b16 %v2434, %v2426
  %v4379 = vpack.c.b16 %v2435, %v2427
  %v4380 = vpack.c.b16 %v2436, %v2428
  %v4381 = vpack.c.b16 %v2437, %v2429
  %v4382 = vpack.c.b16 %v2446, %v2438
  %v4383 = vpack.c.b16 %v2447, %v2439
  %v4384 = vpack.c.b16 %v2448, %v2440
  %v4385 = vpack.c.b16 %v2449, %v2441
  %v4386 = vpack.c.b16 %v2450, %v2442
  %v4387 = vpack.c.b16 %v2451, %v2443
  %v4388 = vpack.c.b16 %v2452, %v2444
  %v4389 = vpack.c.b16 %v2453, %v2445
  %v4390 = vpack.c.b16 %v2462, %v2454
  %v4391 = vpack.c.b16 %v2463, %v2455
  %v4392 = vpack.c.b16 %v2464, %v2456
  %v4393 = vpack.c.b16 %v2465, %v2457
  %v4394 = vpack.c.b16 %v2466, %v2458
  %v4395 = vpack.c.b16 %v2467, %v2459
  %v4396 = vpack.c.b16 %v2468, %v2460
  %v4397 = vpack.c.b16 %v2469, %v2461
  %v4398 = vpack.c.b16 %v2478, %v2470
  %v4399 = vpack.c.b16 %v2479, %v2471
  %v4400 = vpack.c.b16 %v2480, %v2472
  %v4401 = vpack.c.b16 %v2481, %v2473
  %v4402 = vpack.c.b16 %v2482, %v2474
  %v4403 = vpack.c.b16 %v2483, %v2475
  %v4404 = vpack.c.b16 %v2484, %v2476
  %v4405 = vpack.c.b16 %v2485, %v2477
  %v4406 = vpack.c.b16 %v2494, %v2486
  %v4407 = vpack.c.b16 %v2495, %v2487
  %v4408 = vpack.c.b16 %v2496, %v2488
  %v4409 = vpack.c.b16 %v2497, %v2489
  %v4410 = vpack.c.b16 %v2498, %v2490
  %v4411 = vpack.c.b16 %v2499, %v2491
  %v4412 = vpack.c.b16 %v2500, %v2492
  %v4413 = vpack.c.b16 %v2501, %v2493
  %v4414 = vpack.c.b16 %v2510, %v2502
  %v4415 = vpack.c.b16 %v2511, %v2503
  %v4416 = vpack.c.b16 %v2512, %v2504
  %v4417 = vpack.c.b16 %v2513, %v2505
  %v4418 = vpack.c.b16 %v2514, %v2506
  %v4419 = vpack.c.b16 %v2515, %v2507
  %v4420 = vpack.c.b16 %v2516, %v2508
  %v4421 = vpack.c.b16 %v2517, %v2509
  %v4422 = vpack.c.b16 %v2526, %v2518
  %v4423 = vpack.c.b16 %v2527, %v2519
  %v4424 = vpack.c.b16 %v2528, %v2520
  %v4425 = vpack.c.b16 %v2529, %v2521
  %v4426 = vpack.c.b16 %v2530, %v2522
  %v4427 = vpack.c.b16 %v2531, %v2523
  %v4428 = vpack.c.b16 %v2532, %v2524
  %v4429 = vpack.c.b16 %v2533, %v2525
  %v4430 = vpack.c.b16 %v2542, %v2534
  %v4431 = vpack.c.b16 %v2543, %v2535
  %v4432 = vpack.c.b16 %v2544, %v2536
  %v4433 = vpack.c.b16 %v2545, %v2537
  %v4434 = vpack.c.b16 %v2546, %v2538
  %v4435 = vpack.c.b16 %v2547, %v2539
  %v4436 = vpack.c.b16 %v2548, %v2540
  %v4437 = vpack.c.b16 %v2549, %v2541
  %v4438 = vpack.c.b16 %v2558, %v2550
  %v4439 = vpack.c.b16 %v2559, %v2551
  %v4440 = vpack.c.b16 %v2560, %v2552
  %v4441 = vpack.c.b16 %v2561, %v2553
  %v4442 = vpack.c.b16 %v2562, %v2554
  %v4443 = vpack.c.b16 %v2563, %v2555
  %v4444 = vpack.c.b16 %v2564, %v2556
  %v4445 = vpack.c.b16 %v2565, %v2557
  %v4446 = vpack.c.b16 %v2574, %v2566
  %v4447 = vpack.c.b16 %v2575, %v2567
  %v4448 = vpack.c.b16 %v2576, %v2568
  %v4449 = vpack.c.b16 %v2577, %v2569
  %v4450 = vpack.c.b16 %v2578, %v2570
  %v4451 = vpack.c.b16 %v2579, %v2571
  %v4452 = vpack.c.b16 %v2580, %v2572
  %v4453 = vpack.c.b16 %v2581, %v2573
  %v4454 = vpack.c.b16 %v2590, %v2582
  %v4455 = vpack.c.b16 %v2591, %v2583
  %v4456 = vpack.c.b16 %v2592, %v2584
  %v4457 = vpack.c.b16 %v2593, %v2585
  %v4458 = vpack.c.b16 %v2594, %v2586
  %v4459 = vpack.c.b16 %v2595, %v2587
  %v4460 = vpack.c.b16 %v2596, %v2588
  %v4461 = vpack.c.b16 %v2597, %v2589
  %v4462 = vpack.c.b16 %v2606, %v2598
  %v4463 = vpack.c.b16 %v2607, %v2599
  %v4464 = vpack.c.b16 %v2608, %v2600
  %v4465 = vpack.c.b16 %v2609, %v2601
  %v4466 = vpack.c.b16 %v2610, %v2602
  %v4467 = vpack.c.b16 %v2611, %v2603
  %v4468 = vpack.c.b16 %v2612, %v2604
  %v4469 = vpack.c.b16 %v2613, %v2605
  %v4470 = vpack.c.b16 %v2622, %v2614
  %v4471 = vpack.c.b16 %v2623, %v2615
  %v4472 = vpack.c.b16 %v2624, %v2616
  %v4473 = vpack.c.b16 %v2625, %v2617
  %v4474 = vpack.c.b16 %v2626, %v2618
  %v4475 = vpack.c.b16 %v2627, %v2619
  %v4476 = vpack.c.b16 %v2628, %v2620
  %v4477 = vpack.c.b16 %v2629, %v2621
  %v4478 = vpack.c.b16 %v2638, %v2630
  %v4479 = vpack.c.b16 %v2639, %v2631
  %v4480 = vpack.c.b16 %v2640, %v2632
  %v4481 = vpack.c.b16 %v2641, %v2633
  %v4482 = vpack.c.b16 %v2642, %v2634
  %v4483 = vpack.c.b16 %v2643, %v2635
  %v4484 = vpack.c.b16 %v2644, %v2636
  %v4485 = vpack.c.b16 %v2645, %v2637
  %v4486 = vpack.c.b16 %v2654, %v2646
  %v4487 = vpack.c.b16 %v2655, %v2647
  %v4488 = vpack.c.b16 %v2656, %v2648
  %v4489 = vpack.c.b16 %v2657, %v2649
  %v4490 = vpack.c.b16 %v2658, %v2650
  %v4491 = vpack.c.b16 %v2659, %v2651
  %v4492 = vpack.c.b16 %v2660, %v2652
  %v4493 = vpack.c.b16 %v2661, %v2653
  %v4494 = vpack.c.b16 %v2670, %v2662
  %v4495 = vpack.c.b16 %v2671, %v2663
  %v4496 = vpack.c.b16 %v2672, %v2664
  %v4497 = vpack.c.b16 %v2673, %v2665
  %v4498 = vpack.c.b16 %v2674, %v2666
  %v4499 = vpack.c.b16 %v2675, %v2667
  %v4500 = vpack.c.b16 %v2676, %v2668
  %v4501 = vpack.c.b16 %v2677, %v2669
  %v4502 = vpack.c.b16 %v2686, %v2678
  %v4503 = vpack.c.b16 %v2687, %v2679
  %v4504 = vpack.c.b16 %v2688, %v2680
  %v4505 = vpack.c.b16 %v2689, %v2681
  %v4506 = vpack.c.b16 %v2690, %v2682
  %v4507 = vpack.c.b16 %v2691, %v2683
  %v4508 = vpack.c.b16 %v2692, %v2684
  %v4509 = vpack.c.b16 %v2693, %v2685
  %v4510 = vpack.c.b16 %v2702, %v2694
  %v4511 = vpack.c.b16 %v2703, %v2695
  %v4512 = vpack.c.b16 %v2704, %v2696
  %v4513 = vpack.c.b16 %v2705, %v2697
  %v4514 = vpack.c.b16 %v2706, %v2698
  %v4515 = vpack.c.b16 %v2707, %v2699
  %v4516 = vpack.c.b16 %v2708, %v2700
  %v4517 = vpack.c.b16 %v2709, %v2701
  %v4518 = vpack.c.b16 %v2718, %v2710
  %v4519 = vpack.c.b16 %v2719, %v2711
  %v4520 = vpack.c.b16 %v2720, %v2712
  %v4521 = vpack.c.b16 %v2721, %v2713
  %v4522 = vpack.c.b16 %v2722, %v2714
  %v4523 = vpack.c.b16 %v2723, %v2715
  %v4524 = vpack.c.b16 %v2724, %v2716
  %v4525 = vpack.c.b16 %v2725, %v2717
  %v4526 = vpack.c.b16 %v2734, %v2726
  %v4527 = vpack.c.b16 %v2735, %v2727
  %v4528 = vpack.c.b16 %v2736, %v2728
  %v4529 = vpack.c.b16 %v2737, %v2729
  %v4530 = vpack.c.b16 %v2738, %v2730
  %v4531 = vpack.c.b16 %v2739, %v2731
  %v4532 = vpack.c.b16 %v2740, %v2732
  %v4533 = vpack.c.b16 %v2741, %v2733
  %v4534 = vpack.c.b16 %v2750, %v2742
  %v4535 = vpack.c.b16 %v2751, %v2743
  %v4536 = vpack.c.b16 %v2752, %v2744
  %v4537 = vpack.c.b16 %v2753, %v2745
  %v4538 = vpack.c.b16 %v2754, %v2746
  %v4539 = vpack.c.b16 %v2755, %v2747
  %v4540 = vpack.c.b16 %v2756, %v2748
  %v4541 = vpack.c.b16 %v2757, %v2749
  %v4542 = vpack.c.b16 %v2766, %v2758
  %v4543 = vpack.c.b16 %v2767, %v2759
  %v4544 = vpack.c.b16 %v2768, %v2760
  %v4545 = vpack.c.b16 %v2769, %v2761
  %v4546 = vpack.c.b16 %v2770, %v2762
  %v4547 = vpack.c.b16 %v2771, %v2763
  %v4548 = vpack.c.b16 %v2772, %v2764
  %v4549 = vpack.c.b16 %v2773, %v2765
  %v4550 = vpack.c.b16 %v2782, %v2774
  %v4551 = vpack.c.b16 %v2783, %v2775
  %v4552 = vpack.c.b16 %v2784, %v2776
  %v4553 = vpack.c.b16 %v2785, %v2777
  %v4554 = vpack.c.b16 %v2786, %v2778
  %v4555 = vpack.c.b16 %v2787, %v2779
  %v4556 = vpack.c.b16 %v2788, %v2780
  %v4557 = vpack.c.b16 %v2789, %v2781
  %v4558 = vpack.c.b16 %v2798, %v2790
  %v4559 = vpack.c.b16 %v2799, %v2791
  %v4560 = vpack.c.b16 %v2800, %v2792
  %v4561 = vpack.c.b16 %v2801, %v2793
  %v4562 = vpack.c.b16 %v2802, %v2794
  %v4563 = vpack.c.b16 %v2803, %v2795
  %v4564 = vpack.c.b16 %v2804, %v2796
  %v4565 = vpack.c.b16 %v2805, %v2797
  %v4566 = vpack.c.b16 %v2814, %v2806
  %v4567 = vpack.c.b16 %v2815, %v2807
  %v4568 = vpack.c.b16 %v2816, %v2808
  %v4569 = vpack.c.b16 %v2817, %v2809
  %v4570 = vpack.c.b16 %v2818, %v2810
  %v4571 = vpack.c.b16 %v2819, %v2811
  %v4572 = vpack.c.b16 %v2820, %v2812
  %v4573 = vpack.c.b16 %v2821, %v2813
  %v4574 = vpack.c.b16 %v2830, %v2822
  %v4575 = vpack.c.b16 %v2831, %v2823
  %v4576 = vpack.c.b16 %v2832, %v2824
  %v4577 = vpack.c.b16 %v2833, %v2825
  %v4578 = vpack.c.b16 %v2834, %v2826
  %v4579 = vpack.c.b16 %v2835, %v2827
  %v4580 = vpack.c.b16 %v2836, %v2828
  %v4581 = vpack.c.b16 %v2837, %v2829
  %v4582 = vpack.c.b16 %v2846, %v2838
  %v4583 = vpack.c.b16 %v2847, %v2839
  %v4584 = vpack.c.b16 %v2848, %v2840
  %v4585 = vpack.c.b16 %v2849, %v2841
  %v4586 = vpack.c.b16 %v2850, %v2842
  %v4587 = vpack.c.b16 %v2851, %v2843
  %v4588 = vpack.c.b16 %v2852, %v2844
  %v4589 = vpack.c.b16 %v2853, %v2845
  %v4590 = vpack.c.b16 %v2862, %v2854
  %v4591 = vpack.c.b16 %v2863, %v2855
  %v4592 = vpack.c.b16 %v2864, %v2856
  %v4593 = vpack.c.b16 %v2865, %v2857
  %v4594 = vpack.c.b16 %v2866, %v2858
  %v4595 = vpack.c.b16 %v2867, %v2859
  %v4596 = vpack.c.b16 %v2868, %v2860
  %v4597 = vpack.c.b16 %v2869, %v2861
  %v4598 = vpack.c.b16 %v2878, %v2870
  %v4599 = vpack.c.b16 %v2879, %v2871
  %v4600 = vpack.c.b16 %v2880, %v2872
  %v4601 = vpack.c.b16 %v2881, %v2873
  %v4602 = vpack.c.b16 %v2882, %v2874
  %v4603 = vpack.c.b16 %v2883, %v2875
  %v4604 = vpack.c.b16 %v2884, %v2876
  %v4605 = vpack.c.b16 %v2885, %v2877
  %v4606 = vpack.c.b16 %v2894, %v2886
  %v4607 = vpack.c.b16 %v2895, %v2887
  %v4608 = vpack.c.b16 %v2896, %v2888
  %v4609 = vpack.c.b16 %v2897, %v2889
  %v4610 = vpack.c.b16 %v2898, %v2890
  %v4611 = vpack.c.b16 %v2899, %v2891
  %v4612 = vpack.c.b16 %v2900, %v2892
  %v4613 = vpack.c.b16 %v2901, %v2893
  %v4614 = vpack.c.b16 %v2910, %v2902
  %v4615 = vpack.c.b16 %v2911, %v2903
  %v4616 = vpack.c.b16 %v2912, %v2904
  %v4617 = vpack.c.b16 %v2913, %v2905
  %v4618 = vpack.c.b16 %v2914, %v2906
  %v4619 = vpack.c.b16 %v2915, %v2907
  %v4620 = vpack.c.b16 %v2916, %v2908
  %v4621 = vpack.c.b16 %v2917, %v2909
  %v4622 = vpack.c.b16 %v2926, %v2918
  %v4623 = vpack.c.b16 %v2927, %v2919
  %v4624 = vpack.c.b16 %v2928, %v2920
  %v4625 = vpack.c.b16 %v2929, %v2921
  %v4626 = vpack.c.b16 %v2930, %v2922
  %v4627 = vpack.c.b16 %v2931, %v2923
  %v4628 = vpack.c.b16 %v2932, %v2924
  %v4629 = vpack.c.b16 %v2933, %v2925
  %v4630 = vpack.c.b16 %v2942, %v2934
  %v4631 = vpack.c.b16 %v2943, %v2935
  %v4632 = vpack.c.b16 %v2944, %v2936
  %v4633 = vpack.c.b16 %v2945, %v2937
  %v4634 = vpack.c.b16 %v2946, %v2938
  %v4635 = vpack.c.b16 %v2947, %v2939
  %v4636 = vpack.c.b16 %v2948, %v2940
  %v4637 = vpack.c.b16 %v2949, %v2941
  %v4638 = vpack.c.b16 %v2958, %v2950
  %v4639 = vpack.c.b16 %v2959, %v2951
  %v4640 = vpack.c.b16 %v2960, %v2952
  %v4641 = vpack.c.b16 %v2961, %v2953
  %v4642 = vpack.c.b16 %v2962, %v2954
  %v4643 = vpack.c.b16 %v2963, %v2955
  %v4644 = vpack.c.b16 %v2964, %v2956
  %v4645 = vpack.c.b16 %v2965, %v2957
  %v4646 = vpack.c.b16 %v2974, %v2966
  %v4647 = vpack.c.b16 %v2975, %v2967
  %v4648 = vpack.c.b16 %v2976, %v2968
  %v4649 = vpack.c.b16 %v2977, %v2969
  %v4650 = vpack.c.b16 %v2978, %v2970
  %v4651 = vpack.c.b16 %v2979, %v2971
  %v4652 = vpack.c.b16 %v2980, %v2972
  %v4653 = vpack.c.b16 %v2981, %v2973
  %v4654 = vpack.c.b16 %v2990, %v2982
  %v4655 = vpack.c.b16 %v2991, %v2983
  %v4656 = vpack.c.b16 %v2992, %v2984
  %v4657 = vpack.c.b16 %v2993, %v2985
  %v4658 = vpack.c.b16 %v2994, %v2986
  %v4659 = vpack.c.b16 %v2995, %v2987
  %v4660 = vpack.c.b16 %v2996, %v2988
  %v4661 = vpack.c.b16 %v2997, %v2989
  %v4662 = vpack.c.b16 %v3006, %v2998
  %v4663 = vpack.c.b16 %v3007, %v2999
  %v4664 = vpack.c.b16 %v3008, %v3000
  %v4665 = vpack.c.b16 %v3009, %v3001
  %v4666 = vpack.c.b16 %v3010, %v3002
  %v4667 = vpack.c.b16 %v3011, %v3003
  %v4668 = vpack.c.b16 %v3012, %v3004
  %v4669 = vpack.c.b16 %v3013, %v3005
  %v4670 = vpack.c.b16 %v3022, %v3014
  %v4671 = vpack.c.b16 %v3023, %v3015
  %v4672 = vpack.c.b16 %v3024, %v3016
  %v4673 = vpack.c.b16 %v3025, %v3017
  %v4674 = vpack.c.b16 %v3026, %v3018
  %v4675 = vpack.c.b16 %v3027, %v3019
  %v4676 = vpack.c.b16 %v3028, %v3020
  %v4677 = vpack.c.b16 %v3029, %v3021
  %v4678 = vpack.c.b16 %v3038, %v3030
  %v4679 = vpack.c.b16 %v3039, %v3031
  %v4680 = vpack.c.b16 %v3040, %v3032
  %v4681 = vpack.c.b16 %v3041, %v3033
  %v4682 = vpack.c.b16 %v3042, %v3034
  %v4683 = vpack.c.b16 %v3043, %v3035
  %v4684 = vpack.c.b16 %v3044, %v3036
  %v4685 = vpack.c.b16 %v3045, %v3037
  %v4686 = vpack.c.b16 %v3054, %v3046
  %v4687 = vpack.c.b16 %v3055, %v3047
  %v4688 = vpack.c.b16 %v3056, %v3048
  %v4689 = vpack.c.b16 %v3057, %v3049
  %v4690 = vpack.c.b16 %v3058, %v3050
  %v4691 = vpack.c.b16 %v3059, %v3051
  %v4692 = vpack.c.b16 %v3060, %v3052
  %v4693 = vpack.c.b16 %v3061, %v3053
  %v4694 = vpack.c.b16 %v3070, %v3062
  %v4695 = vpack.c.b16 %v3071, %v3063
  %v4696 = vpack.c.b16 %v3072, %v3064
  %v4697 = vpack.c.b16 %v3073, %v3065
  %v4698 = vpack.c.b16 %v3074, %v3066
  %v4699 = vpack.c.b16 %v3075, %v3067
  %v4700 = vpack.c.b16 %v3076, %v3068
  %v4701 = vpack.c.b16 %v3077, %v3069
  %v4702 = vpack.c.b16 %v3086, %v3078
  %v4703 = vpack.c.b16 %v3087, %v3079
  %v4704 = vpack.c.b16 %v3088, %v3080
  %v4705 = vpack.c.b16 %v3089, %v3081
  %v4706 = vpack.c.b16 %v3090, %v3082
  %v4707 = vpack.c.b16 %v3091, %v3083
  %v4708 = vpack.c.b16 %v3092, %v3084
  %v4709 = vpack.c.b16 %v3093, %v3085
  %v4710 = vpack.c.b16 %v3102, %v3094
  %v4711 = vpack.c.b16 %v3103, %v3095
  %v4712 = vpack.c.b16 %v3104, %v3096
  %v4713 = vpack.c.b16 %v3105, %v3097
  %v4714 = vpack.c.b16 %v3106, %v3098
  %v4715 = vpack.c.b16 %v3107, %v3099
  %v4716 = vpack.c.b16 %v3108, %v3100
  %v4717 = vpack.c.b16 %v3109, %v3101
  %v4718 = vpack.c.b16 %v3118, %v3110
  %v4719 = vpack.c.b16 %v3119, %v3111
  %v4720 = vpack.c.b16 %v3120, %v3112
  %v4721 = vpack.c.b16 %v3121, %v3113
  %v4722 = vpack.c.b16 %v3122, %v3114
  %v4723 = vpack.c.b16 %v3123, %v3115
  %v4724 = vpack.c.b16 %v3124, %v3116
  %v4725 = vpack.c.b16 %v3125, %v3117
  %v4726 = vpack.c.b16 %v3134, %v3126
  %v4727 = vpack.c.b16 %v3135, %v3127
  %v4728 = vpack.c.b16 %v3136, %v3128
  %v4729 = vpack.c.b16 %v3137, %v3129
  %v4730 = vpack.c.b16 %v3138, %v3130
  %v4731 = vpack.c.b16 %v3139, %v3131
  %v4732 = vpack.c.b16 %v3140, %v3132
  %v4733 = vpack.c.b16 %v3141, %v3133
  %v4734 = vpack.c.b16 %v3150, %v3142
  %v4735 = vpack.c.b16 %v3151, %v3143
  %v4736 = vpack.c.b16 %v3152, %v3144
  %v4737 = vpack.c.b16 %v3153, %v3145
  %v4738 = vpack.c.b16 %v3154, %v3146
  %v4739 = vpack.c.b16 %v3155, %v3147
  %v4740 = vpack.c.b16 %v3156, %v3148
  %v4741 = vpack.c.b16 %v3157, %v3149
  %v4742 = vpack.c.b16 %v3166, %v3158
  %v4743 = vpack.c.b16 %v3167, %v3159
  %v4744 = vpack.c.b16 %v3168, %v3160
  %v4745 = vpack.c.b16 %v3169, %v3161
  %v4746 = vpack.c.b16 %v3170, %v3162
  %v4747 = vpack.c.b16 %v3171, %v3163
  %v4748 = vpack.c.b16 %v3172, %v3164
  %v4749 = vpack.c.b16 %v3173, %v3165
  %v4750 = vpack.c.b16 %v3182, %v3174
  %v4751 = vpack.c.b16 %v3183, %v3175
  %v4752 = vpack.c.b16 %v3184, %v3176
  %v4753 = vpack.c.b16 %v3185, %v3177
  %v4754 = vpack.c.b16 %v3186, %v3178
  %v4755 = vpack.c.b16 %v3187, %v3179
  %v4756 = vpack.c.b16 %v3188, %v3180
  %v4757 = vpack.c.b16 %v3189, %v3181
  %v4758 = vpack.c.b16 %v3198, %v3190
  %v4759 = vpack.c.b16 %v3199, %v3191
  %v4760 = vpack.c.b16 %v3200, %v3192
  %v4761 = vpack.c.b16 %v3201, %v3193
  %v4762 = vpack.c.b16 %v3202, %v3194
  %v4763 = vpack.c.b16 %v3203, %v3195
  %v4764 = vpack.c.b16 %v3204, %v3196
  %v4765 = vpack.c.b16 %v3205, %v3197
  %v4766 = vpack.c.b16 %v3214, %v3206
  %v4767 = vpack.c.b16 %v3215, %v3207
  %v4768 = vpack.c.b16 %v3216, %v3208
  %v4769 = vpack.c.b16 %v3217, %v3209
  %v4770 = vpack.c.b16 %v3218, %v3210
  %v4771 = vpack.c.b16 %v3219, %v3211
  %v4772 = vpack.c.b16 %v3220, %v3212
  %v4773 = vpack.c.b16 %v3221, %v3213
  %v4774 = vpack.c.b16 %v3230, %v3222
  %v4775 = vpack.c.b16 %v3231, %v3223
  %v4776 = vpack.c.b16 %v3232, %v3224
  %v4777 = vpack.c.b16 %v3233, %v3225
  %v4778 = vpack.c.b16 %v3234, %v3226
  %v4779 = vpack.c.b16 %v3235, %v3227
  %v4780 = vpack.c.b16 %v3236, %v3228
  %v4781 = vpack.c.b16 %v3237, %v3229
  %v4782 = vpack.c.b16 %v3246, %v3238
  %v4783 = vpack.c.b16 %v3247, %v3239
  %v4784 = vpack.c.b16 %v3248, %v3240
  %v4785 = vpack.c.b16 %v3249, %v3241
  %v4786 = vpack.c.b16 %v3250, %v3242
  %v4787 = vpack.c.b16 %v3251, %v3243
  %v4788 = vpack.c.b16 %v3252, %v3244
  %v4789 = vpack.c.b16 %v3253, %v3245
  %v4790 = vpack.c.b16 %v3262, %v3254
  %v4791 = vpack.c.b16 %v3263, %v3255
  %v4792 = vpack.c.b16 %v3264, %v3256
  %v4793 = vpack.c.b16 %v3265, %v3257
  %v4794 = vpack.c.b16 %v3266, %v3258
  %v4795 = vpack.c.b16 %v3267, %v3259
  %v4796 = vpack.c.b16 %v3268, %v3260
  %v4797 = vpack.c.b16 %v3269, %v3261
  %v4798 = vpack.c.b16 %v3278, %v3270
  %v4799 = vpack.c.b16 %v3279, %v3271
  %v4800 = vpack.c.b16 %v3280, %v3272
  %v4801 = vpack.c.b16 %v3281, %v3273
  %v4802 = vpack.c.b16 %v3282, %v3274
  %v4803 = vpack.c.b16 %v3283, %v3275
  %v4804 = vpack.c.b16 %v3284, %v3276
  %v4805 = vpack.c.b16 %v3285, %v3277
  %v4806 = vpack.c.b16 %v3294, %v3286
  %v4807 = vpack.c.b16 %v3295, %v3287
  %v4808 = vpack.c.b16 %v3296, %v3288
  %v4809 = vpack.c.b16 %v3297, %v3289
  %v4810 = vpack.c.b16 %v3298, %v3290
  %v4811 = vpack.c.b16 %v3299, %v3291
  %v4812 = vpack.c.b16 %v3300, %v3292
  %v4813 = vpack.c.b16 %v3301, %v3293
  %v4814 = vpack.c.b16 %v3310, %v3302
  %v4815 = vpack.c.b16 %v3311, %v3303
  %v4816 = vpack.c.b16 %v3312, %v3304
  %v4817 = vpack.c.b16 %v3313, %v3305
  %v4818 = vpack.c.b16 %v3314, %v3306
  %v4819 = vpack.c.b16 %v3315, %v3307
  %v4820 = vpack.c.b16 %v3316, %v3308
  %v4821 = vpack.c.b16 %v3317, %v3309
  %v4822 = vpack.c.b16 %v3326, %v3318
  %v4823 = vpack.c.b16 %v3327, %v3319
  %v4824 = vpack.c.b16 %v3328, %v3320
  %v4825 = vpack.c.b16 %v3329, %v3321
  %v4826 = vpack.c.b16 %v3330, %v3322
  %v4827 = vpack.c.b16 %v3331, %v3323
  %v4828 = vpack.c.b16 %v3332, %v3324
  %v4829 = vpack.c.b16 %v3333, %v3325
  %v4830 = vpack.c.b16 %v3342, %v3334
  %v4831 = vpack.c.b16 %v3343, %v3335
  %v4832 = vpack.c.b16 %v3344, %v3336
  %v4833 = vpack.c.b16 %v3345, %v3337
  %v4834 = vpack.c.b16 %v3346, %v3338
  %v4835 = vpack.c.b16 %v3347, %v3339
  %v4836 = vpack.c.b16 %v3348, %v3340
  %v4837 = vpack.c.b16 %v3349, %v3341
  %v4838 = vpack.c.b16 %v3358, %v3350
  %v4839 = vpack.c.b16 %v3359, %v3351
  %v4840 = vpack.c.b16 %v3360, %v3352
  %v4841 = vpack.c.b16 %v3361, %v3353
  %v4842 = vpack.c.b16 %v3362, %v3354
  %v4843 = vpack.c.b16 %v3363, %v3355
  %v4844 = vpack.c.b16 %v3364, %v3356
  %v4845 = vpack.c.b16 %v3365, %v3357
  %v4846 = vpack.c.b16 %v3374, %v3366
  %v4847 = vpack.c.b16 %v3375, %v3367
  %v4848 = vpack.c.b16 %v3376, %v3368
  %v4849 = vpack.c.b16 %v3377, %v3369
  %v4850 = vpack.c.b16 %v3378, %v3370
  %v4851 = vpack.c.b16 %v3379, %v3371
  %v4852 = vpack.c.b16 %v3380, %v3372
  %v4853 = vpack.c.b16 %v3381, %v3373
  %v4854 = vpack.c.b16 %v3390, %v3382
  %v4855 = vpack.c.b16 %v3391, %v3383
  %v4856 = vpack.c.b16 %v3392, %v3384
  %v4857 = vpack.c.b16 %v3393, %v3385
  %v4858 = vpack.c.b16 %v3394, %v3386
  %v4859 = vpack.c.b16 %v3395, %v3387
  %v4860 = vpack.c.b16 %v3396, %v3388
  %v4861 = vpack.c.b16 %v3397, %v3389
  %v4862 = vpack.c.b16 %v3406, %v3398
  %v4863 = vpack.c.b16 %v3407, %v3399
  %v4864 = vpack.c.b16 %v3408, %v3400
  %v4865 = vpack.c.b16 %v3409, %v3401
  %v4866 = vpack.c.b16 %v3410, %v3402
  %v4867 = vpack.c.b16 %v3411, %v3403
  %v4868 = vpack.c.b16 %v3412, %v3404
  %v4869 = vpack.c.b16 %v3413, %v3405
  %v4870 = vpack.c.b16 %v3422, %v3414
  %v4871 = vpack.c.b16 %v3423, %v3415
  %v4872 = vpack.c.b16 %v3424, %v3416
  %v4873 = vpack.c.b16 %v3425, %v3417
  %v4874 = vpack.c.b16 %v3426, %v3418
  %v4875 = vpack.c.b16 %v3427, %v3419
  %v4876 = vpack.c.b16 %v3428, %v3420
  %v4877 = vpack.c.b16 %v3429, %v3421
  %v4878 = vpack.c.b16 %v3438, %v3430
  %v4879 = vpack.c.b16 %v3439, %v3431
  %v4880 = vpack.c.b16 %v3440, %v3432
  %v4881 = vpack.c.b16 %v3441, %v3433
  %v4882 = vpack.c.b16 %v3442, %v3434
  %v4883 = vpack.c.b16 %v3443, %v3435
  %v4884 = vpack.c.b16 %v3444, %v3436
  %v4885 = vpack.c.b16 %v3445, %v3437
  %v4886 = vpack.c.b16 %v3454, %v3446
  %v4887 = vpack.c.b16 %v3455, %v3447
  %v4888 = vpack.c.b16 %v3456, %v3448
  %v4889 = vpack.c.b16 %v3457, %v3449
  %v4890 = vpack.c.b16 %v3458, %v3450
  %v4891 = vpack.c.b16 %v3459, %v3451
  %v4892 = vpack.c.b16 %v3460, %v3452
  %v4893 = vpack.c.b16 %v3461, %v3453
  %v4894 = vpack.c.b16 %v3470, %v3462
  %v4895 = vpack.c.b16 %v3471, %v3463
  %v4896 = vpack.c.b16 %v3472, %v3464
  %v4897 = vpack.c.b16 %v3473, %v3465
  %v4898 = vpack.c.b16 %v3474, %v3466
  %v4899 = vpack.c.b16 %v3475, %v3467
  %v4900 = vpack.c.b16 %v3476, %v3468
  %v4901 = vpack.c.b16 %v3477, %v3469
  %v4902 = vpack.c.b16 %v3486, %v3478
  %v4903 = vpack.c.b16 %v3487, %v3479
  %v4904 = vpack.c.b16 %v3488, %v3480
  %v4905 = vpack.c.b16 %v3489, %v3481
  %v4906 = vpack.c.b16 %v3490, %v3482
  %v4907 = vpack.c.b16 %v3491, %v3483
  %v4908 = vpack.c.b16 %v3492, %v3484
  %v4909 = vpack.c.b16 %v3493, %v3485
  %v4910 = vpack.c.b16 %v3502, %v3494
  %v4911 = vpack.c.b16 %v3503, %v3495
  %v4912 = vpack.c.b16 %v3504, %v3496
  %v4913 = vpack.c.b16 %v3505, %v3497
  %v4914 = vpack.c.b16 %v3506, %v3498
  %v4915 = vpack.c.b16 %v3507, %v3499
  %v4916 = vpack.c.b16 %v3508, %v3500
  %v4917 = vpack.c.b16 %v3509, %v3501
  %v4918 = vpack.c.b16 %v3518, %v3510
  %v4919 = vpack.c.b16 %v3519, %v3511
  %v4920 = vpack.c.b16 %v3520, %v3512
  %v4921 = vpack.c.b16 %v3521, %v3513
  %v4922 = vpack.c.b16 %v3522, %v3514
  %v4923 = vpack.c.b16 %v3523, %v3515
  %v4924 = vpack.c.b16 %v3524, %v3516
  %v4925 = vpack.c.b16 %v3525, %v3517
  %v4926 = vpack.c.b16 %v3534, %v3526
  %v4927 = vpack.c.b16 %v3535, %v3527
  %v4928 = vpack.c.b16 %v3536, %v3528
  %v4929 = vpack.c.b16 %v3537, %v3529
  %v4930 = vpack.c.b16 %v3538, %v3530
  %v4931 = vpack.c.b16 %v3539, %v3531
  %v4932 = vpack.c.b16 %v3540, %v3532
  %v4933 = vpack.c.b16 %v3541, %v3533
  %v4934 = vpack.c.b16 %v3550, %v3542
  %v4935 = vpack.c.b16 %v3551, %v3543
  %v4936 = vpack.c.b16 %v3552, %v3544
  %v4937 = vpack.c.b16 %v3553, %v3545
  %v4938 = vpack.c.b16 %v3554, %v3546
  %v4939 = vpack.c.b16 %v3555, %v3547
  %v4940 = vpack.c.b16 %v3556, %v3548
  %v4941 = vpack.c.b16 %v3557, %v3549
  %v4942 = vpack.c.b16 %v3566, %v3558
  %v4943 = vpack.c.b16 %v3567, %v3559
  %v4944 = vpack.c.b16 %v3568, %v3560
  %v4945 = vpack.c.b16 %v3569, %v3561
  %v4946 = vpack.c.b16 %v3570, %v3562
  %v4947 = vpack.c.b16 %v3571, %v3563
  %v4948 = vpack.c.b16 %v3572, %v3564
  %v4949 = vpack.c.b16 %v3573, %v3565
  %v4950 = vpack.c.b16 %v3582, %v3574
  %v4951 = vpack.c.b16 %v3583, %v3575
  %v4952 = vpack.c.b16 %v3584, %v3576
  %v4953 = vpack.c.b16 %v3585, %v3577
  %v4954 = vpack.c.b16 %v3586, %v3578
  %v4955 = vpack.c.b16 %v3587, %v3579
  %v4956 = vpack.c.b16 %v3588, %v3580
  %v4957 = vpack.c.b16 %v3589, %v3581
  %v4958 = vpack.c.b16 %v3598, %v3590
  %v4959 = vpack.c.b16 %v3599, %v3591
  %v4960 = vpack.c.b16 %v3600, %v3592
  %v4961 = vpack.c.b16 %v3601, %v3593
  %v4962 = vpack.c.b16 %v3602, %v3594
  %v4963 = vpack.c.b16 %v3603, %v3595
  %v4964 = vpack.c.b16 %v3604, %v3596
  %v4965 = vpack.c.b16 %v3605, %v3597
  %v4966 = vpack.c.b16 %v3614, %v3606
  %v4967 = vpack.c.b16 %v3615, %v3607
  %v4968 = vpack.c.b16 %v3616, %v3608
  %v4969 = vpack.c.b16 %v3617, %v3609
  %v4970 = vpack.c.b16 %v3618, %v3610
  %v4971 = vpack.c.b16 %v3619, %v3611
  %v4972 = vpack.c.b16 %v3620, %v3612
  %v4973 = vpack.c.b16 %v3621, %v3613
  %v4974 = vpack.c.b16 %v3630, %v3622
  %v4975 = vpack.c.b16 %v3631, %v3623
  %v4976 = vpack.c.b16 %v3632, %v3624
  %v4977 = vpack.c.b16 %v3633, %v3625
  %v4978 = vpack.c.b16 %v3634, %v3626
  %v4979 = vpack.c.b16 %v3635, %v3627
  %v4980 = vpack.c.b16 %v3636, %v3628
  %v4981 = vpack.c.b16 %v3637, %v3629
  %v4982 = vpack.c.b16 %v3646, %v3638
  %v4983 = vpack.c.b16 %v3647, %v3639
  %v4984 = vpack.c.b16 %v3648, %v3640
  %v4985 = vpack.c.b16 %v3649, %v3641
  %v4986 = vpack.c.b16 %v3650, %v3642
  %v4987 = vpack.c.b16 %v3651, %v3643
  %v4988 = vpack.c.b16 %v3652, %v3644
  %v4989 = vpack.c.b16 %v3653, %v3645
  %v4990 = vpack.c.b16 %v3662, %v3654
  %v4991 = vpack.c.b16 %v3663, %v3655
  %v4992 = vpack.c.b16 %v3664, %v3656
  %v4993 = vpack.c.b16 %v3665, %v3657
  %v4994 = vpack.c.b16 %v3666, %v3658
  %v4995 = vpack.c.b16 %v3667, %v3659
  %v4996 = vpack.c.b16 %v3668, %v3660
  %v4997 = vpack.c.b16 %v3669, %v3661
  %v4998 = vpack.c.b16 %v3678, %v3670
  %v4999 = vpack.c.b16 %v3679, %v3671
  %v5000 = vpack.c.b16 %v3680, %v3672
  %v5001 = vpack.c.b16 %v3681, %v3673
  %v5002 = vpack.c.b16 %v3682, %v3674
  %v5003 = vpack.c.b16 %v3683, %v3675
  %v5004 = vpack.c.b16 %v3684, %v3676
  %v5005 = vpack.c.b16 %v3685, %v3677
  %v5006 = vpack.c.b16 %v3694, %v3686
  %v5007 = vpack.c.b16 %v3695, %v3687
  %v5008 = vpack.c.b16 %v3696, %v3688
  %v5009 = vpack.c.b16 %v3697, %v3689
  %v5010 = vpack.c.b16 %v3698, %v3690
  %v5011 = vpack.c.b16 %v3699, %v3691
  %v5012 = vpack.c.b16 %v3700, %v3692
  %v5013 = vpack.c.b16 %v3701, %v3693
  %v5014 = vpack.c.b16 %v3710, %v3702
  %v5015 = vpack.c.b16 %v3711, %v3703
  %v5016 = vpack.c.b16 %v3712, %v3704
  %v5017 = vpack.c.b16 %v3713, %v3705
  %v5018 = vpack.c.b16 %v3714, %v3706
  %v5019 = vpack.c.b16 %v3715, %v3707
  %v5020 = vpack.c.b16 %v3716, %v3708
  %v5021 = vpack.c.b16 %v3717, %v3709
  %v5022 = vpack.c.b16 %v3726, %v3718
  %v5023 = vpack.c.b16 %v3727, %v3719
  %v5024 = vpack.c.b16 %v3728, %v3720
  %v5025 = vpack.c.b16 %v3729, %v3721
  %v5026 = vpack.c.b16 %v3730, %v3722
  %v5027 = vpack.c.b16 %v3731, %v3723
  %v5028 = vpack.c.b16 %v3732, %v3724
  %v5029 = vpack.c.b16 %v3733, %v3725
  %v5030 = vpack.c.b16 %v3742, %v3734
  %v5031 = vpack.c.b16 %v3743, %v3735
  %v5032 = vpack.c.b16 %v3744, %v3736
  %v5033 = vpack.c.b16 %v3745, %v3737
  %v5034 = vpack.c.b16 %v3746, %v3738
  %v5035 = vpack.c.b16 %v3747, %v3739
  %v5036 = vpack.c.b16 %v3748, %v3740
  %v5037 = vpack.c.b16 %v3749, %v3741
  %v5038 = vpack.c.b16 %v3758, %v3750
  %v5039 = vpack.c.b16 %v3759, %v3751
  %v5040 = vpack.c.b16 %v3760, %v3752
  %v5041 = vpack.c.b16 %v3761, %v3753
  %v5042 = vpack.c.b16 %v3762, %v3754
  %v5043 = vpack.c.b16 %v3763, %v3755
  %v5044 = vpack.c.b16 %v3764, %v3756
  %v5045 = vpack.c.b16 %v3765, %v3757
  %v5046 = vpack.c.b16 %v3774, %v3766
  %v5047 = vpack.c.b16 %v3775, %v3767
  %v5048 = vpack.c.b16 %v3776, %v3768
  %v5049 = vpack.c.b16 %v3777, %v3769
  %v5050 = vpack.c.b16 %v3778, %v3770
  %v5051 = vpack.c.b16 %v3779, %v3771
  %v5052 = vpack.c.b16 %v3780, %v3772
  %v5053 = vpack.c.b16 %v3781, %v3773
  %v5054 = vpack.c.b16 %v3790, %v3782
  %v5055 = vpack.c.b16 %v3791, %v3783
  %v5056 = vpack.c.b16 %v3792, %v3784
  %v5057 = vpack.c.b16 %v3793, %v3785
  %v5058 = vpack.c.b16 %v3794, %v3786
  %v5059 = vpack.c.b16 %v3795, %v3787
  %v5060 = vpack.c.b16 %v3796, %v3788
  %v5061 = vpack.c.b16 %v3797, %v3789
  %v5062 = vpack.c.b16 %v3806, %v3798
  %v5063 = vpack.c.b16 %v3807, %v3799
  %v5064 = vpack.c.b16 %v3808, %v3800
  %v5065 = vpack.c.b16 %v3809, %v3801
  %v5066 = vpack.c.b16 %v3810, %v3802
  %v5067 = vpack.c.b16 %v3811, %v3803
  %v5068 = vpack.c.b16 %v3812, %v3804
  %v5069 = vpack.c.b16 %v3813, %v3805
  %v5070 = vpack.c.b16 %v3822, %v3814
  %v5071 = vpack.c.b16 %v3823, %v3815
  %v5072 = vpack.c.b16 %v3824, %v3816
  %v5073 = vpack.c.b16 %v3825, %v3817
  %v5074 = vpack.c.b16 %v3826, %v3818
  %v5075 = vpack.c.b16 %v3827, %v3819
  %v5076 = vpack.c.b16 %v3828, %v3820
  %v5077 = vpack.c.b16 %v3829, %v3821
  %v5078 = vpack.c.b16 %v3838, %v3830
  %v5079 = vpack.c.b16 %v3839, %v3831
  %v5080 = vpack.c.b16 %v3840, %v3832
  %v5081 = vpack.c.b16 %v3841, %v3833
  %v5082 = vpack.c.b16 %v3842, %v3834
  %v5083 = vpack.c.b16 %v3843, %v3835
  %v5084 = vpack.c.b16 %v3844, %v3836
  %v5085 = vpack.c.b16 %v3845, %v3837
  %v5086 = vpack.c.b16 %v3854, %v3846
  %v5087 = vpack.c.b16 %v3855, %v3847
  %v5088 = vpack.c.b16 %v3856, %v3848
  %v5089 = vpack.c.b16 %v3857, %v3849
  %v5090 = vpack.c.b16 %v3858, %v3850
  %v5091 = vpack.c.b16 %v3859, %v3851
  %v5092 = vpack.c.b16 %v3860, %v3852
  %v5093 = vpack.c.b16 %v3861, %v3853
  %v5094 = vpack.c.b16 %v3870, %v3862
  %v5095 = vpack.c.b16 %v3871, %v3863
  %v5096 = vpack.c.b16 %v3872, %v3864
  %v5097 = vpack.c.b16 %v3873, %v3865
  %v5098 = vpack.c.b16 %v3874, %v3866
  %v5099 = vpack.c.b16 %v3875, %v3867
  %v5100 = vpack.c.b16 %v3876, %v3868
  %v5101 = vpack.c.b16 %v3877, %v3869
  %v5102 = vpack.c.b16 %v3886, %v3878
  %v5103 = vpack.c.b16 %v3887, %v3879
  %v5104 = vpack.c.b16 %v3888, %v3880
  %v5105 = vpack.c.b16 %v3889, %v3881
  %v5106 = vpack.c.b16 %v3890, %v3882
  %v5107 = vpack.c.b16 %v3891, %v3883
  %v5108 = vpack.c.b16 %v3892, %v3884
  %v5109 = vpack.c.b16 %v3893, %v3885
  %v5110 = vpack.c.b16 %v3902, %v3894
  %v5111 = vpack.c.b16 %v3903, %v3895
  %v5112 = vpack.c.b16 %v3904, %v3896
  %v5113 = vpack.c.b16 %v3905, %v3897
  %v5114 = vpack.c.b16 %v3906, %v3898
  %v5115 = vpack.c.b16 %v3907, %v3899
  %v5116 = vpack.c.b16 %v3908, %v3900
  %v5117 = vpack.c.b16 %v3909, %v3901
  %v5118 = vpack.c.b16 %v3918, %v3910
  %v5119 = vpack.c.b16 %v3919, %v3911
  %v5120 = vpack.c.b16 %v3920, %v3912
  %v5121 = vpack.c.b16 %v3921, %v3913
  %v5122 = vpack.c.b16 %v3922, %v3914
  %v5123 = vpack.c.b16 %v3923, %v3915
  %v5124 = vpack.c.b16 %v3924, %v3916
  %v5125 = vpack.c.b16 %v3925, %v3917
  %v5126 = vpack.c.b16 %v3934, %v3926
  %v5127 = vpack.c.b16 %v3935, %v3927
  %v5128 = vpack.c.b16 %v3936, %v3928
  %v5129 = vpack.c.b16 %v3937, %v3929
  %v5130 = vpack.c.b16 %v3938, %v3930
  %v5131 = vpack.c.b16 %v3939, %v3931
  %v5132 = vpack.c.b16 %v3940, %v3932
  %v5133 = vpack.c.b16 %v3941, %v3933
  %v5134 = vpack.c.b16 %v3950, %v3942
  %v5135 = vpack.c.b16 %v3951, %v3943
  %v5136 = vpack.c.b16 %v3952, %v3944
  %v5137 = vpack.c.b16 %v3953, %v3945
  %v5138 = vpack.c.b16 %v3954, %v3946
  %v5139 = vpack.c.b16 %v3955, %v3947
  %v5140 = vpack.c.b16 %v3956, %v3948
  %v5141 = vpack.c.b16 %v3957, %v3949
  %v5142 = vpack.c.b16 %v3966, %v3958
  %v5143 = vpack.c.b16 %v3967, %v3959
  %v5144 = vpack.c.b16 %v3968, %v3960
  %v5145 = vpack.c.b16 %v3969, %v3961
  %v5146 = vpack.c.b16 %v3970, %v3962
  %v5147 = vpack.c.b16 %v3971, %v3963
  %v5148 = vpack.c.b16 %v3972, %v3964
  %v5149 = vpack.c.b16 %v3973, %v3965
  %v5150 = vpack.c.b16 %v3982, %v3974
  %v5151 = vpack.c.b16 %v3983, %v3975
  %v5152 = vpack.c.b16 %v3984, %v3976
  %v5153 = vpack.c.b16 %v3985, %v3977
  %v5154 = vpack.c.b16 %v3986, %v3978
  %v5155 = vpack.c.b16 %v3987, %v3979
  %v5156 = vpack.c.b16 %v3988, %v3980
  %v5157 = vpack.c.b16 %v3989, %v3981
  %v5158 = vpack.c.b16 %v3998, %v3990
  %v5159 = vpack.c.b16 %v3999, %v3991
  %v5160 = vpack.c.b16 %v4000, %v3992
  %v5161 = vpack.c.b16 %v4001, %v3993
  %v5162 = vpack.c.b16 %v4002, %v3994
  %v5163 = vpack.c.b16 %v4003, %v3995
  %v5164 = vpack.c.b16 %v4004, %v3996
  %v5165 = vpack.c.b16 %v4005, %v3997
  %v5166 = vpack.c.b16 %v4014, %v4006
  %v5167 = vpack.c.b16 %v4015, %v4007
  %v5168 = vpack.c.b16 %v4016, %v4008
  %v5169 = vpack.c.b16 %v4017, %v4009
  %v5170 = vpack.c.b16 %v4018, %v4010
  %v5171 = vpack.c.b16 %v4019, %v4011
  %v5172 = vpack.c.b16 %v4020, %v4012
  %v5173 = vpack.c.b16 %v4021, %v4013
  %v5174 = vpack.c.b16 %v4030, %v4022
  %v5175 = vpack.c.b16 %v4031, %v4023
  %v5176 = vpack.c.b16 %v4032, %v4024
  %v5177 = vpack.c.b16 %v4033, %v4025
  %v5178 = vpack.c.b16 %v4034, %v4026
  %v5179 = vpack.c.b16 %v4035, %v4027
  %v5180 = vpack.c.b16 %v4036, %v4028
  %v5181 = vpack.c.b16 %v4037, %v4029
  %v5182 = vpack.c.b16 %v4046, %v4038
  %v5183 = vpack.c.b16 %v4047, %v4039
  %v5184 = vpack.c.b16 %v4048, %v4040
  %v5185 = vpack.c.b16 %v4049, %v4041
  %v5186 = vpack.c.b16 %v4050, %v4042
  %v5187 = vpack.c.b16 %v4051, %v4043
  %v5188 = vpack.c.b16 %v4052, %v4044
  %v5189 = vpack.c.b16 %v4053, %v4045
  %v5190 = vpack.c.b16 %v4062, %v4054
  %v5191 = vpack.c.b16 %v4063, %v4055
  %v5192 = vpack.c.b16 %v4064, %v4056
  %v5193 = vpack.c.b16 %v4065, %v4057
  %v5194 = vpack.c.b16 %v4066, %v4058
  %v5195 = vpack.c.b16 %v4067, %v4059
  %v5196 = vpack.c.b16 %v4068, %v4060
  %v5197 = vpack.c.b16 %v4069, %v4061
  %v5198 = vpack.c.b16 %v4078, %v4070
  %v5199 = vpack.c.b16 %v4079, %v4071
  %v5200 = vpack.c.b16 %v4080, %v4072
  %v5201 = vpack.c.b16 %v4081, %v4073
  %v5202 = vpack.c.b16 %v4082, %v4074
  %v5203 = vpack.c.b16 %v4083, %v4075
  %v5204 = vpack.c.b16 %v4084, %v4076
  %v5205 = vpack.c.b16 %v4085, %v4077
  %v5206 = vpack.c.b16 %v4094, %v4086
  %v5207 = vpack.c.b16 %v4095, %v4087
  %v5208 = vpack.c.b16 %v4096, %v4088
  %v5209 = vpack.c.b16 %v4097, %v4089
  %v5210 = vpack.c.b16 %v4098, %v4090
  %v5211 = vpack.c.b16 %v4099, %v4091
  %v5212 = vpack.c.b16 %v4100, %v4092
  %v5213 = vpack.c.b16 %v4101, %v4093
  %v5214 = vpack.c.b16 %v4110, %v4102
  %v5215 = vpack.c.b16 %v4111, %v4103
  %v5216 = vpack.c.b16 %v4112, %v4104
  %v5217 = vpack.c.b16 %v4113, %v4105
  %v5218 = vpack.c.b16 %v4114, %v4106
  %v5219 = vpack.c.b16 %v4115, %v4107
  %v5220 = vpack.c.b16 %v4116, %v4108
  %v5221 = vpack.c.b16 %v4117, %v4109
  %v5222 = vpack.c.b16 %v4126, %v4118
  %v5223 = vpack.c.b16 %v4127, %v4119
  %v5224 = vpack.c.b16 %v4128, %v4120
  %v5225 = vpack.c.b16 %v4129, %v4121
  %v5226 = vpack.c.b16 %v4130, %v4122
  %v5227 = vpack.c.b16 %v4131, %v4123
  %v5228 = vpack.c.b16 %v4132, %v4124
  %v5229 = vpack.c.b16 %v4133, %v4125
  %v5230 = vpack.c.b16 %v4142, %v4134
  %v5231 = vpack.c.b16 %v4143, %v4135
  %v5232 = vpack.c.b16 %v4144, %v4136
  %v5233 = vpack.c.b16 %v4145, %v4137
  %v5234 = vpack.c.b16 %v4146, %v4138
  %v5235 = vpack.c.b16 %v4147, %v4139
  %v5236 = vpack.c.b16 %v4148, %v4140
  %v5237 = vpack.c.b16 %v4149, %v4141
  %v5238 = vpack.c.b16 %v4158, %v4150
  %v5239 = vpack.c.b16 %v4159, %v4151
  %v5240 = vpack.c.b16 %v4160, %v4152
  %v5241 = vpack.c.b16 %v4161, %v4153
  %v5242 = vpack.c.b16 %v4162, %v4154
  %v5243 = vpack.c.b16 %v4163, %v4155
  %v5244 = vpack.c.b16 %v4164, %v4156
  %v5245 = vpack.c.b16 %v4165, %v4157
  %v5246 = vpack.c.b16 %v4174, %v4166
  %v5247 = vpack.c.b16 %v4175, %v4167
  %v5248 = vpack.c.b16 %v4176, %v4168
  %v5249 = vpack.c.b16 %v4177, %v4169
  %v5250 = vpack.c.b16 %v4178, %v4170
  %v5251 = vpack.c.b16 %v4179, %v4171
  %v5252 = vpack.c.b16 %v4180, %v4172
  %v5253 = vpack.c.b16 %v4181, %v4173
  %v5254 = vpack.c.b16 %v4190, %v4182
  %v5255 = vpack.c.b16 %v4191, %v4183
  %v5256 = vpack.c.b16 %v4192, %v4184
  %v5257 = vpack.c.b16 %v4193, %v4185
  %v5258 = vpack.c.b16 %v4194, %v4186
  %v5259 = vpack.c.b16 %v4195, %v4187
  %v5260 = vpack.c.b16 %v4196, %v4188
  %v5261 = vpack.c.b16 %v4197, %v4189
  %v5262 = vpack.c.b16 %v4206, %v4198
  %v5263 = vpack.c.b16 %v4207, %v4199
  %v5264 = vpack.c.b16 %v4208, %v4200
  %v5265 = vpack.c.b16 %v4209, %v4201
  %v5266 = vpack.c.b16 %v4210, %v4202
  %v5267 = vpack.c.b16 %v4211, %v4203
  %v5268 = vpack.c.b16 %v4212, %v4204
  %v5269 = vpack.c.b16 %v4213, %v4205
  %v5270 = vpack.c.b16 %v4222, %v4214
  %v5271 = vpack.c.b16 %v4223, %v4215
  %v5272 = vpack.c.b16 %v4224, %v4216
  %v5273 = vpack.c.b16 %v4225, %v4217
  %v5274 = vpack.c.b16 %v4226, %v4218
  %v5275 = vpack.c.b16 %v4227, %v4219
  %v5276 = vpack.c.b16 %v4228, %v4220
  %v5277 = vpack.c.b16 %v4229, %v4221
  %v5278 = vpack.c.b16 %v4238, %v4230
  %v5279 = vpack.c.b16 %v4239, %v4231
  %v5280 = vpack.c.b16 %v4240, %v4232
  %v5281 = vpack.c.b16 %v4241, %v4233
  %v5282 = vpack.c.b16 %v4242, %v4234
  %v5283 = vpack.c.b16 %v4243, %v4235
  %v5284 = vpack.c.b16 %v4244, %v4236
  %v5285 = vpack.c.b16 %v4245, %v4237
  %v5286 = vpack.c.b16 %v4254, %v4246
  %v5287 = vpack.c.b16 %v4255, %v4247
  %v5288 = vpack.c.b16 %v4256, %v4248
  %v5289 = vpack.c.b16 %v4257, %v4249
  %v5290 = vpack.c.b16 %v4258, %v4250
  %v5291 = vpack.c.b16 %v4259, %v4251
  %v5292 = vpack.c.b16 %v4260, %v4252
  %v5293 = vpack.c.b16 %v4261, %v4253
  %v5294 = vpack.c.b16 %v4270, %v4262
  %v5295 = vpack.c.b16 %v4271, %v4263
  %v5296 = vpack.c.b16 %v4272, %v4264
  %v5297 = vpack.c.b16 %v4273, %v4265
  %v5298 = vpack.c.b16 %v4274, %v4266
  %v5299 = vpack.c.b16 %v4275, %v4267
  %v5300 = vpack.c.b16 %v4276, %v4268
  %v5301 = vpack.c.b16 %v4277, %v4269
  %6326 = vmatprep.subr.bf16.mxu0 %v4279
  %6327 = vmatpush1.bf16.msra.mxu0 %v4278
  %6328 = vmatprep.subr.bf16.mxu0 %v4287
  %6329 = vmatpush1.bf16.msra.mxu0 %v4286
  %6330 = vmatprep.subr.bf16.mxu0 %v4295
  %6331 = vmatpush1.bf16.msra.mxu0 %v4294
  %6332 = vmatprep.subr.bf16.mxu0 %v4303
  %6333 = vmatpush1.bf16.msra.mxu0 %v4302
  %6334 = vmatprep.subr.bf16.mxu0 %v4311
  %6335 = vmatpush1.bf16.msra.mxu0 %v4310
  %6336 = vmatprep.subr.bf16.mxu0 %v4319
  %6337 = vmatpush1.bf16.msra.mxu0 %v4318
  %6338 = vmatprep.subr.bf16.mxu0 %v4327
  %6339 = vmatpush1.bf16.msra.mxu0 %v4326
  %6340 = vmatprep.subr.bf16.mxu0 %v4335
  %6341 = vmatpush1.bf16.msra.mxu0 %v4334
  %6342 = vmatprep.subr.bf16.mxu0 %v4343
  %6343 = vmatpush1.bf16.msra.mxu0 %v4342
  %6344 = vmatprep.subr.bf16.mxu0 %v4351
  %6345 = vmatpush1.bf16.msra.mxu0 %v4350
  %6346 = vmatprep.subr.bf16.mxu0 %v4359
  %6347 = vmatpush1.bf16.msra.mxu0 %v4358
  %6348 = vmatprep.subr.bf16.mxu0 %v4367
  %6349 = vmatpush1.bf16.msra.mxu0 %v4366
  %6350 = vmatprep.subr.bf16.mxu0 %v4375
  %6351 = vmatpush1.bf16.msra.mxu0 %v4374
  %6352 = vmatprep.subr.bf16.mxu0 %v4383
  %6353 = vmatpush1.bf16.msra.mxu0 %v4382
  %6354 = vmatprep.subr.bf16.mxu0 %v4391
  %6355 = vmatpush1.bf16.msra.mxu0 %v4390
  %6356 = vmatprep.subr.bf16.mxu0 %v4399
  %6357 = vmatpush1.bf16.msra.mxu0 %v4398
  %6358 = vmatprep.mubr.bf16.mxu0 %v1129
  %6359 = vmatmul.mubr.bf16.gmra.mrb[0].mxu0 %v1115
  %v6360 = vpop.f32.mrb[0].mxu0
  %v6361 = vadd.f32 %v1053, %v6360
  %v6362 = vpop.f32.mrb[0].mxu0
  %v6363 = vadd.f32 %v1057, %v6362
  %v6364 = vpop.f32.mrb[0].mxu0
  %v6365 = vpop.f32.mrb[0].mxu0
  %6366 = vdwg.mxu0
  %6367 = vmatprep.subr.bf16.mxu0 %v4407
  %6368 = vmatpush1.bf16.msra.mxu0 %v4406
  %6369 = vmatprep.subr.bf16.mxu0 %v4415
  %6370 = vmatpush1.bf16.msra.mxu0 %v4414
  %6371 = vmatprep.subr.bf16.mxu0 %v4423
  %6372 = vmatpush1.bf16.msra.mxu0 %v4422
  %6373 = vmatprep.subr.bf16.mxu0 %v4431
  %6374 = vmatpush1.bf16.msra.mxu0 %v4430
  %6375 = vmatprep.subr.bf16.mxu0 %v4439
  %6376 = vmatpush1.bf16.msra.mxu0 %v4438
  %6377 = vmatprep.subr.bf16.mxu0 %v4447
  %6378 = vmatpush1.bf16.msra.mxu0 %v4446
  %6379 = vmatprep.subr.bf16.mxu0 %v4455
  %6380 = vmatpush1.bf16.msra.mxu0 %v4454
  %6381 = vmatprep.subr.bf16.mxu0 %v4463
  %6382 = vmatpush1.bf16.msra.mxu0 %v4462
  %6383 = vmatprep.subr.bf16.mxu0 %v4471
  %6384 = vmatpush1.bf16.msra.mxu0 %v4470
  %6385 = vmatprep.subr.bf16.mxu0 %v4479
  %6386 = vmatpush1.bf16.msra.mxu0 %v4478
  %6387 = vmatprep.subr.bf16.mxu0 %v4487
  %6388 = vmatpush1.bf16.msra.mxu0 %v4486
  %6389 = vmatprep.subr.bf16.mxu0 %v4495
  %6390 = vmatpush1.bf16.msra.mxu0 %v4494
  %6391 = vmatprep.subr.bf16.mxu0 %v4503
  %6392 = vmatpush1.bf16.msra.mxu0 %v4502
  %6393 = vmatprep.subr.bf16.mxu0 %v4511
  %6394 = vmatpush1.bf16.msra.mxu0 %v4510
  %6395 = vmatprep.subr.bf16.mxu0 %v4519
  %6396 = vmatpush1.bf16.msra.mxu0 %v4518
  %6397 = vmatprep.subr.bf16.mxu0 %v4527
  %6398 = vmatpush1.bf16.msra.mxu0 %v4526
  %6399 = vmatprep.mubr.bf16.mxu0 %v1139
  %6400 = vmatmul.mubr.bf16.gmra.mrb[0].mxu0 %v1137
  %v6401 = vpop.f32.mrb[0].mxu0
  %v6402 = vadd.f32 %v6361, %v6401
  %v6403 = vpop.f32.mrb[0].mxu0
  %v6404 = vadd.f32 %v6363, %v6403
  %v6405 = vpop.f32.mrb[0].mxu0
  %v6406 = vpop.f32.mrb[0].mxu0
  %6407 = vdwg.mxu0
  %6408 = vmatprep.subr.bf16.mxu0 %v4535
  %6409 = vmatpush1.bf16.msra.mxu0 %v4534
  %6410 = vmatprep.subr.bf16.mxu0 %v4543
  %6411 = vmatpush1.bf16.msra.mxu0 %v4542
  %6412 = vmatprep.subr.bf16.mxu0 %v4551
  %6413 = vmatpush1.bf16.msra.mxu0 %v4550
  %6414 = vmatprep.subr.bf16.mxu0 %v4559
  %6415 = vmatpush1.bf16.msra.mxu0 %v4558
  %6416 = vmatprep.subr.bf16.mxu0 %v4567
  %6417 = vmatpush1.bf16.msra.mxu0 %v4566
  %6418 = vmatprep.subr.bf16.mxu0 %v4575
  %6419 = vmatpush1.bf16.msra.mxu0 %v4574
  %6420 = vmatprep.subr.bf16.mxu0 %v4583
  %6421 = vmatpush1.bf16.msra.mxu0 %v4582
  %6422 = vmatprep.subr.bf16.mxu0 %v4591
  %6423 = vmatpush1.bf16.msra.mxu0 %v4590
  %6424 = vmatprep.subr.bf16.mxu0 %v4599
  %6425 = vmatpush1.bf16.msra.mxu0 %v4598
  %6426 = vmatprep.subr.bf16.mxu0 %v4607
  %6427 = vmatpush1.bf16.msra.mxu0 %v4606
  %6428 = vmatprep.subr.bf16.mxu0 %v4615
  %6429 = vmatpush1.bf16.msra.mxu0 %v4614
  %6430 = vmatprep.subr.bf16.mxu0 %v4623
  %6431 = vmatpush1.bf16.msra.mxu0 %v4622
  %6432 = vmatprep.subr.bf16.mxu0 %v4631
  %6433 = vmatpush1.bf16.msra.mxu0 %v4630
  %6434 = vmatprep.subr.bf16.mxu0 %v4639
  %6435 = vmatpush1.bf16.msra.mxu0 %v4638
  %6436 = vmatprep.subr.bf16.mxu0 %v4647
  %6437 = vmatpush1.bf16.msra.mxu0 %v4646
  %6438 = vmatprep.subr.bf16.mxu0 %v4655
  %6439 = vmatpush1.bf16.msra.mxu0 %v4654
  %6440 = vmatprep.mubr.bf16.mxu0 %v1136
  %6441 = vmatmul.mubr.bf16.gmra.mrb[0].mxu0 %v1122
  %v6442 = vpop.f32.mrb[0].mxu0
  %v6443 = vadd.f32 %v6402, %v6442
  %v6444 = vpop.f32.mrb[0].mxu0
  %v6445 = vadd.f32 %v6404, %v6444
  %v6446 = vpop.f32.mrb[0].mxu0
  %v6447 = vpop.f32.mrb[0].mxu0
  %6448 = vdwg.mxu0
  %6449 = vmatprep.subr.bf16.mxu0 %v4663
  %6450 = vmatpush1.bf16.msra.mxu0 %v4662
  %6451 = vmatprep.subr.bf16.mxu0 %v4671
  %6452 = vmatpush1.bf16.msra.mxu0 %v4670
  %6453 = vmatprep.subr.bf16.mxu0 %v4679
  %6454 = vmatpush1.bf16.msra.mxu0 %v4678
  %6455 = vmatprep.subr.bf16.mxu0 %v4687
  %6456 = vmatpush1.bf16.msra.mxu0 %v4686
  %6457 = vmatprep.subr.bf16.mxu0 %v4695
  %6458 = vmatpush1.bf16.msra.mxu0 %v4694
  %6459 = vmatprep.subr.bf16.mxu0 %v4703
  %6460 = vmatpush1.bf16.msra.mxu0 %v4702
  %6461 = vmatprep.subr.bf16.mxu0 %v4711
  %6462 = vmatpush1.bf16.msra.mxu0 %v4710
  %6463 = vmatprep.subr.bf16.mxu0 %v4719
  %6464 = vmatpush1.bf16.msra.mxu0 %v4718
  %6465 = vmatprep.subr.bf16.mxu0 %v4727
  %6466 = vmatpush1.bf16.msra.mxu0 %v4726
  %6467 = vmatprep.subr.bf16.mxu0 %v4735
  %6468 = vmatpush1.bf16.msra.mxu0 %v4734
  %6469 = vmatprep.subr.bf16.mxu0 %v4743
  %6470 = vmatpush1.bf16.msra.mxu0 %v4742
  %6471 = vmatprep.subr.bf16.mxu0 %v4751
  %6472 = vmatpush1.bf16.msra.mxu0 %v4750
  %6473 = vmatprep.subr.bf16.mxu0 %v4759
  %6474 = vmatpush1.bf16.msra.mxu0 %v4758
  %6475 = vmatprep.subr.bf16.mxu0 %v4767
  %6476 = vmatpush1.bf16.msra.mxu0 %v4766
  %6477 = vmatprep.subr.bf16.mxu0 %v4775
  %6478 = vmatpush1.bf16.msra.mxu0 %v4774
  %6479 = vmatprep.subr.bf16.mxu0 %v4783
  %6480 = vmatpush1.bf16.msra.mxu0 %v4782
  %6481 = vmatprep.mubr.bf16.mxu0 %v1140
  %6482 = vmatmul.mubr.bf16.gmra.mrb[0].mxu0 %v1138
  %v6483 = vpop.f32.mrb[0].mxu0
  %v6484 = vadd.f32 %v6443, %v6483
  %v6485 = vpop.f32.mrb[0].mxu0
  %v6486 = vadd.f32 %v6445, %v6485
  %v6487 = vpop.f32.mrb[0].mxu0
  %v6488 = vpop.f32.mrb[0].mxu0
  %6489 = vdwg.mxu0
  %6490 = vmatprep.subr.bf16.mxu0 %v4791
  %6491 = vmatpush1.bf16.msra.mxu0 %v4790
  %6492 = vmatprep.subr.bf16.mxu0 %v4799
  %6493 = vmatpush1.bf16.msra.mxu0 %v4798
  %6494 = vmatprep.subr.bf16.mxu0 %v4807
  %6495 = vmatpush1.bf16.msra.mxu0 %v4806
  %6496 = vmatprep.subr.bf16.mxu0 %v4815
  %6497 = vmatpush1.bf16.msra.mxu0 %v4814
  %6498 = vmatprep.subr.bf16.mxu0 %v4823
  %6499 = vmatpush1.bf16.msra.mxu0 %v4822
  %6500 = vmatprep.subr.bf16.mxu0 %v4831
  %6501 = vmatpush1.bf16.msra.mxu0 %v4830
  %6502 = vmatprep.subr.bf16.mxu0 %v4839
  %6503 = vmatpush1.bf16.msra.mxu0 %v4838
  %6504 = vmatprep.subr.bf16.mxu0 %v4847
  %6505 = vmatpush1.bf16.msra.mxu0 %v4846
  %6506 = vmatprep.subr.bf16.mxu0 %v4855
  %6507 = vmatpush1.bf16.msra.mxu0 %v4854
  %6508 = vmatprep.subr.bf16.mxu0 %v4863
  %6509 = vmatpush1.bf16.msra.mxu0 %v4862
  %6510 = vmatprep.subr.bf16.mxu0 %v4871
  %6511 = vmatpush1.bf16.msra.mxu0 %v4870
  %6512 = vmatprep.subr.bf16.mxu0 %v4879
  %6513 = vmatpush1.bf16.msra.mxu0 %v4878
  %6514 = vmatprep.subr.bf16.mxu0 %v4887
  %6515 = vmatpush1.bf16.msra.mxu0 %v4886
  %6516 = vmatprep.subr.bf16.mxu0 %v4895
  %6517 = vmatpush1.bf16.msra.mxu0 %v4894
  %6518 = vmatprep.subr.bf16.mxu0 %v4903
  %6519 = vmatpush1.bf16.msra.mxu0 %v4902
  %6520 = vmatprep.subr.bf16.mxu0 %v4911
  %6521 = vmatpush1.bf16.msra.mxu0 %v4910
  %6522 = vmatprep.mubr.bf16.mxu0 %v1178
  %6523 = vmatmul.mubr.bf16.gmra.mrb[0].mxu0 %v1164
  %v6524 = vpop.f32.mrb[0].mxu0
  %v6525 = vadd.f32 %v6484, %v6524
  %v6526 = vpop.f32.mrb[0].mxu0
  %v6527 = vadd.f32 %v6486, %v6526
  %v6528 = vpop.f32.mrb[0].mxu0
  %v6529 = vpop.f32.mrb[0].mxu0
  %6530 = vdwg.mxu0
  %6531 = vmatprep.subr.bf16.mxu0 %v4919
  %6532 = vmatpush1.bf16.msra.mxu0 %v4918
  %6533 = vmatprep.subr.bf16.mxu0 %v4927
  %6534 = vmatpush1.bf16.msra.mxu0 %v4926
  %6535 = vmatprep.subr.bf16.mxu0 %v4935
  %6536 = vmatpush1.bf16.msra.mxu0 %v4934
  %6537 = vmatprep.subr.bf16.mxu0 %v4943
  %6538 = vmatpush1.bf16.msra.mxu0 %v4942
  %6539 = vmatprep.subr.bf16.mxu0 %v4951
  %6540 = vmatpush1.bf16.msra.mxu0 %v4950
  %6541 = vmatprep.subr.bf16.mxu0 %v4959
  %6542 = vmatpush1.bf16.msra.mxu0 %v4958
  %6543 = vmatprep.subr.bf16.mxu0 %v4967
  %6544 = vmatpush1.bf16.msra.mxu0 %v4966
  %6545 = vmatprep.subr.bf16.mxu0 %v4975
  %6546 = vmatpush1.bf16.msra.mxu0 %v4974
  %6547 = vmatprep.subr.bf16.mxu0 %v4983
  %6548 = vmatpush1.bf16.msra.mxu0 %v4982
  %6549 = vmatprep.subr.bf16.mxu0 %v4991
  %6550 = vmatpush1.bf16.msra.mxu0 %v4990
  %6551 = vmatprep.subr.bf16.mxu0 %v4999
  %6552 = vmatpush1.bf16.msra.mxu0 %v4998
  %6553 = vmatprep.subr.bf16.mxu0 %v5007
  %6554 = vmatpush1.bf16.msra.mxu0 %v5006
  %6555 = vmatprep.subr.bf16.mxu0 %v5015
  %6556 = vmatpush1.bf16.msra.mxu0 %v5014
  %6557 = vmatprep.subr.bf16.mxu0 %v5023
  %6558 = vmatpush1.bf16.msra.mxu0 %v5022
  %6559 = vmatprep.subr.bf16.mxu0 %v5031
  %6560 = vmatpush1.bf16.msra.mxu0 %v5030
  %6561 = vmatprep.subr.bf16.mxu0 %v5039
  %6562 = vmatpush1.bf16.msra.mxu0 %v5038
  %6563 = vmatprep.mubr.bf16.mxu0 %v1188
  %6564 = vmatmul.mubr.bf16.gmra.mrb[0].mxu0 %v1186
  %v6565 = vpop.f32.mrb[0].mxu0
  %v6566 = vadd.f32 %v6525, %v6565
  %v6567 = vpop.f32.mrb[0].mxu0
  %v6568 = vadd.f32 %v6527, %v6567
  %v6569 = vpop.f32.mrb[0].mxu0
  %v6570 = vpop.f32.mrb[0].mxu0
  %6571 = vdwg.mxu0
  %6572 = vmatprep.subr.bf16.mxu0 %v5047
  %6573 = vmatpush1.bf16.msra.mxu0 %v5046
  %6574 = vmatprep.subr.bf16.mxu0 %v5055
  %6575 = vmatpush1.bf16.msra.mxu0 %v5054
  %6576 = vmatprep.subr.bf16.mxu0 %v5063
  %6577 = vmatpush1.bf16.msra.mxu0 %v5062
  %6578 = vmatprep.subr.bf16.mxu0 %v5071
  %6579 = vmatpush1.bf16.msra.mxu0 %v5070
  %6580 = vmatprep.subr.bf16.mxu0 %v5079
  %6581 = vmatpush1.bf16.msra.mxu0 %v5078
  %6582 = vmatprep.subr.bf16.mxu0 %v5087
  %6583 = vmatpush1.bf16.msra.mxu0 %v5086
  %6584 = vmatprep.subr.bf16.mxu0 %v5095
  %6585 = vmatpush1.bf16.msra.mxu0 %v5094
  %6586 = vmatprep.subr.bf16.mxu0 %v5103
  %6587 = vmatpush1.bf16.msra.mxu0 %v5102
  %6588 = vmatprep.subr.bf16.mxu0 %v5111
  %6589 = vmatpush1.bf16.msra.mxu0 %v5110
  %6590 = vmatprep.subr.bf16.mxu0 %v5119
  %6591 = vmatpush1.bf16.msra.mxu0 %v5118
  %6592 = vmatprep.subr.bf16.mxu0 %v5127
  %6593 = vmatpush1.bf16.msra.mxu0 %v5126
  %6594 = vmatprep.subr.bf16.mxu0 %v5135
  %6595 = vmatpush1.bf16.msra.mxu0 %v5134
  %6596 = vmatprep.subr.bf16.mxu0 %v5143
  %6597 = vmatpush1.bf16.msra.mxu0 %v5142
  %6598 = vmatprep.subr.bf16.mxu0 %v5151
  %6599 = vmatpush1.bf16.msra.mxu0 %v5150
  %6600 = vmatprep.subr.bf16.mxu0 %v5159
  %6601 = vmatpush1.bf16.msra.mxu0 %v5158
  %6602 = vmatprep.subr.bf16.mxu0 %v5167
  %6603 = vmatpush1.bf16.msra.mxu0 %v5166
  %6604 = vmatprep.mubr.bf16.mxu0 %v1185
  %6605 = vmatmul.mubr.bf16.gmra.mrb[0].mxu0 %v1171
  %v6606 = vpop.f32.mrb[0].mxu0
  %v6607 = vadd.f32 %v6566, %v6606
  %v6608 = vpop.f32.mrb[0].mxu0
  %v6609 = vadd.f32 %v6568, %v6608
  %v6610 = vpop.f32.mrb[0].mxu0
  %v6611 = vpop.f32.mrb[0].mxu0
  %6612 = vdwg.mxu0
  %6613 = vmatprep.subr.bf16.mxu0 %v5175
  %6614 = vmatpush1.bf16.msra.mxu0 %v5174
  %6615 = vmatprep.subr.bf16.mxu0 %v5183
  %6616 = vmatpush1.bf16.msra.mxu0 %v5182
  %6617 = vmatprep.subr.bf16.mxu0 %v5191
  %6618 = vmatpush1.bf16.msra.mxu0 %v5190
  %6619 = vmatprep.subr.bf16.mxu0 %v5199
  %6620 = vmatpush1.bf16.msra.mxu0 %v5198
  %6621 = vmatprep.subr.bf16.mxu0 %v5207
  %6622 = vmatpush1.bf16.msra.mxu0 %v5206
  %6623 = vmatprep.subr.bf16.mxu0 %v5215
  %6624 = vmatpush1.bf16.msra.mxu0 %v5214
  %6625 = vmatprep.subr.bf16.mxu0 %v5223
  %6626 = vmatpush1.bf16.msra.mxu0 %v5222
  %6627 = vmatprep.subr.bf16.mxu0 %v5231
  %6628 = vmatpush1.bf16.msra.mxu0 %v5230
  %6629 = vmatprep.subr.bf16.mxu0 %v5239
  %6630 = vmatpush1.bf16.msra.mxu0 %v5238
  %6631 = vmatprep.subr.bf16.mxu0 %v5247
  %6632 = vmatpush1.bf16.msra.mxu0 %v5246
  %6633 = vmatprep.subr.bf16.mxu0 %v5255
  %6634 = vmatpush1.bf16.msra.mxu0 %v5254
  %6635 = vmatprep.subr.bf16.mxu0 %v5263
  %6636 = vmatpush1.bf16.msra.mxu0 %v5262
  %6637 = vmatprep.subr.bf16.mxu0 %v5271
  %6638 = vmatpush1.bf16.msra.mxu0 %v5270
  %6639 = vmatprep.subr.bf16.mxu0 %v5279
  %6640 = vmatpush1.bf16.msra.mxu0 %v5278
  %6641 = vmatprep.subr.bf16.mxu0 %v5287
  %6642 = vmatpush1.bf16.msra.mxu0 %v5286
  %6643 = vmatprep.subr.bf16.mxu0 %v5295
  %6644 = vmatpush1.bf16.msra.mxu0 %v5294
  %6645 = vmatprep.mubr.bf16.mxu0 %v1189
  %6646 = vmatmul.mubr.bf16.gmra.mrb[0].mxu0 %v1187
  %v6647 = vpop.f32.mrb[0].mxu0
  %v6648 = vadd.f32 %v6607, %v6647
  %v6649 = vpop.f32.mrb[0].mxu0
  %v6650 = vadd.f32 %v6609, %v6649
  %v6651 = vpop.f32.mrb[0].mxu0
  %v6652 = vpop.f32.mrb[0].mxu0
  %6653 = vdwg.mxu0
  %6654 = vmatprep.subr.bf16.mxu0 %v4281
  %6655 = vmatpush1.bf16.msra.mxu0 %v4280
  %6656 = vmatprep.subr.bf16.mxu0 %v4289
  %6657 = vmatpush1.bf16.msra.mxu0 %v4288
  %6658 = vmatprep.subr.bf16.mxu0 %v4297
  %6659 = vmatpush1.bf16.msra.mxu0 %v4296
  %6660 = vmatprep.subr.bf16.mxu0 %v4305
  %6661 = vmatpush1.bf16.msra.mxu0 %v4304
  %6662 = vmatprep.subr.bf16.mxu0 %v4313
  %6663 = vmatpush1.bf16.msra.mxu0 %v4312
  %6664 = vmatprep.subr.bf16.mxu0 %v4321
  %6665 = vmatpush1.bf16.msra.mxu0 %v4320
  %6666 = vmatprep.subr.bf16.mxu0 %v4329
  %6667 = vmatpush1.bf16.msra.mxu0 %v4328
  %6668 = vmatprep.subr.bf16.mxu0 %v4337
  %6669 = vmatpush1.bf16.msra.mxu0 %v4336
  %6670 = vmatprep.subr.bf16.mxu0 %v4345
  %6671 = vmatpush1.bf16.msra.mxu0 %v4344
  %6672 = vmatprep.subr.bf16.mxu0 %v4353
  %6673 = vmatpush1.bf16.msra.mxu0 %v4352
  %6674 = vmatprep.subr.bf16.mxu0 %v4361
  %6675 = vmatpush1.bf16.msra.mxu0 %v4360
  %6676 = vmatprep.subr.bf16.mxu0 %v4369
  %6677 = vmatpush1.bf16.msra.mxu0 %v4368
  %6678 = vmatprep.subr.bf16.mxu0 %v4377
  %6679 = vmatpush1.bf16.msra.mxu0 %v4376
  %6680 = vmatprep.subr.bf16.mxu0 %v4385
  %6681 = vmatpush1.bf16.msra.mxu0 %v4384
  %6682 = vmatprep.subr.bf16.mxu0 %v4393
  %6683 = vmatpush1.bf16.msra.mxu0 %v4392
  %6684 = vmatprep.subr.bf16.mxu0 %v4401
  %6685 = vmatpush1.bf16.msra.mxu0 %v4400
  %6686 = vmatprep.mubr.bf16.mxu0 %v1129
  %6687 = vmatmul.mubr.bf16.gmra.mrb[0].mxu0 %v1115
  %v6688 = vpop.f32.mrb[0].mxu0
  %v6689 = vadd.f32 %v1061, %v6688
  %v6690 = vpop.f32.mrb[0].mxu0
  %v6691 = vadd.f32 %v1065, %v6690
  %v6692 = vpop.f32.mrb[0].mxu0
  %v6693 = vpop.f32.mrb[0].mxu0
  %6694 = vdwg.mxu0
  %6695 = vmatprep.subr.bf16.mxu0 %v4409
  %6696 = vmatpush1.bf16.msra.mxu0 %v4408
  %6697 = vmatprep.subr.bf16.mxu0 %v4417
  %6698 = vmatpush1.bf16.msra.mxu0 %v4416
  %6699 = vmatprep.subr.bf16.mxu0 %v4425
  %6700 = vmatpush1.bf16.msra.mxu0 %v4424
  %6701 = vmatprep.subr.bf16.mxu0 %v4433
  %6702 = vmatpush1.bf16.msra.mxu0 %v4432
  %6703 = vmatprep.subr.bf16.mxu0 %v4441
  %6704 = vmatpush1.bf16.msra.mxu0 %v4440
  %6705 = vmatprep.subr.bf16.mxu0 %v4449
  %6706 = vmatpush1.bf16.msra.mxu0 %v4448
  %6707 = vmatprep.subr.bf16.mxu0 %v4457
  %6708 = vmatpush1.bf16.msra.mxu0 %v4456
  %6709 = vmatprep.subr.bf16.mxu0 %v4465
  %6710 = vmatpush1.bf16.msra.mxu0 %v4464
  %6711 = vmatprep.subr.bf16.mxu0 %v4473
  %6712 = vmatpush1.bf16.msra.mxu0 %v4472
  %6713 = vmatprep.subr.bf16.mxu0 %v4481
  %6714 = vmatpush1.bf16.msra.mxu0 %v4480
  %6715 = vmatprep.subr.bf16.mxu0 %v4489
  %6716 = vmatpush1.bf16.msra.mxu0 %v4488
  %6717 = vmatprep.subr.bf16.mxu0 %v4497
  %6718 = vmatpush1.bf16.msra.mxu0 %v4496
  %6719 = vmatprep.subr.bf16.mxu0 %v4505
  %6720 = vmatpush1.bf16.msra.mxu0 %v4504
  %6721 = vmatprep.subr.bf16.mxu0 %v4513
  %6722 = vmatpush1.bf16.msra.mxu0 %v4512
  %6723 = vmatprep.subr.bf16.mxu0 %v4521
  %6724 = vmatpush1.bf16.msra.mxu0 %v4520
  %6725 = vmatprep.subr.bf16.mxu0 %v4529
  %6726 = vmatpush1.bf16.msra.mxu0 %v4528
  %6727 = vmatprep.mubr.bf16.mxu0 %v1139
  %6728 = vmatmul.mubr.bf16.gmra.mrb[0].mxu0 %v1137
  %v6729 = vpop.f32.mrb[0].mxu0
  %v6730 = vadd.f32 %v6689, %v6729
  %v6731 = vpop.f32.mrb[0].mxu0
  %v6732 = vadd.f32 %v6691, %v6731
  %v6733 = vpop.f32.mrb[0].mxu0
  %v6734 = vpop.f32.mrb[0].mxu0
  %6735 = vdwg.mxu0
  %6736 = vmatprep.subr.bf16.mxu0 %v4537
  %6737 = vmatpush1.bf16.msra.mxu0 %v4536
  %6738 = vmatprep.subr.bf16.mxu0 %v4545
  %6739 = vmatpush1.bf16.msra.mxu0 %v4544
  %6740 = vmatprep.subr.bf16.mxu0 %v4553
  %6741 = vmatpush1.bf16.msra.mxu0 %v4552
  %6742 = vmatprep.subr.bf16.mxu0 %v4561
  %6743 = vmatpush1.bf16.msra.mxu0 %v4560
  %6744 = vmatprep.subr.bf16.mxu0 %v4569
  %6745 = vmatpush1.bf16.msra.mxu0 %v4568
  %6746 = vmatprep.subr.bf16.mxu0 %v4577
  %6747 = vmatpush1.bf16.msra.mxu0 %v4576
  %6748 = vmatprep.subr.bf16.mxu0 %v4585
  %6749 = vmatpush1.bf16.msra.mxu0 %v4584
  %6750 = vmatprep.subr.bf16.mxu0 %v4593
  %6751 = vmatpush1.bf16.msra.mxu0 %v4592
  %6752 = vmatprep.subr.bf16.mxu0 %v4601
  %6753 = vmatpush1.bf16.msra.mxu0 %v4600
  %6754 = vmatprep.subr.bf16.mxu0 %v4609
  %6755 = vmatpush1.bf16.msra.mxu0 %v4608
  %6756 = vmatprep.subr.bf16.mxu0 %v4617
  %6757 = vmatpush1.bf16.msra.mxu0 %v4616
  %6758 = vmatprep.subr.bf16.mxu0 %v4625
  %6759 = vmatpush1.bf16.msra.mxu0 %v4624
  %6760 = vmatprep.subr.bf16.mxu0 %v4633
  %6761 = vmatpush1.bf16.msra.mxu0 %v4632
  %6762 = vmatprep.subr.bf16.mxu0 %v4641
  %6763 = vmatpush1.bf16.msra.mxu0 %v4640
  %6764 = vmatprep.subr.bf16.mxu0 %v4649
  %6765 = vmatpush1.bf16.msra.mxu0 %v4648
  %6766 = vmatprep.subr.bf16.mxu0 %v4657
  %6767 = vmatpush1.bf16.msra.mxu0 %v4656
  %6768 = vmatprep.mubr.bf16.mxu0 %v1136
  %6769 = vmatmul.mubr.bf16.gmra.mrb[0].mxu0 %v1122
  %v6770 = vpop.f32.mrb[0].mxu0
  %v6771 = vadd.f32 %v6730, %v6770
  %v6772 = vpop.f32.mrb[0].mxu0
  %v6773 = vadd.f32 %v6732, %v6772
  %v6774 = vpop.f32.mrb[0].mxu0
  %v6775 = vpop.f32.mrb[0].mxu0
  %6776 = vdwg.mxu0
  %6777 = vmatprep.subr.bf16.mxu0 %v4665
  %6778 = vmatpush1.bf16.msra.mxu0 %v4664
  %6779 = vmatprep.subr.bf16.mxu0 %v4673
  %6780 = vmatpush1.bf16.msra.mxu0 %v4672
  %6781 = vmatprep.subr.bf16.mxu0 %v4681
  %6782 = vmatpush1.bf16.msra.mxu0 %v4680
  %6783 = vmatprep.subr.bf16.mxu0 %v4689
  %6784 = vmatpush1.bf16.msra.mxu0 %v4688
  %6785 = vmatprep.subr.bf16.mxu0 %v4697
  %6786 = vmatpush1.bf16.msra.mxu0 %v4696
  %6787 = vmatprep.subr.bf16.mxu0 %v4705
  %6788 = vmatpush1.bf16.msra.mxu0 %v4704
  %6789 = vmatprep.subr.bf16.mxu0 %v4713
  %6790 = vmatpush1.bf16.msra.mxu0 %v4712
  %6791 = vmatprep.subr.bf16.mxu0 %v4721
  %6792 = vmatpush1.bf16.msra.mxu0 %v4720
  %6793 = vmatprep.subr.bf16.mxu0 %v4729
  %6794 = vmatpush1.bf16.msra.mxu0 %v4728
  %6795 = vmatprep.subr.bf16.mxu0 %v4737
  %6796 = vmatpush1.bf16.msra.mxu0 %v4736
  %6797 = vmatprep.subr.bf16.mxu0 %v4745
  %6798 = vmatpush1.bf16.msra.mxu0 %v4744
  %6799 = vmatprep.subr.bf16.mxu0 %v4753
  %6800 = vmatpush1.bf16.msra.mxu0 %v4752
  %6801 = vmatprep.subr.bf16.mxu0 %v4761
  %6802 = vmatpush1.bf16.msra.mxu0 %v4760
  %6803 = vmatprep.subr.bf16.mxu0 %v4769
  %6804 = vmatpush1.bf16.msra.mxu0 %v4768
  %6805 = vmatprep.subr.bf16.mxu0 %v4777
  %6806 = vmatpush1.bf16.msra.mxu0 %v4776
  %6807 = vmatprep.subr.bf16.mxu0 %v4785
  %6808 = vmatpush1.bf16.msra.mxu0 %v4784
  %6809 = vmatprep.mubr.bf16.mxu0 %v1140
  %6810 = vmatmul.mubr.bf16.gmra.mrb[0].mxu0 %v1138
  %v6811 = vpop.f32.mrb[0].mxu0
  %v6812 = vadd.f32 %v6771, %v6811
  %v6813 = vpop.f32.mrb[0].mxu0
  %v6814 = vadd.f32 %v6773, %v6813
  %v6815 = vpop.f32.mrb[0].mxu0
  %v6816 = vpop.f32.mrb[0].mxu0
  %6817 = vdwg.mxu0
  %6818 = vmatprep.subr.bf16.mxu0 %v4793
  %6819 = vmatpush1.bf16.msra.mxu0 %v4792
  %6820 = vmatprep.subr.bf16.mxu0 %v4801
  %6821 = vmatpush1.bf16.msra.mxu0 %v4800
  %6822 = vmatprep.subr.bf16.mxu0 %v4809
  %6823 = vmatpush1.bf16.msra.mxu0 %v4808
  %6824 = vmatprep.subr.bf16.mxu0 %v4817
  %6825 = vmatpush1.bf16.msra.mxu0 %v4816
  %6826 = vmatprep.subr.bf16.mxu0 %v4825
  %6827 = vmatpush1.bf16.msra.mxu0 %v4824
  %6828 = vmatprep.subr.bf16.mxu0 %v4833
  %6829 = vmatpush1.bf16.msra.mxu0 %v4832
  %6830 = vmatprep.subr.bf16.mxu0 %v4841
  %6831 = vmatpush1.bf16.msra.mxu0 %v4840
  %6832 = vmatprep.subr.bf16.mxu0 %v4849
  %6833 = vmatpush1.bf16.msra.mxu0 %v4848
  %6834 = vmatprep.subr.bf16.mxu0 %v4857
  %6835 = vmatpush1.bf16.msra.mxu0 %v4856
  %6836 = vmatprep.subr.bf16.mxu0 %v4865
  %6837 = vmatpush1.bf16.msra.mxu0 %v4864
  %6838 = vmatprep.subr.bf16.mxu0 %v4873
  %6839 = vmatpush1.bf16.msra.mxu0 %v4872
  %6840 = vmatprep.subr.bf16.mxu0 %v4881
  %6841 = vmatpush1.bf16.msra.mxu0 %v4880
  %6842 = vmatprep.subr.bf16.mxu0 %v4889
  %6843 = vmatpush1.bf16.msra.mxu0 %v4888
  %6844 = vmatprep.subr.bf16.mxu0 %v4897
  %6845 = vmatpush1.bf16.msra.mxu0 %v4896
  %6846 = vmatprep.subr.bf16.mxu0 %v4905
  %6847 = vmatpush1.bf16.msra.mxu0 %v4904
  %6848 = vmatprep.subr.bf16.mxu0 %v4913
  %6849 = vmatpush1.bf16.msra.mxu0 %v4912
  %6850 = vmatprep.mubr.bf16.mxu0 %v1178
  %6851 = vmatmul.mubr.bf16.gmra.mrb[0].mxu0 %v1164
  %v6852 = vpop.f32.mrb[0].mxu0
  %v6853 = vadd.f32 %v6812, %v6852
  %v6854 = vpop.f32.mrb[0].mxu0
  %v6855 = vadd.f32 %v6814, %v6854
  %v6856 = vpop.f32.mrb[0].mxu0
  %v6857 = vpop.f32.mrb[0].mxu0
  %6858 = vdwg.mxu0
  %6859 = vmatprep.subr.bf16.mxu0 %v4921
  %6860 = vmatpush1.bf16.msra.mxu0 %v4920
  %6861 = vmatprep.subr.bf16.mxu0 %v4929
  %6862 = vmatpush1.bf16.msra.mxu0 %v4928
  %6863 = vmatprep.subr.bf16.mxu0 %v4937
  %6864 = vmatpush1.bf16.msra.mxu0 %v4936
  %6865 = vmatprep.subr.bf16.mxu0 %v4945
  %6866 = vmatpush1.bf16.msra.mxu0 %v4944
  %6867 = vmatprep.subr.bf16.mxu0 %v4953
  %6868 = vmatpush1.bf16.msra.mxu0 %v4952
  %6869 = vmatprep.subr.bf16.mxu0 %v4961
  %6870 = vmatpush1.bf16.msra.mxu0 %v4960
  %6871 = vmatprep.subr.bf16.mxu0 %v4969
  %6872 = vmatpush1.bf16.msra.mxu0 %v4968
  %6873 = vmatprep.subr.bf16.mxu0 %v4977
  %6874 = vmatpush1.bf16.msra.mxu0 %v4976
  %6875 = vmatprep.subr.bf16.mxu0 %v4985
  %6876 = vmatpush1.bf16.msra.mxu0 %v4984
  %6877 = vmatprep.subr.bf16.mxu0 %v4993
  %6878 = vmatpush1.bf16.msra.mxu0 %v4992
  %6879 = vmatprep.subr.bf16.mxu0 %v5001
  %6880 = vmatpush1.bf16.msra.mxu0 %v5000
  %6881 = vmatprep.subr.bf16.mxu0 %v5009
  %6882 = vmatpush1.bf16.msra.mxu0 %v5008
  %6883 = vmatprep.subr.bf16.mxu0 %v5017
  %6884 = vmatpush1.bf16.msra.mxu0 %v5016
  %6885 = vmatprep.subr.bf16.mxu0 %v5025
  %6886 = vmatpush1.bf16.msra.mxu0 %v5024
  %6887 = vmatprep.subr.bf16.mxu0 %v5033
  %6888 = vmatpush1.bf16.msra.mxu0 %v5032
  %6889 = vmatprep.subr.bf16.mxu0 %v5041
  %6890 = vmatpush1.bf16.msra.mxu0 %v5040
  %6891 = vmatprep.mubr.bf16.mxu0 %v1188
  %6892 = vmatmul.mubr.bf16.gmra.mrb[0].mxu0 %v1186
  %v6893 = vpop.f32.mrb[0].mxu0
  %v6894 = vadd.f32 %v6853, %v6893
  %v6895 = vpop.f32.mrb[0].mxu0
  %v6896 = vadd.f32 %v6855, %v6895
  %v6897 = vpop.f32.mrb[0].mxu0
  %v6898 = vpop.f32.mrb[0].mxu0
  %6899 = vdwg.mxu0
  %6900 = vmatprep.subr.bf16.mxu0 %v5049
  %6901 = vmatpush1.bf16.msra.mxu0 %v5048
  %6902 = vmatprep.subr.bf16.mxu0 %v5057
  %6903 = vmatpush1.bf16.msra.mxu0 %v5056
  %6904 = vmatprep.subr.bf16.mxu0 %v5065
  %6905 = vmatpush1.bf16.msra.mxu0 %v5064
  %6906 = vmatprep.subr.bf16.mxu0 %v5073
  %6907 = vmatpush1.bf16.msra.mxu0 %v5072
  %6908 = vmatprep.subr.bf16.mxu0 %v5081
  %6909 = vmatpush1.bf16.msra.mxu0 %v5080
  %6910 = vmatprep.subr.bf16.mxu0 %v5089
  %6911 = vmatpush1.bf16.msra.mxu0 %v5088
  %6912 = vmatprep.subr.bf16.mxu0 %v5097
  %6913 = vmatpush1.bf16.msra.mxu0 %v5096
  %6914 = vmatprep.subr.bf16.mxu0 %v5105
  %6915 = vmatpush1.bf16.msra.mxu0 %v5104
  %6916 = vmatprep.subr.bf16.mxu0 %v5113
  %6917 = vmatpush1.bf16.msra.mxu0 %v5112
  %6918 = vmatprep.subr.bf16.mxu0 %v5121
  %6919 = vmatpush1.bf16.msra.mxu0 %v5120
  %6920 = vmatprep.subr.bf16.mxu0 %v5129
  %6921 = vmatpush1.bf16.msra.mxu0 %v5128
  %6922 = vmatprep.subr.bf16.mxu0 %v5137
  %6923 = vmatpush1.bf16.msra.mxu0 %v5136
  %6924 = vmatprep.subr.bf16.mxu0 %v5145
  %6925 = vmatpush1.bf16.msra.mxu0 %v5144
  %6926 = vmatprep.subr.bf16.mxu0 %v5153
  %6927 = vmatpush1.bf16.msra.mxu0 %v5152
  %6928 = vmatprep.subr.bf16.mxu0 %v5161
  %6929 = vmatpush1.bf16.msra.mxu0 %v5160
  %6930 = vmatprep.subr.bf16.mxu0 %v5169
  %6931 = vmatpush1.bf16.msra.mxu0 %v5168
  %6932 = vmatprep.mubr.bf16.mxu0 %v1185
  %6933 = vmatmul.mubr.bf16.gmra.mrb[0].mxu0 %v1171
  %v6934 = vpop.f32.mrb[0].mxu0
  %v6935 = vadd.f32 %v6894, %v6934
  %v6936 = vpop.f32.mrb[0].mxu0
  %v6937 = vadd.f32 %v6896, %v6936
  %v6938 = vpop.f32.mrb[0].mxu0
  %v6939 = vpop.f32.mrb[0].mxu0
  %6940 = vdwg.mxu0
  %6941 = vmatprep.subr.bf16.mxu0 %v5177
  %6942 = vmatpush1.bf16.msra.mxu0 %v5176
  %6943 = vmatprep.subr.bf16.mxu0 %v5185
  %6944 = vmatpush1.bf16.msra.mxu0 %v5184
  %6945 = vmatprep.subr.bf16.mxu0 %v5193
  %6946 = vmatpush1.bf16.msra.mxu0 %v5192
  %6947 = vmatprep.subr.bf16.mxu0 %v5201
  %6948 = vmatpush1.bf16.msra.mxu0 %v5200
  %6949 = vmatprep.subr.bf16.mxu0 %v5209
  %6950 = vmatpush1.bf16.msra.mxu0 %v5208
  %6951 = vmatprep.subr.bf16.mxu0 %v5217
  %6952 = vmatpush1.bf16.msra.mxu0 %v5216
  %6953 = vmatprep.subr.bf16.mxu0 %v5225
  %6954 = vmatpush1.bf16.msra.mxu0 %v5224
  %6955 = vmatprep.subr.bf16.mxu0 %v5233
  %6956 = vmatpush1.bf16.msra.mxu0 %v5232
  %6957 = vmatprep.subr.bf16.mxu0 %v5241
  %6958 = vmatpush1.bf16.msra.mxu0 %v5240
  %6959 = vmatprep.subr.bf16.mxu0 %v5249
  %6960 = vmatpush1.bf16.msra.mxu0 %v5248
  %6961 = vmatprep.subr.bf16.mxu0 %v5257
  %6962 = vmatpush1.bf16.msra.mxu0 %v5256
  %6963 = vmatprep.subr.bf16.mxu0 %v5265
  %6964 = vmatpush1.bf16.msra.mxu0 %v5264
  %6965 = vmatprep.subr.bf16.mxu0 %v5273
  %6966 = vmatpush1.bf16.msra.mxu0 %v5272
  %6967 = vmatprep.subr.bf16.mxu0 %v5281
  %6968 = vmatpush1.bf16.msra.mxu0 %v5280
  %6969 = vmatprep.subr.bf16.mxu0 %v5289
  %6970 = vmatpush1.bf16.msra.mxu0 %v5288
  %6971 = vmatprep.subr.bf16.mxu0 %v5297
  %6972 = vmatpush1.bf16.msra.mxu0 %v5296
  %6973 = vmatprep.mubr.bf16.mxu0 %v1189
  %6974 = vmatmul.mubr.bf16.gmra.mrb[0].mxu0 %v1187
  %v6975 = vpop.f32.mrb[0].mxu0
  %v6976 = vadd.f32 %v6935, %v6975
  %v6977 = vpop.f32.mrb[0].mxu0
  %v6978 = vadd.f32 %v6937, %v6977
  %v6979 = vpop.f32.mrb[0].mxu0
  %v6980 = vpop.f32.mrb[0].mxu0
  %6981 = vdwg.mxu0
  %6982 = vmatprep.subr.bf16.mxu0 %v4283
  %6983 = vmatpush1.bf16.msra.mxu0 %v4282
  %6984 = vmatprep.subr.bf16.mxu0 %v4291
  %6985 = vmatpush1.bf16.msra.mxu0 %v4290
  %6986 = vmatprep.subr.bf16.mxu0 %v4299
  %6987 = vmatpush1.bf16.msra.mxu0 %v4298
  %6988 = vmatprep.subr.bf16.mxu0 %v4307
  %6989 = vmatpush1.bf16.msra.mxu0 %v4306
  %6990 = vmatprep.subr.bf16.mxu0 %v4315
  %6991 = vmatpush1.bf16.msra.mxu0 %v4314
  %6992 = vmatprep.subr.bf16.mxu0 %v4323
  %6993 = vmatpush1.bf16.msra.mxu0 %v4322
  %6994 = vmatprep.subr.bf16.mxu0 %v4331
  %6995 = vmatpush1.bf16.msra.mxu0 %v4330
  %6996 = vmatprep.subr.bf16.mxu0 %v4339
  %6997 = vmatpush1.bf16.msra.mxu0 %v4338
  %6998 = vmatprep.subr.bf16.mxu0 %v4347
  %6999 = vmatpush1.bf16.msra.mxu0 %v4346
  %7000 = vmatprep.subr.bf16.mxu0 %v4355
  %7001 = vmatpush1.bf16.msra.mxu0 %v4354
  %7002 = vmatprep.subr.bf16.mxu0 %v4363
  %7003 = vmatpush1.bf16.msra.mxu0 %v4362
  %7004 = vmatprep.subr.bf16.mxu0 %v4371
  %7005 = vmatpush1.bf16.msra.mxu0 %v4370
  %7006 = vmatprep.subr.bf16.mxu0 %v4379
  %7007 = vmatpush1.bf16.msra.mxu0 %v4378
  %7008 = vmatprep.subr.bf16.mxu0 %v4387
  %7009 = vmatpush1.bf16.msra.mxu0 %v4386
  %7010 = vmatprep.subr.bf16.mxu0 %v4395
  %7011 = vmatpush1.bf16.msra.mxu0 %v4394
  %7012 = vmatprep.subr.bf16.mxu0 %v4403
  %7013 = vmatpush1.bf16.msra.mxu0 %v4402
  %7014 = vmatprep.mubr.bf16.mxu0 %v1129
  %7015 = vmatmul.mubr.bf16.gmra.mrb[0].mxu0 %v1115
  %v7016 = vpop.f32.mrb[0].mxu0
  %v7017 = vadd.f32 %v1069, %v7016
  %v7018 = vpop.f32.mrb[0].mxu0
  %v7019 = vadd.f32 %v1073, %v7018
  %v7020 = vpop.f32.mrb[0].mxu0
  %v7021 = vpop.f32.mrb[0].mxu0
  %7022 = vdwg.mxu0
  %7023 = vmatprep.subr.bf16.mxu0 %v4411
  %7024 = vmatpush1.bf16.msra.mxu0 %v4410
  %7025 = vmatprep.subr.bf16.mxu0 %v4419
  %7026 = vmatpush1.bf16.msra.mxu0 %v4418
  %7027 = vmatprep.subr.bf16.mxu0 %v4427
  %7028 = vmatpush1.bf16.msra.mxu0 %v4426
  %7029 = vmatprep.subr.bf16.mxu0 %v4435
  %7030 = vmatpush1.bf16.msra.mxu0 %v4434
  %7031 = vmatprep.subr.bf16.mxu0 %v4443
  %7032 = vmatpush1.bf16.msra.mxu0 %v4442
  %7033 = vmatprep.subr.bf16.mxu0 %v4451
  %7034 = vmatpush1.bf16.msra.mxu0 %v4450
  %7035 = vmatprep.subr.bf16.mxu0 %v4459
  %7036 = vmatpush1.bf16.msra.mxu0 %v4458
  %7037 = vmatprep.subr.bf16.mxu0 %v4467
  %7038 = vmatpush1.bf16.msra.mxu0 %v4466
  %7039 = vmatprep.subr.bf16.mxu0 %v4475
  %7040 = vmatpush1.bf16.msra.mxu0 %v4474
  %7041 = vmatprep.subr.bf16.mxu0 %v4483
  %7042 = vmatpush1.bf16.msra.mxu0 %v4482
  %7043 = vmatprep.subr.bf16.mxu0 %v4491
  %7044 = vmatpush1.bf16.msra.mxu0 %v4490
  %7045 = vmatprep.subr.bf16.mxu0 %v4499
  %7046 = vmatpush1.bf16.msra.mxu0 %v4498
  %7047 = vmatprep.subr.bf16.mxu0 %v4507
  %7048 = vmatpush1.bf16.msra.mxu0 %v4506
  %7049 = vmatprep.subr.bf16.mxu0 %v4515
  %7050 = vmatpush1.bf16.msra.mxu0 %v4514
  %7051 = vmatprep.subr.bf16.mxu0 %v4523
  %7052 = vmatpush1.bf16.msra.mxu0 %v4522
  %7053 = vmatprep.subr.bf16.mxu0 %v4531
  %7054 = vmatpush1.bf16.msra.mxu0 %v4530
  %7055 = vmatprep.mubr.bf16.mxu0 %v1139
  %7056 = vmatmul.mubr.bf16.gmra.mrb[0].mxu0 %v1137
  %v7057 = vpop.f32.mrb[0].mxu0
  %v7058 = vadd.f32 %v7017, %v7057
  %v7059 = vpop.f32.mrb[0].mxu0
  %v7060 = vadd.f32 %v7019, %v7059
  %v7061 = vpop.f32.mrb[0].mxu0
  %v7062 = vpop.f32.mrb[0].mxu0
  %7063 = vdwg.mxu0
  %7064 = vmatprep.subr.bf16.mxu0 %v4539
  %7065 = vmatpush1.bf16.msra.mxu0 %v4538
  %7066 = vmatprep.subr.bf16.mxu0 %v4547
  %7067 = vmatpush1.bf16.msra.mxu0 %v4546
  %7068 = vmatprep.subr.bf16.mxu0 %v4555
  %7069 = vmatpush1.bf16.msra.mxu0 %v4554
  %7070 = vmatprep.subr.bf16.mxu0 %v4563
  %7071 = vmatpush1.bf16.msra.mxu0 %v4562
  %7072 = vmatprep.subr.bf16.mxu0 %v4571
  %7073 = vmatpush1.bf16.msra.mxu0 %v4570
  %7074 = vmatprep.subr.bf16.mxu0 %v4579
  %7075 = vmatpush1.bf16.msra.mxu0 %v4578
  %7076 = vmatprep.subr.bf16.mxu0 %v4587
  %7077 = vmatpush1.bf16.msra.mxu0 %v4586
  %7078 = vmatprep.subr.bf16.mxu0 %v4595
  %7079 = vmatpush1.bf16.msra.mxu0 %v4594
  %7080 = vmatprep.subr.bf16.mxu0 %v4603
  %7081 = vmatpush1.bf16.msra.mxu0 %v4602
  %7082 = vmatprep.subr.bf16.mxu0 %v4611
  %7083 = vmatpush1.bf16.msra.mxu0 %v4610
  %7084 = vmatprep.subr.bf16.mxu0 %v4619
  %7085 = vmatpush1.bf16.msra.mxu0 %v4618
  %7086 = vmatprep.subr.bf16.mxu0 %v4627
  %7087 = vmatpush1.bf16.msra.mxu0 %v4626
  %7088 = vmatprep.subr.bf16.mxu0 %v4635
  %7089 = vmatpush1.bf16.msra.mxu0 %v4634
  %7090 = vmatprep.subr.bf16.mxu0 %v4643
  %7091 = vmatpush1.bf16.msra.mxu0 %v4642
  %7092 = vmatprep.subr.bf16.mxu0 %v4651
  %7093 = vmatpush1.bf16.msra.mxu0 %v4650
  %7094 = vmatprep.subr.bf16.mxu0 %v4659
  %7095 = vmatpush1.bf16.msra.mxu0 %v4658
  %7096 = vmatprep.mubr.bf16.mxu0 %v1136
  %7097 = vmatmul.mubr.bf16.gmra.mrb[0].mxu0 %v1122
  %v7098 = vpop.f32.mrb[0].mxu0
  %v7099 = vadd.f32 %v7058, %v7098
  %v7100 = vpop.f32.mrb[0].mxu0
  %v7101 = vadd.f32 %v7060, %v7100
  %v7102 = vpop.f32.mrb[0].mxu0
  %v7103 = vpop.f32.mrb[0].mxu0
  %7104 = vdwg.mxu0
  %7105 = vmatprep.subr.bf16.mxu0 %v4667
  %7106 = vmatpush1.bf16.msra.mxu0 %v4666
  %7107 = vmatprep.subr.bf16.mxu0 %v4675
  %7108 = vmatpush1.bf16.msra.mxu0 %v4674
  %7109 = vmatprep.subr.bf16.mxu0 %v4683
  %7110 = vmatpush1.bf16.msra.mxu0 %v4682
  %7111 = vmatprep.subr.bf16.mxu0 %v4691
  %7112 = vmatpush1.bf16.msra.mxu0 %v4690
  %7113 = vmatprep.subr.bf16.mxu0 %v4699
  %7114 = vmatpush1.bf16.msra.mxu0 %v4698
  %7115 = vmatprep.subr.bf16.mxu0 %v4707
  %7116 = vmatpush1.bf16.msra.mxu0 %v4706
  %7117 = vmatprep.subr.bf16.mxu0 %v4715
  %7118 = vmatpush1.bf16.msra.mxu0 %v4714
  %7119 = vmatprep.subr.bf16.mxu0 %v4723
  %7120 = vmatpush1.bf16.msra.mxu0 %v4722
  %7121 = vmatprep.subr.bf16.mxu0 %v4731
  %7122 = vmatpush1.bf16.msra.mxu0 %v4730
  %7123 = vmatprep.subr.bf16.mxu0 %v4739
  %7124 = vmatpush1.bf16.msra.mxu0 %v4738
  %7125 = vmatprep.subr.bf16.mxu0 %v4747
  %7126 = vmatpush1.bf16.msra.mxu0 %v4746
  %7127 = vmatprep.subr.bf16.mxu0 %v4755
  %7128 = vmatpush1.bf16.msra.mxu0 %v4754
  %7129 = vmatprep.subr.bf16.mxu0 %v4763
  %7130 = vmatpush1.bf16.msra.mxu0 %v4762
  %7131 = vmatprep.subr.bf16.mxu0 %v4771
  %7132 = vmatpush1.bf16.msra.mxu0 %v4770
  %7133 = vmatprep.subr.bf16.mxu0 %v4779
  %7134 = vmatpush1.bf16.msra.mxu0 %v4778
  %7135 = vmatprep.subr.bf16.mxu0 %v4787
  %7136 = vmatpush1.bf16.msra.mxu0 %v4786
  %7137 = vmatprep.mubr.bf16.mxu0 %v1140
  %7138 = vmatmul.mubr.bf16.gmra.mrb[0].mxu0 %v1138
  %v7139 = vpop.f32.mrb[0].mxu0
  %v7140 = vadd.f32 %v7099, %v7139
  %v7141 = vpop.f32.mrb[0].mxu0
  %v7142 = vadd.f32 %v7101, %v7141
  %v7143 = vpop.f32.mrb[0].mxu0
  %v7144 = vpop.f32.mrb[0].mxu0
  %7145 = vdwg.mxu0
  %7146 = vmatprep.subr.bf16.mxu0 %v4795
  %7147 = vmatpush1.bf16.msra.mxu0 %v4794
  %7148 = vmatprep.subr.bf16.mxu0 %v4803
  %7149 = vmatpush1.bf16.msra.mxu0 %v4802
  %7150 = vmatprep.subr.bf16.mxu0 %v4811
  %7151 = vmatpush1.bf16.msra.mxu0 %v4810
  %7152 = vmatprep.subr.bf16.mxu0 %v4819
  %7153 = vmatpush1.bf16.msra.mxu0 %v4818
  %7154 = vmatprep.subr.bf16.mxu0 %v4827
  %7155 = vmatpush1.bf16.msra.mxu0 %v4826
  %7156 = vmatprep.subr.bf16.mxu0 %v4835
  %7157 = vmatpush1.bf16.msra.mxu0 %v4834
  %7158 = vmatprep.subr.bf16.mxu0 %v4843
  %7159 = vmatpush1.bf16.msra.mxu0 %v4842
  %7160 = vmatprep.subr.bf16.mxu0 %v4851
  %7161 = vmatpush1.bf16.msra.mxu0 %v4850
  %7162 = vmatprep.subr.bf16.mxu0 %v4859
  %7163 = vmatpush1.bf16.msra.mxu0 %v4858
  %7164 = vmatprep.subr.bf16.mxu0 %v4867
  %7165 = vmatpush1.bf16.msra.mxu0 %v4866
  %7166 = vmatprep.subr.bf16.mxu0 %v4875
  %7167 = vmatpush1.bf16.msra.mxu0 %v4874
  %7168 = vmatprep.subr.bf16.mxu0 %v4883
  %7169 = vmatpush1.bf16.msra.mxu0 %v4882
  %7170 = vmatprep.subr.bf16.mxu0 %v4891
  %7171 = vmatpush1.bf16.msra.mxu0 %v4890
  %7172 = vmatprep.subr.bf16.mxu0 %v4899
  %7173 = vmatpush1.bf16.msra.mxu0 %v4898
  %7174 = vmatprep.subr.bf16.mxu0 %v4907
  %7175 = vmatpush1.bf16.msra.mxu0 %v4906
  %7176 = vmatprep.subr.bf16.mxu0 %v4915
  %7177 = vmatpush1.bf16.msra.mxu0 %v4914
  %7178 = vmatprep.mubr.bf16.mxu0 %v1178
  %7179 = vmatmul.mubr.bf16.gmra.mrb[0].mxu0 %v1164
  %v7180 = vpop.f32.mrb[0].mxu0
  %v7181 = vadd.f32 %v7140, %v7180
  %v7182 = vpop.f32.mrb[0].mxu0
  %v7183 = vadd.f32 %v7142, %v7182
  %v7184 = vpop.f32.mrb[0].mxu0
  %v7185 = vpop.f32.mrb[0].mxu0
  %7186 = vdwg.mxu0
  %7187 = vmatprep.subr.bf16.mxu0 %v4923
  %7188 = vmatpush1.bf16.msra.mxu0 %v4922
  %7189 = vmatprep.subr.bf16.mxu0 %v4931
  %7190 = vmatpush1.bf16.msra.mxu0 %v4930
  %7191 = vmatprep.subr.bf16.mxu0 %v4939
  %7192 = vmatpush1.bf16.msra.mxu0 %v4938
  %7193 = vmatprep.subr.bf16.mxu0 %v4947
  %7194 = vmatpush1.bf16.msra.mxu0 %v4946
  %7195 = vmatprep.subr.bf16.mxu0 %v4955
  %7196 = vmatpush1.bf16.msra.mxu0 %v4954
  %7197 = vmatprep.subr.bf16.mxu0 %v4963
  %7198 = vmatpush1.bf16.msra.mxu0 %v4962
  %7199 = vmatprep.subr.bf16.mxu0 %v4971
  %7200 = vmatpush1.bf16.msra.mxu0 %v4970
  %7201 = vmatprep.subr.bf16.mxu0 %v4979
  %7202 = vmatpush1.bf16.msra.mxu0 %v4978
  %7203 = vmatprep.subr.bf16.mxu0 %v4987
  %7204 = vmatpush1.bf16.msra.mxu0 %v4986
  %7205 = vmatprep.subr.bf16.mxu0 %v4995
  %7206 = vmatpush1.bf16.msra.mxu0 %v4994
  %7207 = vmatprep.subr.bf16.mxu0 %v5003
  %7208 = vmatpush1.bf16.msra.mxu0 %v5002
  %7209 = vmatprep.subr.bf16.mxu0 %v5011
  %7210 = vmatpush1.bf16.msra.mxu0 %v5010
  %7211 = vmatprep.subr.bf16.mxu0 %v5019
  %7212 = vmatpush1.bf16.msra.mxu0 %v5018
  %7213 = vmatprep.subr.bf16.mxu0 %v5027
  %7214 = vmatpush1.bf16.msra.mxu0 %v5026
  %7215 = vmatprep.subr.bf16.mxu0 %v5035
  %7216 = vmatpush1.bf16.msra.mxu0 %v5034
  %7217 = vmatprep.subr.bf16.mxu0 %v5043
  %7218 = vmatpush1.bf16.msra.mxu0 %v5042
  %7219 = vmatprep.mubr.bf16.mxu0 %v1188
  %7220 = vmatmul.mubr.bf16.gmra.mrb[0].mxu0 %v1186
  %v7221 = vpop.f32.mrb[0].mxu0
  %v7222 = vadd.f32 %v7181, %v7221
  %v7223 = vpop.f32.mrb[0].mxu0
  %v7224 = vadd.f32 %v7183, %v7223
  %v7225 = vpop.f32.mrb[0].mxu0
  %v7226 = vpop.f32.mrb[0].mxu0
  %7227 = vdwg.mxu0
  %7228 = vmatprep.subr.bf16.mxu0 %v5051
  %7229 = vmatpush1.bf16.msra.mxu0 %v5050
  %7230 = vmatprep.subr.bf16.mxu0 %v5059
  %7231 = vmatpush1.bf16.msra.mxu0 %v5058
  %7232 = vmatprep.subr.bf16.mxu0 %v5067
  %7233 = vmatpush1.bf16.msra.mxu0 %v5066
  %7234 = vmatprep.subr.bf16.mxu0 %v5075
  %7235 = vmatpush1.bf16.msra.mxu0 %v5074
  %7236 = vmatprep.subr.bf16.mxu0 %v5083
  %7237 = vmatpush1.bf16.msra.mxu0 %v5082
  %7238 = vmatprep.subr.bf16.mxu0 %v5091
  %7239 = vmatpush1.bf16.msra.mxu0 %v5090
  %7240 = vmatprep.subr.bf16.mxu0 %v5099
  %7241 = vmatpush1.bf16.msra.mxu0 %v5098
  %7242 = vmatprep.subr.bf16.mxu0 %v5107
  %7243 = vmatpush1.bf16.msra.mxu0 %v5106
  %7244 = vmatprep.subr.bf16.mxu0 %v5115
  %7245 = vmatpush1.bf16.msra.mxu0 %v5114
  %7246 = vmatprep.subr.bf16.mxu0 %v5123
  %7247 = vmatpush1.bf16.msra.mxu0 %v5122
  %7248 = vmatprep.subr.bf16.mxu0 %v5131
  %7249 = vmatpush1.bf16.msra.mxu0 %v5130
  %7250 = vmatprep.subr.bf16.mxu0 %v5139
  %7251 = vmatpush1.bf16.msra.mxu0 %v5138
  %7252 = vmatprep.subr.bf16.mxu0 %v5147
  %7253 = vmatpush1.bf16.msra.mxu0 %v5146
  %7254 = vmatprep.subr.bf16.mxu0 %v5155
  %7255 = vmatpush1.bf16.msra.mxu0 %v5154
  %7256 = vmatprep.subr.bf16.mxu0 %v5163
  %7257 = vmatpush1.bf16.msra.mxu0 %v5162
  %7258 = vmatprep.subr.bf16.mxu0 %v5171
  %7259 = vmatpush1.bf16.msra.mxu0 %v5170
  %7260 = vmatprep.mubr.bf16.mxu0 %v1185
  %7261 = vmatmul.mubr.bf16.gmra.mrb[0].mxu0 %v1171
  %v7262 = vpop.f32.mrb[0].mxu0
  %v7263 = vadd.f32 %v7222, %v7262
  %v7264 = vpop.f32.mrb[0].mxu0
  %v7265 = vadd.f32 %v7224, %v7264
  %v7266 = vpop.f32.mrb[0].mxu0
  %v7267 = vpop.f32.mrb[0].mxu0
  %7268 = vdwg.mxu0
  %7269 = vmatprep.subr.bf16.mxu0 %v5179
  %7270 = vmatpush1.bf16.msra.mxu0 %v5178
  %7271 = vmatprep.subr.bf16.mxu0 %v5187
  %7272 = vmatpush1.bf16.msra.mxu0 %v5186
  %7273 = vmatprep.subr.bf16.mxu0 %v5195
  %7274 = vmatpush1.bf16.msra.mxu0 %v5194
  %7275 = vmatprep.subr.bf16.mxu0 %v5203
  %7276 = vmatpush1.bf16.msra.mxu0 %v5202
  %7277 = vmatprep.subr.bf16.mxu0 %v5211
  %7278 = vmatpush1.bf16.msra.mxu0 %v5210
  %7279 = vmatprep.subr.bf16.mxu0 %v5219
  %7280 = vmatpush1.bf16.msra.mxu0 %v5218
  %7281 = vmatprep.subr.bf16.mxu0 %v5227
  %7282 = vmatpush1.bf16.msra.mxu0 %v5226
  %7283 = vmatprep.subr.bf16.mxu0 %v5235
  %7284 = vmatpush1.bf16.msra.mxu0 %v5234
  %7285 = vmatprep.subr.bf16.mxu0 %v5243
  %7286 = vmatpush1.bf16.msra.mxu0 %v5242
  %7287 = vmatprep.subr.bf16.mxu0 %v5251
  %7288 = vmatpush1.bf16.msra.mxu0 %v5250
  %7289 = vmatprep.subr.bf16.mxu0 %v5259
  %7290 = vmatpush1.bf16.msra.mxu0 %v5258
  %7291 = vmatprep.subr.bf16.mxu0 %v5267
  %7292 = vmatpush1.bf16.msra.mxu0 %v5266
  %7293 = vmatprep.subr.bf16.mxu0 %v5275
  %7294 = vmatpush1.bf16.msra.mxu0 %v5274
  %7295 = vmatprep.subr.bf16.mxu0 %v5283
  %7296 = vmatpush1.bf16.msra.mxu0 %v5282
  %7297 = vmatprep.subr.bf16.mxu0 %v5291
  %7298 = vmatpush1.bf16.msra.mxu0 %v5290
  %7299 = vmatprep.subr.bf16.mxu0 %v5299
  %7300 = vmatpush1.bf16.msra.mxu0 %v5298
  %7301 = vmatprep.mubr.bf16.mxu0 %v1189
  %7302 = vmatmul.mubr.bf16.gmra.mrb[0].mxu0 %v1187
  %v7303 = vpop.f32.mrb[0].mxu0
  %v7304 = vadd.f32 %v7263, %v7303
  %v7305 = vpop.f32.mrb[0].mxu0
  %v7306 = vadd.f32 %v7265, %v7305
  %v7307 = vpop.f32.mrb[0].mxu0
  %v7308 = vpop.f32.mrb[0].mxu0
  %7309 = vdwg.mxu0
  %7310 = vmatprep.subr.bf16.mxu0 %v4285
  %7311 = vmatpush1.bf16.msra.mxu0 %v4284
  %7312 = vmatprep.subr.bf16.mxu0 %v4293
  %7313 = vmatpush1.bf16.msra.mxu0 %v4292
  %7314 = vmatprep.subr.bf16.mxu0 %v4301
  %7315 = vmatpush1.bf16.msra.mxu0 %v4300
  %7316 = vmatprep.subr.bf16.mxu0 %v4309
  %7317 = vmatpush1.bf16.msra.mxu0 %v4308
  %7318 = vmatprep.subr.bf16.mxu0 %v4317
  %7319 = vmatpush1.bf16.msra.mxu0 %v4316
  %7320 = vmatprep.subr.bf16.mxu0 %v4325
  %7321 = vmatpush1.bf16.msra.mxu0 %v4324
  %7322 = vmatprep.subr.bf16.mxu0 %v4333
  %7323 = vmatpush1.bf16.msra.mxu0 %v4332
  %7324 = vmatprep.subr.bf16.mxu0 %v4341
  %7325 = vmatpush1.bf16.msra.mxu0 %v4340
  %7326 = vmatprep.subr.bf16.mxu0 %v4349
  %7327 = vmatpush1.bf16.msra.mxu0 %v4348
  %7328 = vmatprep.subr.bf16.mxu0 %v4357
  %7329 = vmatpush1.bf16.msra.mxu0 %v4356
  %7330 = vmatprep.subr.bf16.mxu0 %v4365
  %7331 = vmatpush1.bf16.msra.mxu0 %v4364
  %7332 = vmatprep.subr.bf16.mxu0 %v4373
  %7333 = vmatpush1.bf16.msra.mxu0 %v4372
  %7334 = vmatprep.subr.bf16.mxu0 %v4381
  %7335 = vmatpush1.bf16.msra.mxu0 %v4380
  %7336 = vmatprep.subr.bf16.mxu0 %v4389
  %7337 = vmatpush1.bf16.msra.mxu0 %v4388
  %7338 = vmatprep.subr.bf16.mxu0 %v4397
  %7339 = vmatpush1.bf16.msra.mxu0 %v4396
  %7340 = vmatprep.subr.bf16.mxu0 %v4405
  %7341 = vmatpush1.bf16.msra.mxu0 %v4404
  %7342 = vmatprep.mubr.bf16.mxu0 %v1129
  %7343 = vmatmul.mubr.bf16.gmra.mrb[0].mxu0 %v1115
  %v7344 = vpop.f32.mrb[0].mxu0
  %v7345 = vadd.f32 %v1077, %v7344
  %v7346 = vpop.f32.mrb[0].mxu0
  %v7347 = vadd.f32 %v1081, %v7346
  %v7348 = vpop.f32.mrb[0].mxu0
  %v7349 = vpop.f32.mrb[0].mxu0
  %7350 = vdwg.mxu0
  %7351 = vmatprep.subr.bf16.mxu0 %v4413
  %7352 = vmatpush1.bf16.msra.mxu0 %v4412
  %7353 = vmatprep.subr.bf16.mxu0 %v4421
  %7354 = vmatpush1.bf16.msra.mxu0 %v4420
  %7355 = vmatprep.subr.bf16.mxu0 %v4429
  %7356 = vmatpush1.bf16.msra.mxu0 %v4428
  %7357 = vmatprep.subr.bf16.mxu0 %v4437
  %7358 = vmatpush1.bf16.msra.mxu0 %v4436
  %7359 = vmatprep.subr.bf16.mxu0 %v4445
  %7360 = vmatpush1.bf16.msra.mxu0 %v4444
  %7361 = vmatprep.subr.bf16.mxu0 %v4453
  %7362 = vmatpush1.bf16.msra.mxu0 %v4452
  %7363 = vmatprep.subr.bf16.mxu0 %v4461
  %7364 = vmatpush1.bf16.msra.mxu0 %v4460
  %7365 = vmatprep.subr.bf16.mxu0 %v4469
  %7366 = vmatpush1.bf16.msra.mxu0 %v4468
  %7367 = vmatprep.subr.bf16.mxu0 %v4477
  %7368 = vmatpush1.bf16.msra.mxu0 %v4476
  %7369 = vmatprep.subr.bf16.mxu0 %v4485
  %7370 = vmatpush1.bf16.msra.mxu0 %v4484
  %7371 = vmatprep.subr.bf16.mxu0 %v4493
  %7372 = vmatpush1.bf16.msra.mxu0 %v4492
  %7373 = vmatprep.subr.bf16.mxu0 %v4501
  %7374 = vmatpush1.bf16.msra.mxu0 %v4500
  %7375 = vmatprep.subr.bf16.mxu0 %v4509
  %7376 = vmatpush1.bf16.msra.mxu0 %v4508
  %7377 = vmatprep.subr.bf16.mxu0 %v4517
  %7378 = vmatpush1.bf16.msra.mxu0 %v4516
  %7379 = vmatprep.subr.bf16.mxu0 %v4525
  %7380 = vmatpush1.bf16.msra.mxu0 %v4524
  %7381 = vmatprep.subr.bf16.mxu0 %v4533
  %7382 = vmatpush1.bf16.msra.mxu0 %v4532
  %7383 = vmatprep.mubr.bf16.mxu0 %v1139
  %7384 = vmatmul.mubr.bf16.gmra.mrb[0].mxu0 %v1137
  %v7385 = vpop.f32.mrb[0].mxu0
  %v7386 = vadd.f32 %v7345, %v7385
  %v7387 = vpop.f32.mrb[0].mxu0
  %v7388 = vadd.f32 %v7347, %v7387
  %v7389 = vpop.f32.mrb[0].mxu0
  %v7390 = vpop.f32.mrb[0].mxu0
  %7391 = vdwg.mxu0
  %7392 = vmatprep.subr.bf16.mxu0 %v4541
  %7393 = vmatpush1.bf16.msra.mxu0 %v4540
  %7394 = vmatprep.subr.bf16.mxu0 %v4549
  %7395 = vmatpush1.bf16.msra.mxu0 %v4548
  %7396 = vmatprep.subr.bf16.mxu0 %v4557
  %7397 = vmatpush1.bf16.msra.mxu0 %v4556
  %7398 = vmatprep.subr.bf16.mxu0 %v4565
  %7399 = vmatpush1.bf16.msra.mxu0 %v4564
  %7400 = vmatprep.subr.bf16.mxu0 %v4573
  %7401 = vmatpush1.bf16.msra.mxu0 %v4572
  %7402 = vmatprep.subr.bf16.mxu0 %v4581
  %7403 = vmatpush1.bf16.msra.mxu0 %v4580
  %7404 = vmatprep.subr.bf16.mxu0 %v4589
  %7405 = vmatpush1.bf16.msra.mxu0 %v4588
  %7406 = vmatprep.subr.bf16.mxu0 %v4597
  %7407 = vmatpush1.bf16.msra.mxu0 %v4596
  %7408 = vmatprep.subr.bf16.mxu0 %v4605
  %7409 = vmatpush1.bf16.msra.mxu0 %v4604
  %7410 = vmatprep.subr.bf16.mxu0 %v4613
  %7411 = vmatpush1.bf16.msra.mxu0 %v4612
  %7412 = vmatprep.subr.bf16.mxu0 %v4621
  %7413 = vmatpush1.bf16.msra.mxu0 %v4620
  %7414 = vmatprep.subr.bf16.mxu0 %v4629
  %7415 = vmatpush1.bf16.msra.mxu0 %v4628
  %7416 = vmatprep.subr.bf16.mxu0 %v4637
  %7417 = vmatpush1.bf16.msra.mxu0 %v4636
  %7418 = vmatprep.subr.bf16.mxu0 %v4645
  %7419 = vmatpush1.bf16.msra.mxu0 %v4644
  %7420 = vmatprep.subr.bf16.mxu0 %v4653
  %7421 = vmatpush1.bf16.msra.mxu0 %v4652
  %7422 = vmatprep.subr.bf16.mxu0 %v4661
  %7423 = vmatpush1.bf16.msra.mxu0 %v4660
  %7424 = vmatprep.mubr.bf16.mxu0 %v1136
  %7425 = vmatmul.mubr.bf16.gmra.mrb[0].mxu0 %v1122
  %v7426 = vpop.f32.mrb[0].mxu0
  %v7427 = vadd.f32 %v7386, %v7426
  %v7428 = vpop.f32.mrb[0].mxu0
  %v7429 = vadd.f32 %v7388, %v7428
  %v7430 = vpop.f32.mrb[0].mxu0
  %v7431 = vpop.f32.mrb[0].mxu0
  %7432 = vdwg.mxu0
  %7433 = vmatprep.subr.bf16.mxu0 %v4669
  %7434 = vmatpush1.bf16.msra.mxu0 %v4668
  %7435 = vmatprep.subr.bf16.mxu0 %v4677
  %7436 = vmatpush1.bf16.msra.mxu0 %v4676
  %7437 = vmatprep.subr.bf16.mxu0 %v4685
  %7438 = vmatpush1.bf16.msra.mxu0 %v4684
  %7439 = vmatprep.subr.bf16.mxu0 %v4693
  %7440 = vmatpush1.bf16.msra.mxu0 %v4692
  %7441 = vmatprep.subr.bf16.mxu0 %v4701
  %7442 = vmatpush1.bf16.msra.mxu0 %v4700
  %7443 = vmatprep.subr.bf16.mxu0 %v4709
  %7444 = vmatpush1.bf16.msra.mxu0 %v4708
  %7445 = vmatprep.subr.bf16.mxu0 %v4717
  %7446 = vmatpush1.bf16.msra.mxu0 %v4716
  %7447 = vmatprep.subr.bf16.mxu0 %v4725
  %7448 = vmatpush1.bf16.msra.mxu0 %v4724
  %7449 = vmatprep.subr.bf16.mxu0 %v4733
  %7450 = vmatpush1.bf16.msra.mxu0 %v4732
  %7451 = vmatprep.subr.bf16.mxu0 %v4741
  %7452 = vmatpush1.bf16.msra.mxu0 %v4740
  %7453 = vmatprep.subr.bf16.mxu0 %v4749
  %7454 = vmatpush1.bf16.msra.mxu0 %v4748
  %7455 = vmatprep.subr.bf16.mxu0 %v4757
  %7456 = vmatpush1.bf16.msra.mxu0 %v4756
  %7457 = vmatprep.subr.bf16.mxu0 %v4765
  %7458 = vmatpush1.bf16.msra.mxu0 %v4764
  %7459 = vmatprep.subr.bf16.mxu0 %v4773
  %7460 = vmatpush1.bf16.msra.mxu0 %v4772
  %7461 = vmatprep.subr.bf16.mxu0 %v4781
  %7462 = vmatpush1.bf16.msra.mxu0 %v4780
  %7463 = vmatprep.subr.bf16.mxu0 %v4789
  %7464 = vmatpush1.bf16.msra.mxu0 %v4788
  %7465 = vmatprep.mubr.bf16.mxu0 %v1140
  %7466 = vmatmul.mubr.bf16.gmra.mrb[0].mxu0 %v1138
  %v7467 = vpop.f32.mrb[0].mxu0
  %v7468 = vadd.f32 %v7427, %v7467
  %v7469 = vpop.f32.mrb[0].mxu0
  %v7470 = vadd.f32 %v7429, %v7469
  %v7471 = vpop.f32.mrb[0].mxu0
  %v7472 = vpop.f32.mrb[0].mxu0
  %7473 = vdwg.mxu0
  %7474 = vmatprep.subr.bf16.mxu0 %v4797
  %7475 = vmatpush1.bf16.msra.mxu0 %v4796
  %7476 = vmatprep.subr.bf16.mxu0 %v4805
  %7477 = vmatpush1.bf16.msra.mxu0 %v4804
  %7478 = vmatprep.subr.bf16.mxu0 %v4813
  %7479 = vmatpush1.bf16.msra.mxu0 %v4812
  %7480 = vmatprep.subr.bf16.mxu0 %v4821
  %7481 = vmatpush1.bf16.msra.mxu0 %v4820
  %7482 = vmatprep.subr.bf16.mxu0 %v4829
  %7483 = vmatpush1.bf16.msra.mxu0 %v4828
  %7484 = vmatprep.subr.bf16.mxu0 %v4837
  %7485 = vmatpush1.bf16.msra.mxu0 %v4836
  %7486 = vmatprep.subr.bf16.mxu0 %v4845
  %7487 = vmatpush1.bf16.msra.mxu0 %v4844
  %7488 = vmatprep.subr.bf16.mxu0 %v4853
  %7489 = vmatpush1.bf16.msra.mxu0 %v4852
  %7490 = vmatprep.subr.bf16.mxu0 %v4861
  %7491 = vmatpush1.bf16.msra.mxu0 %v4860
  %7492 = vmatprep.subr.bf16.mxu0 %v4869
  %7493 = vmatpush1.bf16.msra.mxu0 %v4868
  %7494 = vmatprep.subr.bf16.mxu0 %v4877
  %7495 = vmatpush1.bf16.msra.mxu0 %v4876
  %7496 = vmatprep.subr.bf16.mxu0 %v4885
  %7497 = vmatpush1.bf16.msra.mxu0 %v4884
  %7498 = vmatprep.subr.bf16.mxu0 %v4893
  %7499 = vmatpush1.bf16.msra.mxu0 %v4892
  %7500 = vmatprep.subr.bf16.mxu0 %v4901
  %7501 = vmatpush1.bf16.msra.mxu0 %v4900
  %7502 = vmatprep.subr.bf16.mxu0 %v4909
  %7503 = vmatpush1.bf16.msra.mxu0 %v4908
  %7504 = vmatprep.subr.bf16.mxu0 %v4917
  %7505 = vmatpush1.bf16.msra.mxu0 %v4916
  %7506 = vmatprep.mubr.bf16.mxu0 %v1178
  %7507 = vmatmul.mubr.bf16.gmra.mrb[0].mxu0 %v1164
  %v7508 = vpop.f32.mrb[0].mxu0
  %v7509 = vadd.f32 %v7468, %v7508
  %v7510 = vpop.f32.mrb[0].mxu0
  %v7511 = vadd.f32 %v7470, %v7510
  %v7512 = vpop.f32.mrb[0].mxu0
  %v7513 = vpop.f32.mrb[0].mxu0
  %7514 = vdwg.mxu0
  %7515 = vmatprep.subr.bf16.mxu0 %v4925
  %7516 = vmatpush1.bf16.msra.mxu0 %v4924
  %7517 = vmatprep.subr.bf16.mxu0 %v4933
  %7518 = vmatpush1.bf16.msra.mxu0 %v4932
  %7519 = vmatprep.subr.bf16.mxu0 %v4941
  %7520 = vmatpush1.bf16.msra.mxu0 %v4940
  %7521 = vmatprep.subr.bf16.mxu0 %v4949
  %7522 = vmatpush1.bf16.msra.mxu0 %v4948
  %7523 = vmatprep.subr.bf16.mxu0 %v4957
  %7524 = vmatpush1.bf16.msra.mxu0 %v4956
  %7525 = vmatprep.subr.bf16.mxu0 %v4965
  %7526 = vmatpush1.bf16.msra.mxu0 %v4964
  %7527 = vmatprep.subr.bf16.mxu0 %v4973
  %7528 = vmatpush1.bf16.msra.mxu0 %v4972
  %7529 = vmatprep.subr.bf16.mxu0 %v4981
  %7530 = vmatpush1.bf16.msra.mxu0 %v4980
  %7531 = vmatprep.subr.bf16.mxu0 %v4989
  %7532 = vmatpush1.bf16.msra.mxu0 %v4988
  %7533 = vmatprep.subr.bf16.mxu0 %v4997
  %7534 = vmatpush1.bf16.msra.mxu0 %v4996
  %7535 = vmatprep.subr.bf16.mxu0 %v5005
  %7536 = vmatpush1.bf16.msra.mxu0 %v5004
  %7537 = vmatprep.subr.bf16.mxu0 %v5013
  %7538 = vmatpush1.bf16.msra.mxu0 %v5012
  %7539 = vmatprep.subr.bf16.mxu0 %v5021
  %7540 = vmatpush1.bf16.msra.mxu0 %v5020
  %7541 = vmatprep.subr.bf16.mxu0 %v5029
  %7542 = vmatpush1.bf16.msra.mxu0 %v5028
  %7543 = vmatprep.subr.bf16.mxu0 %v5037
  %7544 = vmatpush1.bf16.msra.mxu0 %v5036
  %7545 = vmatprep.subr.bf16.mxu0 %v5045
  %7546 = vmatpush1.bf16.msra.mxu0 %v5044
  %7547 = vmatprep.mubr.bf16.mxu0 %v1188
  %7548 = vmatmul.mubr.bf16.gmra.mrb[0].mxu0 %v1186
  %v7549 = vpop.f32.mrb[0].mxu0
  %v7550 = vadd.f32 %v7509, %v7549
  %v7551 = vpop.f32.mrb[0].mxu0
  %v7552 = vadd.f32 %v7511, %v7551
  %v7553 = vpop.f32.mrb[0].mxu0
  %v7554 = vpop.f32.mrb[0].mxu0
  %7555 = vdwg.mxu0
  %7556 = vmatprep.subr.bf16.mxu0 %v5053
  %7557 = vmatpush1.bf16.msra.mxu0 %v5052
  %7558 = vmatprep.subr.bf16.mxu0 %v5061
  %7559 = vmatpush1.bf16.msra.mxu0 %v5060
  %7560 = vmatprep.subr.bf16.mxu0 %v5069
  %7561 = vmatpush1.bf16.msra.mxu0 %v5068
  %7562 = vmatprep.subr.bf16.mxu0 %v5077
  %7563 = vmatpush1.bf16.msra.mxu0 %v5076
  %7564 = vmatprep.subr.bf16.mxu0 %v5085
  %7565 = vmatpush1.bf16.msra.mxu0 %v5084
  %7566 = vmatprep.subr.bf16.mxu0 %v5093
  %7567 = vmatpush1.bf16.msra.mxu0 %v5092
  %7568 = vmatprep.subr.bf16.mxu0 %v5101
  %7569 = vmatpush1.bf16.msra.mxu0 %v5100
  %7570 = vmatprep.subr.bf16.mxu0 %v5109
  %7571 = vmatpush1.bf16.msra.mxu0 %v5108
  %7572 = vmatprep.subr.bf16.mxu0 %v5117
  %7573 = vmatpush1.bf16.msra.mxu0 %v5116
  %7574 = vmatprep.subr.bf16.mxu0 %v5125
  %7575 = vmatpush1.bf16.msra.mxu0 %v5124
  %7576 = vmatprep.subr.bf16.mxu0 %v5133
  %7577 = vmatpush1.bf16.msra.mxu0 %v5132
  %7578 = vmatprep.subr.bf16.mxu0 %v5141
  %7579 = vmatpush1.bf16.msra.mxu0 %v5140
  %7580 = vmatprep.subr.bf16.mxu0 %v5149
  %7581 = vmatpush1.bf16.msra.mxu0 %v5148
  %7582 = vmatprep.subr.bf16.mxu0 %v5157
  %7583 = vmatpush1.bf16.msra.mxu0 %v5156
  %7584 = vmatprep.subr.bf16.mxu0 %v5165
  %7585 = vmatpush1.bf16.msra.mxu0 %v5164
  %7586 = vmatprep.subr.bf16.mxu0 %v5173
  %7587 = vmatpush1.bf16.msra.mxu0 %v5172
  %7588 = vmatprep.mubr.bf16.mxu0 %v1185
  %7589 = vmatmul.mubr.bf16.gmra.mrb[0].mxu0 %v1171
  %v7590 = vpop.f32.mrb[0].mxu0
  %v7591 = vadd.f32 %v7550, %v7590
  %v7592 = vpop.f32.mrb[0].mxu0
  %v7593 = vadd.f32 %v7552, %v7592
  %v7594 = vpop.f32.mrb[0].mxu0
  %v7595 = vpop.f32.mrb[0].mxu0
  %7596 = vdwg.mxu0
  %7597 = vmatprep.subr.bf16.mxu0 %v5181
  %7598 = vmatpush1.bf16.msra.mxu0 %v5180
  %7599 = vmatprep.subr.bf16.mxu0 %v5189
  %7600 = vmatpush1.bf16.msra.mxu0 %v5188
  %7601 = vmatprep.subr.bf16.mxu0 %v5197
  %7602 = vmatpush1.bf16.msra.mxu0 %v5196
  %7603 = vmatprep.subr.bf16.mxu0 %v5205
  %7604 = vmatpush1.bf16.msra.mxu0 %v5204
  %7605 = vmatprep.subr.bf16.mxu0 %v5213
  %7606 = vmatpush1.bf16.msra.mxu0 %v5212
  %7607 = vmatprep.subr.bf16.mxu0 %v5221
  %7608 = vmatpush1.bf16.msra.mxu0 %v5220
  %7609 = vmatprep.subr.bf16.mxu0 %v5229
  %7610 = vmatpush1.bf16.msra.mxu0 %v5228
  %7611 = vmatprep.subr.bf16.mxu0 %v5237
  %7612 = vmatpush1.bf16.msra.mxu0 %v5236
  %7613 = vmatprep.subr.bf16.mxu0 %v5245
  %7614 = vmatpush1.bf16.msra.mxu0 %v5244
  %7615 = vmatprep.subr.bf16.mxu0 %v5253
  %7616 = vmatpush1.bf16.msra.mxu0 %v5252
  %7617 = vmatprep.subr.bf16.mxu0 %v5261
  %7618 = vmatpush1.bf16.msra.mxu0 %v5260
  %7619 = vmatprep.subr.bf16.mxu0 %v5269
  %7620 = vmatpush1.bf16.msra.mxu0 %v5268
  %7621 = vmatprep.subr.bf16.mxu0 %v5277
  %7622 = vmatpush1.bf16.msra.mxu0 %v5276
  %7623 = vmatprep.subr.bf16.mxu0 %v5285
  %7624 = vmatpush1.bf16.msra.mxu0 %v5284
  %7625 = vmatprep.subr.bf16.mxu0 %v5293
  %7626 = vmatpush1.bf16.msra.mxu0 %v5292
  %7627 = vmatprep.subr.bf16.mxu0 %v5301
  %7628 = vmatpush1.bf16.msra.mxu0 %v5300
  %7629 = vmatprep.mubr.bf16.mxu0 %v1189
  %7630 = vmatmul.mubr.bf16.gmra.mrb[0].mxu0 %v1187
  %v7631 = vpop.f32.mrb[0].mxu0
  %v7632 = vadd.f32 %v7591, %v7631
  %v7633 = vpop.f32.mrb[0].mxu0
  %v7634 = vadd.f32 %v7593, %v7633
  %v7635 = vpop.f32.mrb[0].mxu0
  %v7636 = vpop.f32.mrb[0].mxu0
  %7637 = vdwg.mxu0
  %v7638 = vld [vmem:[%s3] sm:$0xff]
  %v7640 = vlaneseq
  %v7641 = vshrl.u32 %v7640, 7
  %v7642 = vsub.s32 0, %v7641
  %v7643 = vrot.slane %v7638, %v7642
  %v7644 = vlaneseq
  %v7645 = vshrl.u32 %v7644, 7
  %v7646 = vsub.s32 1, %v7645
  %v7647 = vrot.slane %v7638, %v7646
  %v7648 = vlaneseq
  %v7649 = vshrl.u32 %v7648, 7
  %v7650 = vsub.s32 2, %v7649
  %v7651 = vrot.slane %v7638, %v7650
  %v7652 = vlaneseq
  %v7653 = vshrl.u32 %v7652, 7
  %v7654 = vsub.s32 3, %v7653
  %v7655 = vrot.slane %v7638, %v7654
  %v7656 = vlaneseq
  %v7657 = vshrl.u32 %v7656, 7
  %v7658 = vsub.s32 4, %v7657
  %v7659 = vrot.slane %v7638, %v7658
  %v7660 = vlaneseq
  %v7661 = vshrl.u32 %v7660, 7
  %v7662 = vsub.s32 5, %v7661
  %v7663 = vrot.slane %v7638, %v7662
  %v7664 = vlaneseq
  %v7665 = vshrl.u32 %v7664, 7
  %v7666 = vsub.s32 6, %v7665
  %v7667 = vrot.slane %v7638, %v7666
  %v7668 = vlaneseq
  %v7669 = vshrl.u32 %v7668, 7
  %v7670 = vsub.s32 7, %v7669
  %v7671 = vrot.slane %v7638, %v7670
  %v7680 = vmul.f32 %v6648, %v7643
  %v7681 = vmul.f32 %v6650, %v7647
  %v7682 = vmul.f32 %v6976, %v7651
  %v7683 = vmul.f32 %v6978, %v7655
  %v7684 = vmul.f32 %v7304, %v7659
  %v7685 = vmul.f32 %v7306, %v7663
  %v7686 = vmul.f32 %v7632, %v7667
  %v7687 = vmul.f32 %v7634, %v7671
  %vm7688 = vcmask 1041408
  %v7689 = vsel %vm7688, %v7680, 0.0
  %v7690 = vsel %vm7688, %v7681, 0.0
  %v7691 = vadd.f32 %v7689, %v7690
  %v7692 = vsel %vm7688, %v7682, 0.0
  %v7693 = vadd.f32 %v7691, %v7692
  %v7694 = vsel %vm7688, %v7683, 0.0
  %v7695 = vadd.f32 %v7693, %v7694
  %v7696 = vsel %vm7688, %v7684, 0.0
  %v7697 = vadd.f32 %v7695, %v7696
  %v7698 = vsel %vm7688, %v7685, 0.0
  %v7699 = vadd.f32 %v7697, %v7698
  %v7700 = vsel %vm7688, %v7686, 0.0
  %v7701 = vadd.f32 %v7699, %v7700
  %v7702 = vsel %vm7688, %v7687, 0.0
  %v7703 = vadd.f32 %v7701, %v7702
  %7704 = vadd.xlane.f32.xlu0 %v7703
  %v7705 = vpop.xlane.xlu0 %7704
  %v7706 = vld [vmem:[#allocation2] sm:$0x1]
  %v7708 = vlaneseq
  %v7709 = vshrl.u32 %v7708, 7
  %v7710 = vsub.s32 0, %v7709
  %v7711 = vrot.slane %v7706, %v7710
  %v7713 = vadd.f32 %v7705, %v7711
  %vm7714 = vcmask 1024
  %7715 = vst.msk [vmem:[%s5] sm:$0x3] %vm7714, %v7713
  // Predicated region
  $region22: #{dcnn_nariqa_forward.9} parent=0 // pred_check
    _
  $region23: #{dcnn_nariqa_forward.9} parent=0 // pred_check_branch
    %7717 = sbr.rel (0) target = $region25
  $region24: #{dcnn_nariqa_forward.9} parent=0 // pred_region
    _
  $region25: #{dcnn_nariqa_forward.9} parent=0 // pred_fallthru
    _
  // Predicated region
  $region26: #{dcnn_nariqa_forward.9} parent=0 // pred_check
    _
  $region27: #{dcnn_nariqa_forward.9} parent=0 // pred_check_branch
    %7719 = sbr.rel (0) target = $region29
  $region28: #{dcnn_nariqa_forward.9} parent=0 // pred_region
    _
  $region29: #{dcnn_nariqa_forward.9} parent=0 // pred_fallthru
    _

</llo_original>
